<compile_context>
chip_gen: v7x
topology: tpu7x:2x2x1
jax: 0.10.0
libtpu: 0.0.40
codegen_flags: <defaults>
</compile_context>

<pallas_src>
import functools
import numpy as np
import jax
import jax.numpy as jnp
from jax.experimental import pallas as pl
from jax.experimental.pallas import tpu as pltpu

EPS = 1e-5           # nn.BatchNorm2d default eps
NEG_BIG = -3.0e38    # "no ReLU" lower bound


# --------------------------------------------------------------------------
# host-side helpers
# --------------------------------------------------------------------------

def _interp_matrix(in_size, out_size):
    """PyTorch bilinear align_corners=False interpolation matrix (out, in)."""
    A = np.zeros((out_size, in_size), dtype=np.float32)
    scale = in_size / out_size
    for o in range(out_size):
        src = (o + 0.5) * scale - 0.5
        src = max(src, 0.0)
        i0 = min(int(np.floor(src)), in_size - 1)
        i1 = min(i0 + 1, in_size - 1)
        lam = src - i0
        A[o, i0] += 1.0 - lam
        A[o, i1] += lam
    return A


def _pick_row_tile(H, cap=32):
    for t in range(min(H, cap), 0, -1):
        if H % t == 0:
            return t
    return H


def _bn_scale_shift(stats, count, gamma, beta):
    """stats: (B, nT, 2, C) per-tile (sum, sum_sq) -> per-channel scale/shift."""
    s = jnp.sum(stats.astype(jnp.float32), axis=(0, 1))      # (2, C)
    mean = s[0] / count
    var = jnp.maximum(s[1] / count - mean * mean, 0.0)        # biased (train)
    inv = jax.lax.rsqrt(var + EPS)
    scale = gamma * inv
    shift = beta - mean * scale
    return scale, shift


# --------------------------------------------------------------------------
# kernels
# --------------------------------------------------------------------------

def _front_kernel(low_ref, xw_ref, wlow_ref, o_ref, stats_ref, *, scale_h):
    """Bilinear height upsample (VPU 2-tap blend) + low-level 1x1 conv (GEMM)
    + channel concat.  Emits per-tile BN partial sums for the low branch."""
    TH, W = o_ref.shape[1], o_ref.shape[2]
    Cl = low_ref.shape[3]
    h_in = xw_ref.shape[1]
    i = pl.program_id(1)
    r0 = i * TH

    # (a) height-direction bilinear upsample of the width-upsampled ASPP rows.
    rows = []
    for k in range(TH):
        r = (r0 + k).astype(jnp.float32)
        src = jnp.maximum((r + 0.5) * scale_h - 0.5, 0.0)
        i0 = src.astype(jnp.int32)                       # floor (src >= 0)
        lam = src - i0.astype(jnp.float32)
        i1 = jnp.minimum(i0 + 1, h_in - 1)
        row0 = xw_ref[0, i0].astype(jnp.float32)         # (W, Ca)
        row1 = xw_ref[0, i1].astype(jnp.float32)
        rows.append((1.0 - lam) * row0 + lam * row1)
    up_tile = jnp.stack(rows, axis=0)                    # (TH, W, Ca) f32

    # (b) low-level 1x1 conv as a GEMM (bf16 operands, f32 accumulation).
    z = jnp.dot(low_ref[0].reshape(TH * W, Cl), wlow_ref[...],
                preferred_element_type=jnp.float32)      # (TH*W, 48) f32

    cat_tile = jnp.concatenate(
        [up_tile, z.reshape(TH, W, z.shape[-1])], axis=-1)
    o_ref[0] = cat_tile.astype(o_ref.dtype)
    stats_ref[0, 0] = jnp.concatenate(
        [jnp.sum(z, axis=0, keepdims=True),
         jnp.sum(z * z, axis=0, keepdims=True)], axis=0)


def _conv3x3_bn_kernel(x_ref, w_ref, scale_ref, shift_ref, lower_ref,
                       o_ref, stats_ref):
    """Prologue: per-channel affine (previous BN) + bounded ReLU.
    Body: 3x3 conv (padding=1) via 9 shifted views of an in-VMEM halo strip.
    Epilogue: pre-BN output + per-tile (sum, sum_sq) BN partials."""
    TH, W, Cout = o_ref.shape[1], o_ref.shape[2], o_ref.shape[3]
    H, Cin = x_ref.shape[1], x_ref.shape[3]
    i = pl.program_id(1)
    nT = pl.num_programs(1)
    r0 = i * TH

    scale = scale_ref[0]
    shift = shift_ref[0]
    lower = lower_ref[0]

    def prep(v):                         # BN apply + selective ReLU, f32
        y = v.astype(jnp.float32) * scale + shift
        return jnp.maximum(y, lower)

    body = prep(x_ref[0, pl.ds(r0, TH), :, :])                      # (TH, W, Cin)
    top = prep(x_ref[0, pl.ds(jnp.maximum(r0 - 1, 0), 1), :, :])    # (1, W, Cin)
    top = jnp.where(i > 0, top, jnp.zeros_like(top))
    bot = prep(x_ref[0, pl.ds(jnp.minimum(r0 + TH, H - 1), 1), :, :])
    bot = jnp.where(i < nT - 1, bot, jnp.zeros_like(bot))

    strip = jnp.concatenate([top, body, bot], axis=0)               # (TH+2, W, Cin)
    zcol = jnp.zeros((TH + 2, 1, Cin), jnp.float32)
    strip = jnp.concatenate([zcol, strip, zcol], axis=1)            # (TH+2, W+2, Cin)

    acc = jnp.zeros((TH * W, Cout), jnp.float32)
    for dx in range(3):
        cols = strip[:, dx:dx + W, :].reshape((TH + 2) * W, Cin)
        for dy in range(3):
            tap = cols[dy * W:dy * W + TH * W, :]
            acc = acc + jnp.dot(tap.astype(jnp.bfloat16),
                                w_ref[dy * 3 + dx],
                                preferred_element_type=jnp.float32)

    o_ref[0] = acc.reshape(TH, W, Cout).astype(o_ref.dtype)
    stats_ref[0, 0] = jnp.concatenate(
        [jnp.sum(acc, axis=0, keepdims=True),
         jnp.sum(acc * acc, axis=0, keepdims=True)], axis=0)


def _cls_kernel(x_ref, w_ref, b_ref, scale_ref, shift_ref, o_ref):
    """Apply dec2's BN + ReLU, then the final 1x1 conv (lane-padded Cout)."""
    TH, W = o_ref.shape[1], o_ref.shape[2]
    C = x_ref.shape[3]
    Np = o_ref.shape[3]
    v = x_ref[0].astype(jnp.float32) * scale_ref[0] + shift_ref[0]
    v = jnp.maximum(v, 0.0)
    y = jnp.dot(v.reshape(TH * W, C).astype(jnp.bfloat16), w_ref[...],
                preferred_element_type=jnp.float32)
    o_ref[0] = (y + b_ref[0]).reshape(TH, W, Np)


# --------------------------------------------------------------------------
# parameters
# --------------------------------------------------------------------------

def init_params(key, low_level_channels, num_classes, aspp_out_channels=128):
    ks = jax.random.split(key, 11)
    f32, bf16 = jnp.float32, jnp.bfloat16

    def winit(k, shape, fan_in):
        return jax.random.normal(k, shape, f32) / np.sqrt(fan_in)

    ccat = aspp_out_channels + 48
    npad = ((num_classes + 127) // 128) * 128

    p = {"num_classes": int(num_classes)}
    # low_level_conv: 1x1, Cl -> 48, no bias   (weights stored (Cl, 48))
    p["low_w"] = winit(ks[0], (low_level_channels, 48), low_level_channels).astype(bf16)
    p["low_gamma"] = 1.0 + 0.1 * jax.random.normal(ks[1], (48,), f32)
    p["low_beta"] = 0.1 * jax.random.normal(ks[2], (48,), f32)
    # decoder_conv[0]: 3x3, ccat -> 128   (weights stored (9, Cin, Cout), t = dy*3+dx)
    p["dec1_w"] = winit(ks[3], (9, ccat, 128), 9 * ccat).astype(bf16)
    p["dec1_gamma"] = 1.0 + 0.1 * jax.random.normal(ks[4], (128,), f32)
    p["dec1_beta"] = 0.1 * jax.random.normal(ks[5], (128,), f32)
    # decoder_conv[3]: 3x3, 128 -> 128
    p["dec2_w"] = winit(ks[6], (9, 128, 128), 9 * 128).astype(bf16)
    p["dec2_gamma"] = 1.0 + 0.1 * jax.random.normal(ks[7], (128,), f32)
    p["dec2_beta"] = 0.1 * jax.random.normal(ks[8], (128,), f32)
    # decoder_conv[6]: 1x1, 128 -> num_classes (with bias); lane-padded to npad
    w_cls = winit(ks[9], (128, num_classes), 128)
    b_cls = 0.1 * jax.random.normal(ks[10], (num_classes,), f32)
    p["cls_w"] = jnp.zeros((128, npad), f32).at[:, :num_classes].set(w_cls).astype(bf16)
    p["cls_b"] = jnp.zeros((1, npad), f32).at[0, :num_classes].set(b_cls)
    return p


# --------------------------------------------------------------------------
# forward pass
# --------------------------------------------------------------------------

def deeplab_decoder_forward(params, x_nchw, low_nchw, row_tile=None):
    f32, bf16 = jnp.float32, jnp.bfloat16
    x = jnp.transpose(x_nchw, (0, 2, 3, 1)).astype(f32)      # (B, h, w, Ca)
    low = jnp.transpose(low_nchw, (0, 2, 3, 1)).astype(f32)  # (B, H, W, Cl)
    B, H, W, Cl = low.shape
    _, h, w, Ca = x.shape
    Ccat = Ca + 48
    num_classes = params["num_classes"]
    Np = params["cls_w"].shape[-1]

    TH = row_tile if row_tile is not None else _pick_row_tile(H)
    assert H % TH == 0, (H, TH)
    nT = H // TH
    count = B * H * W

    # NOTE: sweep per generation; 32 MiB is safe on v5e/v6e/v7x.
    cp = pltpu.CompilerParams(
        dimension_semantics=("parallel", "parallel"),
        vmem_limit_bytes=32 * 1024 * 1024,
    )

    # Width-direction bilinear pass on the small ASPP tensor (plain-JAX glue).
    Aw = jnp.asarray(_interp_matrix(w, W))                    # (W, w)
    xw = jnp.einsum("bhwc,Ww->bhWc", x, Aw).astype(bf16)      # (B, h, W, Ca)

    # ---- stage 1: height upsample + low-level 1x1 conv + concat ------------
    cat, st_low = pl.pallas_call(
        functools.partial(_front_kernel, scale_h=float(h) / float(H)),
        grid=(B, nT),
        in_specs=[
            pl.BlockSpec((1, TH, W, Cl), lambda b, i: (b, i, 0, 0)),
            pl.BlockSpec((1, h, W, Ca), lambda b, i: (b, 0, 0, 0)),
            pl.BlockSpec((Cl, 48), lambda b, i: (0, 0)),
        ],
        out_specs=(
            pl.BlockSpec((1, TH, W, Ccat), lambda b, i: (b, i, 0, 0)),
            pl.BlockSpec((1, 1, 2, 48), lambda b, i: (b, i, 0, 0)),
        ),
        out_shape=(
            jax.ShapeDtypeStruct((B, H, W, Ccat), bf16),
            jax.ShapeDtypeStruct((B, nT, 2, 48), f32),
        ),
        compiler_params=cp,
    )(low.astype(bf16), xw, params["low_w"])

    sc48, sh48 = _bn_scale_shift(st_low, count,
                                 params["low_gamma"], params["low_beta"])
    scale_cat = jnp.concatenate([jnp.ones((Ca,), f32), sc48]).reshape(1, Ccat)
    shift_cat = jnp.concatenate([jnp.zeros((Ca,), f32), sh48]).reshape(1, Ccat)
    lower_cat = jnp.concatenate([jnp.full((Ca,), NEG_BIG, f32),
                                 jnp.zeros((48,), f32)]).reshape(1, Ccat)

    # ---- stages 2/3: 3x3 convs with halo-in-VMEM + fused BN-apply prologue --
    def conv3x3(x_in, wts, scale, shift, lower, Cin, Cout):
        return pl.pallas_call(
            _conv3x3_bn_kernel,
            grid=(B, nT),
            in_specs=[
                pl.BlockSpec((1, H, W, Cin), lambda b, i: (b, 0, 0, 0)),  # resident image
                pl.BlockSpec((9, Cin, Cout), lambda b, i: (0, 0, 0)),
                pl.BlockSpec((1, Cin), lambda b, i: (0, 0)),
                pl.BlockSpec((1, Cin), lambda b, i: (0, 0)),
                pl.BlockSpec((1, Cin), lambda b, i: (0, 0)),
            ],
            out_specs=(
                pl.BlockSpec((1, TH, W, Cout), lambda b, i: (b, i, 0, 0)),
                pl.BlockSpec((1, 1, 2, Cout), lambda b, i: (b, i, 0, 0)),
            ),
            out_shape=(
                jax.ShapeDtypeStruct((B, H, W, Cout), bf16),
                jax.ShapeDtypeStruct((B, nT, 2, Cout), f32),
            ),
            compiler_params=cp,
        )(x_in, wts, scale, shift, lower)

    d1, st1 = conv3x3(cat, params["dec1_w"], scale_cat, shift_cat, lower_cat,
                      Ccat, 128)
    sc1, sh1 = _bn_scale_shift(st1, count,
                               params["dec1_gamma"], params["dec1_beta"])
    d2, st2 = conv3x3(d1, params["dec2_w"], sc1.reshape(1, -1),
                      sh1.reshape(1, -1), jnp.zeros((1, 128), f32), 128, 128)
    sc2, sh2 = _bn_scale_shift(st2, count,
                               params["dec2_gamma"], params["dec2_beta"])

    # ---- stage 4: BN + ReLU + 1x1 classifier (lane-padded output) ----------
    out_p = pl.pallas_call(
        _cls_kernel,
        grid=(B, nT),
        in_specs=[
            pl.BlockSpec((1, TH, W, 128), lambda b, i: (b, i, 0, 0)),
            pl.BlockSpec((128, Np), lambda b, i: (0, 0)),
            pl.BlockSpec((1, Np), lambda b, i: (0, 0)),
            pl.BlockSpec((1, 128), lambda b, i: (0, 0)),
            pl.BlockSpec((1, 128), lambda b, i: (0, 0)),
        ],
        out_specs=pl.BlockSpec((1, TH, W, Np), lambda b, i: (b, i, 0, 0)),
        out_shape=jax.ShapeDtypeStruct((B, H, W, Np), f32),
        compiler_params=cp,
    )(d2, params["cls_w"], params["cls_b"],
      sc2.reshape(1, -1), sh2.reshape(1, -1))

    out = out_p[..., :num_classes]
    return jnp.transpose(out, (0, 3, 1, 2))                  # NCHW


# --------------------------------------------------------------------------
# pure-JAX reference (for a loose numerical sanity check)
# --------------------------------------------------------------------------

def _reference_forward(params, x_nchw, low_nchw):
    f32 = jnp.float32
    x = jnp.transpose(x_nchw, (0, 2, 3, 1)).astype(f32)
    low = jnp.transpose(low_nchw, (0, 2, 3, 1)).astype(f32)
    B, H, W, _ = low.shape
    _, h, w, _ = x.shape
    Aw = jnp.asarray(_interp_matrix(w, W))
    Ah = jnp.asarray(_interp_matrix(h, H))
    xu = jnp.einsum("bhwc,Ww->bhWc", x, Aw)
    xu = jnp.einsum("bhWc,Hh->bHWc", xu, Ah)

    def bn_relu(v, gamma, beta):
        mu = jnp.mean(v, axis=(0, 1, 2))
        var = jnp.mean((v - mu) ** 2, axis=(0, 1, 2))
        y = (v - mu) * jax.lax.rsqrt(var + EPS) * gamma + beta
        return jnp.maximum(y, 0.0)

    z = jnp.einsum("bhwc,cd->bhwd", low, params["low_w"].astype(f32))
    z = bn_relu(z, params["low_gamma"], params["low_beta"])
    cat = jnp.concatenate([xu, z], axis=-1)

    def conv3(v, wts):
        k = wts.astype(f32).reshape(3, 3, wts.shape[1], wts.shape[2])
        return jax.lax.conv_general_dilated(
            v, k, window_strides=(1, 1), padding="SAME",
            dimension_numbers=("NHWC", "HWIO", "NHWC"))

    y = bn_relu(conv3(cat, params["dec1_w"]),
                params["dec1_gamma"], params["dec1_beta"])
    y = bn_relu(conv3(y, params["dec2_w"]),
                params["dec2_gamma"], params["dec2_beta"])
    ncls = params["num_classes"]
    out = jnp.einsum("bhwc,cd->bhwd", y,
                     params["cls_w"].astype(f32)[:, :ncls]) + params["cls_b"][0, :ncls]
    return jnp.transpose(out, (0, 3, 1, 2))


# --------------------------------------------------------------------------
# main
# --------------------------------------------------------------------------

if __name__ == "__main__":
    key = jax.random.PRNGKey(0)
    k_x, k_low, k_par = jax.random.split(key, 3)

    B = 2
    low_level_channels = 4
    num_classes = 3
    aspp_out_channels = 32
    H = W = 16        # low-level feature spatial size
    h = w = 8         # ASPP feature spatial size (decoder upsamples 2x)

    x = jax.random.normal(k_x, (B, aspp_out_channels, h, w), jnp.float32)
    low_level_feat = jax.random.normal(
        k_low, (B, low_level_channels, H, W), jnp.float32)
    params = init_params(k_par, low_level_channels, num_classes,
                         aspp_out_channels)

    fwd = jax.jit(functools.partial(deeplab_decoder_forward, params,
                                    row_tile=8))
    out = fwd(x, low_level_feat)
    jax.block_until_ready(out)

    assert out.shape == (B, num_classes, H, W), out.shape
    assert bool(jnp.all(jnp.isfinite(out)))

    ref = _reference_forward(params, x, low_level_feat)
    err = float(jnp.max(jnp.abs(out - ref)))
    assert err < 0.2, f"max abs error vs reference: {err}"

    print("KERNEL_OK")
</pallas_src>

<mosaic_0001>
module attributes {stable_mosaic.version = 11 : i64} {
  func.func @_front_kernel(%arg0: i32, %arg1: i32, %arg2: memref<1x8x16x4xbf16, #tpu.memory_space<vmem>>, %arg3: memref<1x8x16x32xbf16, #tpu.memory_space<vmem>>, %arg4: memref<4x48xbf16, #tpu.memory_space<vmem>>, %arg5: memref<1x8x16x80xbf16, #tpu.memory_space<vmem>>, %arg6: memref<1x1x2x48xf32, #tpu.memory_space<vmem>>) attributes {dimension_semantics = [#tpu.dimension_semantics<parallel>, #tpu.dimension_semantics<parallel>], iteration_bounds = array<i64: 2, 2>, scalar_prefetch = 0 : i64, scratch_operands = 0 : i64, tpu.core_type = #tpu.core_type<tc>, window_params = [{transform_indices = @transform_0, window_bounds = array<i64: 1, 8, 16, 4>}, {transform_indices = @transform_1, window_bounds = array<i64: 1, 8, 16, 32>}, {pipeline_mode = #tpu.pipeline_mode<synchronous>, transform_indices = @transform_2, window_bounds = array<i64: 4, 48>}, {transform_indices = @transform_3, window_bounds = array<i64: 1, 8, 16, 80>}, {transform_indices = @transform_4, window_bounds = array<i64: 1, 1, 2, 48>}]} {
    %c8_i32 = arith.constant 8 : i32
    %0 = arith.muli %arg1, %c8_i32 : i32
    %c0_i32 = arith.constant 0 : i32
    %1 = arith.addi %0, %c0_i32 : i32
    %2 = arith.sitofp %1 : i32 to f32
    %cst = arith.constant 5.000000e-01 : f32
    %3 = arith.addf %2, %cst : f32
    %cst_0 = arith.constant 5.000000e-01 : f32
    %4 = arith.mulf %3, %cst_0 : f32
    %cst_1 = arith.constant 5.000000e-01 : f32
    %5 = arith.subf %4, %cst_1 : f32
    %cst_2 = arith.constant 0.000000e+00 : f32
    %6 = arith.maximumf %5, %cst_2 : f32
    %7 = arith.fptosi %6 : f32 to i32
    %8 = arith.sitofp %7 : i32 to f32
    %9 = arith.subf %6, %8 : f32
    %c1_i32 = arith.constant 1 : i32
    %10 = arith.addi %7, %c1_i32 : i32
    %c7_i32 = arith.constant 7 : i32
    %11 = arith.minsi %10, %c7_i32 : i32
    %c0 = arith.constant 0 : index
    %12 = arith.index_cast %7 : i32 to index
    %c0_3 = arith.constant 0 : index
    %c0_4 = arith.constant 0 : index
    %13 = vector.load %arg3[%c0, %12, %c0_3, %c0_4] : memref<1x8x16x32xbf16, #tpu.memory_space<vmem>>, vector<1x1x16x32xbf16>
    %14 = vector.shape_cast %13 : vector<1x1x16x32xbf16> to vector<16x32xbf16>
    %15 = arith.extf %14 : vector<16x32xbf16> to vector<16x32xf32>
    %c0_5 = arith.constant 0 : index
    %16 = arith.index_cast %11 : i32 to index
    %c0_6 = arith.constant 0 : index
    %c0_7 = arith.constant 0 : index
    %17 = vector.load %arg3[%c0_5, %16, %c0_6, %c0_7] : memref<1x8x16x32xbf16, #tpu.memory_space<vmem>>, vector<1x1x16x32xbf16>
    %18 = vector.shape_cast %17 : vector<1x1x16x32xbf16> to vector<16x32xbf16>
    %19 = arith.extf %18 : vector<16x32xbf16> to vector<16x32xf32>
    %cst_8 = arith.constant 1.000000e+00 : f32
    %20 = arith.subf %cst_8, %9 : f32
    %21 = vector.broadcast %20 : f32 to vector<16x32xf32>
    %22 = arith.mulf %21, %15 : vector<16x32xf32>
    %23 = vector.broadcast %9 : f32 to vector<16x32xf32>
    %24 = arith.mulf %23, %19 : vector<16x32xf32>
    %25 = arith.addf %22, %24 : vector<16x32xf32>
    %c1_i32_9 = arith.constant 1 : i32
    %26 = arith.addi %0, %c1_i32_9 : i32
    %27 = arith.sitofp %26 : i32 to f32
    %cst_10 = arith.constant 5.000000e-01 : f32
    %28 = arith.addf %27, %cst_10 : f32
    %cst_11 = arith.constant 5.000000e-01 : f32
    %29 = arith.mulf %28, %cst_11 : f32
    %cst_12 = arith.constant 5.000000e-01 : f32
    %30 = arith.subf %29, %cst_12 : f32
    %cst_13 = arith.constant 0.000000e+00 : f32
    %31 = arith.maximumf %30, %cst_13 : f32
    %32 = arith.fptosi %31 : f32 to i32
    %33 = arith.sitofp %32 : i32 to f32
    %34 = arith.subf %31, %33 : f32
    %c1_i32_14 = arith.constant 1 : i32
    %35 = arith.addi %32, %c1_i32_14 : i32
    %c7_i32_15 = arith.constant 7 : i32
    %36 = arith.minsi %35, %c7_i32_15 : i32
    %c0_16 = arith.constant 0 : index
    %37 = arith.index_cast %32 : i32 to index
    %c0_17 = arith.constant 0 : index
    %c0_18 = arith.constant 0 : index
    %38 = vector.load %arg3[%c0_16, %37, %c0_17, %c0_18] : memref<1x8x16x32xbf16, #tpu.memory_space<vmem>>, vector<1x1x16x32xbf16>
    %39 = vector.shape_cast %38 : vector<1x1x16x32xbf16> to vector<16x32xbf16>
    %40 = arith.extf %39 : vector<16x32xbf16> to vector<16x32xf32>
    %c0_19 = arith.constant 0 : index
    %41 = arith.index_cast %36 : i32 to index
    %c0_20 = arith.constant 0 : index
    %c0_21 = arith.constant 0 : index
    %42 = vector.load %arg3[%c0_19, %41, %c0_20, %c0_21] : memref<1x8x16x32xbf16, #tpu.memory_space<vmem>>, vector<1x1x16x32xbf16>
    %43 = vector.shape_cast %42 : vector<1x1x16x32xbf16> to vector<16x32xbf16>
    %44 = arith.extf %43 : vector<16x32xbf16> to vector<16x32xf32>
    %cst_22 = arith.constant 1.000000e+00 : f32
    %45 = arith.subf %cst_22, %34 : f32
    %46 = vector.broadcast %45 : f32 to vector<16x32xf32>
    %47 = arith.mulf %46, %40 : vector<16x32xf32>
    %48 = vector.broadcast %34 : f32 to vector<16x32xf32>
    %49 = arith.mulf %48, %44 : vector<16x32xf32>
    %50 = arith.addf %47, %49 : vector<16x32xf32>
    %c2_i32 = arith.constant 2 : i32
    %51 = arith.addi %0, %c2_i32 : i32
    %52 = arith.sitofp %51 : i32 to f32
    %cst_23 = arith.constant 5.000000e-01 : f32
    %53 = arith.addf %52, %cst_23 : f32
    %cst_24 = arith.constant 5.000000e-01 : f32
    %54 = arith.mulf %53, %cst_24 : f32
    %cst_25 = arith.constant 5.000000e-01 : f32
    %55 = arith.subf %54, %cst_25 : f32
    %cst_26 = arith.constant 0.000000e+00 : f32
    %56 = arith.maximumf %55, %cst_26 : f32
    %57 = arith.fptosi %56 : f32 to i32
    %58 = arith.sitofp %57 : i32 to f32
    %59 = arith.subf %56, %58 : f32
    %c1_i32_27 = arith.constant 1 : i32
    %60 = arith.addi %57, %c1_i32_27 : i32
    %c7_i32_28 = arith.constant 7 : i32
    %61 = arith.minsi %60, %c7_i32_28 : i32
    %c0_29 = arith.constant 0 : index
    %62 = arith.index_cast %57 : i32 to index
    %c0_30 = arith.constant 0 : index
    %c0_31 = arith.constant 0 : index
    %63 = vector.load %arg3[%c0_29, %62, %c0_30, %c0_31] : memref<1x8x16x32xbf16, #tpu.memory_space<vmem>>, vector<1x1x16x32xbf16>
    %64 = vector.shape_cast %63 : vector<1x1x16x32xbf16> to vector<16x32xbf16>
    %65 = arith.extf %64 : vector<16x32xbf16> to vector<16x32xf32>
    %c0_32 = arith.constant 0 : index
    %66 = arith.index_cast %61 : i32 to index
    %c0_33 = arith.constant 0 : index
    %c0_34 = arith.constant 0 : index
    %67 = vector.load %arg3[%c0_32, %66, %c0_33, %c0_34] : memref<1x8x16x32xbf16, #tpu.memory_space<vmem>>, vector<1x1x16x32xbf16>
    %68 = vector.shape_cast %67 : vector<1x1x16x32xbf16> to vector<16x32xbf16>
    %69 = arith.extf %68 : vector<16x32xbf16> to vector<16x32xf32>
    %cst_35 = arith.constant 1.000000e+00 : f32
    %70 = arith.subf %cst_35, %59 : f32
    %71 = vector.broadcast %70 : f32 to vector<16x32xf32>
    %72 = arith.mulf %71, %65 : vector<16x32xf32>
    %73 = vector.broadcast %59 : f32 to vector<16x32xf32>
    %74 = arith.mulf %73, %69 : vector<16x32xf32>
    %75 = arith.addf %72, %74 : vector<16x32xf32>
    %c3_i32 = arith.constant 3 : i32
    %76 = arith.addi %0, %c3_i32 : i32
    %77 = arith.sitofp %76 : i32 to f32
    %cst_36 = arith.constant 5.000000e-01 : f32
    %78 = arith.addf %77, %cst_36 : f32
    %cst_37 = arith.constant 5.000000e-01 : f32
    %79 = arith.mulf %78, %cst_37 : f32
    %cst_38 = arith.constant 5.000000e-01 : f32
    %80 = arith.subf %79, %cst_38 : f32
    %cst_39 = arith.constant 0.000000e+00 : f32
    %81 = arith.maximumf %80, %cst_39 : f32
    %82 = arith.fptosi %81 : f32 to i32
    %83 = arith.sitofp %82 : i32 to f32
    %84 = arith.subf %81, %83 : f32
    %c1_i32_40 = arith.constant 1 : i32
    %85 = arith.addi %82, %c1_i32_40 : i32
    %c7_i32_41 = arith.constant 7 : i32
    %86 = arith.minsi %85, %c7_i32_41 : i32
    %c0_42 = arith.constant 0 : index
    %87 = arith.index_cast %82 : i32 to index
    %c0_43 = arith.constant 0 : index
    %c0_44 = arith.constant 0 : index
    %88 = vector.load %arg3[%c0_42, %87, %c0_43, %c0_44] : memref<1x8x16x32xbf16, #tpu.memory_space<vmem>>, vector<1x1x16x32xbf16>
    %89 = vector.shape_cast %88 : vector<1x1x16x32xbf16> to vector<16x32xbf16>
    %90 = arith.extf %89 : vector<16x32xbf16> to vector<16x32xf32>
    %c0_45 = arith.constant 0 : index
    %91 = arith.index_cast %86 : i32 to index
    %c0_46 = arith.constant 0 : index
    %c0_47 = arith.constant 0 : index
    %92 = vector.load %arg3[%c0_45, %91, %c0_46, %c0_47] : memref<1x8x16x32xbf16, #tpu.memory_space<vmem>>, vector<1x1x16x32xbf16>
    %93 = vector.shape_cast %92 : vector<1x1x16x32xbf16> to vector<16x32xbf16>
    %94 = arith.extf %93 : vector<16x32xbf16> to vector<16x32xf32>
    %cst_48 = arith.constant 1.000000e+00 : f32
    %95 = arith.subf %cst_48, %84 : f32
    %96 = vector.broadcast %95 : f32 to vector<16x32xf32>
    %97 = arith.mulf %96, %90 : vector<16x32xf32>
    %98 = vector.broadcast %84 : f32 to vector<16x32xf32>
    %99 = arith.mulf %98, %94 : vector<16x32xf32>
    %100 = arith.addf %97, %99 : vector<16x32xf32>
    %c4_i32 = arith.constant 4 : i32
    %101 = arith.addi %0, %c4_i32 : i32
    %102 = arith.sitofp %101 : i32 to f32
    %cst_49 = arith.constant 5.000000e-01 : f32
    %103 = arith.addf %102, %cst_49 : f32
    %cst_50 = arith.constant 5.000000e-01 : f32
    %104 = arith.mulf %103, %cst_50 : f32
    %cst_51 = arith.constant 5.000000e-01 : f32
    %105 = arith.subf %104, %cst_51 : f32
    %cst_52 = arith.constant 0.000000e+00 : f32
    %106 = arith.maximumf %105, %cst_52 : f32
    %107 = arith.fptosi %106 : f32 to i32
    %108 = arith.sitofp %107 : i32 to f32
    %109 = arith.subf %106, %108 : f32
    %c1_i32_53 = arith.constant 1 : i32
    %110 = arith.addi %107, %c1_i32_53 : i32
    %c7_i32_54 = arith.constant 7 : i32
    %111 = arith.minsi %110, %c7_i32_54 : i32
    %c0_55 = arith.constant 0 : index
    %112 = arith.index_cast %107 : i32 to index
    %c0_56 = arith.constant 0 : index
    %c0_57 = arith.constant 0 : index
    %113 = vector.load %arg3[%c0_55, %112, %c0_56, %c0_57] : memref<1x8x16x32xbf16, #tpu.memory_space<vmem>>, vector<1x1x16x32xbf16>
    %114 = vector.shape_cast %113 : vector<1x1x16x32xbf16> to vector<16x32xbf16>
    %115 = arith.extf %114 : vector<16x32xbf16> to vector<16x32xf32>
    %c0_58 = arith.constant 0 : index
    %116 = arith.index_cast %111 : i32 to index
    %c0_59 = arith.constant 0 : index
    %c0_60 = arith.constant 0 : index
    %117 = vector.load %arg3[%c0_58, %116, %c0_59, %c0_60] : memref<1x8x16x32xbf16, #tpu.memory_space<vmem>>, vector<1x1x16x32xbf16>
    %118 = vector.shape_cast %117 : vector<1x1x16x32xbf16> to vector<16x32xbf16>
    %119 = arith.extf %118 : vector<16x32xbf16> to vector<16x32xf32>
    %cst_61 = arith.constant 1.000000e+00 : f32
    %120 = arith.subf %cst_61, %109 : f32
    %121 = vector.broadcast %120 : f32 to vector<16x32xf32>
    %122 = arith.mulf %121, %115 : vector<16x32xf32>
    %123 = vector.broadcast %109 : f32 to vector<16x32xf32>
    %124 = arith.mulf %123, %119 : vector<16x32xf32>
    %125 = arith.addf %122, %124 : vector<16x32xf32>
    %c5_i32 = arith.constant 5 : i32
    %126 = arith.addi %0, %c5_i32 : i32
    %127 = arith.sitofp %126 : i32 to f32
    %cst_62 = arith.constant 5.000000e-01 : f32
    %128 = arith.addf %127, %cst_62 : f32
    %cst_63 = arith.constant 5.000000e-01 : f32
    %129 = arith.mulf %128, %cst_63 : f32
    %cst_64 = arith.constant 5.000000e-01 : f32
    %130 = arith.subf %129, %cst_64 : f32
    %cst_65 = arith.constant 0.000000e+00 : f32
    %131 = arith.maximumf %130, %cst_65 : f32
    %132 = arith.fptosi %131 : f32 to i32
    %133 = arith.sitofp %132 : i32 to f32
    %134 = arith.subf %131, %133 : f32
    %c1_i32_66 = arith.constant 1 : i32
    %135 = arith.addi %132, %c1_i32_66 : i32
    %c7_i32_67 = arith.constant 7 : i32
    %136 = arith.minsi %135, %c7_i32_67 : i32
    %c0_68 = arith.constant 0 : index
    %137 = arith.index_cast %132 : i32 to index
    %c0_69 = arith.constant 0 : index
    %c0_70 = arith.constant 0 : index
    %138 = vector.load %arg3[%c0_68, %137, %c0_69, %c0_70] : memref<1x8x16x32xbf16, #tpu.memory_space<vmem>>, vector<1x1x16x32xbf16>
    %139 = vector.shape_cast %138 : vector<1x1x16x32xbf16> to vector<16x32xbf16>
    %140 = arith.extf %139 : vector<16x32xbf16> to vector<16x32xf32>
    %c0_71 = arith.constant 0 : index
    %141 = arith.index_cast %136 : i32 to index
    %c0_72 = arith.constant 0 : index
    %c0_73 = arith.constant 0 : index
    %142 = vector.load %arg3[%c0_71, %141, %c0_72, %c0_73] : memref<1x8x16x32xbf16, #tpu.memory_space<vmem>>, vector<1x1x16x32xbf16>
    %143 = vector.shape_cast %142 : vector<1x1x16x32xbf16> to vector<16x32xbf16>
    %144 = arith.extf %143 : vector<16x32xbf16> to vector<16x32xf32>
    %cst_74 = arith.constant 1.000000e+00 : f32
    %145 = arith.subf %cst_74, %134 : f32
    %146 = vector.broadcast %145 : f32 to vector<16x32xf32>
    %147 = arith.mulf %146, %140 : vector<16x32xf32>
    %148 = vector.broadcast %134 : f32 to vector<16x32xf32>
    %149 = arith.mulf %148, %144 : vector<16x32xf32>
    %150 = arith.addf %147, %149 : vector<16x32xf32>
    %c6_i32 = arith.constant 6 : i32
    %151 = arith.addi %0, %c6_i32 : i32
    %152 = arith.sitofp %151 : i32 to f32
    %cst_75 = arith.constant 5.000000e-01 : f32
    %153 = arith.addf %152, %cst_75 : f32
    %cst_76 = arith.constant 5.000000e-01 : f32
    %154 = arith.mulf %153, %cst_76 : f32
    %cst_77 = arith.constant 5.000000e-01 : f32
    %155 = arith.subf %154, %cst_77 : f32
    %cst_78 = arith.constant 0.000000e+00 : f32
    %156 = arith.maximumf %155, %cst_78 : f32
    %157 = arith.fptosi %156 : f32 to i32
    %158 = arith.sitofp %157 : i32 to f32
    %159 = arith.subf %156, %158 : f32
    %c1_i32_79 = arith.constant 1 : i32
    %160 = arith.addi %157, %c1_i32_79 : i32
    %c7_i32_80 = arith.constant 7 : i32
    %161 = arith.minsi %160, %c7_i32_80 : i32
    %c0_81 = arith.constant 0 : index
    %162 = arith.index_cast %157 : i32 to index
    %c0_82 = arith.constant 0 : index
    %c0_83 = arith.constant 0 : index
    %163 = vector.load %arg3[%c0_81, %162, %c0_82, %c0_83] : memref<1x8x16x32xbf16, #tpu.memory_space<vmem>>, vector<1x1x16x32xbf16>
    %164 = vector.shape_cast %163 : vector<1x1x16x32xbf16> to vector<16x32xbf16>
    %165 = arith.extf %164 : vector<16x32xbf16> to vector<16x32xf32>
    %c0_84 = arith.constant 0 : index
    %166 = arith.index_cast %161 : i32 to index
    %c0_85 = arith.constant 0 : index
    %c0_86 = arith.constant 0 : index
    %167 = vector.load %arg3[%c0_84, %166, %c0_85, %c0_86] : memref<1x8x16x32xbf16, #tpu.memory_space<vmem>>, vector<1x1x16x32xbf16>
    %168 = vector.shape_cast %167 : vector<1x1x16x32xbf16> to vector<16x32xbf16>
    %169 = arith.extf %168 : vector<16x32xbf16> to vector<16x32xf32>
    %cst_87 = arith.constant 1.000000e+00 : f32
    %170 = arith.subf %cst_87, %159 : f32
    %171 = vector.broadcast %170 : f32 to vector<16x32xf32>
    %172 = arith.mulf %171, %165 : vector<16x32xf32>
    %173 = vector.broadcast %159 : f32 to vector<16x32xf32>
    %174 = arith.mulf %173, %169 : vector<16x32xf32>
    %175 = arith.addf %172, %174 : vector<16x32xf32>
    %c7_i32_88 = arith.constant 7 : i32
    %176 = arith.addi %0, %c7_i32_88 : i32
    %177 = arith.sitofp %176 : i32 to f32
    %cst_89 = arith.constant 5.000000e-01 : f32
    %178 = arith.addf %177, %cst_89 : f32
    %cst_90 = arith.constant 5.000000e-01 : f32
    %179 = arith.mulf %178, %cst_90 : f32
    %cst_91 = arith.constant 5.000000e-01 : f32
    %180 = arith.subf %179, %cst_91 : f32
    %cst_92 = arith.constant 0.000000e+00 : f32
    %181 = arith.maximumf %180, %cst_92 : f32
    %182 = arith.fptosi %181 : f32 to i32
    %183 = arith.sitofp %182 : i32 to f32
    %184 = arith.subf %181, %183 : f32
    %c1_i32_93 = arith.constant 1 : i32
    %185 = arith.addi %182, %c1_i32_93 : i32
    %c7_i32_94 = arith.constant 7 : i32
    %186 = arith.minsi %185, %c7_i32_94 : i32
    %c0_95 = arith.constant 0 : index
    %187 = arith.index_cast %182 : i32 to index
    %c0_96 = arith.constant 0 : index
    %c0_97 = arith.constant 0 : index
    %188 = vector.load %arg3[%c0_95, %187, %c0_96, %c0_97] : memref<1x8x16x32xbf16, #tpu.memory_space<vmem>>, vector<1x1x16x32xbf16>
    %189 = vector.shape_cast %188 : vector<1x1x16x32xbf16> to vector<16x32xbf16>
    %190 = arith.extf %189 : vector<16x32xbf16> to vector<16x32xf32>
    %c0_98 = arith.constant 0 : index
    %191 = arith.index_cast %186 : i32 to index
    %c0_99 = arith.constant 0 : index
    %c0_100 = arith.constant 0 : index
    %192 = vector.load %arg3[%c0_98, %191, %c0_99, %c0_100] : memref<1x8x16x32xbf16, #tpu.memory_space<vmem>>, vector<1x1x16x32xbf16>
    %193 = vector.shape_cast %192 : vector<1x1x16x32xbf16> to vector<16x32xbf16>
    %194 = arith.extf %193 : vector<16x32xbf16> to vector<16x32xf32>
    %cst_101 = arith.constant 1.000000e+00 : f32
    %195 = arith.subf %cst_101, %184 : f32
    %196 = vector.broadcast %195 : f32 to vector<16x32xf32>
    %197 = arith.mulf %196, %190 : vector<16x32xf32>
    %198 = vector.broadcast %184 : f32 to vector<16x32xf32>
    %199 = arith.mulf %198, %194 : vector<16x32xf32>
    %200 = arith.addf %197, %199 : vector<16x32xf32>
    %201 = vector.shape_cast %25 : vector<16x32xf32> to vector<1x16x32xf32>
    %202 = vector.shape_cast %50 : vector<16x32xf32> to vector<1x16x32xf32>
    %203 = vector.shape_cast %75 : vector<16x32xf32> to vector<1x16x32xf32>
    %204 = vector.shape_cast %100 : vector<16x32xf32> to vector<1x16x32xf32>
    %205 = vector.shape_cast %125 : vector<16x32xf32> to vector<1x16x32xf32>
    %206 = vector.shape_cast %150 : vector<16x32xf32> to vector<1x16x32xf32>
    %207 = vector.shape_cast %175 : vector<16x32xf32> to vector<1x16x32xf32>
    %208 = vector.shape_cast %200 : vector<16x32xf32> to vector<1x16x32xf32>
    %209 = tpu.concatenate %201, %202, %203, %204, %205, %206, %207, %208 in 0 : vector<1x16x32xf32>, vector<1x16x32xf32>, vector<1x16x32xf32>, vector<1x16x32xf32>, vector<1x16x32xf32>, vector<1x16x32xf32>, vector<1x16x32xf32>, vector<1x16x32xf32> -> vector<8x16x32xf32>
    %c0_102 = arith.constant 0 : index
    %c0_103 = arith.constant 0 : index
    %c0_104 = arith.constant 0 : index
    %c0_105 = arith.constant 0 : index
    %210 = vector.load %arg2[%c0_102, %c0_103, %c0_104, %c0_105] : memref<1x8x16x4xbf16, #tpu.memory_space<vmem>>, vector<1x8x16x4xbf16>
    %211 = vector.shape_cast %210 : vector<1x8x16x4xbf16> to vector<8x16x4xbf16>
    %212 = vector.shape_cast %211 : vector<8x16x4xbf16> to vector<128x4xbf16>
    %c0_106 = arith.constant 0 : index
    %c0_107 = arith.constant 0 : index
    %213 = vector.load %arg4[%c0_106, %c0_107] : memref<4x48xbf16, #tpu.memory_space<vmem>>, vector<4x48xbf16>
    %cst_108 = arith.constant dense<0.000000e+00> : vector<128x48xf32>
    %214 = tpu.matmul %212, %213, %cst_108 {dimension_numbers = #tpu.dot_dimension_numbers<[1], [0], [0], [1], [0, 0, 1, 1], [], []>} : vector<128x4xbf16>, vector<4x48xbf16>, vector<128x48xf32> -> vector<128x48xf32>
    %215 = vector.shape_cast %214 : vector<128x48xf32> to vector<8x16x48xf32>
    %216 = tpu.concatenate %209, %215 in 2 : vector<8x16x32xf32>, vector<8x16x48xf32> -> vector<8x16x80xf32>
    %217 = arith.truncf %216 : vector<8x16x80xf32> to vector<8x16x80xbf16>
    %c0_109 = arith.constant 0 : index
    %c0_110 = arith.constant 0 : index
    %c0_111 = arith.constant 0 : index
    %c0_112 = arith.constant 0 : index
    %218 = vector.load %arg5[%c0_109, %c0_110, %c0_111, %c0_112] : memref<1x8x16x80xbf16, #tpu.memory_space<vmem>>, vector<1x8x16x80xbf16>
    %219 = vector.shape_cast %218 : vector<1x8x16x80xbf16> to vector<8x16x80xbf16>
    %220 = vector.shape_cast %217 : vector<8x16x80xbf16> to vector<1x8x16x80xbf16>
    tpu.vector_store %arg5[%c0_109, %c0_110, %c0_111, %c0_112], %220 {strides = array<i32>} : memref<1x8x16x80xbf16, #tpu.memory_space<vmem>>, vector<1x8x16x80xbf16>,
    %cst_113 = arith.constant dense<0.000000e+00> : vector<48xf32>
    %221 = vector.multi_reduction <add>, %214, %cst_113 [0] : vector<128x48xf32> to vector<48xf32>
    %222 = vector.shape_cast %221 : vector<48xf32> to vector<1x48xf32>
    %223 = arith.mulf %214, %214 : vector<128x48xf32>
    %cst_114 = arith.constant dense<0.000000e+00> : vector<48xf32>
    %224 = vector.multi_reduction <add>, %223, %cst_114 [0] : vector<128x48xf32> to vector<48xf32>
    %225 = vector.shape_cast %224 : vector<48xf32> to vector<1x48xf32>
    %226 = tpu.concatenate %222, %225 in 0 : vector<1x48xf32>, vector<1x48xf32> -> vector<2x48xf32>
    %c0_115 = arith.constant 0 : index
    %c0_116 = arith.constant 0 : index
    %c0_117 = arith.constant 0 : index
    %c0_118 = arith.constant 0 : index
    %227 = vector.load %arg6[%c0_115, %c0_116, %c0_117, %c0_118] : memref<1x1x2x48xf32, #tpu.memory_space<vmem>>, vector<1x1x2x48xf32>
    %228 = vector.shape_cast %227 : vector<1x1x2x48xf32> to vector<2x48xf32>
    %229 = vector.shape_cast %226 : vector<2x48xf32> to vector<1x1x2x48xf32>
    tpu.vector_store %arg6[%c0_115, %c0_116, %c0_117, %c0_118], %229 {strides = array<i32>} : memref<1x1x2x48xf32, #tpu.memory_space<vmem>>, vector<1x1x2x48xf32>,
    return
  }
  func.func @transform_0(%arg0: i32, %arg1: i32) -> (i32, i32, i32, i32) {
    %c0_i32 = arith.constant 0 : i32
    %c0_i32_0 = arith.constant 0 : i32
    %c0_i32_1 = arith.constant 0 : i32
    return %arg0, %arg1, %c0_i32, %c0_i32_0 : i32, i32, i32, i32
  }
  func.func @transform_1(%arg0: i32, %arg1: i32) -> (i32, i32, i32, i32) {
    %c0_i32 = arith.constant 0 : i32
    %c0_i32_0 = arith.constant 0 : i32
    %c0_i32_1 = arith.constant 0 : i32
    %c0_i32_2 = arith.constant 0 : i32
    return %arg0, %c0_i32, %c0_i32_0, %c0_i32_1 : i32, i32, i32, i32
  }
  func.func @transform_2(%arg0: i32, %arg1: i32) -> (i32, i32) {
    %c0_i32 = arith.constant 0 : i32
    %c0_i32_0 = arith.constant 0 : i32
    %c0_i32_1 = arith.constant 0 : i32
    return %c0_i32, %c0_i32_0 : i32, i32
  }
  func.func @transform_3(%arg0: i32, %arg1: i32) -> (i32, i32, i32, i32) {
    %c0_i32 = arith.constant 0 : i32
    %c0_i32_0 = arith.constant 0 : i32
    %c0_i32_1 = arith.constant 0 : i32
    return %arg0, %arg1, %c0_i32, %c0_i32_0 : i32, i32, i32, i32
  }
  func.func @transform_4(%arg0: i32, %arg1: i32) -> (i32, i32, i32, i32) {
    %c0_i32 = arith.constant 0 : i32
    %c0_i32_0 = arith.constant 0 : i32
    %c0_i32_1 = arith.constant 0 : i32
    return %arg0, %arg1, %c0_i32, %c0_i32_0 : i32, i32, i32, i32
  }
}

module attributes {stable_mosaic.version = 11 : i64} {
  func.func @_cls_kernel(%arg0: i32, %arg1: i32, %arg2: memref<1x8x16x128xbf16, #tpu.memory_space<vmem>>, %arg3: memref<128x128xbf16, #tpu.memory_space<vmem>>, %arg4: memref<1x128xf32, #tpu.memory_space<vmem>>, %arg5: memref<1x128xf32, #tpu.memory_space<vmem>>, %arg6: memref<1x128xf32, #tpu.memory_space<vmem>>, %arg7: memref<1x8x16x128xf32, #tpu.memory_space<vmem>>) attributes {dimension_semantics = [#tpu.dimension_semantics<parallel>, #tpu.dimension_semantics<parallel>], iteration_bounds = array<i64: 2, 2>, scalar_prefetch = 0 : i64, scratch_operands = 0 : i64, tpu.core_type = #tpu.core_type<tc>, window_params = [{transform_indices = @transform_0, window_bounds = array<i64: 1, 8, 16, 128>}, {pipeline_mode = #tpu.pipeline_mode<synchronous>, transform_indices = @transform_1, window_bounds = array<i64: 128, 128>}, {pipeline_mode = #tpu.pipeline_mode<synchronous>, transform_indices = @transform_2, window_bounds = array<i64: 1, 128>}, {pipeline_mode = #tpu.pipeline_mode<synchronous>, transform_indices = @transform_3, window_bounds = array<i64: 1, 128>}, {pipeline_mode = #tpu.pipeline_mode<synchronous>, transform_indices = @transform_4, window_bounds = array<i64: 1, 128>}, {transform_indices = @transform_5, window_bounds = array<i64: 1, 8, 16, 128>}]} {
    %c0 = arith.constant 0 : index
    %c0_0 = arith.constant 0 : index
    %c0_1 = arith.constant 0 : index
    %c0_2 = arith.constant 0 : index
    %0 = vector.load %arg2[%c0, %c0_0, %c0_1, %c0_2] : memref<1x8x16x128xbf16, #tpu.memory_space<vmem>>, vector<1x8x16x128xbf16>
    %1 = vector.shape_cast %0 : vector<1x8x16x128xbf16> to vector<8x16x128xbf16>
    %2 = arith.extf %1 : vector<8x16x128xbf16> to vector<8x16x128xf32>
    %c0_3 = arith.constant 0 : index
    %c0_4 = arith.constant 0 : index
    %3 = vector.load %arg5[%c0_3, %c0_4] : memref<1x128xf32, #tpu.memory_space<vmem>>, vector<1x128xf32>
    %4 = vector.shape_cast %3 : vector<1x128xf32> to vector<128xf32>
    %5 = vector.shape_cast %4 : vector<128xf32> to vector<1x1x128xf32>
    %6 = vector.broadcast %5 : vector<1x1x128xf32> to vector<8x16x128xf32>
    %7 = arith.mulf %2, %6 : vector<8x16x128xf32>
    %c0_5 = arith.constant 0 : index
    %c0_6 = arith.constant 0 : index
    %8 = vector.load %arg6[%c0_5, %c0_6] : memref<1x128xf32, #tpu.memory_space<vmem>>, vector<1x128xf32>
    %9 = vector.shape_cast %8 : vector<1x128xf32> to vector<128xf32>
    %10 = vector.shape_cast %9 : vector<128xf32> to vector<1x1x128xf32>
    %11 = vector.broadcast %10 : vector<1x1x128xf32> to vector<8x16x128xf32>
    %12 = arith.addf %7, %11 : vector<8x16x128xf32>
    %cst = arith.constant 0.000000e+00 : f32
    %13 = vector.broadcast %cst : f32 to vector<8x16x128xf32>
    %14 = arith.maximumf %12, %13 : vector<8x16x128xf32>
    %15 = vector.shape_cast %14 : vector<8x16x128xf32> to vector<128x128xf32>
    %16 = arith.truncf %15 : vector<128x128xf32> to vector<128x128xbf16>
    %c0_7 = arith.constant 0 : index
    %c0_8 = arith.constant 0 : index
    %17 = vector.load %arg3[%c0_7, %c0_8] : memref<128x128xbf16, #tpu.memory_space<vmem>>, vector<128x128xbf16>
    %cst_9 = arith.constant dense<0.000000e+00> : vector<128x128xf32>
    %18 = tpu.matmul %16, %17, %cst_9 {dimension_numbers = #tpu.dot_dimension_numbers<[1], [0], [0], [1], [0, 0, 1, 1], [], []>} : vector<128x128xbf16>, vector<128x128xbf16>, vector<128x128xf32> -> vector<128x128xf32>
    %c0_10 = arith.constant 0 : index
    %c0_11 = arith.constant 0 : index
    %19 = vector.load %arg4[%c0_10, %c0_11] : memref<1x128xf32, #tpu.memory_space<vmem>>, vector<1x128xf32>
    %20 = vector.shape_cast %19 : vector<1x128xf32> to vector<128xf32>
    %21 = vector.shape_cast %20 : vector<128xf32> to vector<1x128xf32>
    %22 = vector.broadcast %21 : vector<1x128xf32> to vector<128x128xf32>
    %23 = arith.addf %18, %22 : vector<128x128xf32>
    %24 = vector.shape_cast %23 : vector<128x128xf32> to vector<8x16x128xf32>
    %c0_12 = arith.constant 0 : index
    %c0_13 = arith.constant 0 : index
    %c0_14 = arith.constant 0 : index
    %c0_15 = arith.constant 0 : index
    %25 = vector.load %arg7[%c0_12, %c0_13, %c0_14, %c0_15] : memref<1x8x16x128xf32, #tpu.memory_space<vmem>>, vector<1x8x16x128xf32>
    %26 = vector.shape_cast %25 : vector<1x8x16x128xf32> to vector<8x16x128xf32>
    %27 = vector.shape_cast %24 : vector<8x16x128xf32> to vector<1x8x16x128xf32>
    tpu.vector_store %arg7[%c0_12, %c0_13, %c0_14, %c0_15], %27 {strides = array<i32>} : memref<1x8x16x128xf32, #tpu.memory_space<vmem>>, vector<1x8x16x128xf32>,
    return
  }
  func.func @transform_0(%arg0: i32, %arg1: i32) -> (i32, i32, i32, i32) {
    %c0_i32 = arith.constant 0 : i32
    %c0_i32_0 = arith.constant 0 : i32
    %c0_i32_1 = arith.constant 0 : i32
    return %arg0, %arg1, %c0_i32, %c0_i32_0 : i32, i32, i32, i32
  }
  func.func @transform_1(%arg0: i32, %arg1: i32) -> (i32, i32) {
    %c0_i32 = arith.constant 0 : i32
    %c0_i32_0 = arith.constant 0 : i32
    %c0_i32_1 = arith.constant 0 : i32
    return %c0_i32, %c0_i32_0 : i32, i32
  }
  func.func @transform_2(%arg0: i32, %arg1: i32) -> (i32, i32) {
    %c0_i32 = arith.constant 0 : i32
    %c0_i32_0 = arith.constant 0 : i32
    %c0_i32_1 = arith.constant 0 : i32
    return %c0_i32, %c0_i32_0 : i32, i32
  }
  func.func @transform_3(%arg0: i32, %arg1: i32) -> (i32, i32) {
    %c0_i32 = arith.constant 0 : i32
    %c0_i32_0 = arith.constant 0 : i32
    %c0_i32_1 = arith.constant 0 : i32
    return %c0_i32, %c0_i32_0 : i32, i32
  }
  func.func @transform_4(%arg0: i32, %arg1: i32) -> (i32, i32) {
    %c0_i32 = arith.constant 0 : i32
    %c0_i32_0 = arith.constant 0 : i32
    %c0_i32_1 = arith.constant 0 : i32
    return %c0_i32, %c0_i32_0 : i32, i32
  }
  func.func @transform_5(%arg0: i32, %arg1: i32) -> (i32, i32, i32, i32) {
    %c0_i32 = arith.constant 0 : i32
    %c0_i32_0 = arith.constant 0 : i32
    %c0_i32_1 = arith.constant 0 : i32
    return %arg0, %arg1, %c0_i32, %c0_i32_0 : i32, i32, i32, i32
  }
}

module attributes {stable_mosaic.version = 11 : i64} {
  func.func @_conv3x3_bn_kernel(%arg0: i32, %arg1: i32, %arg2: memref<1x16x16x80xbf16, #tpu.memory_space<vmem>>, %arg3: memref<9x80x128xbf16, #tpu.memory_space<vmem>>, %arg4: memref<1x80xf32, #tpu.memory_space<vmem>>, %arg5: memref<1x80xf32, #tpu.memory_space<vmem>>, %arg6: memref<1x80xf32, #tpu.memory_space<vmem>>, %arg7: memref<1x8x16x128xbf16, #tpu.memory_space<vmem>>, %arg8: memref<1x1x2x128xf32, #tpu.memory_space<vmem>>) attributes {dimension_semantics = [#tpu.dimension_semantics<parallel>, #tpu.dimension_semantics<parallel>], iteration_bounds = array<i64: 2, 2>, scalar_prefetch = 0 : i64, scratch_operands = 0 : i64, tpu.core_type = #tpu.core_type<tc>, window_params = [{transform_indices = @transform_0, window_bounds = array<i64: 1, 16, 16, 80>}, {pipeline_mode = #tpu.pipeline_mode<synchronous>, transform_indices = @transform_1, window_bounds = array<i64: 9, 80, 128>}, {pipeline_mode = #tpu.pipeline_mode<synchronous>, transform_indices = @transform_2, window_bounds = array<i64: 1, 80>}, {pipeline_mode = #tpu.pipeline_mode<synchronous>, transform_indices = @transform_3, window_bounds = array<i64: 1, 80>}, {pipeline_mode = #tpu.pipeline_mode<synchronous>, transform_indices = @transform_4, window_bounds = array<i64: 1, 80>}, {transform_indices = @transform_5, window_bounds = array<i64: 1, 8, 16, 128>}, {transform_indices = @transform_6, window_bounds = array<i64: 1, 1, 2, 128>}]} {
    %c8_i32 = arith.constant 8 : i32
    %0 = arith.muli %arg1, %c8_i32 : i32
    %c0 = arith.constant 0 : index
    %c0_0 = arith.constant 0 : index
    %1 = vector.load %arg4[%c0, %c0_0] : memref<1x80xf32, #tpu.memory_space<vmem>>, vector<1x80xf32>
    %2 = vector.shape_cast %1 : vector<1x80xf32> to vector<80xf32>
    %c0_1 = arith.constant 0 : index
    %c0_2 = arith.constant 0 : index
    %3 = vector.load %arg5[%c0_1, %c0_2] : memref<1x80xf32, #tpu.memory_space<vmem>>, vector<1x80xf32>
    %4 = vector.shape_cast %3 : vector<1x80xf32> to vector<80xf32>
    %c0_3 = arith.constant 0 : index
    %c0_4 = arith.constant 0 : index
    %5 = vector.load %arg6[%c0_3, %c0_4] : memref<1x80xf32, #tpu.memory_space<vmem>>, vector<1x80xf32>
    %6 = vector.shape_cast %5 : vector<1x80xf32> to vector<80xf32>
    %c0_5 = arith.constant 0 : index
    %7 = arith.index_cast %0 : i32 to index
    %c0_6 = arith.constant 0 : index
    %c0_7 = arith.constant 0 : index
    %8 = vector.load %arg2[%c0_5, %7, %c0_6, %c0_7] : memref<1x16x16x80xbf16, #tpu.memory_space<vmem>>, vector<1x8x16x80xbf16>
    %9 = vector.shape_cast %8 : vector<1x8x16x80xbf16> to vector<8x16x80xbf16>
    %10 = arith.extf %9 : vector<8x16x80xbf16> to vector<8x16x80xf32>
    %11 = vector.shape_cast %2 : vector<80xf32> to vector<1x1x80xf32>
    %12 = vector.broadcast %11 : vector<1x1x80xf32> to vector<8x16x80xf32>
    %13 = arith.mulf %10, %12 : vector<8x16x80xf32>
    %14 = vector.shape_cast %4 : vector<80xf32> to vector<1x1x80xf32>
    %15 = vector.broadcast %14 : vector<1x1x80xf32> to vector<8x16x80xf32>
    %16 = arith.addf %13, %15 : vector<8x16x80xf32>
    %17 = vector.shape_cast %6 : vector<80xf32> to vector<1x1x80xf32>
    %18 = vector.broadcast %17 : vector<1x1x80xf32> to vector<8x16x80xf32>
    %19 = arith.maximumf %16, %18 : vector<8x16x80xf32>
    %c1_i32 = arith.constant 1 : i32
    %20 = arith.subi %0, %c1_i32 : i32
    %c0_i32 = arith.constant 0 : i32
    %21 = arith.maxsi %20, %c0_i32 : i32
    %c0_8 = arith.constant 0 : index
    %22 = arith.index_cast %21 : i32 to index
    %c0_9 = arith.constant 0 : index
    %c0_10 = arith.constant 0 : index
    %23 = vector.load %arg2[%c0_8, %22, %c0_9, %c0_10] : memref<1x16x16x80xbf16, #tpu.memory_space<vmem>>, vector<1x1x16x80xbf16>
    %24 = vector.shape_cast %23 : vector<1x1x16x80xbf16> to vector<1x16x80xbf16>
    %25 = arith.extf %24 : vector<1x16x80xbf16> to vector<1x16x80xf32>
    %26 = vector.shape_cast %2 : vector<80xf32> to vector<1x1x80xf32>
    %27 = vector.broadcast %26 : vector<1x1x80xf32> to vector<1x16x80xf32>
    %28 = arith.mulf %25, %27 : vector<1x16x80xf32>
    %29 = vector.shape_cast %4 : vector<80xf32> to vector<1x1x80xf32>
    %30 = vector.broadcast %29 : vector<1x1x80xf32> to vector<1x16x80xf32>
    %31 = arith.addf %28, %30 : vector<1x16x80xf32>
    %32 = vector.shape_cast %6 : vector<80xf32> to vector<1x1x80xf32>
    %33 = vector.broadcast %32 : vector<1x1x80xf32> to vector<1x16x80xf32>
    %34 = arith.maximumf %31, %33 : vector<1x16x80xf32>
    %c0_i32_11 = arith.constant 0 : i32
    %35 = arith.cmpi sgt, %arg1, %c0_i32_11 : i32
    %cst = arith.constant 0.000000e+00 : f32
    %36 = vector.broadcast %cst : f32 to vector<1x16x80xf32>
    %37 = arith.select %35, %34, %36 : vector<1x16x80xf32>
    %c8_i32_12 = arith.constant 8 : i32
    %38 = arith.addi %0, %c8_i32_12 : i32
    %c15_i32 = arith.constant 15 : i32
    %39 = arith.minsi %38, %c15_i32 : i32
    %c0_13 = arith.constant 0 : index
    %40 = arith.index_cast %39 : i32 to index
    %c0_14 = arith.constant 0 : index
    %c0_15 = arith.constant 0 : index
    %41 = vector.load %arg2[%c0_13, %40, %c0_14, %c0_15] : memref<1x16x16x80xbf16, #tpu.memory_space<vmem>>, vector<1x1x16x80xbf16>
    %42 = vector.shape_cast %41 : vector<1x1x16x80xbf16> to vector<1x16x80xbf16>
    %43 = arith.extf %42 : vector<1x16x80xbf16> to vector<1x16x80xf32>
    %44 = vector.shape_cast %2 : vector<80xf32> to vector<1x1x80xf32>
    %45 = vector.broadcast %44 : vector<1x1x80xf32> to vector<1x16x80xf32>
    %46 = arith.mulf %43, %45 : vector<1x16x80xf32>
    %47 = vector.shape_cast %4 : vector<80xf32> to vector<1x1x80xf32>
    %48 = vector.broadcast %47 : vector<1x1x80xf32> to vector<1x16x80xf32>
    %49 = arith.addf %46, %48 : vector<1x16x80xf32>
    %50 = vector.shape_cast %6 : vector<80xf32> to vector<1x1x80xf32>
    %51 = vector.broadcast %50 : vector<1x1x80xf32> to vector<1x16x80xf32>
    %52 = arith.maximumf %49, %51 : vector<1x16x80xf32>
    %c1_i32_16 = arith.constant 1 : i32
    %53 = arith.cmpi slt, %arg1, %c1_i32_16 : i32
    %cst_17 = arith.constant 0.000000e+00 : f32
    %54 = vector.broadcast %cst_17 : f32 to vector<1x16x80xf32>
    %55 = arith.select %53, %52, %54 : vector<1x16x80xf32>
    %56 = tpu.concatenate %37, %19, %55 in 0 : vector<1x16x80xf32>, vector<8x16x80xf32>, vector<1x16x80xf32> -> vector<10x16x80xf32>
    %cst_18 = arith.constant 0.000000e+00 : f32
    %57 = vector.broadcast %cst_18 : f32 to vector<10x1x80xf32>
    %58 = tpu.concatenate %57, %56, %57 in 1 : vector<10x1x80xf32>, vector<10x16x80xf32>, vector<10x1x80xf32> -> vector<10x18x80xf32>
    %cst_19 = arith.constant 0.000000e+00 : f32
    %59 = vector.broadcast %cst_19 : f32 to vector<128x128xf32>
    %60 = vector.extract_strided_slice %58 {offsets = [0, 0, 0], sizes = [10, 16, 80], strides = [1, 1, 1]} : vector<10x18x80xf32> to vector<10x16x80xf32>
    %61 = vector.shape_cast %60 : vector<10x16x80xf32> to vector<160x80xf32>
    %62 = vector.extract_strided_slice %61 {offsets = [0, 0], sizes = [128, 80], strides = [1, 1]} : vector<160x80xf32> to vector<128x80xf32>
    %63 = arith.truncf %62 : vector<128x80xf32> to vector<128x80xbf16>
    %c0_20 = arith.constant 0 : index
    %c0_21 = arith.constant 0 : index
    %c0_22 = arith.constant 0 : index
    %64 = vector.load %arg3[%c0_20, %c0_21, %c0_22] : memref<9x80x128xbf16, #tpu.memory_space<vmem>>, vector<1x80x128xbf16>
    %65 = vector.shape_cast %64 : vector<1x80x128xbf16> to vector<80x128xbf16>
    %cst_23 = arith.constant dense<0.000000e+00> : vector<128x128xf32>
    %66 = tpu.matmul %63, %65, %cst_23 {dimension_numbers = #tpu.dot_dimension_numbers<[1], [0], [0], [1], [0, 0, 1, 1], [], []>} : vector<128x80xbf16>, vector<80x128xbf16>, vector<128x128xf32> -> vector<128x128xf32>
    %67 = arith.addf %59, %66 : vector<128x128xf32>
    %68 = vector.extract_strided_slice %61 {offsets = [16, 0], sizes = [128, 80], strides = [1, 1]} : vector<160x80xf32> to vector<128x80xf32>
    %69 = arith.truncf %68 : vector<128x80xf32> to vector<128x80xbf16>
    %c3 = arith.constant 3 : index
    %c0_24 = arith.constant 0 : index
    %c0_25 = arith.constant 0 : index
    %70 = vector.load %arg3[%c3, %c0_24, %c0_25] : memref<9x80x128xbf16, #tpu.memory_space<vmem>>, vector<1x80x128xbf16>
    %71 = vector.shape_cast %70 : vector<1x80x128xbf16> to vector<80x128xbf16>
    %cst_26 = arith.constant dense<0.000000e+00> : vector<128x128xf32>
    %72 = tpu.matmul %69, %71, %cst_26 {dimension_numbers = #tpu.dot_dimension_numbers<[1], [0], [0], [1], [0, 0, 1, 1], [], []>} : vector<128x80xbf16>, vector<80x128xbf16>, vector<128x128xf32> -> vector<128x128xf32>
    %73 = arith.addf %67, %72 : vector<128x128xf32>
    %74 = vector.extract_strided_slice %61 {offsets = [32, 0], sizes = [128, 80], strides = [1, 1]} : vector<160x80xf32> to vector<128x80xf32>
    %75 = arith.truncf %74 : vector<128x80xf32> to vector<128x80xbf16>
    %c6 = arith.constant 6 : index
    %c0_27 = arith.constant 0 : index
    %c0_28 = arith.constant 0 : index
    %76 = vector.load %arg3[%c6, %c0_27, %c0_28] : memref<9x80x128xbf16, #tpu.memory_space<vmem>>, vector<1x80x128xbf16>
    %77 = vector.shape_cast %76 : vector<1x80x128xbf16> to vector<80x128xbf16>
    %cst_29 = arith.constant dense<0.000000e+00> : vector<128x128xf32>
    %78 = tpu.matmul %75, %77, %cst_29 {dimension_numbers = #tpu.dot_dimension_numbers<[1], [0], [0], [1], [0, 0, 1, 1], [], []>} : vector<128x80xbf16>, vector<80x128xbf16>, vector<128x128xf32> -> vector<128x128xf32>
    %79 = arith.addf %73, %78 : vector<128x128xf32>
    %80 = vector.extract_strided_slice %58 {offsets = [0, 1, 0], sizes = [10, 16, 80], strides = [1, 1, 1]} : vector<10x18x80xf32> to vector<10x16x80xf32>
    %81 = vector.shape_cast %80 : vector<10x16x80xf32> to vector<160x80xf32>
    %82 = vector.extract_strided_slice %81 {offsets = [0, 0], sizes = [128, 80], strides = [1, 1]} : vector<160x80xf32> to vector<128x80xf32>
    %83 = arith.truncf %82 : vector<128x80xf32> to vector<128x80xbf16>
    %c1 = arith.constant 1 : index
    %c0_30 = arith.constant 0 : index
    %c0_31 = arith.constant 0 : index
    %84 = vector.load %arg3[%c1, %c0_30, %c0_31] : memref<9x80x128xbf16, #tpu.memory_space<vmem>>, vector<1x80x128xbf16>
    %85 = vector.shape_cast %84 : vector<1x80x128xbf16> to vector<80x128xbf16>
    %cst_32 = arith.constant dense<0.000000e+00> : vector<128x128xf32>
    %86 = tpu.matmul %83, %85, %cst_32 {dimension_numbers = #tpu.dot_dimension_numbers<[1], [0], [0], [1], [0, 0, 1, 1], [], []>} : vector<128x80xbf16>, vector<80x128xbf16>, vector<128x128xf32> -> vector<128x128xf32>
    %87 = arith.addf %79, %86 : vector<128x128xf32>
    %88 = vector.extract_strided_slice %81 {offsets = [16, 0], sizes = [128, 80], strides = [1, 1]} : vector<160x80xf32> to vector<128x80xf32>
    %89 = arith.truncf %88 : vector<128x80xf32> to vector<128x80xbf16>
    %c4 = arith.constant 4 : index
    %c0_33 = arith.constant 0 : index
    %c0_34 = arith.constant 0 : index
    %90 = vector.load %arg3[%c4, %c0_33, %c0_34] : memref<9x80x128xbf16, #tpu.memory_space<vmem>>, vector<1x80x128xbf16>
    %91 = vector.shape_cast %90 : vector<1x80x128xbf16> to vector<80x128xbf16>
    %cst_35 = arith.constant dense<0.000000e+00> : vector<128x128xf32>
    %92 = tpu.matmul %89, %91, %cst_35 {dimension_numbers = #tpu.dot_dimension_numbers<[1], [0], [0], [1], [0, 0, 1, 1], [], []>} : vector<128x80xbf16>, vector<80x128xbf16>, vector<128x128xf32> -> vector<128x128xf32>
    %93 = arith.addf %87, %92 : vector<128x128xf32>
    %94 = vector.extract_strided_slice %81 {offsets = [32, 0], sizes = [128, 80], strides = [1, 1]} : vector<160x80xf32> to vector<128x80xf32>
    %95 = arith.truncf %94 : vector<128x80xf32> to vector<128x80xbf16>
    %c7 = arith.constant 7 : index
    %c0_36 = arith.constant 0 : index
    %c0_37 = arith.constant 0 : index
    %96 = vector.load %arg3[%c7, %c0_36, %c0_37] : memref<9x80x128xbf16, #tpu.memory_space<vmem>>, vector<1x80x128xbf16>
    %97 = vector.shape_cast %96 : vector<1x80x128xbf16> to vector<80x128xbf16>
    %cst_38 = arith.constant dense<0.000000e+00> : vector<128x128xf32>
    %98 = tpu.matmul %95, %97, %cst_38 {dimension_numbers = #tpu.dot_dimension_numbers<[1], [0], [0], [1], [0, 0, 1, 1], [], []>} : vector<128x80xbf16>, vector<80x128xbf16>, vector<128x128xf32> -> vector<128x128xf32>
    %99 = arith.addf %93, %98 : vector<128x128xf32>
    %100 = vector.extract_strided_slice %58 {offsets = [0, 2, 0], sizes = [10, 16, 80], strides = [1, 1, 1]} : vector<10x18x80xf32> to vector<10x16x80xf32>
    %101 = vector.shape_cast %100 : vector<10x16x80xf32> to vector<160x80xf32>
    %102 = vector.extract_strided_slice %101 {offsets = [0, 0], sizes = [128, 80], strides = [1, 1]} : vector<160x80xf32> to vector<128x80xf32>
    %103 = arith.truncf %102 : vector<128x80xf32> to vector<128x80xbf16>
    %c2 = arith.constant 2 : index
    %c0_39 = arith.constant 0 : index
    %c0_40 = arith.constant 0 : index
    %104 = vector.load %arg3[%c2, %c0_39, %c0_40] : memref<9x80x128xbf16, #tpu.memory_space<vmem>>, vector<1x80x128xbf16>
    %105 = vector.shape_cast %104 : vector<1x80x128xbf16> to vector<80x128xbf16>
    %cst_41 = arith.constant dense<0.000000e+00> : vector<128x128xf32>
    %106 = tpu.matmul %103, %105, %cst_41 {dimension_numbers = #tpu.dot_dimension_numbers<[1], [0], [0], [1], [0, 0, 1, 1], [], []>} : vector<128x80xbf16>, vector<80x128xbf16>, vector<128x128xf32> -> vector<128x128xf32>
    %107 = arith.addf %99, %106 : vector<128x128xf32>
    %108 = vector.extract_strided_slice %101 {offsets = [16, 0], sizes = [128, 80], strides = [1, 1]} : vector<160x80xf32> to vector<128x80xf32>
    %109 = arith.truncf %108 : vector<128x80xf32> to vector<128x80xbf16>
    %c5 = arith.constant 5 : index
    %c0_42 = arith.constant 0 : index
    %c0_43 = arith.constant 0 : index
    %110 = vector.load %arg3[%c5, %c0_42, %c0_43] : memref<9x80x128xbf16, #tpu.memory_space<vmem>>, vector<1x80x128xbf16>
    %111 = vector.shape_cast %110 : vector<1x80x128xbf16> to vector<80x128xbf16>
    %cst_44 = arith.constant dense<0.000000e+00> : vector<128x128xf32>
    %112 = tpu.matmul %109, %111, %cst_44 {dimension_numbers = #tpu.dot_dimension_numbers<[1], [0], [0], [1], [0, 0, 1, 1], [], []>} : vector<128x80xbf16>, vector<80x128xbf16>, vector<128x128xf32> -> vector<128x128xf32>
    %113 = arith.addf %107, %112 : vector<128x128xf32>
    %114 = vector.extract_strided_slice %101 {offsets = [32, 0], sizes = [128, 80], strides = [1, 1]} : vector<160x80xf32> to vector<128x80xf32>
    %115 = arith.truncf %114 : vector<128x80xf32> to vector<128x80xbf16>
    %c8 = arith.constant 8 : index
    %c0_45 = arith.constant 0 : index
    %c0_46 = arith.constant 0 : index
    %116 = vector.load %arg3[%c8, %c0_45, %c0_46] : memref<9x80x128xbf16, #tpu.memory_space<vmem>>, vector<1x80x128xbf16>
    %117 = vector.shape_cast %116 : vector<1x80x128xbf16> to vector<80x128xbf16>
    %cst_47 = arith.constant dense<0.000000e+00> : vector<128x128xf32>
    %118 = tpu.matmul %115, %117, %cst_47 {dimension_numbers = #tpu.dot_dimension_numbers<[1], [0], [0], [1], [0, 0, 1, 1], [], []>} : vector<128x80xbf16>, vector<80x128xbf16>, vector<128x128xf32> -> vector<128x128xf32>
    %119 = arith.addf %113, %118 : vector<128x128xf32>
    %120 = vector.shape_cast %119 : vector<128x128xf32> to vector<8x16x128xf32>
    %121 = arith.truncf %120 : vector<8x16x128xf32> to vector<8x16x128xbf16>
    %c0_48 = arith.constant 0 : index
    %c0_49 = arith.constant 0 : index
    %c0_50 = arith.constant 0 : index
    %c0_51 = arith.constant 0 : index
    %122 = vector.load %arg7[%c0_48, %c0_49, %c0_50, %c0_51] : memref<1x8x16x128xbf16, #tpu.memory_space<vmem>>, vector<1x8x16x128xbf16>
    %123 = vector.shape_cast %122 : vector<1x8x16x128xbf16> to vector<8x16x128xbf16>
    %124 = vector.shape_cast %121 : vector<8x16x128xbf16> to vector<1x8x16x128xbf16>
    tpu.vector_store %arg7[%c0_48, %c0_49, %c0_50, %c0_51], %124 {strides = array<i32>} : memref<1x8x16x128xbf16, #tpu.memory_space<vmem>>, vector<1x8x16x128xbf16>,
    %cst_52 = arith.constant dense<0.000000e+00> : vector<128xf32>
    %125 = vector.multi_reduction <add>, %119, %cst_52 [0] : vector<128x128xf32> to vector<128xf32>
    %126 = vector.shape_cast %125 : vector<128xf32> to vector<1x128xf32>
    %127 = arith.mulf %119, %119 : vector<128x128xf32>
    %cst_53 = arith.constant dense<0.000000e+00> : vector<128xf32>
    %128 = vector.multi_reduction <add>, %127, %cst_53 [0] : vector<128x128xf32> to vector<128xf32>
    %129 = vector.shape_cast %128 : vector<128xf32> to vector<1x128xf32>
    %130 = tpu.concatenate %126, %129 in 0 : vector<1x128xf32>, vector<1x128xf32> -> vector<2x128xf32>
    %c0_54 = arith.constant 0 : index
    %c0_55 = arith.constant 0 : index
    %c0_56 = arith.constant 0 : index
    %c0_57 = arith.constant 0 : index
    %131 = vector.load %arg8[%c0_54, %c0_55, %c0_56, %c0_57] : memref<1x1x2x128xf32, #tpu.memory_space<vmem>>, vector<1x1x2x128xf32>
    %132 = vector.shape_cast %131 : vector<1x1x2x128xf32> to vector<2x128xf32>
    %133 = vector.shape_cast %130 : vector<2x128xf32> to vector<1x1x2x128xf32>
    tpu.vector_store %arg8[%c0_54, %c0_55, %c0_56, %c0_57], %133 {strides = array<i32>} : memref<1x1x2x128xf32, #tpu.memory_space<vmem>>, vector<1x1x2x128xf32>,
    return
  }
  func.func @transform_0(%arg0: i32, %arg1: i32) -> (i32, i32, i32, i32) {
    %c0_i32 = arith.constant 0 : i32
    %c0_i32_0 = arith.constant 0 : i32
    %c0_i32_1 = arith.constant 0 : i32
    %c0_i32_2 = arith.constant 0 : i32
    return %arg0, %c0_i32, %c0_i32_0, %c0_i32_1 : i32, i32, i32, i32
  }
  func.func @transform_1(%arg0: i32, %arg1: i32) -> (i32, i32, i32) {
    %c0_i32 = arith.constant 0 : i32
    %c0_i32_0 = arith.constant 0 : i32
    %c0_i32_1 = arith.constant 0 : i32
    %c0_i32_2 = arith.constant 0 : i32
    return %c0_i32, %c0_i32_0, %c0_i32_1 : i32, i32, i32
  }
  func.func @transform_2(%arg0: i32, %arg1: i32) -> (i32, i32) {
    %c0_i32 = arith.constant 0 : i32
    %c0_i32_0 = arith.constant 0 : i32
    %c0_i32_1 = arith.constant 0 : i32
    return %c0_i32, %c0_i32_0 : i32, i32
  }
  func.func @transform_3(%arg0: i32, %arg1: i32) -> (i32, i32) {
    %c0_i32 = arith.constant 0 : i32
    %c0_i32_0 = arith.constant 0 : i32
    %c0_i32_1 = arith.constant 0 : i32
    return %c0_i32, %c0_i32_0 : i32, i32
  }
  func.func @transform_4(%arg0: i32, %arg1: i32) -> (i32, i32) {
    %c0_i32 = arith.constant 0 : i32
    %c0_i32_0 = arith.constant 0 : i32
    %c0_i32_1 = arith.constant 0 : i32
    return %c0_i32, %c0_i32_0 : i32, i32
  }
  func.func @transform_5(%arg0: i32, %arg1: i32) -> (i32, i32, i32, i32) {
    %c0_i32 = arith.constant 0 : i32
    %c0_i32_0 = arith.constant 0 : i32
    %c0_i32_1 = arith.constant 0 : i32
    return %arg0, %arg1, %c0_i32, %c0_i32_0 : i32, i32, i32, i32
  }
  func.func @transform_6(%arg0: i32, %arg1: i32) -> (i32, i32, i32, i32) {
    %c0_i32 = arith.constant 0 : i32
    %c0_i32_0 = arith.constant 0 : i32
    %c0_i32_1 = arith.constant 0 : i32
    return %arg0, %arg1, %c0_i32, %c0_i32_0 : i32, i32, i32, i32
  }
}

module attributes {stable_mosaic.version = 11 : i64} {
  func.func @_conv3x3_bn_kernel(%arg0: i32, %arg1: i32, %arg2: memref<1x16x16x128xbf16, #tpu.memory_space<vmem>>, %arg3: memref<9x128x128xbf16, #tpu.memory_space<vmem>>, %arg4: memref<1x128xf32, #tpu.memory_space<vmem>>, %arg5: memref<1x128xf32, #tpu.memory_space<vmem>>, %arg6: memref<1x128xf32, #tpu.memory_space<vmem>>, %arg7: memref<1x8x16x128xbf16, #tpu.memory_space<vmem>>, %arg8: memref<1x1x2x128xf32, #tpu.memory_space<vmem>>) attributes {dimension_semantics = [#tpu.dimension_semantics<parallel>, #tpu.dimension_semantics<parallel>], iteration_bounds = array<i64: 2, 2>, scalar_prefetch = 0 : i64, scratch_operands = 0 : i64, tpu.core_type = #tpu.core_type<tc>, window_params = [{transform_indices = @transform_0, window_bounds = array<i64: 1, 16, 16, 128>}, {pipeline_mode = #tpu.pipeline_mode<synchronous>, transform_indices = @transform_1, window_bounds = array<i64: 9, 128, 128>}, {pipeline_mode = #tpu.pipeline_mode<synchronous>, transform_indices = @transform_2, window_bounds = array<i64: 1, 128>}, {pipeline_mode = #tpu.pipeline_mode<synchronous>, transform_indices = @transform_3, window_bounds = array<i64: 1, 128>}, {pipeline_mode = #tpu.pipeline_mode<synchronous>, transform_indices = @transform_4, window_bounds = array<i64: 1, 128>}, {transform_indices = @transform_5, window_bounds = array<i64: 1, 8, 16, 128>}, {transform_indices = @transform_6, window_bounds = array<i64: 1, 1, 2, 128>}]} {
    %c8_i32 = arith.constant 8 : i32
    %0 = arith.muli %arg1, %c8_i32 : i32
    %c0 = arith.constant 0 : index
    %c0_0 = arith.constant 0 : index
    %1 = vector.load %arg4[%c0, %c0_0] : memref<1x128xf32, #tpu.memory_space<vmem>>, vector<1x128xf32>
    %2 = vector.shape_cast %1 : vector<1x128xf32> to vector<128xf32>
    %c0_1 = arith.constant 0 : index
    %c0_2 = arith.constant 0 : index
    %3 = vector.load %arg5[%c0_1, %c0_2] : memref<1x128xf32, #tpu.memory_space<vmem>>, vector<1x128xf32>
    %4 = vector.shape_cast %3 : vector<1x128xf32> to vector<128xf32>
    %c0_3 = arith.constant 0 : index
    %c0_4 = arith.constant 0 : index
    %5 = vector.load %arg6[%c0_3, %c0_4] : memref<1x128xf32, #tpu.memory_space<vmem>>, vector<1x128xf32>
    %6 = vector.shape_cast %5 : vector<1x128xf32> to vector<128xf32>
    %c0_5 = arith.constant 0 : index
    %7 = arith.index_cast %0 : i32 to index
    %c0_6 = arith.constant 0 : index
    %c0_7 = arith.constant 0 : index
    %8 = vector.load %arg2[%c0_5, %7, %c0_6, %c0_7] : memref<1x16x16x128xbf16, #tpu.memory_space<vmem>>, vector<1x8x16x128xbf16>
    %9 = vector.shape_cast %8 : vector<1x8x16x128xbf16> to vector<8x16x128xbf16>
    %10 = arith.extf %9 : vector<8x16x128xbf16> to vector<8x16x128xf32>
    %11 = vector.shape_cast %2 : vector<128xf32> to vector<1x1x128xf32>
    %12 = vector.broadcast %11 : vector<1x1x128xf32> to vector<8x16x128xf32>
    %13 = arith.mulf %10, %12 : vector<8x16x128xf32>
    %14 = vector.shape_cast %4 : vector<128xf32> to vector<1x1x128xf32>
    %15 = vector.broadcast %14 : vector<1x1x128xf32> to vector<8x16x128xf32>
    %16 = arith.addf %13, %15 : vector<8x16x128xf32>
    %17 = vector.shape_cast %6 : vector<128xf32> to vector<1x1x128xf32>
    %18 = vector.broadcast %17 : vector<1x1x128xf32> to vector<8x16x128xf32>
    %19 = arith.maximumf %16, %18 : vector<8x16x128xf32>
    %c1_i32 = arith.constant 1 : i32
    %20 = arith.subi %0, %c1_i32 : i32
    %c0_i32 = arith.constant 0 : i32
    %21 = arith.maxsi %20, %c0_i32 : i32
    %c0_8 = arith.constant 0 : index
    %22 = arith.index_cast %21 : i32 to index
    %c0_9 = arith.constant 0 : index
    %c0_10 = arith.constant 0 : index
    %23 = vector.load %arg2[%c0_8, %22, %c0_9, %c0_10] : memref<1x16x16x128xbf16, #tpu.memory_space<vmem>>, vector<1x1x16x128xbf16>
    %24 = vector.shape_cast %23 : vector<1x1x16x128xbf16> to vector<1x16x128xbf16>
    %25 = arith.extf %24 : vector<1x16x128xbf16> to vector<1x16x128xf32>
    %26 = vector.shape_cast %2 : vector<128xf32> to vector<1x1x128xf32>
    %27 = vector.broadcast %26 : vector<1x1x128xf32> to vector<1x16x128xf32>
    %28 = arith.mulf %25, %27 : vector<1x16x128xf32>
    %29 = vector.shape_cast %4 : vector<128xf32> to vector<1x1x128xf32>
    %30 = vector.broadcast %29 : vector<1x1x128xf32> to vector<1x16x128xf32>
    %31 = arith.addf %28, %30 : vector<1x16x128xf32>
    %32 = vector.shape_cast %6 : vector<128xf32> to vector<1x1x128xf32>
    %33 = vector.broadcast %32 : vector<1x1x128xf32> to vector<1x16x128xf32>
    %34 = arith.maximumf %31, %33 : vector<1x16x128xf32>
    %c0_i32_11 = arith.constant 0 : i32
    %35 = arith.cmpi sgt, %arg1, %c0_i32_11 : i32
    %cst = arith.constant 0.000000e+00 : f32
    %36 = vector.broadcast %cst : f32 to vector<1x16x128xf32>
    %37 = arith.select %35, %34, %36 : vector<1x16x128xf32>
    %c8_i32_12 = arith.constant 8 : i32
    %38 = arith.addi %0, %c8_i32_12 : i32
    %c15_i32 = arith.constant 15 : i32
    %39 = arith.minsi %38, %c15_i32 : i32
    %c0_13 = arith.constant 0 : index
    %40 = arith.index_cast %39 : i32 to index
    %c0_14 = arith.constant 0 : index
    %c0_15 = arith.constant 0 : index
    %41 = vector.load %arg2[%c0_13, %40, %c0_14, %c0_15] : memref<1x16x16x128xbf16, #tpu.memory_space<vmem>>, vector<1x1x16x128xbf16>
    %42 = vector.shape_cast %41 : vector<1x1x16x128xbf16> to vector<1x16x128xbf16>
    %43 = arith.extf %42 : vector<1x16x128xbf16> to vector<1x16x128xf32>
    %44 = vector.shape_cast %2 : vector<128xf32> to vector<1x1x128xf32>
    %45 = vector.broadcast %44 : vector<1x1x128xf32> to vector<1x16x128xf32>
    %46 = arith.mulf %43, %45 : vector<1x16x128xf32>
    %47 = vector.shape_cast %4 : vector<128xf32> to vector<1x1x128xf32>
    %48 = vector.broadcast %47 : vector<1x1x128xf32> to vector<1x16x128xf32>
    %49 = arith.addf %46, %48 : vector<1x16x128xf32>
    %50 = vector.shape_cast %6 : vector<128xf32> to vector<1x1x128xf32>
    %51 = vector.broadcast %50 : vector<1x1x128xf32> to vector<1x16x128xf32>
    %52 = arith.maximumf %49, %51 : vector<1x16x128xf32>
    %c1_i32_16 = arith.constant 1 : i32
    %53 = arith.cmpi slt, %arg1, %c1_i32_16 : i32
    %cst_17 = arith.constant 0.000000e+00 : f32
    %54 = vector.broadcast %cst_17 : f32 to vector<1x16x128xf32>
    %55 = arith.select %53, %52, %54 : vector<1x16x128xf32>
    %56 = tpu.concatenate %37, %19, %55 in 0 : vector<1x16x128xf32>, vector<8x16x128xf32>, vector<1x16x128xf32> -> vector<10x16x128xf32>
    %cst_18 = arith.constant 0.000000e+00 : f32
    %57 = vector.broadcast %cst_18 : f32 to vector<10x1x128xf32>
    %58 = tpu.concatenate %57, %56, %57 in 1 : vector<10x1x128xf32>, vector<10x16x128xf32>, vector<10x1x128xf32> -> vector<10x18x128xf32>
    %cst_19 = arith.constant 0.000000e+00 : f32
    %59 = vector.broadcast %cst_19 : f32 to vector<128x128xf32>
    %60 = vector.extract_strided_slice %58 {offsets = [0, 0, 0], sizes = [10, 16, 128], strides = [1, 1, 1]} : vector<10x18x128xf32> to vector<10x16x128xf32>
    %61 = vector.shape_cast %60 : vector<10x16x128xf32> to vector<160x128xf32>
    %62 = vector.extract_strided_slice %61 {offsets = [0, 0], sizes = [128, 128], strides = [1, 1]} : vector<160x128xf32> to vector<128x128xf32>
    %63 = arith.truncf %62 : vector<128x128xf32> to vector<128x128xbf16>
    %c0_20 = arith.constant 0 : index
    %c0_21 = arith.constant 0 : index
    %c0_22 = arith.constant 0 : index
    %64 = vector.load %arg3[%c0_20, %c0_21, %c0_22] : memref<9x128x128xbf16, #tpu.memory_space<vmem>>, vector<1x128x128xbf16>
    %65 = vector.shape_cast %64 : vector<1x128x128xbf16> to vector<128x128xbf16>
    %cst_23 = arith.constant dense<0.000000e+00> : vector<128x128xf32>
    %66 = tpu.matmul %63, %65, %cst_23 {dimension_numbers = #tpu.dot_dimension_numbers<[1], [0], [0], [1], [0, 0, 1, 1], [], []>} : vector<128x128xbf16>, vector<128x128xbf16>, vector<128x128xf32> -> vector<128x128xf32>
    %67 = arith.addf %59, %66 : vector<128x128xf32>
    %68 = vector.extract_strided_slice %61 {offsets = [16, 0], sizes = [128, 128], strides = [1, 1]} : vector<160x128xf32> to vector<128x128xf32>
    %69 = arith.truncf %68 : vector<128x128xf32> to vector<128x128xbf16>
    %c3 = arith.constant 3 : index
    %c0_24 = arith.constant 0 : index
    %c0_25 = arith.constant 0 : index
    %70 = vector.load %arg3[%c3, %c0_24, %c0_25] : memref<9x128x128xbf16, #tpu.memory_space<vmem>>, vector<1x128x128xbf16>
    %71 = vector.shape_cast %70 : vector<1x128x128xbf16> to vector<128x128xbf16>
    %cst_26 = arith.constant dense<0.000000e+00> : vector<128x128xf32>
    %72 = tpu.matmul %69, %71, %cst_26 {dimension_numbers = #tpu.dot_dimension_numbers<[1], [0], [0], [1], [0, 0, 1, 1], [], []>} : vector<128x128xbf16>, vector<128x128xbf16>, vector<128x128xf32> -> vector<128x128xf32>
    %73 = arith.addf %67, %72 : vector<128x128xf32>
    %74 = vector.extract_strided_slice %61 {offsets = [32, 0], sizes = [128, 128], strides = [1, 1]} : vector<160x128xf32> to vector<128x128xf32>
    %75 = arith.truncf %74 : vector<128x128xf32> to vector<128x128xbf16>
    %c6 = arith.constant 6 : index
    %c0_27 = arith.constant 0 : index
    %c0_28 = arith.constant 0 : index
    %76 = vector.load %arg3[%c6, %c0_27, %c0_28] : memref<9x128x128xbf16, #tpu.memory_space<vmem>>, vector<1x128x128xbf16>
    %77 = vector.shape_cast %76 : vector<1x128x128xbf16> to vector<128x128xbf16>
    %cst_29 = arith.constant dense<0.000000e+00> : vector<128x128xf32>
    %78 = tpu.matmul %75, %77, %cst_29 {dimension_numbers = #tpu.dot_dimension_numbers<[1], [0], [0], [1], [0, 0, 1, 1], [], []>} : vector<128x128xbf16>, vector<128x128xbf16>, vector<128x128xf32> -> vector<128x128xf32>
    %79 = arith.addf %73, %78 : vector<128x128xf32>
    %80 = vector.extract_strided_slice %58 {offsets = [0, 1, 0], sizes = [10, 16, 128], strides = [1, 1, 1]} : vector<10x18x128xf32> to vector<10x16x128xf32>
    %81 = vector.shape_cast %80 : vector<10x16x128xf32> to vector<160x128xf32>
    %82 = vector.extract_strided_slice %81 {offsets = [0, 0], sizes = [128, 128], strides = [1, 1]} : vector<160x128xf32> to vector<128x128xf32>
    %83 = arith.truncf %82 : vector<128x128xf32> to vector<128x128xbf16>
    %c1 = arith.constant 1 : index
    %c0_30 = arith.constant 0 : index
    %c0_31 = arith.constant 0 : index
    %84 = vector.load %arg3[%c1, %c0_30, %c0_31] : memref<9x128x128xbf16, #tpu.memory_space<vmem>>, vector<1x128x128xbf16>
    %85 = vector.shape_cast %84 : vector<1x128x128xbf16> to vector<128x128xbf16>
    %cst_32 = arith.constant dense<0.000000e+00> : vector<128x128xf32>
    %86 = tpu.matmul %83, %85, %cst_32 {dimension_numbers = #tpu.dot_dimension_numbers<[1], [0], [0], [1], [0, 0, 1, 1], [], []>} : vector<128x128xbf16>, vector<128x128xbf16>, vector<128x128xf32> -> vector<128x128xf32>
    %87 = arith.addf %79, %86 : vector<128x128xf32>
    %88 = vector.extract_strided_slice %81 {offsets = [16, 0], sizes = [128, 128], strides = [1, 1]} : vector<160x128xf32> to vector<128x128xf32>
    %89 = arith.truncf %88 : vector<128x128xf32> to vector<128x128xbf16>
    %c4 = arith.constant 4 : index
    %c0_33 = arith.constant 0 : index
    %c0_34 = arith.constant 0 : index
    %90 = vector.load %arg3[%c4, %c0_33, %c0_34] : memref<9x128x128xbf16, #tpu.memory_space<vmem>>, vector<1x128x128xbf16>
    %91 = vector.shape_cast %90 : vector<1x128x128xbf16> to vector<128x128xbf16>
    %cst_35 = arith.constant dense<0.000000e+00> : vector<128x128xf32>
    %92 = tpu.matmul %89, %91, %cst_35 {dimension_numbers = #tpu.dot_dimension_numbers<[1], [0], [0], [1], [0, 0, 1, 1], [], []>} : vector<128x128xbf16>, vector<128x128xbf16>, vector<128x128xf32> -> vector<128x128xf32>
    %93 = arith.addf %87, %92 : vector<128x128xf32>
    %94 = vector.extract_strided_slice %81 {offsets = [32, 0], sizes = [128, 128], strides = [1, 1]} : vector<160x128xf32> to vector<128x128xf32>
    %95 = arith.truncf %94 : vector<128x128xf32> to vector<128x128xbf16>
    %c7 = arith.constant 7 : index
    %c0_36 = arith.constant 0 : index
    %c0_37 = arith.constant 0 : index
    %96 = vector.load %arg3[%c7, %c0_36, %c0_37] : memref<9x128x128xbf16, #tpu.memory_space<vmem>>, vector<1x128x128xbf16>
    %97 = vector.shape_cast %96 : vector<1x128x128xbf16> to vector<128x128xbf16>
    %cst_38 = arith.constant dense<0.000000e+00> : vector<128x128xf32>
    %98 = tpu.matmul %95, %97, %cst_38 {dimension_numbers = #tpu.dot_dimension_numbers<[1], [0], [0], [1], [0, 0, 1, 1], [], []>} : vector<128x128xbf16>, vector<128x128xbf16>, vector<128x128xf32> -> vector<128x128xf32>
    %99 = arith.addf %93, %98 : vector<128x128xf32>
    %100 = vector.extract_strided_slice %58 {offsets = [0, 2, 0], sizes = [10, 16, 128], strides = [1, 1, 1]} : vector<10x18x128xf32> to vector<10x16x128xf32>
    %101 = vector.shape_cast %100 : vector<10x16x128xf32> to vector<160x128xf32>
    %102 = vector.extract_strided_slice %101 {offsets = [0, 0], sizes = [128, 128], strides = [1, 1]} : vector<160x128xf32> to vector<128x128xf32>
    %103 = arith.truncf %102 : vector<128x128xf32> to vector<128x128xbf16>
    %c2 = arith.constant 2 : index
    %c0_39 = arith.constant 0 : index
    %c0_40 = arith.constant 0 : index
    %104 = vector.load %arg3[%c2, %c0_39, %c0_40] : memref<9x128x128xbf16, #tpu.memory_space<vmem>>, vector<1x128x128xbf16>
    %105 = vector.shape_cast %104 : vector<1x128x128xbf16> to vector<128x128xbf16>
    %cst_41 = arith.constant dense<0.000000e+00> : vector<128x128xf32>
    %106 = tpu.matmul %103, %105, %cst_41 {dimension_numbers = #tpu.dot_dimension_numbers<[1], [0], [0], [1], [0, 0, 1, 1], [], []>} : vector<128x128xbf16>, vector<128x128xbf16>, vector<128x128xf32> -> vector<128x128xf32>
    %107 = arith.addf %99, %106 : vector<128x128xf32>
    %108 = vector.extract_strided_slice %101 {offsets = [16, 0], sizes = [128, 128], strides = [1, 1]} : vector<160x128xf32> to vector<128x128xf32>
    %109 = arith.truncf %108 : vector<128x128xf32> to vector<128x128xbf16>
    %c5 = arith.constant 5 : index
    %c0_42 = arith.constant 0 : index
    %c0_43 = arith.constant 0 : index
    %110 = vector.load %arg3[%c5, %c0_42, %c0_43] : memref<9x128x128xbf16, #tpu.memory_space<vmem>>, vector<1x128x128xbf16>
    %111 = vector.shape_cast %110 : vector<1x128x128xbf16> to vector<128x128xbf16>
    %cst_44 = arith.constant dense<0.000000e+00> : vector<128x128xf32>
    %112 = tpu.matmul %109, %111, %cst_44 {dimension_numbers = #tpu.dot_dimension_numbers<[1], [0], [0], [1], [0, 0, 1, 1], [], []>} : vector<128x128xbf16>, vector<128x128xbf16>, vector<128x128xf32> -> vector<128x128xf32>
    %113 = arith.addf %107, %112 : vector<128x128xf32>
    %114 = vector.extract_strided_slice %101 {offsets = [32, 0], sizes = [128, 128], strides = [1, 1]} : vector<160x128xf32> to vector<128x128xf32>
    %115 = arith.truncf %114 : vector<128x128xf32> to vector<128x128xbf16>
    %c8 = arith.constant 8 : index
    %c0_45 = arith.constant 0 : index
    %c0_46 = arith.constant 0 : index
    %116 = vector.load %arg3[%c8, %c0_45, %c0_46] : memref<9x128x128xbf16, #tpu.memory_space<vmem>>, vector<1x128x128xbf16>
    %117 = vector.shape_cast %116 : vector<1x128x128xbf16> to vector<128x128xbf16>
    %cst_47 = arith.constant dense<0.000000e+00> : vector<128x128xf32>
    %118 = tpu.matmul %115, %117, %cst_47 {dimension_numbers = #tpu.dot_dimension_numbers<[1], [0], [0], [1], [0, 0, 1, 1], [], []>} : vector<128x128xbf16>, vector<128x128xbf16>, vector<128x128xf32> -> vector<128x128xf32>
    %119 = arith.addf %113, %118 : vector<128x128xf32>
    %120 = vector.shape_cast %119 : vector<128x128xf32> to vector<8x16x128xf32>
    %121 = arith.truncf %120 : vector<8x16x128xf32> to vector<8x16x128xbf16>
    %c0_48 = arith.constant 0 : index
    %c0_49 = arith.constant 0 : index
    %c0_50 = arith.constant 0 : index
    %c0_51 = arith.constant 0 : index
    %122 = vector.load %arg7[%c0_48, %c0_49, %c0_50, %c0_51] : memref<1x8x16x128xbf16, #tpu.memory_space<vmem>>, vector<1x8x16x128xbf16>
    %123 = vector.shape_cast %122 : vector<1x8x16x128xbf16> to vector<8x16x128xbf16>
    %124 = vector.shape_cast %121 : vector<8x16x128xbf16> to vector<1x8x16x128xbf16>
    tpu.vector_store %arg7[%c0_48, %c0_49, %c0_50, %c0_51], %124 {strides = array<i32>} : memref<1x8x16x128xbf16, #tpu.memory_space<vmem>>, vector<1x8x16x128xbf16>,
    %cst_52 = arith.constant dense<0.000000e+00> : vector<128xf32>
    %125 = vector.multi_reduction <add>, %119, %cst_52 [0] : vector<128x128xf32> to vector<128xf32>
    %126 = vector.shape_cast %125 : vector<128xf32> to vector<1x128xf32>
    %127 = arith.mulf %119, %119 : vector<128x128xf32>
    %cst_53 = arith.constant dense<0.000000e+00> : vector<128xf32>
    %128 = vector.multi_reduction <add>, %127, %cst_53 [0] : vector<128x128xf32> to vector<128xf32>
    %129 = vector.shape_cast %128 : vector<128xf32> to vector<1x128xf32>
    %130 = tpu.concatenate %126, %129 in 0 : vector<1x128xf32>, vector<1x128xf32> -> vector<2x128xf32>
    %c0_54 = arith.constant 0 : index
    %c0_55 = arith.constant 0 : index
    %c0_56 = arith.constant 0 : index
    %c0_57 = arith.constant 0 : index
    %131 = vector.load %arg8[%c0_54, %c0_55, %c0_56, %c0_57] : memref<1x1x2x128xf32, #tpu.memory_space<vmem>>, vector<1x1x2x128xf32>
    %132 = vector.shape_cast %131 : vector<1x1x2x128xf32> to vector<2x128xf32>
    %133 = vector.shape_cast %130 : vector<2x128xf32> to vector<1x1x2x128xf32>
    tpu.vector_store %arg8[%c0_54, %c0_55, %c0_56, %c0_57], %133 {strides = array<i32>} : memref<1x1x2x128xf32, #tpu.memory_space<vmem>>, vector<1x1x2x128xf32>,
    return
  }
  func.func @transform_0(%arg0: i32, %arg1: i32) -> (i32, i32, i32, i32) {
    %c0_i32 = arith.constant 0 : i32
    %c0_i32_0 = arith.constant 0 : i32
    %c0_i32_1 = arith.constant 0 : i32
    %c0_i32_2 = arith.constant 0 : i32
    return %arg0, %c0_i32, %c0_i32_0, %c0_i32_1 : i32, i32, i32, i32
  }
  func.func @transform_1(%arg0: i32, %arg1: i32) -> (i32, i32, i32) {
    %c0_i32 = arith.constant 0 : i32
    %c0_i32_0 = arith.constant 0 : i32
    %c0_i32_1 = arith.constant 0 : i32
    %c0_i32_2 = arith.constant 0 : i32
    return %c0_i32, %c0_i32_0, %c0_i32_1 : i32, i32, i32
  }
  func.func @transform_2(%arg0: i32, %arg1: i32) -> (i32, i32) {
    %c0_i32 = arith.constant 0 : i32
    %c0_i32_0 = arith.constant 0 : i32
    %c0_i32_1 = arith.constant 0 : i32
    return %c0_i32, %c0_i32_0 : i32, i32
  }
  func.func @transform_3(%arg0: i32, %arg1: i32) -> (i32, i32) {
    %c0_i32 = arith.constant 0 : i32
    %c0_i32_0 = arith.constant 0 : i32
    %c0_i32_1 = arith.constant 0 : i32
    return %c0_i32, %c0_i32_0 : i32, i32
  }
  func.func @transform_4(%arg0: i32, %arg1: i32) -> (i32, i32) {
    %c0_i32 = arith.constant 0 : i32
    %c0_i32_0 = arith.constant 0 : i32
    %c0_i32_1 = arith.constant 0 : i32
    return %c0_i32, %c0_i32_0 : i32, i32
  }
  func.func @transform_5(%arg0: i32, %arg1: i32) -> (i32, i32, i32, i32) {
    %c0_i32 = arith.constant 0 : i32
    %c0_i32_0 = arith.constant 0 : i32
    %c0_i32_1 = arith.constant 0 : i32
    return %arg0, %arg1, %c0_i32, %c0_i32_0 : i32, i32, i32, i32
  }
  func.func @transform_6(%arg0: i32, %arg1: i32) -> (i32, i32, i32, i32) {
    %c0_i32 = arith.constant 0 : i32
    %c0_i32_0 = arith.constant 0 : i32
    %c0_i32_1 = arith.constant 0 : i32
    return %arg0, %arg1, %c0_i32, %c0_i32_0 : i32, i32, i32, i32
  }
}

</mosaic_0001>

<llo_original>
// kernel: deeplab_decoder_forward.4
$region0: #{deeplab_decoder_forward.4}
  #allocation0 [shape = 'u32[]', space=smem, size = 0x4, offset = 0x4, fixed_abs, tag = 'smem constant byte address 0x4 - core index']
  #allocation1 [shape = 'u32[144,128]{1,0:T(1,128)}', space=vmem, size = 0x12000, scoped, tag = 'internal scratch']
  %s0 = inlined_call_operand.vmem [shape: bf16[2,16,16,4], index: 0, kind: input, shape index: {}]
  %s1 = inlined_call_operand.vmem [shape: bf16[2,8,16,32], index: 1, kind: input, shape index: {}]
  %s2 = inlined_call_operand.vmem [shape: bf16[4,48], index: 2, kind: input, shape index: {}]
  %s3 = inlined_call_operand.vmem [shape: bf16[2,16,16,80], index: 3, kind: output, shape index: {0}]
  %s4 = inlined_call_operand.vmem [shape: f32[2,2,2,48], index: 4, kind: output, shape index: {1}]
  %5 = xla_tuple %s3, %s4
  %s6 = sld [smem:[#allocation0]]
  $region53: #{deeplab_decoder_forward.4} parent=0
    _
  %s8 = ssub.s32 1, %s6
  %s9 = scalar_select 0, %s8, %s6
  loop: start=0, step=1, limit=6
  $region2: #{deeplab_decoder_forward.4} parent=0 // loop_pre_header
    _
  $region3: #{deeplab_decoder_forward.4} parent=0 // loop_header
    %s11 = sphi 0, %s15
    %p12 = scmp.ge.s32.totalorder %s11, 6
    %s18 = sphi 0, %s30
    %s19 = sphi 0, %s26
    %s20 = sphi 0, %s18
    %s21 = sphi 0, %s19
    %s22 = sphi 0, %s20
    %s23 = sphi 0, %s21
    %s35 = sphi 0, %s37
    %s38 = sphi 0, %s35
    %s39 = sphi 0, %s38
    %s55 = sphi 0, %s39
    %s61 = sphi 0, %s63
    %s64 = sphi 0, %s61
    %s65 = sphi 0, %s64
    %s81 = sphi 0, %s65
    %s85 = sphi 0, %s85
    %s87 = sphi 0, %s85
    %s88 = sphi 0, %s87
    %s102 = sphi 0, %s88
    %s110 = sphi 0, %s112
    %s113 = sphi 0, %s110
    %s114 = sphi 0, %s113
    %s130 = sphi 0, %s114
    %s138 = sphi 0, %s140
    %s141 = sphi 0, %s138
    %s142 = sphi 0, %s141
    %s158 = sphi 0, %s142
  $region4: #{deeplab_decoder_forward.4} parent=0 // loop_header_branch
    %14 = sbr.rel (%p12) target = $region8
  $region5: #{deeplab_decoder_forward.4} parent=0 // loop_body
    %s16 = ssub.s32 %s11, 1
    %s17 = ssub.s32 %s11, 2
    %s24 = sadd.s32 1, %s19
    %p25 = scmp.ge.s32.totalorder %s24, 2
    %s26 = scalar_select %p25, 0, %s24
    %s27 = sadd.s32 1, %s18
    %s28 = scalar_select %p25, %s27, %s18
    %p29 = scmp.ge.s32.totalorder %s28, 2
    %s30 = scalar_select %p29, 0, %s28
    %s31 = ssub.s32 %s18, %s30
    %s32 = ssub.s32 %s19, %s26
    %s33 = sor.u32 %s31, %s32
    %p34 = scmp.eq.s32.totalorder %s33, 0
    %s36 = sadd.s32 %s35, 1
    %s37 = scalar_select %p34, %s35, %s36
    %p40 = pneg %p34
    %p41 = scmp.eq.s32.totalorder %s11, 3
    %p42 = por %p40, %p41
    %p43 = scmp.ne.s32.totalorder %s35, %s38
    %p44 = scmp.eq.s32.totalorder %s11, 0
    %p45 = por %p43, %p44
    %p46 = scmp.ne.s32.totalorder %s35, %s38
    %p47 = scmp.eq.s32.totalorder %s16, 3
    %p48 = por %p46, %p47
    %p49 = scmp.ne.s32.totalorder %s38, %s39
    %p50 = scmp.eq.s32.totalorder %s16, 0
    %p51 = por %p49, %p50
    %p52 = scmp.ne.s32.totalorder %s38, %s39
    %p53 = scmp.eq.s32.totalorder %s17, 3
    %p54 = por %p52, %p53
    %p56 = scmp.ne.s32.totalorder %s39, %s55
    %p57 = scmp.eq.s32.totalorder %s17, 0
    %p58 = por %p56, %p57
    %s59 = ssub.s32 %s18, %s30
    %p60 = scmp.eq.s32.totalorder %s59, 0
    %s62 = sadd.s32 %s61, 1
    %s63 = scalar_select %p60, %s61, %s62
    %p66 = pneg %p60
    %p67 = scmp.eq.s32.totalorder %s11, 3
    %p68 = por %p66, %p67
    %p69 = scmp.ne.s32.totalorder %s61, %s64
    %p70 = scmp.eq.s32.totalorder %s11, 0
    %p71 = por %p69, %p70
    %p72 = scmp.ne.s32.totalorder %s61, %s64
    %p73 = scmp.eq.s32.totalorder %s16, 3
    %p74 = por %p72, %p73
    %p75 = scmp.ne.s32.totalorder %s64, %s65
    %p76 = scmp.eq.s32.totalorder %s16, 0
    %p77 = por %p75, %p76
    %p78 = scmp.ne.s32.totalorder %s64, %s65
    %p79 = scmp.eq.s32.totalorder %s17, 3
    %p80 = por %p78, %p79
    %p82 = scmp.ne.s32.totalorder %s65, %s81
    %p83 = scmp.eq.s32.totalorder %s17, 0
    %p84 = por %p82, %p83
    %s86 = sadd.s32 %s85, 1
    %p89 = scmp.eq.s32.totalorder %s11, 3
    %p90 = scmp.ne.s32.totalorder %s85, %s87
    %p91 = scmp.eq.s32.totalorder %s11, 0
    %p92 = por %p90, %p91
    %p93 = scmp.ne.s32.totalorder %s85, %s87
    %p94 = scmp.eq.s32.totalorder %s16, 3
    %p95 = por %p93, %p94
    %p96 = scmp.ne.s32.totalorder %s87, %s88
    %p97 = scmp.eq.s32.totalorder %s16, 0
    %p98 = por %p96, %p97
    %p99 = scmp.ne.s32.totalorder %s87, %s88
    %p100 = scmp.eq.s32.totalorder %s17, 3
    %p101 = por %p99, %p100
    %p103 = scmp.ne.s32.totalorder %s88, %s102
    %p104 = scmp.eq.s32.totalorder %s17, 0
    %p105 = por %p103, %p104
    %s106 = ssub.s32 %s18, %s30
    %s107 = ssub.s32 %s19, %s26
    %s108 = sor.u32 %s106, %s107
    %p109 = scmp.eq.s32.totalorder %s108, 0
    %s111 = sadd.s32 %s110, 1
    %s112 = scalar_select %p109, %s110, %s111
    %p115 = pneg %p109
    %p116 = scmp.eq.s32.totalorder %s11, 3
    %p117 = por %p115, %p116
    %p118 = scmp.ne.s32.totalorder %s110, %s113
    %p119 = scmp.eq.s32.totalorder %s11, 0
    %p120 = por %p118, %p119
    %p121 = scmp.ne.s32.totalorder %s110, %s113
    %p122 = scmp.eq.s32.totalorder %s16, 3
    %p123 = por %p121, %p122
    %p124 = scmp.ne.s32.totalorder %s113, %s114
    %p125 = scmp.eq.s32.totalorder %s16, 0
    %p126 = por %p124, %p125
    %p127 = scmp.ne.s32.totalorder %s113, %s114
    %p128 = scmp.eq.s32.totalorder %s17, 3
    %p129 = por %p127, %p128
    %p131 = scmp.ne.s32.totalorder %s114, %s130
    %p132 = scmp.eq.s32.totalorder %s17, 0
    %p133 = por %p131, %p132
    %s134 = ssub.s32 %s18, %s30
    %s135 = ssub.s32 %s19, %s26
    %s136 = sor.u32 %s134, %s135
    %p137 = scmp.eq.s32.totalorder %s136, 0
    %s139 = sadd.s32 %s138, 1
    %s140 = scalar_select %p137, %s138, %s139
    %p143 = pneg %p137
    %p144 = scmp.eq.s32.totalorder %s11, 3
    %p145 = por %p143, %p144
    %p146 = scmp.ne.s32.totalorder %s138, %s141
    %p147 = scmp.eq.s32.totalorder %s11, 0
    %p148 = por %p146, %p147
    %p149 = scmp.ne.s32.totalorder %s138, %s141
    %p150 = scmp.eq.s32.totalorder %s16, 3
    %p151 = por %p149, %p150
    %p152 = scmp.ne.s32.totalorder %s141, %s142
    %p153 = scmp.eq.s32.totalorder %s16, 0
    %p154 = por %p152, %p153
    %p155 = scmp.ne.s32.totalorder %s141, %s142
    %p156 = scmp.eq.s32.totalorder %s17, 3
    %p157 = por %p155, %p156
    %p159 = scmp.ne.s32.totalorder %s142, %s158
    %p160 = scmp.eq.s32.totalorder %s17, 0
    %p161 = por %p159, %p160
    %p162 = scmp.le.s32.totalorder 1, %s11
    %p163 = scmp.lt.s32.totalorder %s11, 5
    %p164 = pnand %p162, %p163
    %p165 = pneg %p164
    // Predicated region
    $region9: #{deeplab_decoder_forward.4} parent=5 // pred_check
      _
    $region10: #{deeplab_decoder_forward.4} parent=5 // pred_check_branch
      %167 = sbr.rel (%p164) target = $region12
    $region11: #{deeplab_decoder_forward.4} parent=5 // pred_region
      %s168 = ssub.s32 %s11, 1
      // Predicated region
      $region13: #{deeplab_decoder_forward.4} parent=11 // pred_check
        %p169 = pneg %p98
      $region14: #{deeplab_decoder_forward.4} parent=11 // pred_check_branch
        %171 = sbr.rel (%p169) target = $region16
      $region15: #{deeplab_decoder_forward.4} parent=11 // pred_region
        _
      $region16: #{deeplab_decoder_forward.4} parent=11 // pred_fallthru
        _
    $region12: #{deeplab_decoder_forward.4} parent=5 // pred_fallthru
      _
    %p172 = scmp.lt.s32.totalorder %s11, 4
    // Predicated region
    $region17: #{deeplab_decoder_forward.4} parent=5 // pred_check
      %p173 = pneg %p172
    $region18: #{deeplab_decoder_forward.4} parent=5 // pred_check_branch
      %175 = sbr.rel (%p173) target = $region20
    $region19: #{deeplab_decoder_forward.4} parent=5 // pred_region
      // Predicated region
      $region21: #{deeplab_decoder_forward.4} parent=19 // pred_check
        %p176 = pneg %p45
      $region22: #{deeplab_decoder_forward.4} parent=19 // pred_check_branch
        %178 = sbr.rel (%p176) target = $region24
      $region23: #{deeplab_decoder_forward.4} parent=19 // pred_region
        %s179 = smul.u32 8, %s19
        %p180 = scmp.lt.s32.totalorder %s18, 1
        %s181 = scalar_select %p180, %s18, 1
        %p182 = scmp.lt.s32.totalorder %s179, 15
        %s183 = scalar_select %p182, %s179, 15
        %s184 = smul.addr %s183, 2
        %s185 = smul.addr %s181, 32
        %s186 = sadd.s32 %s184, %s185
        %s187 = smul.addr %s186, 4
        %s188 = scalar_lea.vmem %s0, %s187
        %s189 = smul.u32 8, %s19
      $region24: #{deeplab_decoder_forward.4} parent=19 // pred_fallthru
        _
      // Predicated region
      $region25: #{deeplab_decoder_forward.4} parent=19 // pred_check
        %p190 = pneg %p71
      $region26: #{deeplab_decoder_forward.4} parent=19 // pred_check_branch
        %192 = sbr.rel (%p190) target = $region28
      $region27: #{deeplab_decoder_forward.4} parent=19 // pred_region
        %p193 = scmp.lt.s32.totalorder %s18, 1
        %s194 = scalar_select %p193, %s18, 1
        %s195 = smul.addr %s194, 16
        %s196 = smul.addr %s195, 4
        %s197 = scalar_lea.vmem %s1, %s196
      $region28: #{deeplab_decoder_forward.4} parent=19 // pred_fallthru
        _
    $region20: #{deeplab_decoder_forward.4} parent=5 // pred_fallthru
      _
    %p198 = scmp.le.s32.totalorder 1, %s11
    %p199 = scmp.lt.s32.totalorder %s11, 5
    %p200 = pnand %p198, %p199
    %p201 = pneg %p200
    // Predicated region
    $region29: #{deeplab_decoder_forward.4} parent=5 // pred_check
      _
    $region30: #{deeplab_decoder_forward.4} parent=5 // pred_check_branch
      %203 = sbr.rel (%p200) target = $region32
    $region31: #{deeplab_decoder_forward.4} parent=5 // pred_region
      %s204 = ssub.s32 %s11, 1
      %s205 = smul.u32 8, %s21
      %p206 = scmp.lt.s32.totalorder %s20, 1
      %s207 = scalar_select %p206, %s20, 1
      %p208 = scmp.lt.s32.totalorder %s205, 15
      %s209 = scalar_select %p208, %s205, 15
      %s210 = smul.addr %s209, 2
      %s211 = smul.addr %s207, 32
      %s212 = sadd.s32 %s210, %s211
      %s213 = smul.addr %s212, 4
      %s214 = scalar_lea.vmem %s0, %s213
      %p215 = pneg %p51
      %p216 = pneg %p48
      %p217 = scmp.lt.s32.totalorder %s20, 1
      %s218 = scalar_select %p217, %s20, 1
      %s219 = smul.addr %s218, 16
      %s220 = smul.addr %s219, 4
      %s221 = scalar_lea.vmem %s1, %s220
      %p222 = pneg %p77
      %p223 = pneg %p74
      %p224 = pneg %p98
      %p225 = pneg %p95
      %p226 = pneg %p126
      %p227 = pneg %p123
      %s228 = smul.u32 8, %s21
      %p229 = scmp.lt.s32.totalorder %s20, 1
      %s230 = scalar_select %p229, %s20, 1
      %p231 = scmp.lt.s32.totalorder %s228, 15
      %s232 = scalar_select %p231, %s228, 15
      %s233 = smul.addr %s232, 2
      %s234 = smul.addr %s230, 32
      %s235 = sadd.s32 %s233, %s234
      %s236 = smul.addr %s235, 4
      %s237 = scalar_lea.vmem %s3, %s236
      %p238 = pneg %p154
      %p239 = pneg %p151
      %p240 = scmp.lt.s32.totalorder %s20, 1
      %s241 = scalar_select %p240, %s20, 1
      %p242 = scmp.lt.s32.totalorder %s21, 1
      %s243 = scalar_select %p242, %s21, 1
      %s244 = smul.addr %s241, 2
      %s245 = sadd.s32 %s243, %s244
      %s246 = smul.addr %s245, 2
      %s247 = scalar_lea.vmem %s4, %s246
      %s248 = smul.u32 8, %s21
      %p249 = scmp.lt.s32.totalorder %s20, 1
      %s250 = scalar_select %p249, %s20, 1
      %p251 = scmp.lt.s32.totalorder %s248, 15
      %s252 = scalar_select %p251, %s248, 15
      %s253 = smul.addr %s252, 2
      %s254 = smul.addr %s250, 32
      %s255 = sadd.s32 %s253, %s254
      %s256 = smul.addr %s255, 4
      %s257 = scalar_lea.vmem %s0, %s256
      %s258 = smul.u32 8, %s21
      %p259 = scmp.lt.s32.totalorder %s20, 1
      %s260 = scalar_select %p259, %s20, 1
      %s261 = smul.addr %s260, 16
      %s262 = smul.addr %s261, 4
      %s263 = scalar_lea.vmem %s1, %s262
      %s264 = smul.u32 8, %s21
      %p265 = scmp.lt.s32.totalorder %s20, 1
      %s266 = scalar_select %p265, %s20, 1
      %p267 = scmp.lt.s32.totalorder %s264, 15
      %s268 = scalar_select %p267, %s264, 15
      %s269 = smul.addr %s268, 2
      %s270 = smul.addr %s266, 32
      %s271 = sadd.s32 %s269, %s270
      %s272 = smul.addr %s271, 4
      %s273 = scalar_lea.vmem %s3, %s272
      %s274 = smul.u32 8, %s21
      %p275 = scmp.lt.s32.totalorder %s20, 1
      %s276 = scalar_select %p275, %s20, 1
      %p277 = scmp.lt.s32.totalorder %s21, 1
      %s278 = scalar_select %p277, %s21, 1
      %s279 = smul.addr %s276, 2
      %s280 = sadd.s32 %s278, %s279
      %s281 = smul.addr %s280, 2
      %s282 = scalar_lea.vmem %s4, %s281
      %s284 = smul.u32 %s21, 8
      %s285 = scvt.s32.f32 %s284
      %s286 = sadd.f32 %s285, 0.5
      %s287 = smul.f32 %s286, 0.5
      %s288 = ssub.f32 %s287, 0.5
      %s289 = smax.f32 %s288, 0.0
      %s290 = scvt.f32.s32.to.zero.pseudo %s289
      %s291 = scvt.s32.f32 %s290
      %s292 = ssub.f32 %s289, %s291
      %s293 = sadd.s32 %s290, 1
      %p294 = scmp.lt.s32.totalorder %s293, 7
      %s295 = scalar_select %p294, %s293, 7
      %s296 = smul.u32 %s290, 2
      %s297 = smul.addr %s296, 4
      %s298 = scalar_lea.vmem %s263, %s297
      %v299 = vld [vmem:[%s298] sm:$0xf]
      %v300 = vld [vmem:[%s298 + $0x4] sm:$0xf]
      %v301 = vunpack.c.l.bf16 %v299
      %v302 = vunpack.c.l.bf16 %v300
      %s303 = smul.u32 %s295, 2
      %s304 = smul.addr %s303, 4
      %s305 = scalar_lea.vmem %s263, %s304
      %v306 = vld [vmem:[%s305] sm:$0xf]
      %v307 = vld [vmem:[%s305 + $0x4] sm:$0xf]
      %v308 = vunpack.c.l.bf16 %v306
      %v309 = vunpack.c.l.bf16 %v307
      %s310 = ssub.f32 1.0, %s292
      %v311 = vstv %s310
      %v312 = vmul.f32 %v311, %v301
      %v313 = vmul.f32 %v311, %v302
      %v314 = vstv %s292
      %v315 = vmul.f32 %v314, %v308
      %v316 = vmul.f32 %v314, %v309
      %v317 = vadd.f32 %v312, %v315
      %v318 = vadd.f32 %v313, %v316
      %s319 = sadd.s32 %s284, 1
      %s320 = scvt.s32.f32 %s319
      %s321 = sadd.f32 %s320, 0.5
      %s322 = smul.f32 %s321, 0.5
      %s323 = ssub.f32 %s322, 0.5
      %s324 = smax.f32 %s323, 0.0
      %s325 = scvt.f32.s32.to.zero.pseudo %s324
      %s326 = scvt.s32.f32 %s325
      %s327 = ssub.f32 %s324, %s326
      %s328 = sadd.s32 %s325, 1
      %p329 = scmp.lt.s32.totalorder %s328, 7
      %s330 = scalar_select %p329, %s328, 7
      %s331 = smul.u32 %s325, 2
      %s332 = smul.addr %s331, 4
      %s333 = scalar_lea.vmem %s263, %s332
      %v334 = vld [vmem:[%s333] sm:$0xf]
      %v335 = vld [vmem:[%s333 + $0x4] sm:$0xf]
      %v336 = vunpack.c.l.bf16 %v334
      %v337 = vunpack.c.l.bf16 %v335
      %s338 = smul.u32 %s330, 2
      %s339 = smul.addr %s338, 4
      %s340 = scalar_lea.vmem %s263, %s339
      %v341 = vld [vmem:[%s340] sm:$0xf]
      %v342 = vld [vmem:[%s340 + $0x4] sm:$0xf]
      %v343 = vunpack.c.l.bf16 %v341
      %v344 = vunpack.c.l.bf16 %v342
      %s345 = ssub.f32 1.0, %s327
      %v346 = vstv %s345
      %v347 = vmul.f32 %v346, %v336
      %v348 = vmul.f32 %v346, %v337
      %v349 = vstv %s327
      %v350 = vmul.f32 %v349, %v343
      %v351 = vmul.f32 %v349, %v344
      %v352 = vadd.f32 %v347, %v350
      %v353 = vadd.f32 %v348, %v351
      %s354 = sadd.s32 %s284, 2
      %s355 = scvt.s32.f32 %s354
      %s356 = sadd.f32 %s355, 0.5
      %s357 = smul.f32 %s356, 0.5
      %s358 = ssub.f32 %s357, 0.5
      %s359 = smax.f32 %s358, 0.0
      %s360 = scvt.f32.s32.to.zero.pseudo %s359
      %s361 = scvt.s32.f32 %s360
      %s362 = ssub.f32 %s359, %s361
      %s363 = sadd.s32 %s360, 1
      %p364 = scmp.lt.s32.totalorder %s363, 7
      %s365 = scalar_select %p364, %s363, 7
      %s366 = smul.u32 %s360, 2
      %s367 = smul.addr %s366, 4
      %s368 = scalar_lea.vmem %s263, %s367
      %v369 = vld [vmem:[%s368] sm:$0xf]
      %v370 = vld [vmem:[%s368 + $0x4] sm:$0xf]
      %v371 = vunpack.c.l.bf16 %v369
      %v372 = vunpack.c.l.bf16 %v370
      %s373 = smul.u32 %s365, 2
      %s374 = smul.addr %s373, 4
      %s375 = scalar_lea.vmem %s263, %s374
      %v376 = vld [vmem:[%s375] sm:$0xf]
      %v377 = vld [vmem:[%s375 + $0x4] sm:$0xf]
      %v378 = vunpack.c.l.bf16 %v376
      %v379 = vunpack.c.l.bf16 %v377
      %s380 = ssub.f32 1.0, %s362
      %v381 = vstv %s380
      %v382 = vmul.f32 %v381, %v371
      %v383 = vmul.f32 %v381, %v372
      %v384 = vstv %s362
      %v385 = vmul.f32 %v384, %v378
      %v386 = vmul.f32 %v384, %v379
      %v387 = vadd.f32 %v382, %v385
      %v388 = vadd.f32 %v383, %v386
      %s389 = sadd.s32 %s284, 3
      %s390 = scvt.s32.f32 %s389
      %s391 = sadd.f32 %s390, 0.5
      %s392 = smul.f32 %s391, 0.5
      %s393 = ssub.f32 %s392, 0.5
      %s394 = smax.f32 %s393, 0.0
      %s395 = scvt.f32.s32.to.zero.pseudo %s394
      %s396 = scvt.s32.f32 %s395
      %s397 = ssub.f32 %s394, %s396
      %s398 = sadd.s32 %s395, 1
      %p399 = scmp.lt.s32.totalorder %s398, 7
      %s400 = scalar_select %p399, %s398, 7
      %s401 = smul.u32 %s395, 2
      %s402 = smul.addr %s401, 4
      %s403 = scalar_lea.vmem %s263, %s402
      %v404 = vld [vmem:[%s403] sm:$0xf]
      %v405 = vld [vmem:[%s403 + $0x4] sm:$0xf]
      %v406 = vunpack.c.l.bf16 %v404
      %v407 = vunpack.c.l.bf16 %v405
      %s408 = smul.u32 %s400, 2
      %s409 = smul.addr %s408, 4
      %s410 = scalar_lea.vmem %s263, %s409
      %v411 = vld [vmem:[%s410] sm:$0xf]
      %v412 = vld [vmem:[%s410 + $0x4] sm:$0xf]
      %v413 = vunpack.c.l.bf16 %v411
      %v414 = vunpack.c.l.bf16 %v412
      %s415 = ssub.f32 1.0, %s397
      %v416 = vstv %s415
      %v417 = vmul.f32 %v416, %v406
      %v418 = vmul.f32 %v416, %v407
      %v419 = vstv %s397
      %v420 = vmul.f32 %v419, %v413
      %v421 = vmul.f32 %v419, %v414
      %v422 = vadd.f32 %v417, %v420
      %v423 = vadd.f32 %v418, %v421
      %s424 = sadd.s32 %s284, 4
      %s425 = scvt.s32.f32 %s424
      %s426 = sadd.f32 %s425, 0.5
      %s427 = smul.f32 %s426, 0.5
      %s428 = ssub.f32 %s427, 0.5
      %s429 = smax.f32 %s428, 0.0
      %s430 = scvt.f32.s32.to.zero.pseudo %s429
      %s431 = scvt.s32.f32 %s430
      %s432 = ssub.f32 %s429, %s431
      %s433 = sadd.s32 %s430, 1
      %p434 = scmp.lt.s32.totalorder %s433, 7
      %s435 = scalar_select %p434, %s433, 7
      %s436 = smul.u32 %s430, 2
      %s437 = smul.addr %s436, 4
      %s438 = scalar_lea.vmem %s263, %s437
      %v439 = vld [vmem:[%s438] sm:$0xf]
      %v440 = vld [vmem:[%s438 + $0x4] sm:$0xf]
      %v441 = vunpack.c.l.bf16 %v439
      %v442 = vunpack.c.l.bf16 %v440
      %s443 = smul.u32 %s435, 2
      %s444 = smul.addr %s443, 4
      %s445 = scalar_lea.vmem %s263, %s444
      %v446 = vld [vmem:[%s445] sm:$0xf]
      %v447 = vld [vmem:[%s445 + $0x4] sm:$0xf]
      %v448 = vunpack.c.l.bf16 %v446
      %v449 = vunpack.c.l.bf16 %v447
      %s450 = ssub.f32 1.0, %s432
      %v451 = vstv %s450
      %v452 = vmul.f32 %v451, %v441
      %v453 = vmul.f32 %v451, %v442
      %v454 = vstv %s432
      %v455 = vmul.f32 %v454, %v448
      %v456 = vmul.f32 %v454, %v449
      %v457 = vadd.f32 %v452, %v455
      %v458 = vadd.f32 %v453, %v456
      %s459 = sadd.s32 %s284, 5
      %s460 = scvt.s32.f32 %s459
      %s461 = sadd.f32 %s460, 0.5
      %s462 = smul.f32 %s461, 0.5
      %s463 = ssub.f32 %s462, 0.5
      %s464 = smax.f32 %s463, 0.0
      %s465 = scvt.f32.s32.to.zero.pseudo %s464
      %s466 = scvt.s32.f32 %s465
      %s467 = ssub.f32 %s464, %s466
      %s468 = sadd.s32 %s465, 1
      %p469 = scmp.lt.s32.totalorder %s468, 7
      %s470 = scalar_select %p469, %s468, 7
      %s471 = smul.u32 %s465, 2
      %s472 = smul.addr %s471, 4
      %s473 = scalar_lea.vmem %s263, %s472
      %v474 = vld [vmem:[%s473] sm:$0xf]
      %v475 = vld [vmem:[%s473 + $0x4] sm:$0xf]
      %v476 = vunpack.c.l.bf16 %v474
      %v477 = vunpack.c.l.bf16 %v475
      %s478 = smul.u32 %s470, 2
      %s479 = smul.addr %s478, 4
      %s480 = scalar_lea.vmem %s263, %s479
      %v481 = vld [vmem:[%s480] sm:$0xf]
      %v482 = vld [vmem:[%s480 + $0x4] sm:$0xf]
      %v483 = vunpack.c.l.bf16 %v481
      %v484 = vunpack.c.l.bf16 %v482
      %s485 = ssub.f32 1.0, %s467
      %v486 = vstv %s485
      %v487 = vmul.f32 %v486, %v476
      %v488 = vmul.f32 %v486, %v477
      %v489 = vstv %s467
      %v490 = vmul.f32 %v489, %v483
      %v491 = vmul.f32 %v489, %v484
      %v492 = vadd.f32 %v487, %v490
      %v493 = vadd.f32 %v488, %v491
      %s494 = sadd.s32 %s284, 6
      %s495 = scvt.s32.f32 %s494
      %s496 = sadd.f32 %s495, 0.5
      %s497 = smul.f32 %s496, 0.5
      %s498 = ssub.f32 %s497, 0.5
      %s499 = smax.f32 %s498, 0.0
      %s500 = scvt.f32.s32.to.zero.pseudo %s499
      %s501 = scvt.s32.f32 %s500
      %s502 = ssub.f32 %s499, %s501
      %s503 = sadd.s32 %s500, 1
      %p504 = scmp.lt.s32.totalorder %s503, 7
      %s505 = scalar_select %p504, %s503, 7
      %s506 = smul.u32 %s500, 2
      %s507 = smul.addr %s506, 4
      %s508 = scalar_lea.vmem %s263, %s507
      %v509 = vld [vmem:[%s508] sm:$0xf]
      %v510 = vld [vmem:[%s508 + $0x4] sm:$0xf]
      %v511 = vunpack.c.l.bf16 %v509
      %v512 = vunpack.c.l.bf16 %v510
      %s513 = smul.u32 %s505, 2
      %s514 = smul.addr %s513, 4
      %s515 = scalar_lea.vmem %s263, %s514
      %v516 = vld [vmem:[%s515] sm:$0xf]
      %v517 = vld [vmem:[%s515 + $0x4] sm:$0xf]
      %v518 = vunpack.c.l.bf16 %v516
      %v519 = vunpack.c.l.bf16 %v517
      %s520 = ssub.f32 1.0, %s502
      %v521 = vstv %s520
      %v522 = vmul.f32 %v521, %v511
      %v523 = vmul.f32 %v521, %v512
      %v524 = vstv %s502
      %v525 = vmul.f32 %v524, %v518
      %v526 = vmul.f32 %v524, %v519
      %v527 = vadd.f32 %v522, %v525
      %v528 = vadd.f32 %v523, %v526
      %s529 = sadd.s32 %s284, 7
      %s530 = scvt.s32.f32 %s529
      %s531 = sadd.f32 %s530, 0.5
      %s532 = smul.f32 %s531, 0.5
      %s533 = ssub.f32 %s532, 0.5
      %s534 = smax.f32 %s533, 0.0
      %s535 = scvt.f32.s32.to.zero.pseudo %s534
      %s536 = scvt.s32.f32 %s535
      %s537 = ssub.f32 %s534, %s536
      %s538 = sadd.s32 %s535, 1
      %p539 = scmp.lt.s32.totalorder %s538, 7
      %s540 = scalar_select %p539, %s538, 7
      %s541 = smul.u32 %s535, 2
      %s542 = smul.addr %s541, 4
      %s543 = scalar_lea.vmem %s263, %s542
      %v544 = vld [vmem:[%s543] sm:$0xf]
      %v545 = vld [vmem:[%s543 + $0x4] sm:$0xf]
      %v546 = vunpack.c.l.bf16 %v544
      %v547 = vunpack.c.l.bf16 %v545
      %s548 = smul.u32 %s540, 2
      %s549 = smul.addr %s548, 4
      %s550 = scalar_lea.vmem %s263, %s549
      %v551 = vld [vmem:[%s550] sm:$0xf]
      %v552 = vld [vmem:[%s550 + $0x4] sm:$0xf]
      %v553 = vunpack.c.l.bf16 %v551
      %v554 = vunpack.c.l.bf16 %v552
      %s555 = ssub.f32 1.0, %s537
      %v556 = vstv %s555
      %v557 = vmul.f32 %v556, %v546
      %v558 = vmul.f32 %v556, %v547
      %v559 = vstv %s537
      %v560 = vmul.f32 %v559, %v553
      %v561 = vmul.f32 %v559, %v554
      %v562 = vadd.f32 %v557, %v560
      %v563 = vadd.f32 %v558, %v561
      %v564 = vld [vmem:[%s257] sm:$0xf]
      %v565 = vld [vmem:[%s257 + $0x4] sm:$0xf]
      %v566 = vld [vmem:[%s257 + $0x8] sm:$0xf]
      %v567 = vld [vmem:[%s257 + $0xc] sm:$0xf]
      %v568 = vld [vmem:[%s257 + $0x10] sm:$0xf]
      %v569 = vld [vmem:[%s257 + $0x14] sm:$0xf]
      %v570 = vld [vmem:[%s257 + $0x18] sm:$0xf]
      %v571 = vld [vmem:[%s257 + $0x1c] sm:$0xf]
      %v572 = vld [vmem:[%s257 + $0x20] sm:$0xf]
      %v573 = vld [vmem:[%s257 + $0x24] sm:$0xf]
      %v574 = vld [vmem:[%s257 + $0x28] sm:$0xf]
      %v575 = vld [vmem:[%s257 + $0x2c] sm:$0xf]
      %v576 = vld [vmem:[%s257 + $0x30] sm:$0xf]
      %v577 = vld [vmem:[%s257 + $0x34] sm:$0xf]
      %v578 = vld [vmem:[%s257 + $0x38] sm:$0xf]
      %v579 = vld [vmem:[%s257 + $0x3c] sm:$0xf]
      %v580 = vld [vmem:[%s2] sm:$0x3]
      %v597 = vunpack.c.l.b16 %v564
      %v598 = vunpack.c.l.b16 %v565
      %v599 = vunpack.c.l.b16 %v566
      %v600 = vunpack.c.l.b16 %v567
      %v601 = vunpack.c.l.b16 %v568
      %v602 = vunpack.c.l.b16 %v569
      %v603 = vunpack.c.l.b16 %v570
      %v604 = vunpack.c.l.b16 %v571
      %v605 = vunpack.c.l.b16 %v572
      %v606 = vunpack.c.l.b16 %v573
      %v607 = vunpack.c.l.b16 %v574
      %v608 = vunpack.c.l.b16 %v575
      %v609 = vunpack.c.l.b16 %v576
      %v610 = vunpack.c.l.b16 %v577
      %v611 = vunpack.c.l.b16 %v578
      %v612 = vunpack.c.l.b16 %v579
      %v613 = vpack.c.b16 %v598, %v597
      %v614 = vpack.c.b16 %v600, %v599
      %v615 = vpack.c.b16 %v602, %v601
      %v616 = vpack.c.b16 %v604, %v603
      %v617 = vpack.c.b16 %v606, %v605
      %v618 = vpack.c.b16 %v608, %v607
      %v619 = vpack.c.b16 %v610, %v609
      %v620 = vpack.c.b16 %v612, %v611
      %vm621 = vcmask 31744
      %v623 = vsel %vm621, %v613, 0
      %v626 = vsel %vm621, %v614, 0
      %v629 = vsel %vm621, %v615, 0
      %v632 = vsel %vm621, %v616, 0
      %v635 = vsel %vm621, %v617, 0
      %v638 = vsel %vm621, %v618, 0
      %v641 = vsel %vm621, %v619, 0
      %v644 = vsel %vm621, %v620, 0
      %vm646 = vcmask 1041408
      %v648 = vsel %vm646, %v580, 0
      %650 = vmatprep.subr.bf16.mxu0 0
      %651 = vmatpush1.bf16.msra.mxu0 %v648
      %652 = vmatprep.subr.bf16.mxu0 0
      %653 = vmatpush1.bf16.msra.mxu0 0
      %654 = vmatprep.subr.bf16.mxu0 0
      %655 = vmatpush1.bf16.msra.mxu0 0
      %656 = vmatprep.subr.bf16.mxu0 0
      %657 = vmatpush1.bf16.msra.mxu0 0
      %658 = vmatprep.subr.bf16.mxu0 0
      %659 = vmatpush1.bf16.msra.mxu0 0
      %660 = vmatprep.subr.bf16.mxu0 0
      %661 = vmatpush1.bf16.msra.mxu0 0
      %662 = vmatprep.subr.bf16.mxu0 0
      %663 = vmatpush1.bf16.msra.mxu0 0
      %664 = vmatprep.subr.bf16.mxu0 0
      %665 = vmatpush1.bf16.msra.mxu0 0
      %666 = vmatprep.subr.bf16.mxu0 0
      %667 = vmatpush1.bf16.msra.mxu0 0
      %668 = vmatprep.subr.bf16.mxu0 0
      %669 = vmatpush1.bf16.msra.mxu0 0
      %670 = vmatprep.subr.bf16.mxu0 0
      %671 = vmatpush1.bf16.msra.mxu0 0
      %672 = vmatprep.subr.bf16.mxu0 0
      %673 = vmatpush1.bf16.msra.mxu0 0
      %674 = vmatprep.subr.bf16.mxu0 0
      %675 = vmatpush1.bf16.msra.mxu0 0
      %676 = vmatprep.subr.bf16.mxu0 0
      %677 = vmatpush1.bf16.msra.mxu0 0
      %678 = vmatprep.subr.bf16.mxu0 0
      %679 = vmatpush1.bf16.msra.mxu0 0
      %680 = vmatprep.subr.bf16.mxu0 0
      %681 = vmatpush1.bf16.msra.mxu0 0
      %682 = vmatprep.mubr.bf16.mxu0 0
      %683 = vmatmul.mubr.bf16.gmra.mrb[0].mxu0 %v623
      %v684 = vpop.f32.mrb[0].mxu0
      %v685 = vadd.f32 0.0, %v684
      %v686 = vpop.f32.mrb[0].mxu0
      %v687 = vpop.f32.mrb[0].mxu0
      %v688 = vadd.f32 0.0, %v687
      %v689 = vpop.f32.mrb[0].mxu0
      %690 = vmatprep.mubr.bf16.mxu0 0
      %691 = vmatmul.mubr.bf16.gmra.mrb[0].mxu0 %v626
      %v692 = vpop.f32.mrb[0].mxu0
      %v693 = vadd.f32 0.0, %v692
      %v694 = vpop.f32.mrb[0].mxu0
      %v695 = vpop.f32.mrb[0].mxu0
      %v696 = vadd.f32 0.0, %v695
      %v697 = vpop.f32.mrb[0].mxu0
      %698 = vmatprep.mubr.bf16.mxu0 0
      %699 = vmatmul.mubr.bf16.gmra.mrb[0].mxu0 %v629
      %v700 = vpop.f32.mrb[0].mxu0
      %v701 = vadd.f32 0.0, %v700
      %v702 = vpop.f32.mrb[0].mxu0
      %v703 = vpop.f32.mrb[0].mxu0
      %v704 = vadd.f32 0.0, %v703
      %v705 = vpop.f32.mrb[0].mxu0
      %706 = vmatprep.mubr.bf16.mxu0 0
      %707 = vmatmul.mubr.bf16.gmra.mrb[0].mxu0 %v632
      %v708 = vpop.f32.mrb[0].mxu0
      %v709 = vadd.f32 0.0, %v708
      %v710 = vpop.f32.mrb[0].mxu0
      %v711 = vpop.f32.mrb[0].mxu0
      %v712 = vadd.f32 0.0, %v711
      %v713 = vpop.f32.mrb[0].mxu0
      %714 = vmatprep.mubr.bf16.mxu0 0
      %715 = vmatmul.mubr.bf16.gmra.mrb[0].mxu0 %v635
      %v716 = vpop.f32.mrb[0].mxu0
      %v717 = vadd.f32 0.0, %v716
      %v718 = vpop.f32.mrb[0].mxu0
      %v719 = vpop.f32.mrb[0].mxu0
      %v720 = vadd.f32 0.0, %v719
      %v721 = vpop.f32.mrb[0].mxu0
      %722 = vmatprep.mubr.bf16.mxu0 0
      %723 = vmatmul.mubr.bf16.gmra.mrb[0].mxu0 %v638
      %v724 = vpop.f32.mrb[0].mxu0
      %v725 = vadd.f32 0.0, %v724
      %v726 = vpop.f32.mrb[0].mxu0
      %v727 = vpop.f32.mrb[0].mxu0
      %v728 = vadd.f32 0.0, %v727
      %v729 = vpop.f32.mrb[0].mxu0
      %730 = vmatprep.mubr.bf16.mxu0 0
      %731 = vmatmul.mubr.bf16.gmra.mrb[0].mxu0 %v641
      %v732 = vpop.f32.mrb[0].mxu0
      %v733 = vadd.f32 0.0, %v732
      %v734 = vpop.f32.mrb[0].mxu0
      %v735 = vpop.f32.mrb[0].mxu0
      %v736 = vadd.f32 0.0, %v735
      %v737 = vpop.f32.mrb[0].mxu0
      %738 = vmatprep.mubr.bf16.mxu0 0
      %739 = vmatmul.mubr.bf16.gmra.mrb[0].mxu0 %v644
      %v740 = vpop.f32.mrb[0].mxu0
      %v741 = vadd.f32 0.0, %v740
      %v742 = vpop.f32.mrb[0].mxu0
      %v743 = vpop.f32.mrb[0].mxu0
      %v744 = vadd.f32 0.0, %v743
      %v745 = vpop.f32.mrb[0].mxu0
      %746 = vdwg.mxu0
      %763 = vrot.lane.b32.xlu0 %v685, 32
      %v764 = vpop.permute.xlu0 %763
      %765 = vrot.lane.b32.xlu0 %v688, 32
      %v766 = vpop.permute.xlu0 %765
      %767 = vrot.lane.b32.xlu0 %v693, 32
      %v768 = vpop.permute.xlu0 %767
      %769 = vrot.lane.b32.xlu0 %v696, 32
      %v770 = vpop.permute.xlu0 %769
      %771 = vrot.lane.b32.xlu0 %v701, 32
      %v772 = vpop.permute.xlu0 %771
      %773 = vrot.lane.b32.xlu0 %v704, 32
      %v774 = vpop.permute.xlu0 %773
      %775 = vrot.lane.b32.xlu0 %v709, 32
      %v776 = vpop.permute.xlu0 %775
      %777 = vrot.lane.b32.xlu0 %v712, 32
      %v778 = vpop.permute.xlu0 %777
      %779 = vrot.lane.b32.xlu0 %v717, 32
      %v780 = vpop.permute.xlu0 %779
      %781 = vrot.lane.b32.xlu0 %v720, 32
      %v782 = vpop.permute.xlu0 %781
      %783 = vrot.lane.b32.xlu0 %v725, 32
      %v784 = vpop.permute.xlu0 %783
      %785 = vrot.lane.b32.xlu0 %v728, 32
      %v786 = vpop.permute.xlu0 %785
      %787 = vrot.lane.b32.xlu0 %v733, 32
      %v788 = vpop.permute.xlu0 %787
      %789 = vrot.lane.b32.xlu0 %v736, 32
      %v790 = vpop.permute.xlu0 %789
      %791 = vrot.lane.b32.xlu0 %v741, 32
      %v792 = vpop.permute.xlu0 %791
      %793 = vrot.lane.b32.xlu0 %v744, 32
      %v794 = vpop.permute.xlu0 %793
      %vm811 = vcmask 261120
      %v812 = vsel %vm811, %v317, %v764
      %v813 = vsel %vm811, %v318, %v766
      %v814 = vsel %vm811, %v352, %v768
      %v815 = vsel %vm811, %v353, %v770
      %v816 = vsel %vm811, %v387, %v772
      %v817 = vsel %vm811, %v388, %v774
      %v818 = vsel %vm811, %v422, %v776
      %v819 = vsel %vm811, %v423, %v778
      %v820 = vsel %vm811, %v457, %v780
      %v821 = vsel %vm811, %v458, %v782
      %v822 = vsel %vm811, %v492, %v784
      %v823 = vsel %vm811, %v493, %v786
      %v824 = vsel %vm811, %v527, %v788
      %v825 = vsel %vm811, %v528, %v790
      %v826 = vsel %vm811, %v562, %v792
      %v827 = vsel %vm811, %v563, %v794
      %v828 = vpack.c.bf16 %v813, %v812
      %v829 = vpack.c.bf16 %v815, %v814
      %v830 = vpack.c.bf16 %v817, %v816
      %v831 = vpack.c.bf16 %v819, %v818
      %v832 = vpack.c.bf16 %v821, %v820
      %v833 = vpack.c.bf16 %v823, %v822
      %v834 = vpack.c.bf16 %v825, %v824
      %v835 = vpack.c.bf16 %v827, %v826
      %v844 = vunpack.c.l.b16 %v828
      %v845 = vunpack.c.h.b16 %v828
      %v846 = vunpack.c.l.b16 %v829
      %v847 = vunpack.c.h.b16 %v829
      %v848 = vunpack.c.l.b16 %v830
      %v849 = vunpack.c.h.b16 %v830
      %v850 = vunpack.c.l.b16 %v831
      %v851 = vunpack.c.h.b16 %v831
      %v852 = vunpack.c.l.b16 %v832
      %v853 = vunpack.c.h.b16 %v832
      %v854 = vunpack.c.l.b16 %v833
      %v855 = vunpack.c.h.b16 %v833
      %v856 = vunpack.c.l.b16 %v834
      %v857 = vunpack.c.h.b16 %v834
      %v858 = vunpack.c.l.b16 %v835
      %v859 = vunpack.c.h.b16 %v835
      %v860 = vpack.c.b16 %v844, %v844
      %v861 = vpack.c.b16 %v845, %v845
      %v862 = vpack.c.b16 %v846, %v846
      %v863 = vpack.c.b16 %v847, %v847
      %v864 = vpack.c.b16 %v848, %v848
      %v865 = vpack.c.b16 %v849, %v849
      %v866 = vpack.c.b16 %v850, %v850
      %v867 = vpack.c.b16 %v851, %v851
      %v868 = vpack.c.b16 %v852, %v852
      %v869 = vpack.c.b16 %v853, %v853
      %v870 = vpack.c.b16 %v854, %v854
      %v871 = vpack.c.b16 %v855, %v855
      %v872 = vpack.c.b16 %v856, %v856
      %v873 = vpack.c.b16 %v857, %v857
      %v874 = vpack.c.b16 %v858, %v858
      %v875 = vpack.c.b16 %v859, %v859
      %vm892 = vcmask 650240
      %893 = vst.msk [vmem:[%s273] sm:$0xf] %vm892, %v860
      %894 = vst.msk [vmem:[%s273 + $0x4] sm:$0xf] %vm892, %v861
      %895 = vst.msk [vmem:[%s273 + $0x8] sm:$0xf] %vm892, %v862
      %896 = vst.msk [vmem:[%s273 + $0xc] sm:$0xf] %vm892, %v863
      %897 = vst.msk [vmem:[%s273 + $0x10] sm:$0xf] %vm892, %v864
      %898 = vst.msk [vmem:[%s273 + $0x14] sm:$0xf] %vm892, %v865
      %899 = vst.msk [vmem:[%s273 + $0x18] sm:$0xf] %vm892, %v866
      %900 = vst.msk [vmem:[%s273 + $0x1c] sm:$0xf] %vm892, %v867
      %901 = vst.msk [vmem:[%s273 + $0x20] sm:$0xf] %vm892, %v868
      %902 = vst.msk [vmem:[%s273 + $0x24] sm:$0xf] %vm892, %v869
      %903 = vst.msk [vmem:[%s273 + $0x28] sm:$0xf] %vm892, %v870
      %904 = vst.msk [vmem:[%s273 + $0x2c] sm:$0xf] %vm892, %v871
      %905 = vst.msk [vmem:[%s273 + $0x30] sm:$0xf] %vm892, %v872
      %906 = vst.msk [vmem:[%s273 + $0x34] sm:$0xf] %vm892, %v873
      %907 = vst.msk [vmem:[%s273 + $0x38] sm:$0xf] %vm892, %v874
      %908 = vst.msk [vmem:[%s273 + $0x3c] sm:$0xf] %vm892, %v875
      %vm909 = vcmask 392192
      %v910 = vsel %vm909, %v685, 0.0
      %v911 = vsel %vm909, %v688, 0.0
      %v912 = vadd.f32 %v910, %v911
      %v913 = vsel %vm909, %v693, 0.0
      %v914 = vadd.f32 %v912, %v913
      %v915 = vsel %vm909, %v696, 0.0
      %v916 = vadd.f32 %v914, %v915
      %v917 = vsel %vm909, %v701, 0.0
      %v918 = vadd.f32 %v916, %v917
      %v919 = vsel %vm909, %v704, 0.0
      %v920 = vadd.f32 %v918, %v919
      %v921 = vsel %vm909, %v709, 0.0
      %v922 = vadd.f32 %v920, %v921
      %v923 = vsel %vm909, %v712, 0.0
      %v924 = vadd.f32 %v922, %v923
      %v925 = vsel %vm909, %v717, 0.0
      %v926 = vadd.f32 %v924, %v925
      %v927 = vsel %vm909, %v720, 0.0
      %v928 = vadd.f32 %v926, %v927
      %v929 = vsel %vm909, %v725, 0.0
      %v930 = vadd.f32 %v928, %v929
      %v931 = vsel %vm909, %v728, 0.0
      %v932 = vadd.f32 %v930, %v931
      %v933 = vsel %vm909, %v733, 0.0
      %v934 = vadd.f32 %v932, %v933
      %v935 = vsel %vm909, %v736, 0.0
      %v936 = vadd.f32 %v934, %v935
      %v937 = vsel %vm909, %v741, 0.0
      %v938 = vadd.f32 %v936, %v937
      %v939 = vsel %vm909, %v744, 0.0
      %v940 = vadd.f32 %v938, %v939
      %v941 = vrot.slane %v940, 4
      %v942 = vadd.f32 %v940, %v941
      %v943 = vrot.slane %v942, 2
      %v944 = vadd.f32 %v942, %v943
      %v945 = vrot.slane %v944, 1
      %v946 = vadd.f32 %v944, %v945
      %v947 = vmul.f32 %v685, %v685
      %v948 = vmul.f32 %v688, %v688
      %v949 = vmul.f32 %v693, %v693
      %v950 = vmul.f32 %v696, %v696
      %v951 = vmul.f32 %v701, %v701
      %v952 = vmul.f32 %v704, %v704
      %v953 = vmul.f32 %v709, %v709
      %v954 = vmul.f32 %v712, %v712
      %v955 = vmul.f32 %v717, %v717
      %v956 = vmul.f32 %v720, %v720
      %v957 = vmul.f32 %v725, %v725
      %v958 = vmul.f32 %v728, %v728
      %v959 = vmul.f32 %v733, %v733
      %v960 = vmul.f32 %v736, %v736
      %v961 = vmul.f32 %v741, %v741
      %v962 = vmul.f32 %v744, %v744
      %v963 = vsel %vm909, %v947, 0.0
      %v964 = vsel %vm909, %v948, 0.0
      %v965 = vadd.f32 %v963, %v964
      %v966 = vsel %vm909, %v949, 0.0
      %v967 = vadd.f32 %v965, %v966
      %v968 = vsel %vm909, %v950, 0.0
      %v969 = vadd.f32 %v967, %v968
      %v970 = vsel %vm909, %v951, 0.0
      %v971 = vadd.f32 %v969, %v970
      %v972 = vsel %vm909, %v952, 0.0
      %v973 = vadd.f32 %v971, %v972
      %v974 = vsel %vm909, %v953, 0.0
      %v975 = vadd.f32 %v973, %v974
      %v976 = vsel %vm909, %v954, 0.0
      %v977 = vadd.f32 %v975, %v976
      %v978 = vsel %vm909, %v955, 0.0
      %v979 = vadd.f32 %v977, %v978
      %v980 = vsel %vm909, %v956, 0.0
      %v981 = vadd.f32 %v979, %v980
      %v982 = vsel %vm909, %v957, 0.0
      %v983 = vadd.f32 %v981, %v982
      %v984 = vsel %vm909, %v958, 0.0
      %v985 = vadd.f32 %v983, %v984
      %v986 = vsel %vm909, %v959, 0.0
      %v987 = vadd.f32 %v985, %v986
      %v988 = vsel %vm909, %v960, 0.0
      %v989 = vadd.f32 %v987, %v988
      %v990 = vsel %vm909, %v961, 0.0
      %v991 = vadd.f32 %v989, %v990
      %v992 = vsel %vm909, %v962, 0.0
      %v993 = vadd.f32 %v991, %v992
      %v994 = vrot.slane %v993, 4
      %v995 = vadd.f32 %v993, %v994
      %v996 = vrot.slane %v995, 2
      %v997 = vadd.f32 %v995, %v996
      %v998 = vrot.slane %v997, 1
      %v999 = vadd.f32 %v997, %v998
      %vm1000 = vcmask 1040384
      %v1001 = vsel %vm1000, %v946, %v999
      %vm1002 = vcmask 386048
      %1003 = vst.msk [vmem:[%s282] sm:$0x3] %vm1002, %v1001
      %s1004 = smul.u32 8, %s21
      %p1005 = scmp.lt.s32.totalorder %s20, 1
      %s1006 = scalar_select %p1005, %s20, 1
      %p1007 = scmp.lt.s32.totalorder %s1004, 15
      %s1008 = scalar_select %p1007, %s1004, 15
      %s1009 = smul.addr %s1008, 2
      %s1010 = smul.addr %s1006, 32
      %s1011 = sadd.s32 %s1009, %s1010
      %s1012 = smul.addr %s1011, 4
      %s1013 = scalar_lea.vmem %s3, %s1012
      %p1014 = scmp.lt.s32.totalorder %s20, 1
      %s1015 = scalar_select %p1014, %s20, 1
      %p1016 = scmp.lt.s32.totalorder %s21, 1
      %s1017 = scalar_select %p1016, %s21, 1
      %s1018 = smul.addr %s1015, 2
      %s1019 = sadd.s32 %s1017, %s1018
      %s1020 = smul.addr %s1019, 2
      %s1021 = scalar_lea.vmem %s4, %s1020
      // Predicated region
      $region33: #{deeplab_decoder_forward.4} parent=31 // pred_check
        %p1022 = pneg %p123
      $region34: #{deeplab_decoder_forward.4} parent=31 // pred_check_branch
        %1024 = sbr.rel (%p1022) target = $region36
      $region35: #{deeplab_decoder_forward.4} parent=31 // pred_region
        %s1025 = smul.u32 8, %s21
      $region36: #{deeplab_decoder_forward.4} parent=31 // pred_fallthru
        _
      // Predicated region
      $region37: #{deeplab_decoder_forward.4} parent=31 // pred_check
        %p1026 = pneg %p151
      $region38: #{deeplab_decoder_forward.4} parent=31 // pred_check_branch
        %1028 = sbr.rel (%p1026) target = $region40
      $region39: #{deeplab_decoder_forward.4} parent=31 // pred_region
        _
      $region40: #{deeplab_decoder_forward.4} parent=31 // pred_fallthru
        _
    $region32: #{deeplab_decoder_forward.4} parent=5 // pred_fallthru
      _
    %p1029 = scmp.le.s32.totalorder 2, %s11
    // Predicated region
    $region41: #{deeplab_decoder_forward.4} parent=5 // pred_check
      %p1030 = pneg %p1029
    $region42: #{deeplab_decoder_forward.4} parent=5 // pred_check_branch
      %1032 = sbr.rel (%p1030) target = $region44
    $region43: #{deeplab_decoder_forward.4} parent=5 // pred_region
      %s1033 = ssub.s32 %s11, 2
      // Predicated region
      $region45: #{deeplab_decoder_forward.4} parent=43 // pred_check
        %p1034 = pneg %p129
      $region46: #{deeplab_decoder_forward.4} parent=43 // pred_check_branch
        %1036 = sbr.rel (%p1034) target = $region48
      $region47: #{deeplab_decoder_forward.4} parent=43 // pred_region
        %s1037 = smul.u32 8, %s23
        %p1038 = scmp.lt.s32.totalorder %s22, 1
        %s1039 = scalar_select %p1038, %s22, 1
        %p1040 = scmp.lt.s32.totalorder %s1037, 15
        %s1041 = scalar_select %p1040, %s1037, 15
        %s1042 = smul.addr %s1041, 2
        %s1043 = smul.addr %s1039, 32
        %s1044 = sadd.s32 %s1042, %s1043
        %s1045 = smul.addr %s1044, 4
        %s1046 = scalar_lea.vmem %s3, %s1045
      $region48: #{deeplab_decoder_forward.4} parent=43 // pred_fallthru
        _
      // Predicated region
      $region49: #{deeplab_decoder_forward.4} parent=43 // pred_check
        %p1047 = pneg %p157
      $region50: #{deeplab_decoder_forward.4} parent=43 // pred_check_branch
        %1049 = sbr.rel (%p1047) target = $region52
      $region51: #{deeplab_decoder_forward.4} parent=43 // pred_region
        %p1050 = scmp.lt.s32.totalorder %s22, 1
        %s1051 = scalar_select %p1050, %s22, 1
        %p1052 = scmp.lt.s32.totalorder %s23, 1
        %s1053 = scalar_select %p1052, %s23, 1
        %s1054 = smul.addr %s1051, 2
        %s1055 = sadd.s32 %s1053, %s1054
        %s1056 = smul.addr %s1055, 2
        %s1057 = scalar_lea.vmem %s4, %s1056
      $region52: #{deeplab_decoder_forward.4} parent=43 // pred_fallthru
        _
    $region44: #{deeplab_decoder_forward.4} parent=5 // pred_fallthru
      _
  $region6: #{deeplab_decoder_forward.4} parent=0 // loop_footer
    %s15 = sadd.s32 1, %s11
  $region7: #{deeplab_decoder_forward.4} parent=0 // loop_footer_branch
    %10 = sbr.rel target = $region3
  $region8: #{deeplab_decoder_forward.4} parent=0 // loop_exit
    _

// kernel: deeplab_decoder_forward.7
$region0: #{deeplab_decoder_forward.7}
  #allocation0 [shape = 'u32[]', space=smem, size = 0x4, offset = 0x4, fixed_abs, tag = 'smem constant byte address 0x4 - core index']
  #allocation1 [shape = 'u32[144,128]{1,0:T(1,128)}', space=vmem, size = 0x12000, scoped, tag = 'internal scratch']
  %s0 = inlined_call_operand.vmem [shape: bf16[2,16,16,128], index: 0, kind: input, shape index: {}]
  %s1 = inlined_call_operand.vmem [shape: bf16[128,128], index: 1, kind: input, shape index: {}]
  %s2 = inlined_call_operand.vmem [shape: f32[1,128], index: 2, kind: input, shape index: {}]
  %s3 = inlined_call_operand.vmem [shape: f32[1,128], index: 3, kind: input, shape index: {}]
  %s4 = inlined_call_operand.vmem [shape: f32[1,128], index: 4, kind: input, shape index: {}]
  %s5 = inlined_call_operand.vmem [shape: f32[2,16,16,128], index: 5, kind: output, shape index: {}]
  %s6 = sld [smem:[#allocation0]]
  $region53: #{deeplab_decoder_forward.7} parent=0
    _
  %s8 = ssub.s32 1, %s6
  %s9 = scalar_select 0, %s8, %s6
  loop: start=0, step=1, limit=6
  $region2: #{deeplab_decoder_forward.7} parent=0 // loop_pre_header
    _
  $region3: #{deeplab_decoder_forward.7} parent=0 // loop_header
    %s11 = sphi 0, %s15
    %p12 = scmp.ge.s32.totalorder %s11, 6
    %s18 = sphi 0, %s30
    %s19 = sphi 0, %s26
    %s20 = sphi 0, %s18
    %s21 = sphi 0, %s19
    %s22 = sphi 0, %s20
    %s23 = sphi 0, %s21
    %s35 = sphi 0, %s37
    %s38 = sphi 0, %s35
    %s39 = sphi 0, %s38
    %s55 = sphi 0, %s39
    %s59 = sphi 0, %s59
    %s61 = sphi 0, %s59
    %s62 = sphi 0, %s61
    %s76 = sphi 0, %s62
    %s80 = sphi 0, %s80
    %s82 = sphi 0, %s80
    %s83 = sphi 0, %s82
    %s97 = sphi 0, %s83
    %s101 = sphi 0, %s101
    %s103 = sphi 0, %s101
    %s104 = sphi 0, %s103
    %s118 = sphi 0, %s104
    %s122 = sphi 0, %s122
    %s124 = sphi 0, %s122
    %s125 = sphi 0, %s124
    %s139 = sphi 0, %s125
    %s147 = sphi 0, %s149
    %s150 = sphi 0, %s147
    %s151 = sphi 0, %s150
    %s167 = sphi 0, %s151
  $region4: #{deeplab_decoder_forward.7} parent=0 // loop_header_branch
    %14 = sbr.rel (%p12) target = $region8
  $region5: #{deeplab_decoder_forward.7} parent=0 // loop_body
    %s16 = ssub.s32 %s11, 1
    %s17 = ssub.s32 %s11, 2
    %s24 = sadd.s32 1, %s19
    %p25 = scmp.ge.s32.totalorder %s24, 2
    %s26 = scalar_select %p25, 0, %s24
    %s27 = sadd.s32 1, %s18
    %s28 = scalar_select %p25, %s27, %s18
    %p29 = scmp.ge.s32.totalorder %s28, 2
    %s30 = scalar_select %p29, 0, %s28
    %s31 = ssub.s32 %s18, %s30
    %s32 = ssub.s32 %s19, %s26
    %s33 = sor.u32 %s31, %s32
    %p34 = scmp.eq.s32.totalorder %s33, 0
    %s36 = sadd.s32 %s35, 1
    %s37 = scalar_select %p34, %s35, %s36
    %p40 = pneg %p34
    %p41 = scmp.eq.s32.totalorder %s11, 3
    %p42 = por %p40, %p41
    %p43 = scmp.ne.s32.totalorder %s35, %s38
    %p44 = scmp.eq.s32.totalorder %s11, 0
    %p45 = por %p43, %p44
    %p46 = scmp.ne.s32.totalorder %s35, %s38
    %p47 = scmp.eq.s32.totalorder %s16, 3
    %p48 = por %p46, %p47
    %p49 = scmp.ne.s32.totalorder %s38, %s39
    %p50 = scmp.eq.s32.totalorder %s16, 0
    %p51 = por %p49, %p50
    %p52 = scmp.ne.s32.totalorder %s38, %s39
    %p53 = scmp.eq.s32.totalorder %s17, 3
    %p54 = por %p52, %p53
    %p56 = scmp.ne.s32.totalorder %s39, %s55
    %p57 = scmp.eq.s32.totalorder %s17, 0
    %p58 = por %p56, %p57
    %s60 = sadd.s32 %s59, 1
    %p63 = scmp.eq.s32.totalorder %s11, 3
    %p64 = scmp.ne.s32.totalorder %s59, %s61
    %p65 = scmp.eq.s32.totalorder %s11, 0
    %p66 = por %p64, %p65
    %p67 = scmp.ne.s32.totalorder %s59, %s61
    %p68 = scmp.eq.s32.totalorder %s16, 3
    %p69 = por %p67, %p68
    %p70 = scmp.ne.s32.totalorder %s61, %s62
    %p71 = scmp.eq.s32.totalorder %s16, 0
    %p72 = por %p70, %p71
    %p73 = scmp.ne.s32.totalorder %s61, %s62
    %p74 = scmp.eq.s32.totalorder %s17, 3
    %p75 = por %p73, %p74
    %p77 = scmp.ne.s32.totalorder %s62, %s76
    %p78 = scmp.eq.s32.totalorder %s17, 0
    %p79 = por %p77, %p78
    %s81 = sadd.s32 %s80, 1
    %p84 = scmp.eq.s32.totalorder %s11, 3
    %p85 = scmp.ne.s32.totalorder %s80, %s82
    %p86 = scmp.eq.s32.totalorder %s11, 0
    %p87 = por %p85, %p86
    %p88 = scmp.ne.s32.totalorder %s80, %s82
    %p89 = scmp.eq.s32.totalorder %s16, 3
    %p90 = por %p88, %p89
    %p91 = scmp.ne.s32.totalorder %s82, %s83
    %p92 = scmp.eq.s32.totalorder %s16, 0
    %p93 = por %p91, %p92
    %p94 = scmp.ne.s32.totalorder %s82, %s83
    %p95 = scmp.eq.s32.totalorder %s17, 3
    %p96 = por %p94, %p95
    %p98 = scmp.ne.s32.totalorder %s83, %s97
    %p99 = scmp.eq.s32.totalorder %s17, 0
    %p100 = por %p98, %p99
    %s102 = sadd.s32 %s101, 1
    %p105 = scmp.eq.s32.totalorder %s11, 3
    %p106 = scmp.ne.s32.totalorder %s101, %s103
    %p107 = scmp.eq.s32.totalorder %s11, 0
    %p108 = por %p106, %p107
    %p109 = scmp.ne.s32.totalorder %s101, %s103
    %p110 = scmp.eq.s32.totalorder %s16, 3
    %p111 = por %p109, %p110
    %p112 = scmp.ne.s32.totalorder %s103, %s104
    %p113 = scmp.eq.s32.totalorder %s16, 0
    %p114 = por %p112, %p113
    %p115 = scmp.ne.s32.totalorder %s103, %s104
    %p116 = scmp.eq.s32.totalorder %s17, 3
    %p117 = por %p115, %p116
    %p119 = scmp.ne.s32.totalorder %s104, %s118
    %p120 = scmp.eq.s32.totalorder %s17, 0
    %p121 = por %p119, %p120
    %s123 = sadd.s32 %s122, 1
    %p126 = scmp.eq.s32.totalorder %s11, 3
    %p127 = scmp.ne.s32.totalorder %s122, %s124
    %p128 = scmp.eq.s32.totalorder %s11, 0
    %p129 = por %p127, %p128
    %p130 = scmp.ne.s32.totalorder %s122, %s124
    %p131 = scmp.eq.s32.totalorder %s16, 3
    %p132 = por %p130, %p131
    %p133 = scmp.ne.s32.totalorder %s124, %s125
    %p134 = scmp.eq.s32.totalorder %s16, 0
    %p135 = por %p133, %p134
    %p136 = scmp.ne.s32.totalorder %s124, %s125
    %p137 = scmp.eq.s32.totalorder %s17, 3
    %p138 = por %p136, %p137
    %p140 = scmp.ne.s32.totalorder %s125, %s139
    %p141 = scmp.eq.s32.totalorder %s17, 0
    %p142 = por %p140, %p141
    %s143 = ssub.s32 %s18, %s30
    %s144 = ssub.s32 %s19, %s26
    %s145 = sor.u32 %s143, %s144
    %p146 = scmp.eq.s32.totalorder %s145, 0
    %s148 = sadd.s32 %s147, 1
    %s149 = scalar_select %p146, %s147, %s148
    %p152 = pneg %p146
    %p153 = scmp.eq.s32.totalorder %s11, 3
    %p154 = por %p152, %p153
    %p155 = scmp.ne.s32.totalorder %s147, %s150
    %p156 = scmp.eq.s32.totalorder %s11, 0
    %p157 = por %p155, %p156
    %p158 = scmp.ne.s32.totalorder %s147, %s150
    %p159 = scmp.eq.s32.totalorder %s16, 3
    %p160 = por %p158, %p159
    %p161 = scmp.ne.s32.totalorder %s150, %s151
    %p162 = scmp.eq.s32.totalorder %s16, 0
    %p163 = por %p161, %p162
    %p164 = scmp.ne.s32.totalorder %s150, %s151
    %p165 = scmp.eq.s32.totalorder %s17, 3
    %p166 = por %p164, %p165
    %p168 = scmp.ne.s32.totalorder %s151, %s167
    %p169 = scmp.eq.s32.totalorder %s17, 0
    %p170 = por %p168, %p169
    %p171 = scmp.le.s32.totalorder 1, %s11
    %p172 = scmp.lt.s32.totalorder %s11, 5
    %p173 = pnand %p171, %p172
    %p174 = pneg %p173
    // Predicated region
    $region9: #{deeplab_decoder_forward.7} parent=5 // pred_check
      _
    $region10: #{deeplab_decoder_forward.7} parent=5 // pred_check_branch
      %176 = sbr.rel (%p173) target = $region12
    $region11: #{deeplab_decoder_forward.7} parent=5 // pred_region
      %s177 = ssub.s32 %s11, 1
      // Predicated region
      $region13: #{deeplab_decoder_forward.7} parent=11 // pred_check
        %p178 = pneg %p72
      $region14: #{deeplab_decoder_forward.7} parent=11 // pred_check_branch
        %180 = sbr.rel (%p178) target = $region16
      $region15: #{deeplab_decoder_forward.7} parent=11 // pred_region
        _
      $region16: #{deeplab_decoder_forward.7} parent=11 // pred_fallthru
        _
      // Predicated region
      $region17: #{deeplab_decoder_forward.7} parent=11 // pred_check
        %p181 = pneg %p93
      $region18: #{deeplab_decoder_forward.7} parent=11 // pred_check_branch
        %183 = sbr.rel (%p181) target = $region20
      $region19: #{deeplab_decoder_forward.7} parent=11 // pred_region
        _
      $region20: #{deeplab_decoder_forward.7} parent=11 // pred_fallthru
        _
      // Predicated region
      $region21: #{deeplab_decoder_forward.7} parent=11 // pred_check
        %p184 = pneg %p114
      $region22: #{deeplab_decoder_forward.7} parent=11 // pred_check_branch
        %186 = sbr.rel (%p184) target = $region24
      $region23: #{deeplab_decoder_forward.7} parent=11 // pred_region
        _
      $region24: #{deeplab_decoder_forward.7} parent=11 // pred_fallthru
        _
      // Predicated region
      $region25: #{deeplab_decoder_forward.7} parent=11 // pred_check
        %p187 = pneg %p135
      $region26: #{deeplab_decoder_forward.7} parent=11 // pred_check_branch
        %189 = sbr.rel (%p187) target = $region28
      $region27: #{deeplab_decoder_forward.7} parent=11 // pred_region
        _
      $region28: #{deeplab_decoder_forward.7} parent=11 // pred_fallthru
        _
    $region12: #{deeplab_decoder_forward.7} parent=5 // pred_fallthru
      _
    %p190 = scmp.lt.s32.totalorder %s11, 4
    // Predicated region
    $region29: #{deeplab_decoder_forward.7} parent=5 // pred_check
      %p191 = pneg %p190
    $region30: #{deeplab_decoder_forward.7} parent=5 // pred_check_branch
      %193 = sbr.rel (%p191) target = $region32
    $region31: #{deeplab_decoder_forward.7} parent=5 // pred_region
      // Predicated region
      $region33: #{deeplab_decoder_forward.7} parent=31 // pred_check
        %p194 = pneg %p45
      $region34: #{deeplab_decoder_forward.7} parent=31 // pred_check_branch
        %196 = sbr.rel (%p194) target = $region36
      $region35: #{deeplab_decoder_forward.7} parent=31 // pred_region
        %s197 = smul.u32 8, %s19
        %p198 = scmp.lt.s32.totalorder %s18, 1
        %s199 = scalar_select %p198, %s18, 1
        %p200 = scmp.lt.s32.totalorder %s197, 15
        %s201 = scalar_select %p200, %s197, 15
        %s202 = smul.addr %s201, 2
        %s203 = smul.addr %s199, 32
        %s204 = sadd.s32 %s202, %s203
        %s205 = smul.addr %s204, 4
        %s206 = scalar_lea.vmem %s0, %s205
        %s207 = smul.u32 8, %s19
      $region36: #{deeplab_decoder_forward.7} parent=31 // pred_fallthru
        _
    $region32: #{deeplab_decoder_forward.7} parent=5 // pred_fallthru
      _
    %p208 = scmp.le.s32.totalorder 1, %s11
    %p209 = scmp.lt.s32.totalorder %s11, 5
    %p210 = pnand %p208, %p209
    %p211 = pneg %p210
    // Predicated region
    $region37: #{deeplab_decoder_forward.7} parent=5 // pred_check
      _
    $region38: #{deeplab_decoder_forward.7} parent=5 // pred_check_branch
      %213 = sbr.rel (%p210) target = $region40
    $region39: #{deeplab_decoder_forward.7} parent=5 // pred_region
      %s214 = ssub.s32 %s11, 1
      %s215 = smul.u32 8, %s21
      %p216 = scmp.lt.s32.totalorder %s20, 1
      %s217 = scalar_select %p216, %s20, 1
      %p218 = scmp.lt.s32.totalorder %s215, 15
      %s219 = scalar_select %p218, %s215, 15
      %s220 = smul.addr %s219, 2
      %s221 = smul.addr %s217, 32
      %s222 = sadd.s32 %s220, %s221
      %s223 = smul.addr %s222, 4
      %s224 = scalar_lea.vmem %s0, %s223
      %p225 = pneg %p51
      %p226 = pneg %p48
      %p227 = pneg %p72
      %p228 = pneg %p69
      %p229 = pneg %p93
      %p230 = pneg %p90
      %p231 = pneg %p114
      %p232 = pneg %p111
      %p233 = pneg %p135
      %p234 = pneg %p132
      %p235 = pneg %p163
      %p236 = pneg %p160
      %s237 = smul.u32 8, %s21
      %p238 = scmp.lt.s32.totalorder %s20, 1
      %s239 = scalar_select %p238, %s20, 1
      %p240 = scmp.lt.s32.totalorder %s237, 15
      %s241 = scalar_select %p240, %s237, 15
      %s242 = smul.addr %s241, 2
      %s243 = smul.addr %s239, 32
      %s244 = sadd.s32 %s242, %s243
      %s245 = smul.addr %s244, 8
      %s246 = scalar_lea.vmem %s5, %s245
      %s247 = smul.u32 8, %s21
      %p248 = scmp.lt.s32.totalorder %s20, 1
      %s249 = scalar_select %p248, %s20, 1
      %p250 = scmp.lt.s32.totalorder %s247, 15
      %s251 = scalar_select %p250, %s247, 15
      %s252 = smul.addr %s251, 2
      %s253 = smul.addr %s249, 32
      %s254 = sadd.s32 %s252, %s253
      %s255 = smul.addr %s254, 4
      %s256 = scalar_lea.vmem %s0, %s255
      %s257 = smul.u32 8, %s21
      %s258 = smul.u32 8, %s21
      %p259 = scmp.lt.s32.totalorder %s20, 1
      %s260 = scalar_select %p259, %s20, 1
      %p261 = scmp.lt.s32.totalorder %s258, 15
      %s262 = scalar_select %p261, %s258, 15
      %s263 = smul.addr %s262, 2
      %s264 = smul.addr %s260, 32
      %s265 = sadd.s32 %s263, %s264
      %s266 = smul.addr %s265, 8
      %s267 = scalar_lea.vmem %s5, %s266
      %s268 = smul.u32 8, %s21
      %v270 = vld [vmem:[%s256] sm:$0xf]
      %v271 = vld [vmem:[%s256 + $0x4] sm:$0xf]
      %v272 = vld [vmem:[%s256 + $0x8] sm:$0xf]
      %v273 = vld [vmem:[%s256 + $0xc] sm:$0xf]
      %v274 = vld [vmem:[%s256 + $0x10] sm:$0xf]
      %v275 = vld [vmem:[%s256 + $0x14] sm:$0xf]
      %v276 = vld [vmem:[%s256 + $0x18] sm:$0xf]
      %v277 = vld [vmem:[%s256 + $0x1c] sm:$0xf]
      %v278 = vld [vmem:[%s256 + $0x20] sm:$0xf]
      %v279 = vld [vmem:[%s256 + $0x24] sm:$0xf]
      %v280 = vld [vmem:[%s256 + $0x28] sm:$0xf]
      %v281 = vld [vmem:[%s256 + $0x2c] sm:$0xf]
      %v282 = vld [vmem:[%s256 + $0x30] sm:$0xf]
      %v283 = vld [vmem:[%s256 + $0x34] sm:$0xf]
      %v284 = vld [vmem:[%s256 + $0x38] sm:$0xf]
      %v285 = vld [vmem:[%s256 + $0x3c] sm:$0xf]
      %v286 = vunpack.c.l.bf16 %v270
      %v287 = vunpack.c.l.bf16 %v271
      %v288 = vunpack.c.l.bf16 %v272
      %v289 = vunpack.c.l.bf16 %v273
      %v290 = vunpack.c.l.bf16 %v274
      %v291 = vunpack.c.l.bf16 %v275
      %v292 = vunpack.c.l.bf16 %v276
      %v293 = vunpack.c.l.bf16 %v277
      %v294 = vunpack.c.l.bf16 %v278
      %v295 = vunpack.c.l.bf16 %v279
      %v296 = vunpack.c.l.bf16 %v280
      %v297 = vunpack.c.l.bf16 %v281
      %v298 = vunpack.c.l.bf16 %v282
      %v299 = vunpack.c.l.bf16 %v283
      %v300 = vunpack.c.l.bf16 %v284
      %v301 = vunpack.c.l.bf16 %v285
      %v302 = vld [vmem:[%s3] sm:$0x1]
      %v304 = vlaneseq
      %v305 = vshrl.u32 %v304, 7
      %v306 = vsub.s32 0, %v305
      %v307 = vrot.slane %v302, %v306
      %v309 = vmul.f32 %v286, %v307
      %v310 = vmul.f32 %v287, %v307
      %v311 = vmul.f32 %v288, %v307
      %v312 = vmul.f32 %v289, %v307
      %v313 = vmul.f32 %v290, %v307
      %v314 = vmul.f32 %v291, %v307
      %v315 = vmul.f32 %v292, %v307
      %v316 = vmul.f32 %v293, %v307
      %v317 = vmul.f32 %v294, %v307
      %v318 = vmul.f32 %v295, %v307
      %v319 = vmul.f32 %v296, %v307
      %v320 = vmul.f32 %v297, %v307
      %v321 = vmul.f32 %v298, %v307
      %v322 = vmul.f32 %v299, %v307
      %v323 = vmul.f32 %v300, %v307
      %v324 = vmul.f32 %v301, %v307
      %v325 = vld [vmem:[%s4] sm:$0x1]
      %v327 = vlaneseq
      %v328 = vshrl.u32 %v327, 7
      %v329 = vsub.s32 0, %v328
      %v330 = vrot.slane %v325, %v329
      %v332 = vadd.f32 %v309, %v330
      %v333 = vadd.f32 %v310, %v330
      %v334 = vadd.f32 %v311, %v330
      %v335 = vadd.f32 %v312, %v330
      %v336 = vadd.f32 %v313, %v330
      %v337 = vadd.f32 %v314, %v330
      %v338 = vadd.f32 %v315, %v330
      %v339 = vadd.f32 %v316, %v330
      %v340 = vadd.f32 %v317, %v330
      %v341 = vadd.f32 %v318, %v330
      %v342 = vadd.f32 %v319, %v330
      %v343 = vadd.f32 %v320, %v330
      %v344 = vadd.f32 %v321, %v330
      %v345 = vadd.f32 %v322, %v330
      %v346 = vadd.f32 %v323, %v330
      %v347 = vadd.f32 %v324, %v330
      %v348 = vmax.f32 %v332, 0.0
      %v349 = vmax.f32 %v333, 0.0
      %v350 = vmax.f32 %v334, 0.0
      %v351 = vmax.f32 %v335, 0.0
      %v352 = vmax.f32 %v336, 0.0
      %v353 = vmax.f32 %v337, 0.0
      %v354 = vmax.f32 %v338, 0.0
      %v355 = vmax.f32 %v339, 0.0
      %v356 = vmax.f32 %v340, 0.0
      %v357 = vmax.f32 %v341, 0.0
      %v358 = vmax.f32 %v342, 0.0
      %v359 = vmax.f32 %v343, 0.0
      %v360 = vmax.f32 %v344, 0.0
      %v361 = vmax.f32 %v345, 0.0
      %v362 = vmax.f32 %v346, 0.0
      %v363 = vmax.f32 %v347, 0.0
      %v364 = vpack.c.bf16 %v349, %v348
      %v365 = vpack.c.bf16 %v351, %v350
      %v366 = vpack.c.bf16 %v353, %v352
      %v367 = vpack.c.bf16 %v355, %v354
      %v368 = vpack.c.bf16 %v357, %v356
      %v369 = vpack.c.bf16 %v359, %v358
      %v370 = vpack.c.bf16 %v361, %v360
      %v371 = vpack.c.bf16 %v363, %v362
      %v372 = vld [vmem:[%s1] sm:$0xf]
      %v373 = vld [vmem:[%s1 + $0x4] sm:$0xf]
      %v374 = vld [vmem:[%s1 + $0x8] sm:$0xf]
      %v375 = vld [vmem:[%s1 + $0xc] sm:$0xf]
      %v376 = vld [vmem:[%s1 + $0x10] sm:$0xf]
      %v377 = vld [vmem:[%s1 + $0x14] sm:$0xf]
      %v378 = vld [vmem:[%s1 + $0x18] sm:$0xf]
      %v379 = vld [vmem:[%s1 + $0x1c] sm:$0xf]
      %v380 = vld [vmem:[%s1 + $0x20] sm:$0xf]
      %v381 = vld [vmem:[%s1 + $0x24] sm:$0xf]
      %v382 = vld [vmem:[%s1 + $0x28] sm:$0xf]
      %v383 = vld [vmem:[%s1 + $0x2c] sm:$0xf]
      %v384 = vld [vmem:[%s1 + $0x30] sm:$0xf]
      %v385 = vld [vmem:[%s1 + $0x34] sm:$0xf]
      %v386 = vld [vmem:[%s1 + $0x38] sm:$0xf]
      %v387 = vld [vmem:[%s1 + $0x3c] sm:$0xf]
      %v388 = vld [vmem:[%s2] sm:$0x1]
      %v390 = vlaneseq
      %v391 = vshrl.u32 %v390, 7
      %v392 = vsub.s32 0, %v391
      %v393 = vrot.slane %v388, %v392
      %v411 = vunpack.c.l.b16 %v372
      %v412 = vunpack.c.l.b16 %v373
      %v413 = vunpack.c.l.b16 %v374
      %v414 = vunpack.c.l.b16 %v375
      %v415 = vunpack.c.l.b16 %v376
      %v416 = vunpack.c.l.b16 %v377
      %v417 = vunpack.c.l.b16 %v378
      %v418 = vunpack.c.l.b16 %v379
      %v419 = vunpack.c.l.b16 %v380
      %v420 = vunpack.c.l.b16 %v381
      %v421 = vunpack.c.l.b16 %v382
      %v422 = vunpack.c.l.b16 %v383
      %v423 = vunpack.c.l.b16 %v384
      %v424 = vunpack.c.l.b16 %v385
      %v425 = vunpack.c.l.b16 %v386
      %v426 = vunpack.c.l.b16 %v387
      %v427 = vpack.c.b16 %v412, %v411
      %v428 = vpack.c.b16 %v414, %v413
      %v429 = vpack.c.b16 %v416, %v415
      %v430 = vpack.c.b16 %v418, %v417
      %v431 = vpack.c.b16 %v420, %v419
      %v432 = vpack.c.b16 %v422, %v421
      %v433 = vpack.c.b16 %v424, %v423
      %v434 = vpack.c.b16 %v426, %v425
      %443 = vmatprep.subr.bf16.mxu0 0
      %444 = vmatpush1.bf16.msra.mxu0 %v427
      %445 = vmatprep.subr.bf16.mxu0 0
      %446 = vmatpush1.bf16.msra.mxu0 %v428
      %447 = vmatprep.subr.bf16.mxu0 0
      %448 = vmatpush1.bf16.msra.mxu0 %v429
      %449 = vmatprep.subr.bf16.mxu0 0
      %450 = vmatpush1.bf16.msra.mxu0 %v430
      %451 = vmatprep.subr.bf16.mxu0 0
      %452 = vmatpush1.bf16.msra.mxu0 %v431
      %453 = vmatprep.subr.bf16.mxu0 0
      %454 = vmatpush1.bf16.msra.mxu0 %v432
      %455 = vmatprep.subr.bf16.mxu0 0
      %456 = vmatpush1.bf16.msra.mxu0 %v433
      %457 = vmatprep.subr.bf16.mxu0 0
      %458 = vmatpush1.bf16.msra.mxu0 %v434
      %459 = vmatprep.subr.bf16.mxu0 0
      %460 = vmatpush1.bf16.msra.mxu0 0
      %461 = vmatprep.subr.bf16.mxu0 0
      %462 = vmatpush1.bf16.msra.mxu0 0
      %463 = vmatprep.subr.bf16.mxu0 0
      %464 = vmatpush1.bf16.msra.mxu0 0
      %465 = vmatprep.subr.bf16.mxu0 0
      %466 = vmatpush1.bf16.msra.mxu0 0
      %467 = vmatprep.subr.bf16.mxu0 0
      %468 = vmatpush1.bf16.msra.mxu0 0
      %469 = vmatprep.subr.bf16.mxu0 0
      %470 = vmatpush1.bf16.msra.mxu0 0
      %471 = vmatprep.subr.bf16.mxu0 0
      %472 = vmatpush1.bf16.msra.mxu0 0
      %473 = vmatprep.subr.bf16.mxu0 0
      %474 = vmatpush1.bf16.msra.mxu0 0
      %475 = vmatprep.mubr.bf16.mxu0 0
      %476 = vmatmul.mubr.bf16.gmra.mrb[0].mxu0 %v364
      %v477 = vpop.f32.mrb[0].mxu0
      %v478 = vadd.f32 %v393, %v477
      %v479 = vpop.f32.mrb[0].mxu0
      %v480 = vpop.f32.mrb[0].mxu0
      %v481 = vadd.f32 %v393, %v480
      %v482 = vpop.f32.mrb[0].mxu0
      %483 = vmatprep.mubr.bf16.mxu0 0
      %484 = vmatmul.mubr.bf16.gmra.mrb[0].mxu0 %v365
      %v485 = vpop.f32.mrb[0].mxu0
      %v486 = vadd.f32 %v393, %v485
      %v487 = vpop.f32.mrb[0].mxu0
      %v488 = vpop.f32.mrb[0].mxu0
      %v489 = vadd.f32 %v393, %v488
      %v490 = vpop.f32.mrb[0].mxu0
      %491 = vmatprep.mubr.bf16.mxu0 0
      %492 = vmatmul.mubr.bf16.gmra.mrb[0].mxu0 %v366
      %v493 = vpop.f32.mrb[0].mxu0
      %v494 = vadd.f32 %v393, %v493
      %v495 = vpop.f32.mrb[0].mxu0
      %v496 = vpop.f32.mrb[0].mxu0
      %v497 = vadd.f32 %v393, %v496
      %v498 = vpop.f32.mrb[0].mxu0
      %499 = vmatprep.mubr.bf16.mxu0 0
      %500 = vmatmul.mubr.bf16.gmra.mrb[0].mxu0 %v367
      %v501 = vpop.f32.mrb[0].mxu0
      %v502 = vadd.f32 %v393, %v501
      %v503 = vpop.f32.mrb[0].mxu0
      %v504 = vpop.f32.mrb[0].mxu0
      %v505 = vadd.f32 %v393, %v504
      %v506 = vpop.f32.mrb[0].mxu0
      %507 = vmatprep.mubr.bf16.mxu0 0
      %508 = vmatmul.mubr.bf16.gmra.mrb[0].mxu0 %v368
      %v509 = vpop.f32.mrb[0].mxu0
      %v510 = vadd.f32 %v393, %v509
      %v511 = vpop.f32.mrb[0].mxu0
      %v512 = vpop.f32.mrb[0].mxu0
      %v513 = vadd.f32 %v393, %v512
      %v514 = vpop.f32.mrb[0].mxu0
      %515 = vmatprep.mubr.bf16.mxu0 0
      %516 = vmatmul.mubr.bf16.gmra.mrb[0].mxu0 %v369
      %v517 = vpop.f32.mrb[0].mxu0
      %v518 = vadd.f32 %v393, %v517
      %v519 = vpop.f32.mrb[0].mxu0
      %v520 = vpop.f32.mrb[0].mxu0
      %v521 = vadd.f32 %v393, %v520
      %v522 = vpop.f32.mrb[0].mxu0
      %523 = vmatprep.mubr.bf16.mxu0 0
      %524 = vmatmul.mubr.bf16.gmra.mrb[0].mxu0 %v370
      %v525 = vpop.f32.mrb[0].mxu0
      %v526 = vadd.f32 %v393, %v525
      %v527 = vpop.f32.mrb[0].mxu0
      %v528 = vpop.f32.mrb[0].mxu0
      %v529 = vadd.f32 %v393, %v528
      %v530 = vpop.f32.mrb[0].mxu0
      %531 = vmatprep.mubr.bf16.mxu0 0
      %532 = vmatmul.mubr.bf16.gmra.mrb[0].mxu0 %v371
      %v533 = vpop.f32.mrb[0].mxu0
      %v534 = vadd.f32 %v393, %v533
      %v535 = vpop.f32.mrb[0].mxu0
      %v536 = vpop.f32.mrb[0].mxu0
      %v537 = vadd.f32 %v393, %v536
      %v538 = vpop.f32.mrb[0].mxu0
      %539 = vdwg.mxu0
      %540 = vst [vmem:[%s267] sm:$0xff] %v478
      %541 = vst [vmem:[%s267 + $0x8] sm:$0xff] %v481
      %542 = vst [vmem:[%s267 + $0x10] sm:$0xff] %v486
      %543 = vst [vmem:[%s267 + $0x18] sm:$0xff] %v489
      %544 = vst [vmem:[%s267 + $0x20] sm:$0xff] %v494
      %545 = vst [vmem:[%s267 + $0x28] sm:$0xff] %v497
      %546 = vst [vmem:[%s267 + $0x30] sm:$0xff] %v502
      %547 = vst [vmem:[%s267 + $0x38] sm:$0xff] %v505
      %548 = vst [vmem:[%s267 + $0x40] sm:$0xff] %v510
      %549 = vst [vmem:[%s267 + $0x48] sm:$0xff] %v513
      %550 = vst [vmem:[%s267 + $0x50] sm:$0xff] %v518
      %551 = vst [vmem:[%s267 + $0x58] sm:$0xff] %v521
      %552 = vst [vmem:[%s267 + $0x60] sm:$0xff] %v526
      %553 = vst [vmem:[%s267 + $0x68] sm:$0xff] %v529
      %554 = vst [vmem:[%s267 + $0x70] sm:$0xff] %v534
      %555 = vst [vmem:[%s267 + $0x78] sm:$0xff] %v537
      %s556 = smul.u32 8, %s21
      %p557 = scmp.lt.s32.totalorder %s20, 1
      %s558 = scalar_select %p557, %s20, 1
      %p559 = scmp.lt.s32.totalorder %s556, 15
      %s560 = scalar_select %p559, %s556, 15
      %s561 = smul.addr %s560, 2
      %s562 = smul.addr %s558, 32
      %s563 = sadd.s32 %s561, %s562
      %s564 = smul.addr %s563, 8
      %s565 = scalar_lea.vmem %s5, %s564
      // Predicated region
      $region41: #{deeplab_decoder_forward.7} parent=39 // pred_check
        %p566 = pneg %p160
      $region42: #{deeplab_decoder_forward.7} parent=39 // pred_check_branch
        %568 = sbr.rel (%p566) target = $region44
      $region43: #{deeplab_decoder_forward.7} parent=39 // pred_region
        %s569 = smul.u32 8, %s21
      $region44: #{deeplab_decoder_forward.7} parent=39 // pred_fallthru
        _
    $region40: #{deeplab_decoder_forward.7} parent=5 // pred_fallthru
      _
    %p570 = scmp.le.s32.totalorder 2, %s11
    // Predicated region
    $region45: #{deeplab_decoder_forward.7} parent=5 // pred_check
      %p571 = pneg %p570
    $region46: #{deeplab_decoder_forward.7} parent=5 // pred_check_branch
      %573 = sbr.rel (%p571) target = $region48
    $region47: #{deeplab_decoder_forward.7} parent=5 // pred_region
      %s574 = ssub.s32 %s11, 2
      // Predicated region
      $region49: #{deeplab_decoder_forward.7} parent=47 // pred_check
        %p575 = pneg %p166
      $region50: #{deeplab_decoder_forward.7} parent=47 // pred_check_branch
        %577 = sbr.rel (%p575) target = $region52
      $region51: #{deeplab_decoder_forward.7} parent=47 // pred_region
        %s578 = smul.u32 8, %s23
        %p579 = scmp.lt.s32.totalorder %s22, 1
        %s580 = scalar_select %p579, %s22, 1
        %p581 = scmp.lt.s32.totalorder %s578, 15
        %s582 = scalar_select %p581, %s578, 15
        %s583 = smul.addr %s582, 2
        %s584 = smul.addr %s580, 32
        %s585 = sadd.s32 %s583, %s584
        %s586 = smul.addr %s585, 8
        %s587 = scalar_lea.vmem %s5, %s586
      $region52: #{deeplab_decoder_forward.7} parent=47 // pred_fallthru
        _
    $region48: #{deeplab_decoder_forward.7} parent=5 // pred_fallthru
      _
  $region6: #{deeplab_decoder_forward.7} parent=0 // loop_footer
    %s15 = sadd.s32 1, %s11
  $region7: #{deeplab_decoder_forward.7} parent=0 // loop_footer_branch
    %10 = sbr.rel target = $region3
  $region8: #{deeplab_decoder_forward.7} parent=0 // loop_exit
    _

// kernel: deeplab_decoder_forward.5
$region0: #{deeplab_decoder_forward.5}
  #allocation0 [shape = 'u32[]', space=smem, size = 0x4, offset = 0x4, fixed_abs, tag = 'smem constant byte address 0x4 - core index']
  #allocation1 [shape = 'u32[144,128]{1,0:T(1,128)}', space=vmem, size = 0x12000, scoped, tag = 'internal scratch']
  %s0 = inlined_call_operand.vmem [shape: bf16[2,16,16,80], index: 0, kind: input, shape index: {}]
  %s1 = inlined_call_operand.vmem [shape: bf16[9,80,128], index: 1, kind: input, shape index: {}]
  %s2 = inlined_call_operand.vmem [shape: f32[1,80], index: 2, kind: input, shape index: {}]
  %s3 = inlined_call_operand.vmem [shape: f32[1,80], index: 3, kind: input, shape index: {}]
  %s4 = inlined_call_operand.vmem [shape: f32[1,80], index: 4, kind: input, shape index: {}]
  %s5 = inlined_call_operand.vmem [shape: bf16[2,16,16,128], index: 5, kind: output, shape index: {0}]
  %s6 = inlined_call_operand.vmem [shape: f32[2,2,2,128], index: 6, kind: output, shape index: {1}]
  %7 = xla_tuple %s5, %s6
  %s8 = sld [smem:[#allocation0]]
  $region61: #{deeplab_decoder_forward.5} parent=0
    _
  %s10 = ssub.s32 1, %s8
  %s11 = scalar_select 0, %s10, %s8
  loop: start=0, step=1, limit=6
  $region2: #{deeplab_decoder_forward.5} parent=0 // loop_pre_header
    _
  $region3: #{deeplab_decoder_forward.5} parent=0 // loop_header
    %s13 = sphi 0, %s17
    %p14 = scmp.ge.s32.totalorder %s13, 6
    %s20 = sphi 0, %s32
    %s21 = sphi 0, %s28
    %s22 = sphi 0, %s20
    %s23 = sphi 0, %s21
    %s24 = sphi 0, %s22
    %s25 = sphi 0, %s23
    %s35 = sphi 0, %s37
    %s38 = sphi 0, %s35
    %s39 = sphi 0, %s38
    %s55 = sphi 0, %s39
    %s59 = sphi 0, %s59
    %s61 = sphi 0, %s59
    %s62 = sphi 0, %s61
    %s76 = sphi 0, %s62
    %s80 = sphi 0, %s80
    %s82 = sphi 0, %s80
    %s83 = sphi 0, %s82
    %s97 = sphi 0, %s83
    %s101 = sphi 0, %s101
    %s103 = sphi 0, %s101
    %s104 = sphi 0, %s103
    %s118 = sphi 0, %s104
    %s122 = sphi 0, %s122
    %s124 = sphi 0, %s122
    %s125 = sphi 0, %s124
    %s139 = sphi 0, %s125
    %s147 = sphi 0, %s149
    %s150 = sphi 0, %s147
    %s151 = sphi 0, %s150
    %s167 = sphi 0, %s151
    %s175 = sphi 0, %s177
    %s178 = sphi 0, %s175
    %s179 = sphi 0, %s178
    %s195 = sphi 0, %s179
  $region4: #{deeplab_decoder_forward.5} parent=0 // loop_header_branch
    %16 = sbr.rel (%p14) target = $region8
  $region5: #{deeplab_decoder_forward.5} parent=0 // loop_body
    %s18 = ssub.s32 %s13, 1
    %s19 = ssub.s32 %s13, 2
    %s26 = sadd.s32 1, %s21
    %p27 = scmp.ge.s32.totalorder %s26, 2
    %s28 = scalar_select %p27, 0, %s26
    %s29 = sadd.s32 1, %s20
    %s30 = scalar_select %p27, %s29, %s20
    %p31 = scmp.ge.s32.totalorder %s30, 2
    %s32 = scalar_select %p31, 0, %s30
    %s33 = ssub.s32 %s20, %s32
    %p34 = scmp.eq.s32.totalorder %s33, 0
    %s36 = sadd.s32 %s35, 1
    %s37 = scalar_select %p34, %s35, %s36
    %p40 = pneg %p34
    %p41 = scmp.eq.s32.totalorder %s13, 3
    %p42 = por %p40, %p41
    %p43 = scmp.ne.s32.totalorder %s35, %s38
    %p44 = scmp.eq.s32.totalorder %s13, 0
    %p45 = por %p43, %p44
    %p46 = scmp.ne.s32.totalorder %s35, %s38
    %p47 = scmp.eq.s32.totalorder %s18, 3
    %p48 = por %p46, %p47
    %p49 = scmp.ne.s32.totalorder %s38, %s39
    %p50 = scmp.eq.s32.totalorder %s18, 0
    %p51 = por %p49, %p50
    %p52 = scmp.ne.s32.totalorder %s38, %s39
    %p53 = scmp.eq.s32.totalorder %s19, 3
    %p54 = por %p52, %p53
    %p56 = scmp.ne.s32.totalorder %s39, %s55
    %p57 = scmp.eq.s32.totalorder %s19, 0
    %p58 = por %p56, %p57
    %s60 = sadd.s32 %s59, 1
    %p63 = scmp.eq.s32.totalorder %s13, 3
    %p64 = scmp.ne.s32.totalorder %s59, %s61
    %p65 = scmp.eq.s32.totalorder %s13, 0
    %p66 = por %p64, %p65
    %p67 = scmp.ne.s32.totalorder %s59, %s61
    %p68 = scmp.eq.s32.totalorder %s18, 3
    %p69 = por %p67, %p68
    %p70 = scmp.ne.s32.totalorder %s61, %s62
    %p71 = scmp.eq.s32.totalorder %s18, 0
    %p72 = por %p70, %p71
    %p73 = scmp.ne.s32.totalorder %s61, %s62
    %p74 = scmp.eq.s32.totalorder %s19, 3
    %p75 = por %p73, %p74
    %p77 = scmp.ne.s32.totalorder %s62, %s76
    %p78 = scmp.eq.s32.totalorder %s19, 0
    %p79 = por %p77, %p78
    %s81 = sadd.s32 %s80, 1
    %p84 = scmp.eq.s32.totalorder %s13, 3
    %p85 = scmp.ne.s32.totalorder %s80, %s82
    %p86 = scmp.eq.s32.totalorder %s13, 0
    %p87 = por %p85, %p86
    %p88 = scmp.ne.s32.totalorder %s80, %s82
    %p89 = scmp.eq.s32.totalorder %s18, 3
    %p90 = por %p88, %p89
    %p91 = scmp.ne.s32.totalorder %s82, %s83
    %p92 = scmp.eq.s32.totalorder %s18, 0
    %p93 = por %p91, %p92
    %p94 = scmp.ne.s32.totalorder %s82, %s83
    %p95 = scmp.eq.s32.totalorder %s19, 3
    %p96 = por %p94, %p95
    %p98 = scmp.ne.s32.totalorder %s83, %s97
    %p99 = scmp.eq.s32.totalorder %s19, 0
    %p100 = por %p98, %p99
    %s102 = sadd.s32 %s101, 1
    %p105 = scmp.eq.s32.totalorder %s13, 3
    %p106 = scmp.ne.s32.totalorder %s101, %s103
    %p107 = scmp.eq.s32.totalorder %s13, 0
    %p108 = por %p106, %p107
    %p109 = scmp.ne.s32.totalorder %s101, %s103
    %p110 = scmp.eq.s32.totalorder %s18, 3
    %p111 = por %p109, %p110
    %p112 = scmp.ne.s32.totalorder %s103, %s104
    %p113 = scmp.eq.s32.totalorder %s18, 0
    %p114 = por %p112, %p113
    %p115 = scmp.ne.s32.totalorder %s103, %s104
    %p116 = scmp.eq.s32.totalorder %s19, 3
    %p117 = por %p115, %p116
    %p119 = scmp.ne.s32.totalorder %s104, %s118
    %p120 = scmp.eq.s32.totalorder %s19, 0
    %p121 = por %p119, %p120
    %s123 = sadd.s32 %s122, 1
    %p126 = scmp.eq.s32.totalorder %s13, 3
    %p127 = scmp.ne.s32.totalorder %s122, %s124
    %p128 = scmp.eq.s32.totalorder %s13, 0
    %p129 = por %p127, %p128
    %p130 = scmp.ne.s32.totalorder %s122, %s124
    %p131 = scmp.eq.s32.totalorder %s18, 3
    %p132 = por %p130, %p131
    %p133 = scmp.ne.s32.totalorder %s124, %s125
    %p134 = scmp.eq.s32.totalorder %s18, 0
    %p135 = por %p133, %p134
    %p136 = scmp.ne.s32.totalorder %s124, %s125
    %p137 = scmp.eq.s32.totalorder %s19, 3
    %p138 = por %p136, %p137
    %p140 = scmp.ne.s32.totalorder %s125, %s139
    %p141 = scmp.eq.s32.totalorder %s19, 0
    %p142 = por %p140, %p141
    %s143 = ssub.s32 %s20, %s32
    %s144 = ssub.s32 %s21, %s28
    %s145 = sor.u32 %s143, %s144
    %p146 = scmp.eq.s32.totalorder %s145, 0
    %s148 = sadd.s32 %s147, 1
    %s149 = scalar_select %p146, %s147, %s148
    %p152 = pneg %p146
    %p153 = scmp.eq.s32.totalorder %s13, 3
    %p154 = por %p152, %p153
    %p155 = scmp.ne.s32.totalorder %s147, %s150
    %p156 = scmp.eq.s32.totalorder %s13, 0
    %p157 = por %p155, %p156
    %p158 = scmp.ne.s32.totalorder %s147, %s150
    %p159 = scmp.eq.s32.totalorder %s18, 3
    %p160 = por %p158, %p159
    %p161 = scmp.ne.s32.totalorder %s150, %s151
    %p162 = scmp.eq.s32.totalorder %s18, 0
    %p163 = por %p161, %p162
    %p164 = scmp.ne.s32.totalorder %s150, %s151
    %p165 = scmp.eq.s32.totalorder %s19, 3
    %p166 = por %p164, %p165
    %p168 = scmp.ne.s32.totalorder %s151, %s167
    %p169 = scmp.eq.s32.totalorder %s19, 0
    %p170 = por %p168, %p169
    %s171 = ssub.s32 %s20, %s32
    %s172 = ssub.s32 %s21, %s28
    %s173 = sor.u32 %s171, %s172
    %p174 = scmp.eq.s32.totalorder %s173, 0
    %s176 = sadd.s32 %s175, 1
    %s177 = scalar_select %p174, %s175, %s176
    %p180 = pneg %p174
    %p181 = scmp.eq.s32.totalorder %s13, 3
    %p182 = por %p180, %p181
    %p183 = scmp.ne.s32.totalorder %s175, %s178
    %p184 = scmp.eq.s32.totalorder %s13, 0
    %p185 = por %p183, %p184
    %p186 = scmp.ne.s32.totalorder %s175, %s178
    %p187 = scmp.eq.s32.totalorder %s18, 3
    %p188 = por %p186, %p187
    %p189 = scmp.ne.s32.totalorder %s178, %s179
    %p190 = scmp.eq.s32.totalorder %s18, 0
    %p191 = por %p189, %p190
    %p192 = scmp.ne.s32.totalorder %s178, %s179
    %p193 = scmp.eq.s32.totalorder %s19, 3
    %p194 = por %p192, %p193
    %p196 = scmp.ne.s32.totalorder %s179, %s195
    %p197 = scmp.eq.s32.totalorder %s19, 0
    %p198 = por %p196, %p197
    %p199 = scmp.le.s32.totalorder 1, %s13
    %p200 = scmp.lt.s32.totalorder %s13, 5
    %p201 = pnand %p199, %p200
    %p202 = pneg %p201
    // Predicated region
    $region9: #{deeplab_decoder_forward.5} parent=5 // pred_check
      _
    $region10: #{deeplab_decoder_forward.5} parent=5 // pred_check_branch
      %204 = sbr.rel (%p201) target = $region12
    $region11: #{deeplab_decoder_forward.5} parent=5 // pred_region
      %s205 = ssub.s32 %s13, 1
      // Predicated region
      $region13: #{deeplab_decoder_forward.5} parent=11 // pred_check
        %p206 = pneg %p72
      $region14: #{deeplab_decoder_forward.5} parent=11 // pred_check_branch
        %208 = sbr.rel (%p206) target = $region16
      $region15: #{deeplab_decoder_forward.5} parent=11 // pred_region
        _
      $region16: #{deeplab_decoder_forward.5} parent=11 // pred_fallthru
        _
      // Predicated region
      $region17: #{deeplab_decoder_forward.5} parent=11 // pred_check
        %p209 = pneg %p93
      $region18: #{deeplab_decoder_forward.5} parent=11 // pred_check_branch
        %211 = sbr.rel (%p209) target = $region20
      $region19: #{deeplab_decoder_forward.5} parent=11 // pred_region
        _
      $region20: #{deeplab_decoder_forward.5} parent=11 // pred_fallthru
        _
      // Predicated region
      $region21: #{deeplab_decoder_forward.5} parent=11 // pred_check
        %p212 = pneg %p114
      $region22: #{deeplab_decoder_forward.5} parent=11 // pred_check_branch
        %214 = sbr.rel (%p212) target = $region24
      $region23: #{deeplab_decoder_forward.5} parent=11 // pred_region
        _
      $region24: #{deeplab_decoder_forward.5} parent=11 // pred_fallthru
        _
      // Predicated region
      $region25: #{deeplab_decoder_forward.5} parent=11 // pred_check
        %p215 = pneg %p135
      $region26: #{deeplab_decoder_forward.5} parent=11 // pred_check_branch
        %217 = sbr.rel (%p215) target = $region28
      $region27: #{deeplab_decoder_forward.5} parent=11 // pred_region
        _
      $region28: #{deeplab_decoder_forward.5} parent=11 // pred_fallthru
        _
    $region12: #{deeplab_decoder_forward.5} parent=5 // pred_fallthru
      _
    %p218 = scmp.lt.s32.totalorder %s13, 4
    // Predicated region
    $region29: #{deeplab_decoder_forward.5} parent=5 // pred_check
      %p219 = pneg %p218
    $region30: #{deeplab_decoder_forward.5} parent=5 // pred_check_branch
      %221 = sbr.rel (%p219) target = $region32
    $region31: #{deeplab_decoder_forward.5} parent=5 // pred_region
      // Predicated region
      $region33: #{deeplab_decoder_forward.5} parent=31 // pred_check
        %p222 = pneg %p45
      $region34: #{deeplab_decoder_forward.5} parent=31 // pred_check_branch
        %224 = sbr.rel (%p222) target = $region36
      $region35: #{deeplab_decoder_forward.5} parent=31 // pred_region
        %p225 = scmp.lt.s32.totalorder %s20, 1
        %s226 = scalar_select %p225, %s20, 1
        %s227 = smul.addr %s226, 32
        %s228 = smul.addr %s227, 4
        %s229 = scalar_lea.vmem %s0, %s228
      $region36: #{deeplab_decoder_forward.5} parent=31 // pred_fallthru
        _
    $region32: #{deeplab_decoder_forward.5} parent=5 // pred_fallthru
      _
    %p230 = scmp.le.s32.totalorder 1, %s13
    %p231 = scmp.lt.s32.totalorder %s13, 5
    %p232 = pnand %p230, %p231
    %p233 = pneg %p232
    // Predicated region
    $region37: #{deeplab_decoder_forward.5} parent=5 // pred_check
      _
    $region38: #{deeplab_decoder_forward.5} parent=5 // pred_check_branch
      %235 = sbr.rel (%p232) target = $region40
    $region39: #{deeplab_decoder_forward.5} parent=5 // pred_region
      %s236 = ssub.s32 %s13, 1
      %p237 = scmp.lt.s32.totalorder %s22, 1
      %s238 = scalar_select %p237, %s22, 1
      %s239 = smul.addr %s238, 32
      %s240 = smul.addr %s239, 4
      %s241 = scalar_lea.vmem %s0, %s240
      %p242 = pneg %p51
      %p243 = pneg %p48
      %p244 = pneg %p72
      %p245 = pneg %p69
      %p246 = pneg %p93
      %p247 = pneg %p90
      %p248 = pneg %p114
      %p249 = pneg %p111
      %p250 = pneg %p135
      %p251 = pneg %p132
      %p252 = pneg %p163
      %p253 = pneg %p160
      %s254 = smul.u32 8, %s23
      %p255 = scmp.lt.s32.totalorder %s22, 1
      %s256 = scalar_select %p255, %s22, 1
      %p257 = scmp.lt.s32.totalorder %s254, 15
      %s258 = scalar_select %p257, %s254, 15
      %s259 = smul.addr %s258, 2
      %s260 = smul.addr %s256, 32
      %s261 = sadd.s32 %s259, %s260
      %s262 = smul.addr %s261, 4
      %s263 = scalar_lea.vmem %s5, %s262
      %p264 = pneg %p191
      %p265 = pneg %p188
      %p266 = scmp.lt.s32.totalorder %s22, 1
      %s267 = scalar_select %p266, %s22, 1
      %p268 = scmp.lt.s32.totalorder %s23, 1
      %s269 = scalar_select %p268, %s23, 1
      %s270 = smul.addr %s267, 2
      %s271 = sadd.s32 %s269, %s270
      %s272 = smul.addr %s271, 2
      %s273 = scalar_lea.vmem %s6, %s272
      %p274 = scmp.lt.s32.totalorder %s22, 1
      %s275 = scalar_select %p274, %s22, 1
      %s276 = smul.addr %s275, 32
      %s277 = smul.addr %s276, 4
      %s278 = scalar_lea.vmem %s0, %s277
      %s279 = smul.u32 8, %s23
      %p280 = scmp.lt.s32.totalorder %s22, 1
      %s281 = scalar_select %p280, %s22, 1
      %p282 = scmp.lt.s32.totalorder %s279, 15
      %s283 = scalar_select %p282, %s279, 15
      %s284 = smul.addr %s283, 2
      %s285 = smul.addr %s281, 32
      %s286 = sadd.s32 %s284, %s285
      %s287 = smul.addr %s286, 4
      %s288 = scalar_lea.vmem %s5, %s287
      %s289 = smul.u32 8, %s23
      %p290 = scmp.lt.s32.totalorder %s22, 1
      %s291 = scalar_select %p290, %s22, 1
      %p292 = scmp.lt.s32.totalorder %s23, 1
      %s293 = scalar_select %p292, %s23, 1
      %s294 = smul.addr %s291, 2
      %s295 = sadd.s32 %s293, %s294
      %s296 = smul.addr %s295, 2
      %s297 = scalar_lea.vmem %s6, %s296
      %s299 = smul.u32 %s23, 8
      %v300 = vld [vmem:[%s2] sm:$0x1]
      %v301 = vld [vmem:[%s3] sm:$0x1]
      %v302 = vld [vmem:[%s4] sm:$0x1]
      %s303 = smul.u32 %s299, 2
      %s304 = smul.addr %s303, 4
      %s305 = scalar_lea.vmem %s278, %s304
      %v306 = vld [vmem:[%s305] sm:$0xf]
      %v307 = vld [vmem:[%s305 + $0x4] sm:$0xf]
      %v308 = vld [vmem:[%s305 + $0x8] sm:$0xf]
      %v309 = vld [vmem:[%s305 + $0xc] sm:$0xf]
      %v310 = vld [vmem:[%s305 + $0x10] sm:$0xf]
      %v311 = vld [vmem:[%s305 + $0x14] sm:$0xf]
      %v312 = vld [vmem:[%s305 + $0x18] sm:$0xf]
      %v313 = vld [vmem:[%s305 + $0x1c] sm:$0xf]
      %v314 = vld [vmem:[%s305 + $0x20] sm:$0xf]
      %v315 = vld [vmem:[%s305 + $0x24] sm:$0xf]
      %v316 = vld [vmem:[%s305 + $0x28] sm:$0xf]
      %v317 = vld [vmem:[%s305 + $0x2c] sm:$0xf]
      %v318 = vld [vmem:[%s305 + $0x30] sm:$0xf]
      %v319 = vld [vmem:[%s305 + $0x34] sm:$0xf]
      %v320 = vld [vmem:[%s305 + $0x38] sm:$0xf]
      %v321 = vld [vmem:[%s305 + $0x3c] sm:$0xf]
      %v322 = vunpack.c.l.bf16 %v306
      %v323 = vunpack.c.l.bf16 %v307
      %v324 = vunpack.c.l.bf16 %v308
      %v325 = vunpack.c.l.bf16 %v309
      %v326 = vunpack.c.l.bf16 %v310
      %v327 = vunpack.c.l.bf16 %v311
      %v328 = vunpack.c.l.bf16 %v312
      %v329 = vunpack.c.l.bf16 %v313
      %v330 = vunpack.c.l.bf16 %v314
      %v331 = vunpack.c.l.bf16 %v315
      %v332 = vunpack.c.l.bf16 %v316
      %v333 = vunpack.c.l.bf16 %v317
      %v334 = vunpack.c.l.bf16 %v318
      %v335 = vunpack.c.l.bf16 %v319
      %v336 = vunpack.c.l.bf16 %v320
      %v337 = vunpack.c.l.bf16 %v321
      %v339 = vlaneseq
      %v340 = vshrl.u32 %v339, 7
      %v341 = vsub.s32 0, %v340
      %v342 = vrot.slane %v300, %v341
      %v344 = vmul.f32 %v322, %v342
      %v345 = vmul.f32 %v323, %v342
      %v346 = vmul.f32 %v324, %v342
      %v347 = vmul.f32 %v325, %v342
      %v348 = vmul.f32 %v326, %v342
      %v349 = vmul.f32 %v327, %v342
      %v350 = vmul.f32 %v328, %v342
      %v351 = vmul.f32 %v329, %v342
      %v352 = vmul.f32 %v330, %v342
      %v353 = vmul.f32 %v331, %v342
      %v354 = vmul.f32 %v332, %v342
      %v355 = vmul.f32 %v333, %v342
      %v356 = vmul.f32 %v334, %v342
      %v357 = vmul.f32 %v335, %v342
      %v358 = vmul.f32 %v336, %v342
      %v359 = vmul.f32 %v337, %v342
      %v361 = vlaneseq
      %v362 = vshrl.u32 %v361, 7
      %v363 = vsub.s32 0, %v362
      %v364 = vrot.slane %v301, %v363
      %v366 = vadd.f32 %v344, %v364
      %v367 = vadd.f32 %v345, %v364
      %v368 = vadd.f32 %v346, %v364
      %v369 = vadd.f32 %v347, %v364
      %v370 = vadd.f32 %v348, %v364
      %v371 = vadd.f32 %v349, %v364
      %v372 = vadd.f32 %v350, %v364
      %v373 = vadd.f32 %v351, %v364
      %v374 = vadd.f32 %v352, %v364
      %v375 = vadd.f32 %v353, %v364
      %v376 = vadd.f32 %v354, %v364
      %v377 = vadd.f32 %v355, %v364
      %v378 = vadd.f32 %v356, %v364
      %v379 = vadd.f32 %v357, %v364
      %v380 = vadd.f32 %v358, %v364
      %v381 = vadd.f32 %v359, %v364
      %v383 = vlaneseq
      %v384 = vshrl.u32 %v383, 7
      %v385 = vsub.s32 0, %v384
      %v386 = vrot.slane %v302, %v385
      %v388 = vmax.f32 %v366, %v386
      %v389 = vmax.f32 %v367, %v386
      %v390 = vmax.f32 %v368, %v386
      %v391 = vmax.f32 %v369, %v386
      %v392 = vmax.f32 %v370, %v386
      %v393 = vmax.f32 %v371, %v386
      %v394 = vmax.f32 %v372, %v386
      %v395 = vmax.f32 %v373, %v386
      %v396 = vmax.f32 %v374, %v386
      %v397 = vmax.f32 %v375, %v386
      %v398 = vmax.f32 %v376, %v386
      %v399 = vmax.f32 %v377, %v386
      %v400 = vmax.f32 %v378, %v386
      %v401 = vmax.f32 %v379, %v386
      %v402 = vmax.f32 %v380, %v386
      %v403 = vmax.f32 %v381, %v386
      %s404 = ssub.s32 %s299, 1
      %p405 = scmp.gt.s32.totalorder %s404, 0
      %s406 = scalar_select %p405, %s404, 0
      %s407 = smul.u32 %s406, 2
      %s408 = smul.addr %s407, 4
      %s409 = scalar_lea.vmem %s278, %s408
      %v410 = vld [vmem:[%s409] sm:$0xf]
      %v411 = vld [vmem:[%s409 + $0x4] sm:$0xf]
      %v412 = vunpack.c.l.bf16 %v410
      %v413 = vunpack.c.l.bf16 %v411
      %v414 = vmul.f32 %v412, %v342
      %v415 = vmul.f32 %v413, %v342
      %v416 = vadd.f32 %v414, %v364
      %v417 = vadd.f32 %v415, %v364
      %v418 = vmax.f32 %v416, %v386
      %v419 = vmax.f32 %v417, %v386
      %p420 = scmp.gt.s32.totalorder %s23, 0
      %s421 = scalar_select %p420, 1, 0
      %v422 = vstv %s421
      %vm423 = vcmp.eq.s32.totalorder %v422, 1
      %v424 = vsel %vm423, %v418, 0.0
      %v425 = vsel %vm423, %v419, 0.0
      %s426 = sadd.s32 %s299, 8
      %p427 = scmp.lt.s32.totalorder %s426, 15
      %s428 = scalar_select %p427, %s426, 15
      %s429 = smul.u32 %s428, 2
      %s430 = smul.addr %s429, 4
      %s431 = scalar_lea.vmem %s278, %s430
      %v432 = vld [vmem:[%s431] sm:$0xf]
      %v433 = vld [vmem:[%s431 + $0x4] sm:$0xf]
      %v434 = vunpack.c.l.bf16 %v432
      %v435 = vunpack.c.l.bf16 %v433
      %v436 = vmul.f32 %v434, %v342
      %v437 = vmul.f32 %v435, %v342
      %v438 = vadd.f32 %v436, %v364
      %v439 = vadd.f32 %v437, %v364
      %v440 = vmax.f32 %v438, %v386
      %v441 = vmax.f32 %v439, %v386
      %p442 = scmp.lt.s32.totalorder %s23, 1
      %s443 = scalar_select %p442, 1, 0
      %v444 = vstv %s443
      %vm445 = vcmp.eq.s32.totalorder %v444, 1
      %v446 = vsel %vm445, %v440, 0.0
      %v447 = vsel %vm445, %v441, 0.0
      %vm468 = vcmask 1040384
      %v469 = vrot.slane %v424, 7
      %v470 = vrot.slane %v425, 7
      %v471 = vsel %vm468, %v469, %v470
      %v472 = vrot.slane %v388, 7
      %v473 = vrot.slane %v389, 7
      %v474 = vsel %vm468, %v472, %v473
      %v475 = vrot.slane %v390, 7
      %v476 = vrot.slane %v391, 7
      %v477 = vsel %vm468, %v475, %v476
      %v478 = vrot.slane %v392, 7
      %v479 = vrot.slane %v393, 7
      %v480 = vsel %vm468, %v478, %v479
      %v481 = vrot.slane %v394, 7
      %v482 = vrot.slane %v395, 7
      %v483 = vsel %vm468, %v481, %v482
      %v484 = vrot.slane %v396, 7
      %v485 = vrot.slane %v397, 7
      %v486 = vsel %vm468, %v484, %v485
      %v487 = vrot.slane %v398, 7
      %v488 = vrot.slane %v399, 7
      %v489 = vsel %vm468, %v487, %v488
      %v490 = vrot.slane %v400, 7
      %v491 = vrot.slane %v401, 7
      %v492 = vsel %vm468, %v490, %v491
      %v493 = vrot.slane %v402, 7
      %v494 = vrot.slane %v403, 7
      %v495 = vsel %vm468, %v493, %v494
      %v496 = vrot.slane %v446, 7
      %v497 = vrot.slane %v447, 7
      %v498 = vsel %vm468, %v496, %v497
      %v529 = vsel %vm468, 0.0, %v469
      %v530 = vsel %vm468, 0.0, %v472
      %v531 = vsel %vm468, 0.0, %v475
      %v532 = vsel %vm468, 0.0, %v478
      %v533 = vsel %vm468, 0.0, %v481
      %v534 = vsel %vm468, 0.0, %v484
      %v535 = vsel %vm468, 0.0, %v487
      %v536 = vsel %vm468, 0.0, %v490
      %v537 = vsel %vm468, 0.0, %v493
      %v538 = vsel %vm468, 0.0, %v496
      %v539 = vsel %vm468, %v470, 0.0
      %v540 = vsel %vm468, %v473, 0.0
      %v541 = vsel %vm468, %v476, 0.0
      %v542 = vsel %vm468, %v479, 0.0
      %v543 = vsel %vm468, %v482, 0.0
      %v544 = vsel %vm468, %v485, 0.0
      %v545 = vsel %vm468, %v488, 0.0
      %v546 = vsel %vm468, %v491, 0.0
      %v547 = vsel %vm468, %v494, 0.0
      %v548 = vsel %vm468, %v497, 0.0
      %v549 = vpack.c.bf16 %v471, %v529
      %v550 = vpack.c.bf16 %v474, %v530
      %v551 = vpack.c.bf16 %v477, %v531
      %v552 = vpack.c.bf16 %v480, %v532
      %v553 = vpack.c.bf16 %v483, %v533
      %v554 = vpack.c.bf16 %v486, %v534
      %v555 = vpack.c.bf16 %v489, %v535
      %v556 = vpack.c.bf16 %v492, %v536
      %v557 = vld [vmem:[%s1] sm:$0xf]
      %v558 = vld [vmem:[%s1 + $0x4] sm:$0xf]
      %v559 = vld [vmem:[%s1 + $0x8] sm:$0xf]
      %v560 = vld [vmem:[%s1 + $0xc] sm:$0xf]
      %v561 = vld [vmem:[%s1 + $0x10] sm:$0xf]
      %v562 = vld [vmem:[%s1 + $0x14] sm:$0xf]
      %v563 = vld [vmem:[%s1 + $0x18] sm:$0xf]
      %v564 = vld [vmem:[%s1 + $0x1c] sm:$0xf]
      %v565 = vld [vmem:[%s1 + $0x20] sm:$0xf]
      %v566 = vld [vmem:[%s1 + $0x24] sm:$0xf]
      %v567 = vpack.c.bf16 %v495, %v537
      %s568 = scalar_lea.vmem %s1, 120
      %v569 = vld [vmem:[%s568] sm:$0xf]
      %v570 = vld [vmem:[%s568 + $0x4] sm:$0xf]
      %v571 = vld [vmem:[%s568 + $0x8] sm:$0xf]
      %v572 = vld [vmem:[%s568 + $0xc] sm:$0xf]
      %v573 = vld [vmem:[%s568 + $0x10] sm:$0xf]
      %v574 = vld [vmem:[%s568 + $0x14] sm:$0xf]
      %v575 = vld [vmem:[%s568 + $0x18] sm:$0xf]
      %v576 = vld [vmem:[%s568 + $0x1c] sm:$0xf]
      %v577 = vld [vmem:[%s568 + $0x20] sm:$0xf]
      %v578 = vld [vmem:[%s568 + $0x24] sm:$0xf]
      %v589 = vunpack.c.l.b16 %v569
      %v590 = vunpack.c.l.b16 %v570
      %v591 = vunpack.c.l.b16 %v571
      %v592 = vunpack.c.l.b16 %v572
      %v593 = vunpack.c.l.b16 %v573
      %v594 = vunpack.c.l.b16 %v574
      %v595 = vunpack.c.l.b16 %v575
      %v596 = vunpack.c.l.b16 %v576
      %v597 = vunpack.c.l.b16 %v577
      %v598 = vunpack.c.l.b16 %v578
      %v599 = vpack.c.b16 %v590, %v589
      %v600 = vpack.c.b16 %v592, %v591
      %v601 = vpack.c.b16 %v594, %v593
      %v602 = vpack.c.b16 %v596, %v595
      %v603 = vpack.c.b16 %v598, %v597
      %vm609 = vcmask 654336
      %v611 = vsel %vm609, %v550, 0
      %v614 = vsel %vm609, %v551, 0
      %v617 = vsel %vm609, %v552, 0
      %v620 = vsel %vm609, %v553, 0
      %v623 = vsel %vm609, %v554, 0
      %v626 = vsel %vm609, %v555, 0
      %v629 = vsel %vm609, %v556, 0
      %v632 = vsel %vm609, %v567, 0
      %634 = vmatprep.subr.bf16.mxu0 0
      %635 = vmatpush1.bf16.msra.mxu0 %v599
      %636 = vmatprep.subr.bf16.mxu0 0
      %637 = vmatpush1.bf16.msra.mxu0 %v600
      %638 = vmatprep.subr.bf16.mxu0 0
      %639 = vmatpush1.bf16.msra.mxu0 %v601
      %640 = vmatprep.subr.bf16.mxu0 0
      %641 = vmatpush1.bf16.msra.mxu0 %v602
      %642 = vmatprep.subr.bf16.mxu0 0
      %643 = vmatpush1.bf16.msra.mxu0 %v603
      %644 = vmatprep.subr.bf16.mxu0 0
      %645 = vmatpush1.bf16.msra.mxu0 0
      %646 = vmatprep.subr.bf16.mxu0 0
      %647 = vmatpush1.bf16.msra.mxu0 0
      %648 = vmatprep.subr.bf16.mxu0 0
      %649 = vmatpush1.bf16.msra.mxu0 0
      %650 = vmatprep.subr.bf16.mxu0 0
      %651 = vmatpush1.bf16.msra.mxu0 0
      %652 = vmatprep.subr.bf16.mxu0 0
      %653 = vmatpush1.bf16.msra.mxu0 0
      %654 = vmatprep.subr.bf16.mxu0 0
      %655 = vmatpush1.bf16.msra.mxu0 0
      %656 = vmatprep.subr.bf16.mxu0 0
      %657 = vmatpush1.bf16.msra.mxu0 0
      %658 = vmatprep.subr.bf16.mxu0 0
      %659 = vmatpush1.bf16.msra.mxu0 0
      %660 = vmatprep.subr.bf16.mxu0 0
      %661 = vmatpush1.bf16.msra.mxu0 0
      %662 = vmatprep.subr.bf16.mxu0 0
      %663 = vmatpush1.bf16.msra.mxu0 0
      %664 = vmatprep.subr.bf16.mxu0 0
      %665 = vmatpush1.bf16.msra.mxu0 0
      %666 = vmatprep.mubr.bf16.mxu0 0
      %667 = vmatmul.mubr.bf16.gmra.mrb[0].mxu0 %v611
      %v668 = vpop.f32.mrb[0].mxu0
      %v669 = vadd.f32 0.0, %v668
      %v670 = vpop.f32.mrb[0].mxu0
      %v671 = vpop.f32.mrb[0].mxu0
      %v672 = vadd.f32 0.0, %v671
      %v673 = vpop.f32.mrb[0].mxu0
      %674 = vmatprep.mubr.bf16.mxu0 0
      %675 = vmatmul.mubr.bf16.gmra.mrb[0].mxu0 %v614
      %v676 = vpop.f32.mrb[0].mxu0
      %v677 = vadd.f32 0.0, %v676
      %v678 = vpop.f32.mrb[0].mxu0
      %v679 = vpop.f32.mrb[0].mxu0
      %v680 = vadd.f32 0.0, %v679
      %v681 = vpop.f32.mrb[0].mxu0
      %682 = vmatprep.mubr.bf16.mxu0 0
      %683 = vmatmul.mubr.bf16.gmra.mrb[0].mxu0 %v617
      %v684 = vpop.f32.mrb[0].mxu0
      %v685 = vadd.f32 0.0, %v684
      %v686 = vpop.f32.mrb[0].mxu0
      %v687 = vpop.f32.mrb[0].mxu0
      %v688 = vadd.f32 0.0, %v687
      %v689 = vpop.f32.mrb[0].mxu0
      %690 = vmatprep.mubr.bf16.mxu0 0
      %691 = vmatmul.mubr.bf16.gmra.mrb[0].mxu0 %v620
      %v692 = vpop.f32.mrb[0].mxu0
      %v693 = vadd.f32 0.0, %v692
      %v694 = vpop.f32.mrb[0].mxu0
      %v695 = vpop.f32.mrb[0].mxu0
      %v696 = vadd.f32 0.0, %v695
      %v697 = vpop.f32.mrb[0].mxu0
      %698 = vmatprep.mubr.bf16.mxu0 0
      %699 = vmatmul.mubr.bf16.gmra.mrb[0].mxu0 %v623
      %v700 = vpop.f32.mrb[0].mxu0
      %v701 = vadd.f32 0.0, %v700
      %v702 = vpop.f32.mrb[0].mxu0
      %v703 = vpop.f32.mrb[0].mxu0
      %v704 = vadd.f32 0.0, %v703
      %v705 = vpop.f32.mrb[0].mxu0
      %706 = vmatprep.mubr.bf16.mxu0 0
      %707 = vmatmul.mubr.bf16.gmra.mrb[0].mxu0 %v626
      %v708 = vpop.f32.mrb[0].mxu0
      %v709 = vadd.f32 0.0, %v708
      %v710 = vpop.f32.mrb[0].mxu0
      %v711 = vpop.f32.mrb[0].mxu0
      %v712 = vadd.f32 0.0, %v711
      %v713 = vpop.f32.mrb[0].mxu0
      %714 = vmatprep.mubr.bf16.mxu0 0
      %715 = vmatmul.mubr.bf16.gmra.mrb[0].mxu0 %v629
      %v716 = vpop.f32.mrb[0].mxu0
      %v717 = vadd.f32 0.0, %v716
      %v718 = vpop.f32.mrb[0].mxu0
      %v719 = vpop.f32.mrb[0].mxu0
      %v720 = vadd.f32 0.0, %v719
      %v721 = vpop.f32.mrb[0].mxu0
      %722 = vmatprep.mubr.bf16.mxu0 0
      %723 = vmatmul.mubr.bf16.gmra.mrb[0].mxu0 %v632
      %v724 = vpop.f32.mrb[0].mxu0
      %v725 = vadd.f32 0.0, %v724
      %v726 = vpop.f32.mrb[0].mxu0
      %v727 = vpop.f32.mrb[0].mxu0
      %v728 = vadd.f32 0.0, %v727
      %v729 = vpop.f32.mrb[0].mxu0
      %730 = vdwg.mxu0
      %v741 = vunpack.c.l.b16 %v557
      %v742 = vunpack.c.l.b16 %v558
      %v743 = vunpack.c.l.b16 %v559
      %v744 = vunpack.c.l.b16 %v560
      %v745 = vunpack.c.l.b16 %v561
      %v746 = vunpack.c.l.b16 %v562
      %v747 = vunpack.c.l.b16 %v563
      %v748 = vunpack.c.l.b16 %v564
      %v749 = vunpack.c.l.b16 %v565
      %v750 = vunpack.c.l.b16 %v566
      %v751 = vpack.c.b16 %v742, %v741
      %v752 = vpack.c.b16 %v744, %v743
      %v753 = vpack.c.b16 %v746, %v745
      %v754 = vpack.c.b16 %v748, %v747
      %v755 = vpack.c.b16 %v750, %v749
      %v762 = vsel %vm609, %v549, 0
      %764 = vmatprep.subr.bf16.mxu0 0
      %765 = vmatpush1.bf16.msra.mxu0 %v751
      %766 = vmatprep.subr.bf16.mxu0 0
      %767 = vmatpush1.bf16.msra.mxu0 %v752
      %768 = vmatprep.subr.bf16.mxu0 0
      %769 = vmatpush1.bf16.msra.mxu0 %v753
      %770 = vmatprep.subr.bf16.mxu0 0
      %771 = vmatpush1.bf16.msra.mxu0 %v754
      %772 = vmatprep.subr.bf16.mxu0 0
      %773 = vmatpush1.bf16.msra.mxu0 %v755
      %774 = vmatprep.subr.bf16.mxu0 0
      %775 = vmatpush1.bf16.msra.mxu0 0
      %776 = vmatprep.subr.bf16.mxu0 0
      %777 = vmatpush1.bf16.msra.mxu0 0
      %778 = vmatprep.subr.bf16.mxu0 0
      %779 = vmatpush1.bf16.msra.mxu0 0
      %780 = vmatprep.subr.bf16.mxu0 0
      %781 = vmatpush1.bf16.msra.mxu0 0
      %782 = vmatprep.subr.bf16.mxu0 0
      %783 = vmatpush1.bf16.msra.mxu0 0
      %784 = vmatprep.subr.bf16.mxu0 0
      %785 = vmatpush1.bf16.msra.mxu0 0
      %786 = vmatprep.subr.bf16.mxu0 0
      %787 = vmatpush1.bf16.msra.mxu0 0
      %788 = vmatprep.subr.bf16.mxu0 0
      %789 = vmatpush1.bf16.msra.mxu0 0
      %790 = vmatprep.subr.bf16.mxu0 0
      %791 = vmatpush1.bf16.msra.mxu0 0
      %792 = vmatprep.subr.bf16.mxu0 0
      %793 = vmatpush1.bf16.msra.mxu0 0
      %794 = vmatprep.subr.bf16.mxu0 0
      %795 = vmatpush1.bf16.msra.mxu0 0
      %796 = vmatprep.mubr.bf16.mxu0 0
      %797 = vmatmul.mubr.bf16.gmra.mrb[0].mxu0 %v762
      %v798 = vpop.f32.mrb[0].mxu0
      %v799 = vadd.f32 %v669, %v798
      %v800 = vpop.f32.mrb[0].mxu0
      %v801 = vpop.f32.mrb[0].mxu0
      %v802 = vadd.f32 %v672, %v801
      %v803 = vpop.f32.mrb[0].mxu0
      %804 = vmatprep.mubr.bf16.mxu0 0
      %805 = vmatmul.mubr.bf16.gmra.mrb[0].mxu0 %v611
      %v806 = vpop.f32.mrb[0].mxu0
      %v807 = vadd.f32 %v677, %v806
      %v808 = vpop.f32.mrb[0].mxu0
      %v809 = vpop.f32.mrb[0].mxu0
      %v810 = vadd.f32 %v680, %v809
      %v811 = vpop.f32.mrb[0].mxu0
      %812 = vmatprep.mubr.bf16.mxu0 0
      %813 = vmatmul.mubr.bf16.gmra.mrb[0].mxu0 %v614
      %v814 = vpop.f32.mrb[0].mxu0
      %v815 = vadd.f32 %v685, %v814
      %v816 = vpop.f32.mrb[0].mxu0
      %v817 = vpop.f32.mrb[0].mxu0
      %v818 = vadd.f32 %v688, %v817
      %v819 = vpop.f32.mrb[0].mxu0
      %820 = vmatprep.mubr.bf16.mxu0 0
      %821 = vmatmul.mubr.bf16.gmra.mrb[0].mxu0 %v617
      %v822 = vpop.f32.mrb[0].mxu0
      %v823 = vadd.f32 %v693, %v822
      %v824 = vpop.f32.mrb[0].mxu0
      %v825 = vpop.f32.mrb[0].mxu0
      %v826 = vadd.f32 %v696, %v825
      %v827 = vpop.f32.mrb[0].mxu0
      %828 = vmatprep.mubr.bf16.mxu0 0
      %829 = vmatmul.mubr.bf16.gmra.mrb[0].mxu0 %v620
      %v830 = vpop.f32.mrb[0].mxu0
      %v831 = vadd.f32 %v701, %v830
      %v832 = vpop.f32.mrb[0].mxu0
      %v833 = vpop.f32.mrb[0].mxu0
      %v834 = vadd.f32 %v704, %v833
      %v835 = vpop.f32.mrb[0].mxu0
      %836 = vmatprep.mubr.bf16.mxu0 0
      %837 = vmatmul.mubr.bf16.gmra.mrb[0].mxu0 %v623
      %v838 = vpop.f32.mrb[0].mxu0
      %v839 = vadd.f32 %v709, %v838
      %v840 = vpop.f32.mrb[0].mxu0
      %v841 = vpop.f32.mrb[0].mxu0
      %v842 = vadd.f32 %v712, %v841
      %v843 = vpop.f32.mrb[0].mxu0
      %844 = vmatprep.mubr.bf16.mxu0 0
      %845 = vmatmul.mubr.bf16.gmra.mrb[0].mxu0 %v626
      %v846 = vpop.f32.mrb[0].mxu0
      %v847 = vadd.f32 %v717, %v846
      %v848 = vpop.f32.mrb[0].mxu0
      %v849 = vpop.f32.mrb[0].mxu0
      %v850 = vadd.f32 %v720, %v849
      %v851 = vpop.f32.mrb[0].mxu0
      %852 = vmatprep.mubr.bf16.mxu0 0
      %853 = vmatmul.mubr.bf16.gmra.mrb[0].mxu0 %v629
      %v854 = vpop.f32.mrb[0].mxu0
      %v855 = vadd.f32 %v725, %v854
      %v856 = vpop.f32.mrb[0].mxu0
      %v857 = vpop.f32.mrb[0].mxu0
      %v858 = vadd.f32 %v728, %v857
      %v859 = vpop.f32.mrb[0].mxu0
      %860 = vdwg.mxu0
      %v861 = vpack.c.bf16 %v498, %v538
      %s862 = scalar_lea.vmem %s1, 240
      %v863 = vld [vmem:[%s862] sm:$0xf]
      %v864 = vld [vmem:[%s862 + $0x4] sm:$0xf]
      %v865 = vld [vmem:[%s862 + $0x8] sm:$0xf]
      %v866 = vld [vmem:[%s862 + $0xc] sm:$0xf]
      %v867 = vld [vmem:[%s862 + $0x10] sm:$0xf]
      %v868 = vld [vmem:[%s862 + $0x14] sm:$0xf]
      %v869 = vld [vmem:[%s862 + $0x18] sm:$0xf]
      %v870 = vld [vmem:[%s862 + $0x1c] sm:$0xf]
      %v871 = vld [vmem:[%s862 + $0x20] sm:$0xf]
      %v872 = vld [vmem:[%s862 + $0x24] sm:$0xf]
      %v883 = vunpack.c.l.b16 %v863
      %v884 = vunpack.c.l.b16 %v864
      %v885 = vunpack.c.l.b16 %v865
      %v886 = vunpack.c.l.b16 %v866
      %v887 = vunpack.c.l.b16 %v867
      %v888 = vunpack.c.l.b16 %v868
      %v889 = vunpack.c.l.b16 %v869
      %v890 = vunpack.c.l.b16 %v870
      %v891 = vunpack.c.l.b16 %v871
      %v892 = vunpack.c.l.b16 %v872
      %v893 = vpack.c.b16 %v884, %v883
      %v894 = vpack.c.b16 %v886, %v885
      %v895 = vpack.c.b16 %v888, %v887
      %v896 = vpack.c.b16 %v890, %v889
      %v897 = vpack.c.b16 %v892, %v891
      %v904 = vsel %vm609, %v861, 0
      %906 = vmatprep.subr.bf16.mxu0 0
      %907 = vmatpush1.bf16.msra.mxu0 %v893
      %908 = vmatprep.subr.bf16.mxu0 0
      %909 = vmatpush1.bf16.msra.mxu0 %v894
      %910 = vmatprep.subr.bf16.mxu0 0
      %911 = vmatpush1.bf16.msra.mxu0 %v895
      %912 = vmatprep.subr.bf16.mxu0 0
      %913 = vmatpush1.bf16.msra.mxu0 %v896
      %914 = vmatprep.subr.bf16.mxu0 0
      %915 = vmatpush1.bf16.msra.mxu0 %v897
      %916 = vmatprep.subr.bf16.mxu0 0
      %917 = vmatpush1.bf16.msra.mxu0 0
      %918 = vmatprep.subr.bf16.mxu0 0
      %919 = vmatpush1.bf16.msra.mxu0 0
      %920 = vmatprep.subr.bf16.mxu0 0
      %921 = vmatpush1.bf16.msra.mxu0 0
      %922 = vmatprep.subr.bf16.mxu0 0
      %923 = vmatpush1.bf16.msra.mxu0 0
      %924 = vmatprep.subr.bf16.mxu0 0
      %925 = vmatpush1.bf16.msra.mxu0 0
      %926 = vmatprep.subr.bf16.mxu0 0
      %927 = vmatpush1.bf16.msra.mxu0 0
      %928 = vmatprep.subr.bf16.mxu0 0
      %929 = vmatpush1.bf16.msra.mxu0 0
      %930 = vmatprep.subr.bf16.mxu0 0
      %931 = vmatpush1.bf16.msra.mxu0 0
      %932 = vmatprep.subr.bf16.mxu0 0
      %933 = vmatpush1.bf16.msra.mxu0 0
      %934 = vmatprep.subr.bf16.mxu0 0
      %935 = vmatpush1.bf16.msra.mxu0 0
      %936 = vmatprep.subr.bf16.mxu0 0
      %937 = vmatpush1.bf16.msra.mxu0 0
      %938 = vmatprep.mubr.bf16.mxu0 0
      %939 = vmatmul.mubr.bf16.gmra.mrb[0].mxu0 %v614
      %v940 = vpop.f32.mrb[0].mxu0
      %v941 = vadd.f32 0.0, %v940
      %v942 = vpop.f32.mrb[0].mxu0
      %v943 = vpop.f32.mrb[0].mxu0
      %v944 = vadd.f32 0.0, %v943
      %v945 = vpop.f32.mrb[0].mxu0
      %946 = vmatprep.mubr.bf16.mxu0 0
      %947 = vmatmul.mubr.bf16.gmra.mrb[0].mxu0 %v617
      %v948 = vpop.f32.mrb[0].mxu0
      %v949 = vadd.f32 0.0, %v948
      %v950 = vpop.f32.mrb[0].mxu0
      %v951 = vpop.f32.mrb[0].mxu0
      %v952 = vadd.f32 0.0, %v951
      %v953 = vpop.f32.mrb[0].mxu0
      %954 = vmatprep.mubr.bf16.mxu0 0
      %955 = vmatmul.mubr.bf16.gmra.mrb[0].mxu0 %v620
      %v956 = vpop.f32.mrb[0].mxu0
      %v957 = vadd.f32 0.0, %v956
      %v958 = vpop.f32.mrb[0].mxu0
      %v959 = vpop.f32.mrb[0].mxu0
      %v960 = vadd.f32 0.0, %v959
      %v961 = vpop.f32.mrb[0].mxu0
      %962 = vmatprep.mubr.bf16.mxu0 0
      %963 = vmatmul.mubr.bf16.gmra.mrb[0].mxu0 %v623
      %v964 = vpop.f32.mrb[0].mxu0
      %v965 = vadd.f32 0.0, %v964
      %v966 = vpop.f32.mrb[0].mxu0
      %v967 = vpop.f32.mrb[0].mxu0
      %v968 = vadd.f32 0.0, %v967
      %v969 = vpop.f32.mrb[0].mxu0
      %970 = vmatprep.mubr.bf16.mxu0 0
      %971 = vmatmul.mubr.bf16.gmra.mrb[0].mxu0 %v626
      %v972 = vpop.f32.mrb[0].mxu0
      %v973 = vadd.f32 0.0, %v972
      %v974 = vpop.f32.mrb[0].mxu0
      %v975 = vpop.f32.mrb[0].mxu0
      %v976 = vadd.f32 0.0, %v975
      %v977 = vpop.f32.mrb[0].mxu0
      %978 = vmatprep.mubr.bf16.mxu0 0
      %979 = vmatmul.mubr.bf16.gmra.mrb[0].mxu0 %v629
      %v980 = vpop.f32.mrb[0].mxu0
      %v981 = vadd.f32 0.0, %v980
      %v982 = vpop.f32.mrb[0].mxu0
      %v983 = vpop.f32.mrb[0].mxu0
      %v984 = vadd.f32 0.0, %v983
      %v985 = vpop.f32.mrb[0].mxu0
      %986 = vmatprep.mubr.bf16.mxu0 0
      %987 = vmatmul.mubr.bf16.gmra.mrb[0].mxu0 %v632
      %v988 = vpop.f32.mrb[0].mxu0
      %v989 = vadd.f32 0.0, %v988
      %v990 = vpop.f32.mrb[0].mxu0
      %v991 = vpop.f32.mrb[0].mxu0
      %v992 = vadd.f32 0.0, %v991
      %v993 = vpop.f32.mrb[0].mxu0
      %994 = vmatprep.mubr.bf16.mxu0 0
      %995 = vmatmul.mubr.bf16.gmra.mrb[0].mxu0 %v904
      %v996 = vpop.f32.mrb[0].mxu0
      %v997 = vadd.f32 0.0, %v996
      %v998 = vpop.f32.mrb[0].mxu0
      %v999 = vpop.f32.mrb[0].mxu0
      %v1000 = vadd.f32 0.0, %v999
      %v1001 = vpop.f32.mrb[0].mxu0
      %1002 = vdwg.mxu0
      %v1003 = vadd.f32 %v799, %v941
      %v1004 = vadd.f32 %v802, %v944
      %v1005 = vadd.f32 %v807, %v949
      %v1006 = vadd.f32 %v810, %v952
      %v1007 = vadd.f32 %v815, %v957
      %v1008 = vadd.f32 %v818, %v960
      %v1009 = vadd.f32 %v823, %v965
      %v1010 = vadd.f32 %v826, %v968
      %v1011 = vadd.f32 %v831, %v973
      %v1012 = vadd.f32 %v834, %v976
      %v1013 = vadd.f32 %v839, %v981
      %v1014 = vadd.f32 %v842, %v984
      %v1015 = vadd.f32 %v847, %v989
      %v1016 = vadd.f32 %v850, %v992
      %v1017 = vadd.f32 %v855, %v997
      %v1018 = vadd.f32 %v858, %v1000
      %vm1039 = vcmask 1046528
      %v1040 = vrot.slane %v529, 1
      %v1041 = vrot.slane %v471, 1
      %v1042 = vsel %vm1039, %v1040, %v1041
      %v1043 = vrot.slane %v539, 1
      %v1044 = vsel %vm1039, %v1041, %v1043
      %v1045 = vrot.slane %v530, 1
      %v1046 = vrot.slane %v474, 1
      %v1047 = vsel %vm1039, %v1045, %v1046
      %v1048 = vrot.slane %v540, 1
      %v1049 = vsel %vm1039, %v1046, %v1048
      %v1050 = vrot.slane %v531, 1
      %v1051 = vrot.slane %v477, 1
      %v1052 = vsel %vm1039, %v1050, %v1051
      %v1053 = vrot.slane %v541, 1
      %v1054 = vsel %vm1039, %v1051, %v1053
      %v1055 = vrot.slane %v532, 1
      %v1056 = vrot.slane %v480, 1
      %v1057 = vsel %vm1039, %v1055, %v1056
      %v1058 = vrot.slane %v542, 1
      %v1059 = vsel %vm1039, %v1056, %v1058
      %v1060 = vrot.slane %v533, 1
      %v1061 = vrot.slane %v483, 1
      %v1062 = vsel %vm1039, %v1060, %v1061
      %v1063 = vrot.slane %v543, 1
      %v1064 = vsel %vm1039, %v1061, %v1063
      %v1065 = vrot.slane %v534, 1
      %v1066 = vrot.slane %v486, 1
      %v1067 = vsel %vm1039, %v1065, %v1066
      %v1068 = vrot.slane %v544, 1
      %v1069 = vsel %vm1039, %v1066, %v1068
      %v1070 = vrot.slane %v535, 1
      %v1071 = vrot.slane %v489, 1
      %v1072 = vsel %vm1039, %v1070, %v1071
      %v1073 = vrot.slane %v545, 1
      %v1074 = vsel %vm1039, %v1071, %v1073
      %v1075 = vrot.slane %v536, 1
      %v1076 = vrot.slane %v492, 1
      %v1077 = vsel %vm1039, %v1075, %v1076
      %v1078 = vrot.slane %v546, 1
      %v1079 = vsel %vm1039, %v1076, %v1078
      %v1080 = vrot.slane %v537, 1
      %v1081 = vrot.slane %v495, 1
      %v1082 = vsel %vm1039, %v1080, %v1081
      %v1083 = vrot.slane %v547, 1
      %v1084 = vsel %vm1039, %v1081, %v1083
      %v1085 = vrot.slane %v538, 1
      %v1086 = vrot.slane %v498, 1
      %v1087 = vsel %vm1039, %v1085, %v1086
      %v1088 = vrot.slane %v548, 1
      %v1089 = vsel %vm1039, %v1086, %v1088
      %v1110 = vpack.c.bf16 %v1044, %v1042
      %v1111 = vpack.c.bf16 %v1049, %v1047
      %v1112 = vpack.c.bf16 %v1054, %v1052
      %v1113 = vpack.c.bf16 %v1059, %v1057
      %v1114 = vpack.c.bf16 %v1064, %v1062
      %v1115 = vpack.c.bf16 %v1069, %v1067
      %v1116 = vpack.c.bf16 %v1074, %v1072
      %v1117 = vpack.c.bf16 %v1079, %v1077
      %s1118 = scalar_lea.vmem %s1, 40
      %v1119 = vld [vmem:[%s1118] sm:$0xf]
      %v1120 = vld [vmem:[%s1118 + $0x4] sm:$0xf]
      %v1121 = vld [vmem:[%s1118 + $0x8] sm:$0xf]
      %v1122 = vld [vmem:[%s1118 + $0xc] sm:$0xf]
      %v1123 = vld [vmem:[%s1118 + $0x10] sm:$0xf]
      %v1124 = vld [vmem:[%s1118 + $0x14] sm:$0xf]
      %v1125 = vld [vmem:[%s1118 + $0x18] sm:$0xf]
      %v1126 = vld [vmem:[%s1118 + $0x1c] sm:$0xf]
      %v1127 = vld [vmem:[%s1118 + $0x20] sm:$0xf]
      %v1128 = vld [vmem:[%s1118 + $0x24] sm:$0xf]
      %v1139 = vunpack.c.l.b16 %v1119
      %v1140 = vunpack.c.l.b16 %v1120
      %v1141 = vunpack.c.l.b16 %v1121
      %v1142 = vunpack.c.l.b16 %v1122
      %v1143 = vunpack.c.l.b16 %v1123
      %v1144 = vunpack.c.l.b16 %v1124
      %v1145 = vunpack.c.l.b16 %v1125
      %v1146 = vunpack.c.l.b16 %v1126
      %v1147 = vunpack.c.l.b16 %v1127
      %v1148 = vunpack.c.l.b16 %v1128
      %v1149 = vpack.c.b16 %v1140, %v1139
      %v1150 = vpack.c.b16 %v1142, %v1141
      %v1151 = vpack.c.b16 %v1144, %v1143
      %v1152 = vpack.c.b16 %v1146, %v1145
      %v1153 = vpack.c.b16 %v1148, %v1147
      %v1160 = vsel %vm609, %v1110, 0
      %v1163 = vsel %vm609, %v1111, 0
      %v1166 = vsel %vm609, %v1112, 0
      %v1169 = vsel %vm609, %v1113, 0
      %v1172 = vsel %vm609, %v1114, 0
      %v1175 = vsel %vm609, %v1115, 0
      %v1178 = vsel %vm609, %v1116, 0
      %v1181 = vsel %vm609, %v1117, 0
      %1183 = vmatprep.subr.bf16.mxu0 0
      %1184 = vmatpush1.bf16.msra.mxu0 %v1149
      %1185 = vmatprep.subr.bf16.mxu0 0
      %1186 = vmatpush1.bf16.msra.mxu0 %v1150
      %1187 = vmatprep.subr.bf16.mxu0 0
      %1188 = vmatpush1.bf16.msra.mxu0 %v1151
      %1189 = vmatprep.subr.bf16.mxu0 0
      %1190 = vmatpush1.bf16.msra.mxu0 %v1152
      %1191 = vmatprep.subr.bf16.mxu0 0
      %1192 = vmatpush1.bf16.msra.mxu0 %v1153
      %1193 = vmatprep.subr.bf16.mxu0 0
      %1194 = vmatpush1.bf16.msra.mxu0 0
      %1195 = vmatprep.subr.bf16.mxu0 0
      %1196 = vmatpush1.bf16.msra.mxu0 0
      %1197 = vmatprep.subr.bf16.mxu0 0
      %1198 = vmatpush1.bf16.msra.mxu0 0
      %1199 = vmatprep.subr.bf16.mxu0 0
      %1200 = vmatpush1.bf16.msra.mxu0 0
      %1201 = vmatprep.subr.bf16.mxu0 0
      %1202 = vmatpush1.bf16.msra.mxu0 0
      %1203 = vmatprep.subr.bf16.mxu0 0
      %1204 = vmatpush1.bf16.msra.mxu0 0
      %1205 = vmatprep.subr.bf16.mxu0 0
      %1206 = vmatpush1.bf16.msra.mxu0 0
      %1207 = vmatprep.subr.bf16.mxu0 0
      %1208 = vmatpush1.bf16.msra.mxu0 0
      %1209 = vmatprep.subr.bf16.mxu0 0
      %1210 = vmatpush1.bf16.msra.mxu0 0
      %1211 = vmatprep.subr.bf16.mxu0 0
      %1212 = vmatpush1.bf16.msra.mxu0 0
      %1213 = vmatprep.subr.bf16.mxu0 0
      %1214 = vmatpush1.bf16.msra.mxu0 0
      %1215 = vmatprep.mubr.bf16.mxu0 0
      %1216 = vmatmul.mubr.bf16.gmra.mrb[0].mxu0 %v1160
      %v1217 = vpop.f32.mrb[0].mxu0
      %v1218 = vadd.f32 0.0, %v1217
      %v1219 = vpop.f32.mrb[0].mxu0
      %v1220 = vpop.f32.mrb[0].mxu0
      %v1221 = vadd.f32 0.0, %v1220
      %v1222 = vpop.f32.mrb[0].mxu0
      %1223 = vmatprep.mubr.bf16.mxu0 0
      %1224 = vmatmul.mubr.bf16.gmra.mrb[0].mxu0 %v1163
      %v1225 = vpop.f32.mrb[0].mxu0
      %v1226 = vadd.f32 0.0, %v1225
      %v1227 = vpop.f32.mrb[0].mxu0
      %v1228 = vpop.f32.mrb[0].mxu0
      %v1229 = vadd.f32 0.0, %v1228
      %v1230 = vpop.f32.mrb[0].mxu0
      %1231 = vmatprep.mubr.bf16.mxu0 0
      %1232 = vmatmul.mubr.bf16.gmra.mrb[0].mxu0 %v1166
      %v1233 = vpop.f32.mrb[0].mxu0
      %v1234 = vadd.f32 0.0, %v1233
      %v1235 = vpop.f32.mrb[0].mxu0
      %v1236 = vpop.f32.mrb[0].mxu0
      %v1237 = vadd.f32 0.0, %v1236
      %v1238 = vpop.f32.mrb[0].mxu0
      %1239 = vmatprep.mubr.bf16.mxu0 0
      %1240 = vmatmul.mubr.bf16.gmra.mrb[0].mxu0 %v1169
      %v1241 = vpop.f32.mrb[0].mxu0
      %v1242 = vadd.f32 0.0, %v1241
      %v1243 = vpop.f32.mrb[0].mxu0
      %v1244 = vpop.f32.mrb[0].mxu0
      %v1245 = vadd.f32 0.0, %v1244
      %v1246 = vpop.f32.mrb[0].mxu0
      %1247 = vmatprep.mubr.bf16.mxu0 0
      %1248 = vmatmul.mubr.bf16.gmra.mrb[0].mxu0 %v1172
      %v1249 = vpop.f32.mrb[0].mxu0
      %v1250 = vadd.f32 0.0, %v1249
      %v1251 = vpop.f32.mrb[0].mxu0
      %v1252 = vpop.f32.mrb[0].mxu0
      %v1253 = vadd.f32 0.0, %v1252
      %v1254 = vpop.f32.mrb[0].mxu0
      %1255 = vmatprep.mubr.bf16.mxu0 0
      %1256 = vmatmul.mubr.bf16.gmra.mrb[0].mxu0 %v1175
      %v1257 = vpop.f32.mrb[0].mxu0
      %v1258 = vadd.f32 0.0, %v1257
      %v1259 = vpop.f32.mrb[0].mxu0
      %v1260 = vpop.f32.mrb[0].mxu0
      %v1261 = vadd.f32 0.0, %v1260
      %v1262 = vpop.f32.mrb[0].mxu0
      %1263 = vmatprep.mubr.bf16.mxu0 0
      %1264 = vmatmul.mubr.bf16.gmra.mrb[0].mxu0 %v1178
      %v1265 = vpop.f32.mrb[0].mxu0
      %v1266 = vadd.f32 0.0, %v1265
      %v1267 = vpop.f32.mrb[0].mxu0
      %v1268 = vpop.f32.mrb[0].mxu0
      %v1269 = vadd.f32 0.0, %v1268
      %v1270 = vpop.f32.mrb[0].mxu0
      %1271 = vmatprep.mubr.bf16.mxu0 0
      %1272 = vmatmul.mubr.bf16.gmra.mrb[0].mxu0 %v1181
      %v1273 = vpop.f32.mrb[0].mxu0
      %v1274 = vadd.f32 0.0, %v1273
      %v1275 = vpop.f32.mrb[0].mxu0
      %v1276 = vpop.f32.mrb[0].mxu0
      %v1277 = vadd.f32 0.0, %v1276
      %v1278 = vpop.f32.mrb[0].mxu0
      %1279 = vdwg.mxu0
      %v1280 = vadd.f32 %v1003, %v1218
      %v1281 = vadd.f32 %v1004, %v1221
      %v1282 = vadd.f32 %v1005, %v1226
      %v1283 = vadd.f32 %v1006, %v1229
      %v1284 = vadd.f32 %v1007, %v1234
      %v1285 = vadd.f32 %v1008, %v1237
      %v1286 = vadd.f32 %v1009, %v1242
      %v1287 = vadd.f32 %v1010, %v1245
      %v1288 = vadd.f32 %v1011, %v1250
      %v1289 = vadd.f32 %v1012, %v1253
      %v1290 = vadd.f32 %v1013, %v1258
      %v1291 = vadd.f32 %v1014, %v1261
      %v1292 = vadd.f32 %v1015, %v1266
      %v1293 = vadd.f32 %v1016, %v1269
      %v1294 = vadd.f32 %v1017, %v1274
      %v1295 = vadd.f32 %v1018, %v1277
      %v1296 = vpack.c.bf16 %v1084, %v1082
      %s1297 = scalar_lea.vmem %s1, 160
      %v1298 = vld [vmem:[%s1297] sm:$0xf]
      %v1299 = vld [vmem:[%s1297 + $0x4] sm:$0xf]
      %v1300 = vld [vmem:[%s1297 + $0x8] sm:$0xf]
      %v1301 = vld [vmem:[%s1297 + $0xc] sm:$0xf]
      %v1302 = vld [vmem:[%s1297 + $0x10] sm:$0xf]
      %v1303 = vld [vmem:[%s1297 + $0x14] sm:$0xf]
      %v1304 = vld [vmem:[%s1297 + $0x18] sm:$0xf]
      %v1305 = vld [vmem:[%s1297 + $0x1c] sm:$0xf]
      %v1306 = vld [vmem:[%s1297 + $0x20] sm:$0xf]
      %v1307 = vld [vmem:[%s1297 + $0x24] sm:$0xf]
      %v1318 = vunpack.c.l.b16 %v1298
      %v1319 = vunpack.c.l.b16 %v1299
      %v1320 = vunpack.c.l.b16 %v1300
      %v1321 = vunpack.c.l.b16 %v1301
      %v1322 = vunpack.c.l.b16 %v1302
      %v1323 = vunpack.c.l.b16 %v1303
      %v1324 = vunpack.c.l.b16 %v1304
      %v1325 = vunpack.c.l.b16 %v1305
      %v1326 = vunpack.c.l.b16 %v1306
      %v1327 = vunpack.c.l.b16 %v1307
      %v1328 = vpack.c.b16 %v1319, %v1318
      %v1329 = vpack.c.b16 %v1321, %v1320
      %v1330 = vpack.c.b16 %v1323, %v1322
      %v1331 = vpack.c.b16 %v1325, %v1324
      %v1332 = vpack.c.b16 %v1327, %v1326
      %v1339 = vsel %vm609, %v1296, 0
      %1341 = vmatprep.subr.bf16.mxu0 0
      %1342 = vmatpush1.bf16.msra.mxu0 %v1328
      %1343 = vmatprep.subr.bf16.mxu0 0
      %1344 = vmatpush1.bf16.msra.mxu0 %v1329
      %1345 = vmatprep.subr.bf16.mxu0 0
      %1346 = vmatpush1.bf16.msra.mxu0 %v1330
      %1347 = vmatprep.subr.bf16.mxu0 0
      %1348 = vmatpush1.bf16.msra.mxu0 %v1331
      %1349 = vmatprep.subr.bf16.mxu0 0
      %1350 = vmatpush1.bf16.msra.mxu0 %v1332
      %1351 = vmatprep.subr.bf16.mxu0 0
      %1352 = vmatpush1.bf16.msra.mxu0 0
      %1353 = vmatprep.subr.bf16.mxu0 0
      %1354 = vmatpush1.bf16.msra.mxu0 0
      %1355 = vmatprep.subr.bf16.mxu0 0
      %1356 = vmatpush1.bf16.msra.mxu0 0
      %1357 = vmatprep.subr.bf16.mxu0 0
      %1358 = vmatpush1.bf16.msra.mxu0 0
      %1359 = vmatprep.subr.bf16.mxu0 0
      %1360 = vmatpush1.bf16.msra.mxu0 0
      %1361 = vmatprep.subr.bf16.mxu0 0
      %1362 = vmatpush1.bf16.msra.mxu0 0
      %1363 = vmatprep.subr.bf16.mxu0 0
      %1364 = vmatpush1.bf16.msra.mxu0 0
      %1365 = vmatprep.subr.bf16.mxu0 0
      %1366 = vmatpush1.bf16.msra.mxu0 0
      %1367 = vmatprep.subr.bf16.mxu0 0
      %1368 = vmatpush1.bf16.msra.mxu0 0
      %1369 = vmatprep.subr.bf16.mxu0 0
      %1370 = vmatpush1.bf16.msra.mxu0 0
      %1371 = vmatprep.subr.bf16.mxu0 0
      %1372 = vmatpush1.bf16.msra.mxu0 0
      %1373 = vmatprep.mubr.bf16.mxu0 0
      %1374 = vmatmul.mubr.bf16.gmra.mrb[0].mxu0 %v1163
      %v1375 = vpop.f32.mrb[0].mxu0
      %v1376 = vadd.f32 0.0, %v1375
      %v1377 = vpop.f32.mrb[0].mxu0
      %v1378 = vpop.f32.mrb[0].mxu0
      %v1379 = vadd.f32 0.0, %v1378
      %v1380 = vpop.f32.mrb[0].mxu0
      %1381 = vmatprep.mubr.bf16.mxu0 0
      %1382 = vmatmul.mubr.bf16.gmra.mrb[0].mxu0 %v1166
      %v1383 = vpop.f32.mrb[0].mxu0
      %v1384 = vadd.f32 0.0, %v1383
      %v1385 = vpop.f32.mrb[0].mxu0
      %v1386 = vpop.f32.mrb[0].mxu0
      %v1387 = vadd.f32 0.0, %v1386
      %v1388 = vpop.f32.mrb[0].mxu0
      %1389 = vmatprep.mubr.bf16.mxu0 0
      %1390 = vmatmul.mubr.bf16.gmra.mrb[0].mxu0 %v1169
      %v1391 = vpop.f32.mrb[0].mxu0
      %v1392 = vadd.f32 0.0, %v1391
      %v1393 = vpop.f32.mrb[0].mxu0
      %v1394 = vpop.f32.mrb[0].mxu0
      %v1395 = vadd.f32 0.0, %v1394
      %v1396 = vpop.f32.mrb[0].mxu0
      %1397 = vmatprep.mubr.bf16.mxu0 0
      %1398 = vmatmul.mubr.bf16.gmra.mrb[0].mxu0 %v1172
      %v1399 = vpop.f32.mrb[0].mxu0
      %v1400 = vadd.f32 0.0, %v1399
      %v1401 = vpop.f32.mrb[0].mxu0
      %v1402 = vpop.f32.mrb[0].mxu0
      %v1403 = vadd.f32 0.0, %v1402
      %v1404 = vpop.f32.mrb[0].mxu0
      %1405 = vmatprep.mubr.bf16.mxu0 0
      %1406 = vmatmul.mubr.bf16.gmra.mrb[0].mxu0 %v1175
      %v1407 = vpop.f32.mrb[0].mxu0
      %v1408 = vadd.f32 0.0, %v1407
      %v1409 = vpop.f32.mrb[0].mxu0
      %v1410 = vpop.f32.mrb[0].mxu0
      %v1411 = vadd.f32 0.0, %v1410
      %v1412 = vpop.f32.mrb[0].mxu0
      %1413 = vmatprep.mubr.bf16.mxu0 0
      %1414 = vmatmul.mubr.bf16.gmra.mrb[0].mxu0 %v1178
      %v1415 = vpop.f32.mrb[0].mxu0
      %v1416 = vadd.f32 0.0, %v1415
      %v1417 = vpop.f32.mrb[0].mxu0
      %v1418 = vpop.f32.mrb[0].mxu0
      %v1419 = vadd.f32 0.0, %v1418
      %v1420 = vpop.f32.mrb[0].mxu0
      %1421 = vmatprep.mubr.bf16.mxu0 0
      %1422 = vmatmul.mubr.bf16.gmra.mrb[0].mxu0 %v1181
      %v1423 = vpop.f32.mrb[0].mxu0
      %v1424 = vadd.f32 0.0, %v1423
      %v1425 = vpop.f32.mrb[0].mxu0
      %v1426 = vpop.f32.mrb[0].mxu0
      %v1427 = vadd.f32 0.0, %v1426
      %v1428 = vpop.f32.mrb[0].mxu0
      %1429 = vmatprep.mubr.bf16.mxu0 0
      %1430 = vmatmul.mubr.bf16.gmra.mrb[0].mxu0 %v1339
      %v1431 = vpop.f32.mrb[0].mxu0
      %v1432 = vadd.f32 0.0, %v1431
      %v1433 = vpop.f32.mrb[0].mxu0
      %v1434 = vpop.f32.mrb[0].mxu0
      %v1435 = vadd.f32 0.0, %v1434
      %v1436 = vpop.f32.mrb[0].mxu0
      %1437 = vdwg.mxu0
      %v1438 = vadd.f32 %v1280, %v1376
      %v1439 = vadd.f32 %v1281, %v1379
      %v1440 = vadd.f32 %v1282, %v1384
      %v1441 = vadd.f32 %v1283, %v1387
      %v1442 = vadd.f32 %v1284, %v1392
      %v1443 = vadd.f32 %v1285, %v1395
      %v1444 = vadd.f32 %v1286, %v1400
      %v1445 = vadd.f32 %v1287, %v1403
      %v1446 = vadd.f32 %v1288, %v1408
      %v1447 = vadd.f32 %v1289, %v1411
      %v1448 = vadd.f32 %v1290, %v1416
      %v1449 = vadd.f32 %v1291, %v1419
      %v1450 = vadd.f32 %v1292, %v1424
      %v1451 = vadd.f32 %v1293, %v1427
      %v1452 = vadd.f32 %v1294, %v1432
      %v1453 = vadd.f32 %v1295, %v1435
      %v1454 = vpack.c.bf16 %v1089, %v1087
      %s1455 = scalar_lea.vmem %s1, 280
      %v1456 = vld [vmem:[%s1455] sm:$0xf]
      %v1457 = vld [vmem:[%s1455 + $0x4] sm:$0xf]
      %v1458 = vld [vmem:[%s1455 + $0x8] sm:$0xf]
      %v1459 = vld [vmem:[%s1455 + $0xc] sm:$0xf]
      %v1460 = vld [vmem:[%s1455 + $0x10] sm:$0xf]
      %v1461 = vld [vmem:[%s1455 + $0x14] sm:$0xf]
      %v1462 = vld [vmem:[%s1455 + $0x18] sm:$0xf]
      %v1463 = vld [vmem:[%s1455 + $0x1c] sm:$0xf]
      %v1464 = vld [vmem:[%s1455 + $0x20] sm:$0xf]
      %v1465 = vld [vmem:[%s1455 + $0x24] sm:$0xf]
      %v1476 = vunpack.c.l.b16 %v1456
      %v1477 = vunpack.c.l.b16 %v1457
      %v1478 = vunpack.c.l.b16 %v1458
      %v1479 = vunpack.c.l.b16 %v1459
      %v1480 = vunpack.c.l.b16 %v1460
      %v1481 = vunpack.c.l.b16 %v1461
      %v1482 = vunpack.c.l.b16 %v1462
      %v1483 = vunpack.c.l.b16 %v1463
      %v1484 = vunpack.c.l.b16 %v1464
      %v1485 = vunpack.c.l.b16 %v1465
      %v1486 = vpack.c.b16 %v1477, %v1476
      %v1487 = vpack.c.b16 %v1479, %v1478
      %v1488 = vpack.c.b16 %v1481, %v1480
      %v1489 = vpack.c.b16 %v1483, %v1482
      %v1490 = vpack.c.b16 %v1485, %v1484
      %v1497 = vsel %vm609, %v1454, 0
      %1499 = vmatprep.subr.bf16.mxu0 0
      %1500 = vmatpush1.bf16.msra.mxu0 %v1486
      %1501 = vmatprep.subr.bf16.mxu0 0
      %1502 = vmatpush1.bf16.msra.mxu0 %v1487
      %1503 = vmatprep.subr.bf16.mxu0 0
      %1504 = vmatpush1.bf16.msra.mxu0 %v1488
      %1505 = vmatprep.subr.bf16.mxu0 0
      %1506 = vmatpush1.bf16.msra.mxu0 %v1489
      %1507 = vmatprep.subr.bf16.mxu0 0
      %1508 = vmatpush1.bf16.msra.mxu0 %v1490
      %1509 = vmatprep.subr.bf16.mxu0 0
      %1510 = vmatpush1.bf16.msra.mxu0 0
      %1511 = vmatprep.subr.bf16.mxu0 0
      %1512 = vmatpush1.bf16.msra.mxu0 0
      %1513 = vmatprep.subr.bf16.mxu0 0
      %1514 = vmatpush1.bf16.msra.mxu0 0
      %1515 = vmatprep.subr.bf16.mxu0 0
      %1516 = vmatpush1.bf16.msra.mxu0 0
      %1517 = vmatprep.subr.bf16.mxu0 0
      %1518 = vmatpush1.bf16.msra.mxu0 0
      %1519 = vmatprep.subr.bf16.mxu0 0
      %1520 = vmatpush1.bf16.msra.mxu0 0
      %1521 = vmatprep.subr.bf16.mxu0 0
      %1522 = vmatpush1.bf16.msra.mxu0 0
      %1523 = vmatprep.subr.bf16.mxu0 0
      %1524 = vmatpush1.bf16.msra.mxu0 0
      %1525 = vmatprep.subr.bf16.mxu0 0
      %1526 = vmatpush1.bf16.msra.mxu0 0
      %1527 = vmatprep.subr.bf16.mxu0 0
      %1528 = vmatpush1.bf16.msra.mxu0 0
      %1529 = vmatprep.subr.bf16.mxu0 0
      %1530 = vmatpush1.bf16.msra.mxu0 0
      %1531 = vmatprep.mubr.bf16.mxu0 0
      %1532 = vmatmul.mubr.bf16.gmra.mrb[0].mxu0 %v1166
      %v1533 = vpop.f32.mrb[0].mxu0
      %v1534 = vadd.f32 0.0, %v1533
      %v1535 = vpop.f32.mrb[0].mxu0
      %v1536 = vpop.f32.mrb[0].mxu0
      %v1537 = vadd.f32 0.0, %v1536
      %v1538 = vpop.f32.mrb[0].mxu0
      %1539 = vmatprep.mubr.bf16.mxu0 0
      %1540 = vmatmul.mubr.bf16.gmra.mrb[0].mxu0 %v1169
      %v1541 = vpop.f32.mrb[0].mxu0
      %v1542 = vadd.f32 0.0, %v1541
      %v1543 = vpop.f32.mrb[0].mxu0
      %v1544 = vpop.f32.mrb[0].mxu0
      %v1545 = vadd.f32 0.0, %v1544
      %v1546 = vpop.f32.mrb[0].mxu0
      %1547 = vmatprep.mubr.bf16.mxu0 0
      %1548 = vmatmul.mubr.bf16.gmra.mrb[0].mxu0 %v1172
      %v1549 = vpop.f32.mrb[0].mxu0
      %v1550 = vadd.f32 0.0, %v1549
      %v1551 = vpop.f32.mrb[0].mxu0
      %v1552 = vpop.f32.mrb[0].mxu0
      %v1553 = vadd.f32 0.0, %v1552
      %v1554 = vpop.f32.mrb[0].mxu0
      %1555 = vmatprep.mubr.bf16.mxu0 0
      %1556 = vmatmul.mubr.bf16.gmra.mrb[0].mxu0 %v1175
      %v1557 = vpop.f32.mrb[0].mxu0
      %v1558 = vadd.f32 0.0, %v1557
      %v1559 = vpop.f32.mrb[0].mxu0
      %v1560 = vpop.f32.mrb[0].mxu0
      %v1561 = vadd.f32 0.0, %v1560
      %v1562 = vpop.f32.mrb[0].mxu0
      %1563 = vmatprep.mubr.bf16.mxu0 0
      %1564 = vmatmul.mubr.bf16.gmra.mrb[0].mxu0 %v1178
      %v1565 = vpop.f32.mrb[0].mxu0
      %v1566 = vadd.f32 0.0, %v1565
      %v1567 = vpop.f32.mrb[0].mxu0
      %v1568 = vpop.f32.mrb[0].mxu0
      %v1569 = vadd.f32 0.0, %v1568
      %v1570 = vpop.f32.mrb[0].mxu0
      %1571 = vmatprep.mubr.bf16.mxu0 0
      %1572 = vmatmul.mubr.bf16.gmra.mrb[0].mxu0 %v1181
      %v1573 = vpop.f32.mrb[0].mxu0
      %v1574 = vadd.f32 0.0, %v1573
      %v1575 = vpop.f32.mrb[0].mxu0
      %v1576 = vpop.f32.mrb[0].mxu0
      %v1577 = vadd.f32 0.0, %v1576
      %v1578 = vpop.f32.mrb[0].mxu0
      %1579 = vmatprep.mubr.bf16.mxu0 0
      %1580 = vmatmul.mubr.bf16.gmra.mrb[0].mxu0 %v1339
      %v1581 = vpop.f32.mrb[0].mxu0
      %v1582 = vadd.f32 0.0, %v1581
      %v1583 = vpop.f32.mrb[0].mxu0
      %v1584 = vpop.f32.mrb[0].mxu0
      %v1585 = vadd.f32 0.0, %v1584
      %v1586 = vpop.f32.mrb[0].mxu0
      %1587 = vmatprep.mubr.bf16.mxu0 0
      %1588 = vmatmul.mubr.bf16.gmra.mrb[0].mxu0 %v1497
      %v1589 = vpop.f32.mrb[0].mxu0
      %v1590 = vadd.f32 0.0, %v1589
      %v1591 = vpop.f32.mrb[0].mxu0
      %v1592 = vpop.f32.mrb[0].mxu0
      %v1593 = vadd.f32 0.0, %v1592
      %v1594 = vpop.f32.mrb[0].mxu0
      %1595 = vdwg.mxu0
      %v1596 = vadd.f32 %v1438, %v1534
      %v1597 = vadd.f32 %v1439, %v1537
      %v1598 = vadd.f32 %v1440, %v1542
      %v1599 = vadd.f32 %v1441, %v1545
      %v1600 = vadd.f32 %v1442, %v1550
      %v1601 = vadd.f32 %v1443, %v1553
      %v1602 = vadd.f32 %v1444, %v1558
      %v1603 = vadd.f32 %v1445, %v1561
      %v1604 = vadd.f32 %v1446, %v1566
      %v1605 = vadd.f32 %v1447, %v1569
      %v1606 = vadd.f32 %v1448, %v1574
      %v1607 = vadd.f32 %v1449, %v1577
      %v1608 = vadd.f32 %v1450, %v1582
      %v1609 = vadd.f32 %v1451, %v1585
      %v1610 = vadd.f32 %v1452, %v1590
      %v1611 = vadd.f32 %v1453, %v1593
      %vm1612 = vcmask 1045504
      %v1613 = vrot.slane %v529, 2
      %v1614 = vrot.slane %v471, 2
      %v1615 = vsel %vm1612, %v1613, %v1614
      %v1616 = vrot.slane %v539, 2
      %v1617 = vsel %vm1612, %v1614, %v1616
      %v1618 = vrot.slane %v530, 2
      %v1619 = vrot.slane %v474, 2
      %v1620 = vsel %vm1612, %v1618, %v1619
      %v1621 = vrot.slane %v540, 2
      %v1622 = vsel %vm1612, %v1619, %v1621
      %v1623 = vrot.slane %v531, 2
      %v1624 = vrot.slane %v477, 2
      %v1625 = vsel %vm1612, %v1623, %v1624
      %v1626 = vrot.slane %v541, 2
      %v1627 = vsel %vm1612, %v1624, %v1626
      %v1628 = vrot.slane %v532, 2
      %v1629 = vrot.slane %v480, 2
      %v1630 = vsel %vm1612, %v1628, %v1629
      %v1631 = vrot.slane %v542, 2
      %v1632 = vsel %vm1612, %v1629, %v1631
      %v1633 = vrot.slane %v533, 2
      %v1634 = vrot.slane %v483, 2
      %v1635 = vsel %vm1612, %v1633, %v1634
      %v1636 = vrot.slane %v543, 2
      %v1637 = vsel %vm1612, %v1634, %v1636
      %v1638 = vrot.slane %v534, 2
      %v1639 = vrot.slane %v486, 2
      %v1640 = vsel %vm1612, %v1638, %v1639
      %v1641 = vrot.slane %v544, 2
      %v1642 = vsel %vm1612, %v1639, %v1641
      %v1643 = vrot.slane %v535, 2
      %v1644 = vrot.slane %v489, 2
      %v1645 = vsel %vm1612, %v1643, %v1644
      %v1646 = vrot.slane %v545, 2
      %v1647 = vsel %vm1612, %v1644, %v1646
      %v1648 = vrot.slane %v536, 2
      %v1649 = vrot.slane %v492, 2
      %v1650 = vsel %vm1612, %v1648, %v1649
      %v1651 = vrot.slane %v546, 2
      %v1652 = vsel %vm1612, %v1649, %v1651
      %v1653 = vrot.slane %v537, 2
      %v1654 = vrot.slane %v495, 2
      %v1655 = vsel %vm1612, %v1653, %v1654
      %v1656 = vrot.slane %v547, 2
      %v1657 = vsel %vm1612, %v1654, %v1656
      %v1658 = vrot.slane %v538, 2
      %v1659 = vrot.slane %v498, 2
      %v1660 = vsel %vm1612, %v1658, %v1659
      %v1661 = vrot.slane %v548, 2
      %v1662 = vsel %vm1612, %v1659, %v1661
      %v1683 = vpack.c.bf16 %v1617, %v1615
      %v1684 = vpack.c.bf16 %v1622, %v1620
      %v1685 = vpack.c.bf16 %v1627, %v1625
      %v1686 = vpack.c.bf16 %v1632, %v1630
      %v1687 = vpack.c.bf16 %v1637, %v1635
      %v1688 = vpack.c.bf16 %v1642, %v1640
      %v1689 = vpack.c.bf16 %v1647, %v1645
      %v1690 = vpack.c.bf16 %v1652, %v1650
      %s1691 = scalar_lea.vmem %s1, 80
      %v1692 = vld [vmem:[%s1691] sm:$0xf]
      %v1693 = vld [vmem:[%s1691 + $0x4] sm:$0xf]
      %v1694 = vld [vmem:[%s1691 + $0x8] sm:$0xf]
      %v1695 = vld [vmem:[%s1691 + $0xc] sm:$0xf]
      %v1696 = vld [vmem:[%s1691 + $0x10] sm:$0xf]
      %v1697 = vld [vmem:[%s1691 + $0x14] sm:$0xf]
      %v1698 = vld [vmem:[%s1691 + $0x18] sm:$0xf]
      %v1699 = vld [vmem:[%s1691 + $0x1c] sm:$0xf]
      %v1700 = vld [vmem:[%s1691 + $0x20] sm:$0xf]
      %v1701 = vld [vmem:[%s1691 + $0x24] sm:$0xf]
      %v1712 = vunpack.c.l.b16 %v1692
      %v1713 = vunpack.c.l.b16 %v1693
      %v1714 = vunpack.c.l.b16 %v1694
      %v1715 = vunpack.c.l.b16 %v1695
      %v1716 = vunpack.c.l.b16 %v1696
      %v1717 = vunpack.c.l.b16 %v1697
      %v1718 = vunpack.c.l.b16 %v1698
      %v1719 = vunpack.c.l.b16 %v1699
      %v1720 = vunpack.c.l.b16 %v1700
      %v1721 = vunpack.c.l.b16 %v1701
      %v1722 = vpack.c.b16 %v1713, %v1712
      %v1723 = vpack.c.b16 %v1715, %v1714
      %v1724 = vpack.c.b16 %v1717, %v1716
      %v1725 = vpack.c.b16 %v1719, %v1718
      %v1726 = vpack.c.b16 %v1721, %v1720
      %v1733 = vsel %vm609, %v1683, 0
      %v1736 = vsel %vm609, %v1684, 0
      %v1739 = vsel %vm609, %v1685, 0
      %v1742 = vsel %vm609, %v1686, 0
      %v1745 = vsel %vm609, %v1687, 0
      %v1748 = vsel %vm609, %v1688, 0
      %v1751 = vsel %vm609, %v1689, 0
      %v1754 = vsel %vm609, %v1690, 0
      %1756 = vmatprep.subr.bf16.mxu0 0
      %1757 = vmatpush1.bf16.msra.mxu0 %v1722
      %1758 = vmatprep.subr.bf16.mxu0 0
      %1759 = vmatpush1.bf16.msra.mxu0 %v1723
      %1760 = vmatprep.subr.bf16.mxu0 0
      %1761 = vmatpush1.bf16.msra.mxu0 %v1724
      %1762 = vmatprep.subr.bf16.mxu0 0
      %1763 = vmatpush1.bf16.msra.mxu0 %v1725
      %1764 = vmatprep.subr.bf16.mxu0 0
      %1765 = vmatpush1.bf16.msra.mxu0 %v1726
      %1766 = vmatprep.subr.bf16.mxu0 0
      %1767 = vmatpush1.bf16.msra.mxu0 0
      %1768 = vmatprep.subr.bf16.mxu0 0
      %1769 = vmatpush1.bf16.msra.mxu0 0
      %1770 = vmatprep.subr.bf16.mxu0 0
      %1771 = vmatpush1.bf16.msra.mxu0 0
      %1772 = vmatprep.subr.bf16.mxu0 0
      %1773 = vmatpush1.bf16.msra.mxu0 0
      %1774 = vmatprep.subr.bf16.mxu0 0
      %1775 = vmatpush1.bf16.msra.mxu0 0
      %1776 = vmatprep.subr.bf16.mxu0 0
      %1777 = vmatpush1.bf16.msra.mxu0 0
      %1778 = vmatprep.subr.bf16.mxu0 0
      %1779 = vmatpush1.bf16.msra.mxu0 0
      %1780 = vmatprep.subr.bf16.mxu0 0
      %1781 = vmatpush1.bf16.msra.mxu0 0
      %1782 = vmatprep.subr.bf16.mxu0 0
      %1783 = vmatpush1.bf16.msra.mxu0 0
      %1784 = vmatprep.subr.bf16.mxu0 0
      %1785 = vmatpush1.bf16.msra.mxu0 0
      %1786 = vmatprep.subr.bf16.mxu0 0
      %1787 = vmatpush1.bf16.msra.mxu0 0
      %1788 = vmatprep.mubr.bf16.mxu0 0
      %1789 = vmatmul.mubr.bf16.gmra.mrb[0].mxu0 %v1733
      %v1790 = vpop.f32.mrb[0].mxu0
      %v1791 = vadd.f32 0.0, %v1790
      %v1792 = vpop.f32.mrb[0].mxu0
      %v1793 = vpop.f32.mrb[0].mxu0
      %v1794 = vadd.f32 0.0, %v1793
      %v1795 = vpop.f32.mrb[0].mxu0
      %1796 = vmatprep.mubr.bf16.mxu0 0
      %1797 = vmatmul.mubr.bf16.gmra.mrb[0].mxu0 %v1736
      %v1798 = vpop.f32.mrb[0].mxu0
      %v1799 = vadd.f32 0.0, %v1798
      %v1800 = vpop.f32.mrb[0].mxu0
      %v1801 = vpop.f32.mrb[0].mxu0
      %v1802 = vadd.f32 0.0, %v1801
      %v1803 = vpop.f32.mrb[0].mxu0
      %1804 = vmatprep.mubr.bf16.mxu0 0
      %1805 = vmatmul.mubr.bf16.gmra.mrb[0].mxu0 %v1739
      %v1806 = vpop.f32.mrb[0].mxu0
      %v1807 = vadd.f32 0.0, %v1806
      %v1808 = vpop.f32.mrb[0].mxu0
      %v1809 = vpop.f32.mrb[0].mxu0
      %v1810 = vadd.f32 0.0, %v1809
      %v1811 = vpop.f32.mrb[0].mxu0
      %1812 = vmatprep.mubr.bf16.mxu0 0
      %1813 = vmatmul.mubr.bf16.gmra.mrb[0].mxu0 %v1742
      %v1814 = vpop.f32.mrb[0].mxu0
      %v1815 = vadd.f32 0.0, %v1814
      %v1816 = vpop.f32.mrb[0].mxu0
      %v1817 = vpop.f32.mrb[0].mxu0
      %v1818 = vadd.f32 0.0, %v1817
      %v1819 = vpop.f32.mrb[0].mxu0
      %1820 = vmatprep.mubr.bf16.mxu0 0
      %1821 = vmatmul.mubr.bf16.gmra.mrb[0].mxu0 %v1745
      %v1822 = vpop.f32.mrb[0].mxu0
      %v1823 = vadd.f32 0.0, %v1822
      %v1824 = vpop.f32.mrb[0].mxu0
      %v1825 = vpop.f32.mrb[0].mxu0
      %v1826 = vadd.f32 0.0, %v1825
      %v1827 = vpop.f32.mrb[0].mxu0
      %1828 = vmatprep.mubr.bf16.mxu0 0
      %1829 = vmatmul.mubr.bf16.gmra.mrb[0].mxu0 %v1748
      %v1830 = vpop.f32.mrb[0].mxu0
      %v1831 = vadd.f32 0.0, %v1830
      %v1832 = vpop.f32.mrb[0].mxu0
      %v1833 = vpop.f32.mrb[0].mxu0
      %v1834 = vadd.f32 0.0, %v1833
      %v1835 = vpop.f32.mrb[0].mxu0
      %1836 = vmatprep.mubr.bf16.mxu0 0
      %1837 = vmatmul.mubr.bf16.gmra.mrb[0].mxu0 %v1751
      %v1838 = vpop.f32.mrb[0].mxu0
      %v1839 = vadd.f32 0.0, %v1838
      %v1840 = vpop.f32.mrb[0].mxu0
      %v1841 = vpop.f32.mrb[0].mxu0
      %v1842 = vadd.f32 0.0, %v1841
      %v1843 = vpop.f32.mrb[0].mxu0
      %1844 = vmatprep.mubr.bf16.mxu0 0
      %1845 = vmatmul.mubr.bf16.gmra.mrb[0].mxu0 %v1754
      %v1846 = vpop.f32.mrb[0].mxu0
      %v1847 = vadd.f32 0.0, %v1846
      %v1848 = vpop.f32.mrb[0].mxu0
      %v1849 = vpop.f32.mrb[0].mxu0
      %v1850 = vadd.f32 0.0, %v1849
      %v1851 = vpop.f32.mrb[0].mxu0
      %1852 = vdwg.mxu0
      %v1853 = vadd.f32 %v1596, %v1791
      %v1854 = vadd.f32 %v1597, %v1794
      %v1855 = vadd.f32 %v1598, %v1799
      %v1856 = vadd.f32 %v1599, %v1802
      %v1857 = vadd.f32 %v1600, %v1807
      %v1858 = vadd.f32 %v1601, %v1810
      %v1859 = vadd.f32 %v1602, %v1815
      %v1860 = vadd.f32 %v1603, %v1818
      %v1861 = vadd.f32 %v1604, %v1823
      %v1862 = vadd.f32 %v1605, %v1826
      %v1863 = vadd.f32 %v1606, %v1831
      %v1864 = vadd.f32 %v1607, %v1834
      %v1865 = vadd.f32 %v1608, %v1839
      %v1866 = vadd.f32 %v1609, %v1842
      %v1867 = vadd.f32 %v1610, %v1847
      %v1868 = vadd.f32 %v1611, %v1850
      %v1869 = vpack.c.bf16 %v1657, %v1655
      %s1870 = scalar_lea.vmem %s1, 200
      %v1871 = vld [vmem:[%s1870] sm:$0xf]
      %v1872 = vld [vmem:[%s1870 + $0x4] sm:$0xf]
      %v1873 = vld [vmem:[%s1870 + $0x8] sm:$0xf]
      %v1874 = vld [vmem:[%s1870 + $0xc] sm:$0xf]
      %v1875 = vld [vmem:[%s1870 + $0x10] sm:$0xf]
      %v1876 = vld [vmem:[%s1870 + $0x14] sm:$0xf]
      %v1877 = vld [vmem:[%s1870 + $0x18] sm:$0xf]
      %v1878 = vld [vmem:[%s1870 + $0x1c] sm:$0xf]
      %v1879 = vld [vmem:[%s1870 + $0x20] sm:$0xf]
      %v1880 = vld [vmem:[%s1870 + $0x24] sm:$0xf]
      %v1891 = vunpack.c.l.b16 %v1871
      %v1892 = vunpack.c.l.b16 %v1872
      %v1893 = vunpack.c.l.b16 %v1873
      %v1894 = vunpack.c.l.b16 %v1874
      %v1895 = vunpack.c.l.b16 %v1875
      %v1896 = vunpack.c.l.b16 %v1876
      %v1897 = vunpack.c.l.b16 %v1877
      %v1898 = vunpack.c.l.b16 %v1878
      %v1899 = vunpack.c.l.b16 %v1879
      %v1900 = vunpack.c.l.b16 %v1880
      %v1901 = vpack.c.b16 %v1892, %v1891
      %v1902 = vpack.c.b16 %v1894, %v1893
      %v1903 = vpack.c.b16 %v1896, %v1895
      %v1904 = vpack.c.b16 %v1898, %v1897
      %v1905 = vpack.c.b16 %v1900, %v1899
      %v1912 = vsel %vm609, %v1869, 0
      %1914 = vmatprep.subr.bf16.mxu0 0
      %1915 = vmatpush1.bf16.msra.mxu0 %v1901
      %1916 = vmatprep.subr.bf16.mxu0 0
      %1917 = vmatpush1.bf16.msra.mxu0 %v1902
      %1918 = vmatprep.subr.bf16.mxu0 0
      %1919 = vmatpush1.bf16.msra.mxu0 %v1903
      %1920 = vmatprep.subr.bf16.mxu0 0
      %1921 = vmatpush1.bf16.msra.mxu0 %v1904
      %1922 = vmatprep.subr.bf16.mxu0 0
      %1923 = vmatpush1.bf16.msra.mxu0 %v1905
      %1924 = vmatprep.subr.bf16.mxu0 0
      %1925 = vmatpush1.bf16.msra.mxu0 0
      %1926 = vmatprep.subr.bf16.mxu0 0
      %1927 = vmatpush1.bf16.msra.mxu0 0
      %1928 = vmatprep.subr.bf16.mxu0 0
      %1929 = vmatpush1.bf16.msra.mxu0 0
      %1930 = vmatprep.subr.bf16.mxu0 0
      %1931 = vmatpush1.bf16.msra.mxu0 0
      %1932 = vmatprep.subr.bf16.mxu0 0
      %1933 = vmatpush1.bf16.msra.mxu0 0
      %1934 = vmatprep.subr.bf16.mxu0 0
      %1935 = vmatpush1.bf16.msra.mxu0 0
      %1936 = vmatprep.subr.bf16.mxu0 0
      %1937 = vmatpush1.bf16.msra.mxu0 0
      %1938 = vmatprep.subr.bf16.mxu0 0
      %1939 = vmatpush1.bf16.msra.mxu0 0
      %1940 = vmatprep.subr.bf16.mxu0 0
      %1941 = vmatpush1.bf16.msra.mxu0 0
      %1942 = vmatprep.subr.bf16.mxu0 0
      %1943 = vmatpush1.bf16.msra.mxu0 0
      %1944 = vmatprep.subr.bf16.mxu0 0
      %1945 = vmatpush1.bf16.msra.mxu0 0
      %1946 = vmatprep.mubr.bf16.mxu0 0
      %1947 = vmatmul.mubr.bf16.gmra.mrb[0].mxu0 %v1736
      %v1948 = vpop.f32.mrb[0].mxu0
      %v1949 = vadd.f32 0.0, %v1948
      %v1950 = vpop.f32.mrb[0].mxu0
      %v1951 = vpop.f32.mrb[0].mxu0
      %v1952 = vadd.f32 0.0, %v1951
      %v1953 = vpop.f32.mrb[0].mxu0
      %1954 = vmatprep.mubr.bf16.mxu0 0
      %1955 = vmatmul.mubr.bf16.gmra.mrb[0].mxu0 %v1739
      %v1956 = vpop.f32.mrb[0].mxu0
      %v1957 = vadd.f32 0.0, %v1956
      %v1958 = vpop.f32.mrb[0].mxu0
      %v1959 = vpop.f32.mrb[0].mxu0
      %v1960 = vadd.f32 0.0, %v1959
      %v1961 = vpop.f32.mrb[0].mxu0
      %1962 = vmatprep.mubr.bf16.mxu0 0
      %1963 = vmatmul.mubr.bf16.gmra.mrb[0].mxu0 %v1742
      %v1964 = vpop.f32.mrb[0].mxu0
      %v1965 = vadd.f32 0.0, %v1964
      %v1966 = vpop.f32.mrb[0].mxu0
      %v1967 = vpop.f32.mrb[0].mxu0
      %v1968 = vadd.f32 0.0, %v1967
      %v1969 = vpop.f32.mrb[0].mxu0
      %1970 = vmatprep.mubr.bf16.mxu0 0
      %1971 = vmatmul.mubr.bf16.gmra.mrb[0].mxu0 %v1745
      %v1972 = vpop.f32.mrb[0].mxu0
      %v1973 = vadd.f32 0.0, %v1972
      %v1974 = vpop.f32.mrb[0].mxu0
      %v1975 = vpop.f32.mrb[0].mxu0
      %v1976 = vadd.f32 0.0, %v1975
      %v1977 = vpop.f32.mrb[0].mxu0
      %1978 = vmatprep.mubr.bf16.mxu0 0
      %1979 = vmatmul.mubr.bf16.gmra.mrb[0].mxu0 %v1748
      %v1980 = vpop.f32.mrb[0].mxu0
      %v1981 = vadd.f32 0.0, %v1980
      %v1982 = vpop.f32.mrb[0].mxu0
      %v1983 = vpop.f32.mrb[0].mxu0
      %v1984 = vadd.f32 0.0, %v1983
      %v1985 = vpop.f32.mrb[0].mxu0
      %1986 = vmatprep.mubr.bf16.mxu0 0
      %1987 = vmatmul.mubr.bf16.gmra.mrb[0].mxu0 %v1751
      %v1988 = vpop.f32.mrb[0].mxu0
      %v1989 = vadd.f32 0.0, %v1988
      %v1990 = vpop.f32.mrb[0].mxu0
      %v1991 = vpop.f32.mrb[0].mxu0
      %v1992 = vadd.f32 0.0, %v1991
      %v1993 = vpop.f32.mrb[0].mxu0
      %1994 = vmatprep.mubr.bf16.mxu0 0
      %1995 = vmatmul.mubr.bf16.gmra.mrb[0].mxu0 %v1754
      %v1996 = vpop.f32.mrb[0].mxu0
      %v1997 = vadd.f32 0.0, %v1996
      %v1998 = vpop.f32.mrb[0].mxu0
      %v1999 = vpop.f32.mrb[0].mxu0
      %v2000 = vadd.f32 0.0, %v1999
      %v2001 = vpop.f32.mrb[0].mxu0
      %2002 = vmatprep.mubr.bf16.mxu0 0
      %2003 = vmatmul.mubr.bf16.gmra.mrb[0].mxu0 %v1912
      %v2004 = vpop.f32.mrb[0].mxu0
      %v2005 = vadd.f32 0.0, %v2004
      %v2006 = vpop.f32.mrb[0].mxu0
      %v2007 = vpop.f32.mrb[0].mxu0
      %v2008 = vadd.f32 0.0, %v2007
      %v2009 = vpop.f32.mrb[0].mxu0
      %2010 = vdwg.mxu0
      %v2011 = vadd.f32 %v1853, %v1949
      %v2012 = vadd.f32 %v1854, %v1952
      %v2013 = vadd.f32 %v1855, %v1957
      %v2014 = vadd.f32 %v1856, %v1960
      %v2015 = vadd.f32 %v1857, %v1965
      %v2016 = vadd.f32 %v1858, %v1968
      %v2017 = vadd.f32 %v1859, %v1973
      %v2018 = vadd.f32 %v1860, %v1976
      %v2019 = vadd.f32 %v1861, %v1981
      %v2020 = vadd.f32 %v1862, %v1984
      %v2021 = vadd.f32 %v1863, %v1989
      %v2022 = vadd.f32 %v1864, %v1992
      %v2023 = vadd.f32 %v1865, %v1997
      %v2024 = vadd.f32 %v1866, %v2000
      %v2025 = vadd.f32 %v1867, %v2005
      %v2026 = vadd.f32 %v1868, %v2008
      %v2027 = vpack.c.bf16 %v1662, %v1660
      %s2028 = scalar_lea.vmem %s1, 320
      %v2029 = vld [vmem:[%s2028] sm:$0xf]
      %v2030 = vld [vmem:[%s2028 + $0x4] sm:$0xf]
      %v2031 = vld [vmem:[%s2028 + $0x8] sm:$0xf]
      %v2032 = vld [vmem:[%s2028 + $0xc] sm:$0xf]
      %v2033 = vld [vmem:[%s2028 + $0x10] sm:$0xf]
      %v2034 = vld [vmem:[%s2028 + $0x14] sm:$0xf]
      %v2035 = vld [vmem:[%s2028 + $0x18] sm:$0xf]
      %v2036 = vld [vmem:[%s2028 + $0x1c] sm:$0xf]
      %v2037 = vld [vmem:[%s2028 + $0x20] sm:$0xf]
      %v2038 = vld [vmem:[%s2028 + $0x24] sm:$0xf]
      %v2049 = vunpack.c.l.b16 %v2029
      %v2050 = vunpack.c.l.b16 %v2030
      %v2051 = vunpack.c.l.b16 %v2031
      %v2052 = vunpack.c.l.b16 %v2032
      %v2053 = vunpack.c.l.b16 %v2033
      %v2054 = vunpack.c.l.b16 %v2034
      %v2055 = vunpack.c.l.b16 %v2035
      %v2056 = vunpack.c.l.b16 %v2036
      %v2057 = vunpack.c.l.b16 %v2037
      %v2058 = vunpack.c.l.b16 %v2038
      %v2059 = vpack.c.b16 %v2050, %v2049
      %v2060 = vpack.c.b16 %v2052, %v2051
      %v2061 = vpack.c.b16 %v2054, %v2053
      %v2062 = vpack.c.b16 %v2056, %v2055
      %v2063 = vpack.c.b16 %v2058, %v2057
      %v2070 = vsel %vm609, %v2027, 0
      %2072 = vmatprep.subr.bf16.mxu0 0
      %2073 = vmatpush1.bf16.msra.mxu0 %v2059
      %2074 = vmatprep.subr.bf16.mxu0 0
      %2075 = vmatpush1.bf16.msra.mxu0 %v2060
      %2076 = vmatprep.subr.bf16.mxu0 0
      %2077 = vmatpush1.bf16.msra.mxu0 %v2061
      %2078 = vmatprep.subr.bf16.mxu0 0
      %2079 = vmatpush1.bf16.msra.mxu0 %v2062
      %2080 = vmatprep.subr.bf16.mxu0 0
      %2081 = vmatpush1.bf16.msra.mxu0 %v2063
      %2082 = vmatprep.subr.bf16.mxu0 0
      %2083 = vmatpush1.bf16.msra.mxu0 0
      %2084 = vmatprep.subr.bf16.mxu0 0
      %2085 = vmatpush1.bf16.msra.mxu0 0
      %2086 = vmatprep.subr.bf16.mxu0 0
      %2087 = vmatpush1.bf16.msra.mxu0 0
      %2088 = vmatprep.subr.bf16.mxu0 0
      %2089 = vmatpush1.bf16.msra.mxu0 0
      %2090 = vmatprep.subr.bf16.mxu0 0
      %2091 = vmatpush1.bf16.msra.mxu0 0
      %2092 = vmatprep.subr.bf16.mxu0 0
      %2093 = vmatpush1.bf16.msra.mxu0 0
      %2094 = vmatprep.subr.bf16.mxu0 0
      %2095 = vmatpush1.bf16.msra.mxu0 0
      %2096 = vmatprep.subr.bf16.mxu0 0
      %2097 = vmatpush1.bf16.msra.mxu0 0
      %2098 = vmatprep.subr.bf16.mxu0 0
      %2099 = vmatpush1.bf16.msra.mxu0 0
      %2100 = vmatprep.subr.bf16.mxu0 0
      %2101 = vmatpush1.bf16.msra.mxu0 0
      %2102 = vmatprep.subr.bf16.mxu0 0
      %2103 = vmatpush1.bf16.msra.mxu0 0
      %2104 = vmatprep.mubr.bf16.mxu0 0
      %2105 = vmatmul.mubr.bf16.gmra.mrb[0].mxu0 %v1739
      %v2106 = vpop.f32.mrb[0].mxu0
      %v2107 = vadd.f32 0.0, %v2106
      %v2108 = vpop.f32.mrb[0].mxu0
      %v2109 = vpop.f32.mrb[0].mxu0
      %v2110 = vadd.f32 0.0, %v2109
      %v2111 = vpop.f32.mrb[0].mxu0
      %2112 = vmatprep.mubr.bf16.mxu0 0
      %2113 = vmatmul.mubr.bf16.gmra.mrb[0].mxu0 %v1742
      %v2114 = vpop.f32.mrb[0].mxu0
      %v2115 = vadd.f32 0.0, %v2114
      %v2116 = vpop.f32.mrb[0].mxu0
      %v2117 = vpop.f32.mrb[0].mxu0
      %v2118 = vadd.f32 0.0, %v2117
      %v2119 = vpop.f32.mrb[0].mxu0
      %2120 = vmatprep.mubr.bf16.mxu0 0
      %2121 = vmatmul.mubr.bf16.gmra.mrb[0].mxu0 %v1745
      %v2122 = vpop.f32.mrb[0].mxu0
      %v2123 = vadd.f32 0.0, %v2122
      %v2124 = vpop.f32.mrb[0].mxu0
      %v2125 = vpop.f32.mrb[0].mxu0
      %v2126 = vadd.f32 0.0, %v2125
      %v2127 = vpop.f32.mrb[0].mxu0
      %2128 = vmatprep.mubr.bf16.mxu0 0
      %2129 = vmatmul.mubr.bf16.gmra.mrb[0].mxu0 %v1748
      %v2130 = vpop.f32.mrb[0].mxu0
      %v2131 = vadd.f32 0.0, %v2130
      %v2132 = vpop.f32.mrb[0].mxu0
      %v2133 = vpop.f32.mrb[0].mxu0
      %v2134 = vadd.f32 0.0, %v2133
      %v2135 = vpop.f32.mrb[0].mxu0
      %2136 = vmatprep.mubr.bf16.mxu0 0
      %2137 = vmatmul.mubr.bf16.gmra.mrb[0].mxu0 %v1751
      %v2138 = vpop.f32.mrb[0].mxu0
      %v2139 = vadd.f32 0.0, %v2138
      %v2140 = vpop.f32.mrb[0].mxu0
      %v2141 = vpop.f32.mrb[0].mxu0
      %v2142 = vadd.f32 0.0, %v2141
      %v2143 = vpop.f32.mrb[0].mxu0
      %2144 = vmatprep.mubr.bf16.mxu0 0
      %2145 = vmatmul.mubr.bf16.gmra.mrb[0].mxu0 %v1754
      %v2146 = vpop.f32.mrb[0].mxu0
      %v2147 = vadd.f32 0.0, %v2146
      %v2148 = vpop.f32.mrb[0].mxu0
      %v2149 = vpop.f32.mrb[0].mxu0
      %v2150 = vadd.f32 0.0, %v2149
      %v2151 = vpop.f32.mrb[0].mxu0
      %2152 = vmatprep.mubr.bf16.mxu0 0
      %2153 = vmatmul.mubr.bf16.gmra.mrb[0].mxu0 %v1912
      %v2154 = vpop.f32.mrb[0].mxu0
      %v2155 = vadd.f32 0.0, %v2154
      %v2156 = vpop.f32.mrb[0].mxu0
      %v2157 = vpop.f32.mrb[0].mxu0
      %v2158 = vadd.f32 0.0, %v2157
      %v2159 = vpop.f32.mrb[0].mxu0
      %2160 = vmatprep.mubr.bf16.mxu0 0
      %2161 = vmatmul.mubr.bf16.gmra.mrb[0].mxu0 %v2070
      %v2162 = vpop.f32.mrb[0].mxu0
      %v2163 = vadd.f32 0.0, %v2162
      %v2164 = vpop.f32.mrb[0].mxu0
      %v2165 = vpop.f32.mrb[0].mxu0
      %v2166 = vadd.f32 0.0, %v2165
      %v2167 = vpop.f32.mrb[0].mxu0
      %2168 = vdwg.mxu0
      %v2169 = vadd.f32 %v2011, %v2107
      %v2170 = vadd.f32 %v2012, %v2110
      %v2171 = vadd.f32 %v2013, %v2115
      %v2172 = vadd.f32 %v2014, %v2118
      %v2173 = vadd.f32 %v2015, %v2123
      %v2174 = vadd.f32 %v2016, %v2126
      %v2175 = vadd.f32 %v2017, %v2131
      %v2176 = vadd.f32 %v2018, %v2134
      %v2177 = vadd.f32 %v2019, %v2139
      %v2178 = vadd.f32 %v2020, %v2142
      %v2179 = vadd.f32 %v2021, %v2147
      %v2180 = vadd.f32 %v2022, %v2150
      %v2181 = vadd.f32 %v2023, %v2155
      %v2182 = vadd.f32 %v2024, %v2158
      %v2183 = vadd.f32 %v2025, %v2163
      %v2184 = vadd.f32 %v2026, %v2166
      %v2185 = vpack.c.bf16 %v2170, %v2169
      %v2186 = vpack.c.bf16 %v2172, %v2171
      %v2187 = vpack.c.bf16 %v2174, %v2173
      %v2188 = vpack.c.bf16 %v2176, %v2175
      %v2189 = vpack.c.bf16 %v2178, %v2177
      %v2190 = vpack.c.bf16 %v2180, %v2179
      %v2191 = vpack.c.bf16 %v2182, %v2181
      %v2192 = vpack.c.bf16 %v2184, %v2183
      %v2201 = vunpack.c.l.b16 %v2185
      %v2202 = vunpack.c.h.b16 %v2185
      %v2203 = vunpack.c.l.b16 %v2186
      %v2204 = vunpack.c.h.b16 %v2186
      %v2205 = vunpack.c.l.b16 %v2187
      %v2206 = vunpack.c.h.b16 %v2187
      %v2207 = vunpack.c.l.b16 %v2188
      %v2208 = vunpack.c.h.b16 %v2188
      %v2209 = vunpack.c.l.b16 %v2189
      %v2210 = vunpack.c.h.b16 %v2189
      %v2211 = vunpack.c.l.b16 %v2190
      %v2212 = vunpack.c.h.b16 %v2190
      %v2213 = vunpack.c.l.b16 %v2191
      %v2214 = vunpack.c.h.b16 %v2191
      %v2215 = vunpack.c.l.b16 %v2192
      %v2216 = vunpack.c.h.b16 %v2192
      %v2217 = vpack.c.b16 %v2201, %v2201
      %v2218 = vpack.c.b16 %v2202, %v2202
      %v2219 = vpack.c.b16 %v2203, %v2203
      %v2220 = vpack.c.b16 %v2204, %v2204
      %v2221 = vpack.c.b16 %v2205, %v2205
      %v2222 = vpack.c.b16 %v2206, %v2206
      %v2223 = vpack.c.b16 %v2207, %v2207
      %v2224 = vpack.c.b16 %v2208, %v2208
      %v2225 = vpack.c.b16 %v2209, %v2209
      %v2226 = vpack.c.b16 %v2210, %v2210
      %v2227 = vpack.c.b16 %v2211, %v2211
      %v2228 = vpack.c.b16 %v2212, %v2212
      %v2229 = vpack.c.b16 %v2213, %v2213
      %v2230 = vpack.c.b16 %v2214, %v2214
      %v2231 = vpack.c.b16 %v2215, %v2215
      %v2232 = vpack.c.b16 %v2216, %v2216
      %2249 = vst [vmem:[%s288] sm:$0xf] %v2217
      %2250 = vst [vmem:[%s288 + $0x4] sm:$0xf] %v2218
      %2251 = vst [vmem:[%s288 + $0x8] sm:$0xf] %v2219
      %2252 = vst [vmem:[%s288 + $0xc] sm:$0xf] %v2220
      %2253 = vst [vmem:[%s288 + $0x10] sm:$0xf] %v2221
      %2254 = vst [vmem:[%s288 + $0x14] sm:$0xf] %v2222
      %2255 = vst [vmem:[%s288 + $0x18] sm:$0xf] %v2223
      %2256 = vst [vmem:[%s288 + $0x1c] sm:$0xf] %v2224
      %2257 = vst [vmem:[%s288 + $0x20] sm:$0xf] %v2225
      %2258 = vst [vmem:[%s288 + $0x24] sm:$0xf] %v2226
      %2259 = vst [vmem:[%s288 + $0x28] sm:$0xf] %v2227
      %2260 = vst [vmem:[%s288 + $0x2c] sm:$0xf] %v2228
      %2261 = vst [vmem:[%s288 + $0x30] sm:$0xf] %v2229
      %2262 = vst [vmem:[%s288 + $0x34] sm:$0xf] %v2230
      %2263 = vst [vmem:[%s288 + $0x38] sm:$0xf] %v2231
      %2264 = vst [vmem:[%s288 + $0x3c] sm:$0xf] %v2232
      %v2265 = vadd.f32 %v2169, %v2170
      %v2266 = vadd.f32 %v2265, %v2171
      %v2267 = vadd.f32 %v2266, %v2172
      %v2268 = vadd.f32 %v2267, %v2173
      %v2269 = vadd.f32 %v2268, %v2174
      %v2270 = vadd.f32 %v2269, %v2175
      %v2271 = vadd.f32 %v2270, %v2176
      %v2272 = vadd.f32 %v2271, %v2177
      %v2273 = vadd.f32 %v2272, %v2178
      %v2274 = vadd.f32 %v2273, %v2179
      %v2275 = vadd.f32 %v2274, %v2180
      %v2276 = vadd.f32 %v2275, %v2181
      %v2277 = vadd.f32 %v2276, %v2182
      %v2278 = vadd.f32 %v2277, %v2183
      %v2279 = vadd.f32 %v2278, %v2184
      %v2280 = vrot.slane %v2279, 4
      %v2281 = vadd.f32 %v2279, %v2280
      %v2282 = vrot.slane %v2281, 2
      %v2283 = vadd.f32 %v2281, %v2282
      %v2284 = vrot.slane %v2283, 1
      %v2285 = vadd.f32 %v2283, %v2284
      %v2286 = vmul.f32 %v2169, %v2169
      %v2287 = vmul.f32 %v2170, %v2170
      %v2288 = vmul.f32 %v2171, %v2171
      %v2289 = vmul.f32 %v2172, %v2172
      %v2290 = vmul.f32 %v2173, %v2173
      %v2291 = vmul.f32 %v2174, %v2174
      %v2292 = vmul.f32 %v2175, %v2175
      %v2293 = vmul.f32 %v2176, %v2176
      %v2294 = vmul.f32 %v2177, %v2177
      %v2295 = vmul.f32 %v2178, %v2178
      %v2296 = vmul.f32 %v2179, %v2179
      %v2297 = vmul.f32 %v2180, %v2180
      %v2298 = vmul.f32 %v2181, %v2181
      %v2299 = vmul.f32 %v2182, %v2182
      %v2300 = vmul.f32 %v2183, %v2183
      %v2301 = vmul.f32 %v2184, %v2184
      %v2302 = vadd.f32 %v2286, %v2287
      %v2303 = vadd.f32 %v2302, %v2288
      %v2304 = vadd.f32 %v2303, %v2289
      %v2305 = vadd.f32 %v2304, %v2290
      %v2306 = vadd.f32 %v2305, %v2291
      %v2307 = vadd.f32 %v2306, %v2292
      %v2308 = vadd.f32 %v2307, %v2293
      %v2309 = vadd.f32 %v2308, %v2294
      %v2310 = vadd.f32 %v2309, %v2295
      %v2311 = vadd.f32 %v2310, %v2296
      %v2312 = vadd.f32 %v2311, %v2297
      %v2313 = vadd.f32 %v2312, %v2298
      %v2314 = vadd.f32 %v2313, %v2299
      %v2315 = vadd.f32 %v2314, %v2300
      %v2316 = vadd.f32 %v2315, %v2301
      %v2317 = vrot.slane %v2316, 4
      %v2318 = vadd.f32 %v2316, %v2317
      %v2319 = vrot.slane %v2318, 2
      %v2320 = vadd.f32 %v2318, %v2319
      %v2321 = vrot.slane %v2320, 1
      %v2322 = vadd.f32 %v2320, %v2321
      %v2323 = vsel %vm468, %v2285, %v2322
      %2324 = vst [vmem:[%s297] sm:$0x3] %v2323
      %s2325 = smul.u32 8, %s23
      %p2326 = scmp.lt.s32.totalorder %s22, 1
      %s2327 = scalar_select %p2326, %s22, 1
      %p2328 = scmp.lt.s32.totalorder %s2325, 15
      %s2329 = scalar_select %p2328, %s2325, 15
      %s2330 = smul.addr %s2329, 2
      %s2331 = smul.addr %s2327, 32
      %s2332 = sadd.s32 %s2330, %s2331
      %s2333 = smul.addr %s2332, 4
      %s2334 = scalar_lea.vmem %s5, %s2333
      %p2335 = scmp.lt.s32.totalorder %s22, 1
      %s2336 = scalar_select %p2335, %s22, 1
      %p2337 = scmp.lt.s32.totalorder %s23, 1
      %s2338 = scalar_select %p2337, %s23, 1
      %s2339 = smul.addr %s2336, 2
      %s2340 = sadd.s32 %s2338, %s2339
      %s2341 = smul.addr %s2340, 2
      %s2342 = scalar_lea.vmem %s6, %s2341
      // Predicated region
      $region41: #{deeplab_decoder_forward.5} parent=39 // pred_check
        %p2343 = pneg %p160
      $region42: #{deeplab_decoder_forward.5} parent=39 // pred_check_branch
        %2345 = sbr.rel (%p2343) target = $region44
      $region43: #{deeplab_decoder_forward.5} parent=39 // pred_region
        %s2346 = smul.u32 8, %s23
      $region44: #{deeplab_decoder_forward.5} parent=39 // pred_fallthru
        _
      // Predicated region
      $region45: #{deeplab_decoder_forward.5} parent=39 // pred_check
        %p2347 = pneg %p188
      $region46: #{deeplab_decoder_forward.5} parent=39 // pred_check_branch
        %2349 = sbr.rel (%p2347) target = $region48
      $region47: #{deeplab_decoder_forward.5} parent=39 // pred_region
        _
      $region48: #{deeplab_decoder_forward.5} parent=39 // pred_fallthru
        _
    $region40: #{deeplab_decoder_forward.5} parent=5 // pred_fallthru
      _
    %p2350 = scmp.le.s32.totalorder 2, %s13
    // Predicated region
    $region49: #{deeplab_decoder_forward.5} parent=5 // pred_check
      %p2351 = pneg %p2350
    $region50: #{deeplab_decoder_forward.5} parent=5 // pred_check_branch
      %2353 = sbr.rel (%p2351) target = $region52
    $region51: #{deeplab_decoder_forward.5} parent=5 // pred_region
      %s2354 = ssub.s32 %s13, 2
      // Predicated region
      $region53: #{deeplab_decoder_forward.5} parent=51 // pred_check
        %p2355 = pneg %p166
      $region54: #{deeplab_decoder_forward.5} parent=51 // pred_check_branch
        %2357 = sbr.rel (%p2355) target = $region56
      $region55: #{deeplab_decoder_forward.5} parent=51 // pred_region
        %s2358 = smul.u32 8, %s25
        %p2359 = scmp.lt.s32.totalorder %s24, 1
        %s2360 = scalar_select %p2359, %s24, 1
        %p2361 = scmp.lt.s32.totalorder %s2358, 15
        %s2362 = scalar_select %p2361, %s2358, 15
        %s2363 = smul.addr %s2362, 2
        %s2364 = smul.addr %s2360, 32
        %s2365 = sadd.s32 %s2363, %s2364
        %s2366 = smul.addr %s2365, 4
        %s2367 = scalar_lea.vmem %s5, %s2366
      $region56: #{deeplab_decoder_forward.5} parent=51 // pred_fallthru
        _
      // Predicated region
      $region57: #{deeplab_decoder_forward.5} parent=51 // pred_check
        %p2368 = pneg %p194
      $region58: #{deeplab_decoder_forward.5} parent=51 // pred_check_branch
        %2370 = sbr.rel (%p2368) target = $region60
      $region59: #{deeplab_decoder_forward.5} parent=51 // pred_region
        %p2371 = scmp.lt.s32.totalorder %s24, 1
        %s2372 = scalar_select %p2371, %s24, 1
        %p2373 = scmp.lt.s32.totalorder %s25, 1
        %s2374 = scalar_select %p2373, %s25, 1
        %s2375 = smul.addr %s2372, 2
        %s2376 = sadd.s32 %s2374, %s2375
        %s2377 = smul.addr %s2376, 2
        %s2378 = scalar_lea.vmem %s6, %s2377
      $region60: #{deeplab_decoder_forward.5} parent=51 // pred_fallthru
        _
    $region52: #{deeplab_decoder_forward.5} parent=5 // pred_fallthru
      _
  $region6: #{deeplab_decoder_forward.5} parent=0 // loop_footer
    %s17 = sadd.s32 1, %s13
  $region7: #{deeplab_decoder_forward.5} parent=0 // loop_footer_branch
    %12 = sbr.rel target = $region3
  $region8: #{deeplab_decoder_forward.5} parent=0 // loop_exit
    _

// kernel: deeplab_decoder_forward.6
$region0: #{deeplab_decoder_forward.6}
  #allocation0 [shape = 'u32[]', space=smem, size = 0x4, offset = 0x4, fixed_abs, tag = 'smem constant byte address 0x4 - core index']
  #allocation1 [shape = 'u32[144,128]{1,0:T(1,128)}', space=vmem, size = 0x12000, scoped, tag = 'internal scratch']
  %s0 = inlined_call_operand.vmem [shape: bf16[2,16,16,128], index: 0, kind: input, shape index: {}]
  %s1 = inlined_call_operand.vmem [shape: bf16[9,128,128], index: 1, kind: input, shape index: {}]
  %s2 = inlined_call_operand.vmem [shape: f32[1,128], index: 2, kind: input, shape index: {}]
  %s3 = inlined_call_operand.vmem [shape: f32[1,128], index: 3, kind: input, shape index: {}]
  %s4 = inlined_call_operand.vmem [shape: f32[1,128], index: 4, kind: input, shape index: {}]
  %s5 = inlined_call_operand.vmem [shape: bf16[2,16,16,128], index: 5, kind: output, shape index: {0}]
  %s6 = inlined_call_operand.vmem [shape: f32[2,2,2,128], index: 6, kind: output, shape index: {1}]
  %7 = xla_tuple %s5, %s6
  %s8 = sld [smem:[#allocation0]]
  $region61: #{deeplab_decoder_forward.6} parent=0
    _
  %s10 = ssub.s32 1, %s8
  %s11 = scalar_select 0, %s10, %s8
  loop: start=0, step=1, limit=6
  $region2: #{deeplab_decoder_forward.6} parent=0 // loop_pre_header
    _
  $region3: #{deeplab_decoder_forward.6} parent=0 // loop_header
    %s13 = sphi 0, %s17
    %p14 = scmp.ge.s32.totalorder %s13, 6
    %s20 = sphi 0, %s32
    %s21 = sphi 0, %s28
    %s22 = sphi 0, %s20
    %s23 = sphi 0, %s21
    %s24 = sphi 0, %s22
    %s25 = sphi 0, %s23
    %s35 = sphi 0, %s37
    %s38 = sphi 0, %s35
    %s39 = sphi 0, %s38
    %s55 = sphi 0, %s39
    %s59 = sphi 0, %s59
    %s61 = sphi 0, %s59
    %s62 = sphi 0, %s61
    %s76 = sphi 0, %s62
    %s80 = sphi 0, %s80
    %s82 = sphi 0, %s80
    %s83 = sphi 0, %s82
    %s97 = sphi 0, %s83
    %s101 = sphi 0, %s101
    %s103 = sphi 0, %s101
    %s104 = sphi 0, %s103
    %s118 = sphi 0, %s104
    %s122 = sphi 0, %s122
    %s124 = sphi 0, %s122
    %s125 = sphi 0, %s124
    %s139 = sphi 0, %s125
    %s147 = sphi 0, %s149
    %s150 = sphi 0, %s147
    %s151 = sphi 0, %s150
    %s167 = sphi 0, %s151
    %s175 = sphi 0, %s177
    %s178 = sphi 0, %s175
    %s179 = sphi 0, %s178
    %s195 = sphi 0, %s179
  $region4: #{deeplab_decoder_forward.6} parent=0 // loop_header_branch
    %16 = sbr.rel (%p14) target = $region8
  $region5: #{deeplab_decoder_forward.6} parent=0 // loop_body
    %s18 = ssub.s32 %s13, 1
    %s19 = ssub.s32 %s13, 2
    %s26 = sadd.s32 1, %s21
    %p27 = scmp.ge.s32.totalorder %s26, 2
    %s28 = scalar_select %p27, 0, %s26
    %s29 = sadd.s32 1, %s20
    %s30 = scalar_select %p27, %s29, %s20
    %p31 = scmp.ge.s32.totalorder %s30, 2
    %s32 = scalar_select %p31, 0, %s30
    %s33 = ssub.s32 %s20, %s32
    %p34 = scmp.eq.s32.totalorder %s33, 0
    %s36 = sadd.s32 %s35, 1
    %s37 = scalar_select %p34, %s35, %s36
    %p40 = pneg %p34
    %p41 = scmp.eq.s32.totalorder %s13, 3
    %p42 = por %p40, %p41
    %p43 = scmp.ne.s32.totalorder %s35, %s38
    %p44 = scmp.eq.s32.totalorder %s13, 0
    %p45 = por %p43, %p44
    %p46 = scmp.ne.s32.totalorder %s35, %s38
    %p47 = scmp.eq.s32.totalorder %s18, 3
    %p48 = por %p46, %p47
    %p49 = scmp.ne.s32.totalorder %s38, %s39
    %p50 = scmp.eq.s32.totalorder %s18, 0
    %p51 = por %p49, %p50
    %p52 = scmp.ne.s32.totalorder %s38, %s39
    %p53 = scmp.eq.s32.totalorder %s19, 3
    %p54 = por %p52, %p53
    %p56 = scmp.ne.s32.totalorder %s39, %s55
    %p57 = scmp.eq.s32.totalorder %s19, 0
    %p58 = por %p56, %p57
    %s60 = sadd.s32 %s59, 1
    %p63 = scmp.eq.s32.totalorder %s13, 3
    %p64 = scmp.ne.s32.totalorder %s59, %s61
    %p65 = scmp.eq.s32.totalorder %s13, 0
    %p66 = por %p64, %p65
    %p67 = scmp.ne.s32.totalorder %s59, %s61
    %p68 = scmp.eq.s32.totalorder %s18, 3
    %p69 = por %p67, %p68
    %p70 = scmp.ne.s32.totalorder %s61, %s62
    %p71 = scmp.eq.s32.totalorder %s18, 0
    %p72 = por %p70, %p71
    %p73 = scmp.ne.s32.totalorder %s61, %s62
    %p74 = scmp.eq.s32.totalorder %s19, 3
    %p75 = por %p73, %p74
    %p77 = scmp.ne.s32.totalorder %s62, %s76
    %p78 = scmp.eq.s32.totalorder %s19, 0
    %p79 = por %p77, %p78
    %s81 = sadd.s32 %s80, 1
    %p84 = scmp.eq.s32.totalorder %s13, 3
    %p85 = scmp.ne.s32.totalorder %s80, %s82
    %p86 = scmp.eq.s32.totalorder %s13, 0
    %p87 = por %p85, %p86
    %p88 = scmp.ne.s32.totalorder %s80, %s82
    %p89 = scmp.eq.s32.totalorder %s18, 3
    %p90 = por %p88, %p89
    %p91 = scmp.ne.s32.totalorder %s82, %s83
    %p92 = scmp.eq.s32.totalorder %s18, 0
    %p93 = por %p91, %p92
    %p94 = scmp.ne.s32.totalorder %s82, %s83
    %p95 = scmp.eq.s32.totalorder %s19, 3
    %p96 = por %p94, %p95
    %p98 = scmp.ne.s32.totalorder %s83, %s97
    %p99 = scmp.eq.s32.totalorder %s19, 0
    %p100 = por %p98, %p99
    %s102 = sadd.s32 %s101, 1
    %p105 = scmp.eq.s32.totalorder %s13, 3
    %p106 = scmp.ne.s32.totalorder %s101, %s103
    %p107 = scmp.eq.s32.totalorder %s13, 0
    %p108 = por %p106, %p107
    %p109 = scmp.ne.s32.totalorder %s101, %s103
    %p110 = scmp.eq.s32.totalorder %s18, 3
    %p111 = por %p109, %p110
    %p112 = scmp.ne.s32.totalorder %s103, %s104
    %p113 = scmp.eq.s32.totalorder %s18, 0
    %p114 = por %p112, %p113
    %p115 = scmp.ne.s32.totalorder %s103, %s104
    %p116 = scmp.eq.s32.totalorder %s19, 3
    %p117 = por %p115, %p116
    %p119 = scmp.ne.s32.totalorder %s104, %s118
    %p120 = scmp.eq.s32.totalorder %s19, 0
    %p121 = por %p119, %p120
    %s123 = sadd.s32 %s122, 1
    %p126 = scmp.eq.s32.totalorder %s13, 3
    %p127 = scmp.ne.s32.totalorder %s122, %s124
    %p128 = scmp.eq.s32.totalorder %s13, 0
    %p129 = por %p127, %p128
    %p130 = scmp.ne.s32.totalorder %s122, %s124
    %p131 = scmp.eq.s32.totalorder %s18, 3
    %p132 = por %p130, %p131
    %p133 = scmp.ne.s32.totalorder %s124, %s125
    %p134 = scmp.eq.s32.totalorder %s18, 0
    %p135 = por %p133, %p134
    %p136 = scmp.ne.s32.totalorder %s124, %s125
    %p137 = scmp.eq.s32.totalorder %s19, 3
    %p138 = por %p136, %p137
    %p140 = scmp.ne.s32.totalorder %s125, %s139
    %p141 = scmp.eq.s32.totalorder %s19, 0
    %p142 = por %p140, %p141
    %s143 = ssub.s32 %s20, %s32
    %s144 = ssub.s32 %s21, %s28
    %s145 = sor.u32 %s143, %s144
    %p146 = scmp.eq.s32.totalorder %s145, 0
    %s148 = sadd.s32 %s147, 1
    %s149 = scalar_select %p146, %s147, %s148
    %p152 = pneg %p146
    %p153 = scmp.eq.s32.totalorder %s13, 3
    %p154 = por %p152, %p153
    %p155 = scmp.ne.s32.totalorder %s147, %s150
    %p156 = scmp.eq.s32.totalorder %s13, 0
    %p157 = por %p155, %p156
    %p158 = scmp.ne.s32.totalorder %s147, %s150
    %p159 = scmp.eq.s32.totalorder %s18, 3
    %p160 = por %p158, %p159
    %p161 = scmp.ne.s32.totalorder %s150, %s151
    %p162 = scmp.eq.s32.totalorder %s18, 0
    %p163 = por %p161, %p162
    %p164 = scmp.ne.s32.totalorder %s150, %s151
    %p165 = scmp.eq.s32.totalorder %s19, 3
    %p166 = por %p164, %p165
    %p168 = scmp.ne.s32.totalorder %s151, %s167
    %p169 = scmp.eq.s32.totalorder %s19, 0
    %p170 = por %p168, %p169
    %s171 = ssub.s32 %s20, %s32
    %s172 = ssub.s32 %s21, %s28
    %s173 = sor.u32 %s171, %s172
    %p174 = scmp.eq.s32.totalorder %s173, 0
    %s176 = sadd.s32 %s175, 1
    %s177 = scalar_select %p174, %s175, %s176
    %p180 = pneg %p174
    %p181 = scmp.eq.s32.totalorder %s13, 3
    %p182 = por %p180, %p181
    %p183 = scmp.ne.s32.totalorder %s175, %s178
    %p184 = scmp.eq.s32.totalorder %s13, 0
    %p185 = por %p183, %p184
    %p186 = scmp.ne.s32.totalorder %s175, %s178
    %p187 = scmp.eq.s32.totalorder %s18, 3
    %p188 = por %p186, %p187
    %p189 = scmp.ne.s32.totalorder %s178, %s179
    %p190 = scmp.eq.s32.totalorder %s18, 0
    %p191 = por %p189, %p190
    %p192 = scmp.ne.s32.totalorder %s178, %s179
    %p193 = scmp.eq.s32.totalorder %s19, 3
    %p194 = por %p192, %p193
    %p196 = scmp.ne.s32.totalorder %s179, %s195
    %p197 = scmp.eq.s32.totalorder %s19, 0
    %p198 = por %p196, %p197
    %p199 = scmp.le.s32.totalorder 1, %s13
    %p200 = scmp.lt.s32.totalorder %s13, 5
    %p201 = pnand %p199, %p200
    %p202 = pneg %p201
    // Predicated region
    $region9: #{deeplab_decoder_forward.6} parent=5 // pred_check
      _
    $region10: #{deeplab_decoder_forward.6} parent=5 // pred_check_branch
      %204 = sbr.rel (%p201) target = $region12
    $region11: #{deeplab_decoder_forward.6} parent=5 // pred_region
      %s205 = ssub.s32 %s13, 1
      // Predicated region
      $region13: #{deeplab_decoder_forward.6} parent=11 // pred_check
        %p206 = pneg %p72
      $region14: #{deeplab_decoder_forward.6} parent=11 // pred_check_branch
        %208 = sbr.rel (%p206) target = $region16
      $region15: #{deeplab_decoder_forward.6} parent=11 // pred_region
        _
      $region16: #{deeplab_decoder_forward.6} parent=11 // pred_fallthru
        _
      // Predicated region
      $region17: #{deeplab_decoder_forward.6} parent=11 // pred_check
        %p209 = pneg %p93
      $region18: #{deeplab_decoder_forward.6} parent=11 // pred_check_branch
        %211 = sbr.rel (%p209) target = $region20
      $region19: #{deeplab_decoder_forward.6} parent=11 // pred_region
        _
      $region20: #{deeplab_decoder_forward.6} parent=11 // pred_fallthru
        _
      // Predicated region
      $region21: #{deeplab_decoder_forward.6} parent=11 // pred_check
        %p212 = pneg %p114
      $region22: #{deeplab_decoder_forward.6} parent=11 // pred_check_branch
        %214 = sbr.rel (%p212) target = $region24
      $region23: #{deeplab_decoder_forward.6} parent=11 // pred_region
        _
      $region24: #{deeplab_decoder_forward.6} parent=11 // pred_fallthru
        _
      // Predicated region
      $region25: #{deeplab_decoder_forward.6} parent=11 // pred_check
        %p215 = pneg %p135
      $region26: #{deeplab_decoder_forward.6} parent=11 // pred_check_branch
        %217 = sbr.rel (%p215) target = $region28
      $region27: #{deeplab_decoder_forward.6} parent=11 // pred_region
        _
      $region28: #{deeplab_decoder_forward.6} parent=11 // pred_fallthru
        _
    $region12: #{deeplab_decoder_forward.6} parent=5 // pred_fallthru
      _
    %p218 = scmp.lt.s32.totalorder %s13, 4
    // Predicated region
    $region29: #{deeplab_decoder_forward.6} parent=5 // pred_check
      %p219 = pneg %p218
    $region30: #{deeplab_decoder_forward.6} parent=5 // pred_check_branch
      %221 = sbr.rel (%p219) target = $region32
    $region31: #{deeplab_decoder_forward.6} parent=5 // pred_region
      // Predicated region
      $region33: #{deeplab_decoder_forward.6} parent=31 // pred_check
        %p222 = pneg %p45
      $region34: #{deeplab_decoder_forward.6} parent=31 // pred_check_branch
        %224 = sbr.rel (%p222) target = $region36
      $region35: #{deeplab_decoder_forward.6} parent=31 // pred_region
        %p225 = scmp.lt.s32.totalorder %s20, 1
        %s226 = scalar_select %p225, %s20, 1
        %s227 = smul.addr %s226, 32
        %s228 = smul.addr %s227, 4
        %s229 = scalar_lea.vmem %s0, %s228
      $region36: #{deeplab_decoder_forward.6} parent=31 // pred_fallthru
        _
    $region32: #{deeplab_decoder_forward.6} parent=5 // pred_fallthru
      _
    %p230 = scmp.le.s32.totalorder 1, %s13
    %p231 = scmp.lt.s32.totalorder %s13, 5
    %p232 = pnand %p230, %p231
    %p233 = pneg %p232
    // Predicated region
    $region37: #{deeplab_decoder_forward.6} parent=5 // pred_check
      _
    $region38: #{deeplab_decoder_forward.6} parent=5 // pred_check_branch
      %235 = sbr.rel (%p232) target = $region40
    $region39: #{deeplab_decoder_forward.6} parent=5 // pred_region
      %s236 = ssub.s32 %s13, 1
      %p237 = scmp.lt.s32.totalorder %s22, 1
      %s238 = scalar_select %p237, %s22, 1
      %s239 = smul.addr %s238, 32
      %s240 = smul.addr %s239, 4
      %s241 = scalar_lea.vmem %s0, %s240
      %p242 = pneg %p51
      %p243 = pneg %p48
      %p244 = pneg %p72
      %p245 = pneg %p69
      %p246 = pneg %p93
      %p247 = pneg %p90
      %p248 = pneg %p114
      %p249 = pneg %p111
      %p250 = pneg %p135
      %p251 = pneg %p132
      %p252 = pneg %p163
      %p253 = pneg %p160
      %s254 = smul.u32 8, %s23
      %p255 = scmp.lt.s32.totalorder %s22, 1
      %s256 = scalar_select %p255, %s22, 1
      %p257 = scmp.lt.s32.totalorder %s254, 15
      %s258 = scalar_select %p257, %s254, 15
      %s259 = smul.addr %s258, 2
      %s260 = smul.addr %s256, 32
      %s261 = sadd.s32 %s259, %s260
      %s262 = smul.addr %s261, 4
      %s263 = scalar_lea.vmem %s5, %s262
      %p264 = pneg %p191
      %p265 = pneg %p188
      %p266 = scmp.lt.s32.totalorder %s22, 1
      %s267 = scalar_select %p266, %s22, 1
      %p268 = scmp.lt.s32.totalorder %s23, 1
      %s269 = scalar_select %p268, %s23, 1
      %s270 = smul.addr %s267, 2
      %s271 = sadd.s32 %s269, %s270
      %s272 = smul.addr %s271, 2
      %s273 = scalar_lea.vmem %s6, %s272
      %p274 = scmp.lt.s32.totalorder %s22, 1
      %s275 = scalar_select %p274, %s22, 1
      %s276 = smul.addr %s275, 32
      %s277 = smul.addr %s276, 4
      %s278 = scalar_lea.vmem %s0, %s277
      %s279 = smul.u32 8, %s23
      %p280 = scmp.lt.s32.totalorder %s22, 1
      %s281 = scalar_select %p280, %s22, 1
      %p282 = scmp.lt.s32.totalorder %s279, 15
      %s283 = scalar_select %p282, %s279, 15
      %s284 = smul.addr %s283, 2
      %s285 = smul.addr %s281, 32
      %s286 = sadd.s32 %s284, %s285
      %s287 = smul.addr %s286, 4
      %s288 = scalar_lea.vmem %s5, %s287
      %s289 = smul.u32 8, %s23
      %p290 = scmp.lt.s32.totalorder %s22, 1
      %s291 = scalar_select %p290, %s22, 1
      %p292 = scmp.lt.s32.totalorder %s23, 1
      %s293 = scalar_select %p292, %s23, 1
      %s294 = smul.addr %s291, 2
      %s295 = sadd.s32 %s293, %s294
      %s296 = smul.addr %s295, 2
      %s297 = scalar_lea.vmem %s6, %s296
      %s299 = smul.u32 %s23, 8
      %v300 = vld [vmem:[%s2] sm:$0x1]
      %v301 = vld [vmem:[%s3] sm:$0x1]
      %v302 = vld [vmem:[%s4] sm:$0x1]
      %s303 = smul.u32 %s299, 2
      %s304 = smul.addr %s303, 4
      %s305 = scalar_lea.vmem %s278, %s304
      %v306 = vld [vmem:[%s305] sm:$0xf]
      %v307 = vld [vmem:[%s305 + $0x4] sm:$0xf]
      %v308 = vld [vmem:[%s305 + $0x8] sm:$0xf]
      %v309 = vld [vmem:[%s305 + $0xc] sm:$0xf]
      %v310 = vld [vmem:[%s305 + $0x10] sm:$0xf]
      %v311 = vld [vmem:[%s305 + $0x14] sm:$0xf]
      %v312 = vld [vmem:[%s305 + $0x18] sm:$0xf]
      %v313 = vld [vmem:[%s305 + $0x1c] sm:$0xf]
      %v314 = vld [vmem:[%s305 + $0x20] sm:$0xf]
      %v315 = vld [vmem:[%s305 + $0x24] sm:$0xf]
      %v316 = vld [vmem:[%s305 + $0x28] sm:$0xf]
      %v317 = vld [vmem:[%s305 + $0x2c] sm:$0xf]
      %v318 = vld [vmem:[%s305 + $0x30] sm:$0xf]
      %v319 = vld [vmem:[%s305 + $0x34] sm:$0xf]
      %v320 = vld [vmem:[%s305 + $0x38] sm:$0xf]
      %v321 = vld [vmem:[%s305 + $0x3c] sm:$0xf]
      %v322 = vunpack.c.l.bf16 %v306
      %v323 = vunpack.c.l.bf16 %v307
      %v324 = vunpack.c.l.bf16 %v308
      %v325 = vunpack.c.l.bf16 %v309
      %v326 = vunpack.c.l.bf16 %v310
      %v327 = vunpack.c.l.bf16 %v311
      %v328 = vunpack.c.l.bf16 %v312
      %v329 = vunpack.c.l.bf16 %v313
      %v330 = vunpack.c.l.bf16 %v314
      %v331 = vunpack.c.l.bf16 %v315
      %v332 = vunpack.c.l.bf16 %v316
      %v333 = vunpack.c.l.bf16 %v317
      %v334 = vunpack.c.l.bf16 %v318
      %v335 = vunpack.c.l.bf16 %v319
      %v336 = vunpack.c.l.bf16 %v320
      %v337 = vunpack.c.l.bf16 %v321
      %v339 = vlaneseq
      %v340 = vshrl.u32 %v339, 7
      %v341 = vsub.s32 0, %v340
      %v342 = vrot.slane %v300, %v341
      %v344 = vmul.f32 %v322, %v342
      %v345 = vmul.f32 %v323, %v342
      %v346 = vmul.f32 %v324, %v342
      %v347 = vmul.f32 %v325, %v342
      %v348 = vmul.f32 %v326, %v342
      %v349 = vmul.f32 %v327, %v342
      %v350 = vmul.f32 %v328, %v342
      %v351 = vmul.f32 %v329, %v342
      %v352 = vmul.f32 %v330, %v342
      %v353 = vmul.f32 %v331, %v342
      %v354 = vmul.f32 %v332, %v342
      %v355 = vmul.f32 %v333, %v342
      %v356 = vmul.f32 %v334, %v342
      %v357 = vmul.f32 %v335, %v342
      %v358 = vmul.f32 %v336, %v342
      %v359 = vmul.f32 %v337, %v342
      %v361 = vlaneseq
      %v362 = vshrl.u32 %v361, 7
      %v363 = vsub.s32 0, %v362
      %v364 = vrot.slane %v301, %v363
      %v366 = vadd.f32 %v344, %v364
      %v367 = vadd.f32 %v345, %v364
      %v368 = vadd.f32 %v346, %v364
      %v369 = vadd.f32 %v347, %v364
      %v370 = vadd.f32 %v348, %v364
      %v371 = vadd.f32 %v349, %v364
      %v372 = vadd.f32 %v350, %v364
      %v373 = vadd.f32 %v351, %v364
      %v374 = vadd.f32 %v352, %v364
      %v375 = vadd.f32 %v353, %v364
      %v376 = vadd.f32 %v354, %v364
      %v377 = vadd.f32 %v355, %v364
      %v378 = vadd.f32 %v356, %v364
      %v379 = vadd.f32 %v357, %v364
      %v380 = vadd.f32 %v358, %v364
      %v381 = vadd.f32 %v359, %v364
      %v383 = vlaneseq
      %v384 = vshrl.u32 %v383, 7
      %v385 = vsub.s32 0, %v384
      %v386 = vrot.slane %v302, %v385
      %v388 = vmax.f32 %v366, %v386
      %v389 = vmax.f32 %v367, %v386
      %v390 = vmax.f32 %v368, %v386
      %v391 = vmax.f32 %v369, %v386
      %v392 = vmax.f32 %v370, %v386
      %v393 = vmax.f32 %v371, %v386
      %v394 = vmax.f32 %v372, %v386
      %v395 = vmax.f32 %v373, %v386
      %v396 = vmax.f32 %v374, %v386
      %v397 = vmax.f32 %v375, %v386
      %v398 = vmax.f32 %v376, %v386
      %v399 = vmax.f32 %v377, %v386
      %v400 = vmax.f32 %v378, %v386
      %v401 = vmax.f32 %v379, %v386
      %v402 = vmax.f32 %v380, %v386
      %v403 = vmax.f32 %v381, %v386
      %s404 = ssub.s32 %s299, 1
      %p405 = scmp.gt.s32.totalorder %s404, 0
      %s406 = scalar_select %p405, %s404, 0
      %s407 = smul.u32 %s406, 2
      %s408 = smul.addr %s407, 4
      %s409 = scalar_lea.vmem %s278, %s408
      %v410 = vld [vmem:[%s409] sm:$0xf]
      %v411 = vld [vmem:[%s409 + $0x4] sm:$0xf]
      %v412 = vunpack.c.l.bf16 %v410
      %v413 = vunpack.c.l.bf16 %v411
      %v414 = vmul.f32 %v412, %v342
      %v415 = vmul.f32 %v413, %v342
      %v416 = vadd.f32 %v414, %v364
      %v417 = vadd.f32 %v415, %v364
      %v418 = vmax.f32 %v416, %v386
      %v419 = vmax.f32 %v417, %v386
      %p420 = scmp.gt.s32.totalorder %s23, 0
      %s421 = scalar_select %p420, 1, 0
      %v422 = vstv %s421
      %vm423 = vcmp.eq.s32.totalorder %v422, 1
      %v424 = vsel %vm423, %v418, 0.0
      %v425 = vsel %vm423, %v419, 0.0
      %s426 = sadd.s32 %s299, 8
      %p427 = scmp.lt.s32.totalorder %s426, 15
      %s428 = scalar_select %p427, %s426, 15
      %s429 = smul.u32 %s428, 2
      %s430 = smul.addr %s429, 4
      %s431 = scalar_lea.vmem %s278, %s430
      %v432 = vld [vmem:[%s431] sm:$0xf]
      %v433 = vld [vmem:[%s431 + $0x4] sm:$0xf]
      %v434 = vunpack.c.l.bf16 %v432
      %v435 = vunpack.c.l.bf16 %v433
      %v436 = vmul.f32 %v434, %v342
      %v437 = vmul.f32 %v435, %v342
      %v438 = vadd.f32 %v436, %v364
      %v439 = vadd.f32 %v437, %v364
      %v440 = vmax.f32 %v438, %v386
      %v441 = vmax.f32 %v439, %v386
      %p442 = scmp.lt.s32.totalorder %s23, 1
      %s443 = scalar_select %p442, 1, 0
      %v444 = vstv %s443
      %vm445 = vcmp.eq.s32.totalorder %v444, 1
      %v446 = vsel %vm445, %v440, 0.0
      %v447 = vsel %vm445, %v441, 0.0
      %vm468 = vcmask 1040384
      %v469 = vrot.slane %v424, 7
      %v470 = vrot.slane %v425, 7
      %v471 = vsel %vm468, %v469, %v470
      %v472 = vrot.slane %v388, 7
      %v473 = vrot.slane %v389, 7
      %v474 = vsel %vm468, %v472, %v473
      %v475 = vrot.slane %v390, 7
      %v476 = vrot.slane %v391, 7
      %v477 = vsel %vm468, %v475, %v476
      %v478 = vrot.slane %v392, 7
      %v479 = vrot.slane %v393, 7
      %v480 = vsel %vm468, %v478, %v479
      %v481 = vrot.slane %v394, 7
      %v482 = vrot.slane %v395, 7
      %v483 = vsel %vm468, %v481, %v482
      %v484 = vrot.slane %v396, 7
      %v485 = vrot.slane %v397, 7
      %v486 = vsel %vm468, %v484, %v485
      %v487 = vrot.slane %v398, 7
      %v488 = vrot.slane %v399, 7
      %v489 = vsel %vm468, %v487, %v488
      %v490 = vrot.slane %v400, 7
      %v491 = vrot.slane %v401, 7
      %v492 = vsel %vm468, %v490, %v491
      %v493 = vrot.slane %v402, 7
      %v494 = vrot.slane %v403, 7
      %v495 = vsel %vm468, %v493, %v494
      %v496 = vrot.slane %v446, 7
      %v497 = vrot.slane %v447, 7
      %v498 = vsel %vm468, %v496, %v497
      %v529 = vsel %vm468, 0.0, %v469
      %v530 = vsel %vm468, 0.0, %v472
      %v531 = vsel %vm468, 0.0, %v475
      %v532 = vsel %vm468, 0.0, %v478
      %v533 = vsel %vm468, 0.0, %v481
      %v534 = vsel %vm468, 0.0, %v484
      %v535 = vsel %vm468, 0.0, %v487
      %v536 = vsel %vm468, 0.0, %v490
      %v537 = vsel %vm468, 0.0, %v493
      %v538 = vsel %vm468, 0.0, %v496
      %v539 = vsel %vm468, %v470, 0.0
      %v540 = vsel %vm468, %v473, 0.0
      %v541 = vsel %vm468, %v476, 0.0
      %v542 = vsel %vm468, %v479, 0.0
      %v543 = vsel %vm468, %v482, 0.0
      %v544 = vsel %vm468, %v485, 0.0
      %v545 = vsel %vm468, %v488, 0.0
      %v546 = vsel %vm468, %v491, 0.0
      %v547 = vsel %vm468, %v494, 0.0
      %v548 = vsel %vm468, %v497, 0.0
      %v549 = vpack.c.bf16 %v471, %v529
      %v550 = vpack.c.bf16 %v474, %v530
      %v551 = vpack.c.bf16 %v477, %v531
      %v552 = vpack.c.bf16 %v480, %v532
      %v553 = vpack.c.bf16 %v483, %v533
      %v554 = vpack.c.bf16 %v486, %v534
      %v555 = vpack.c.bf16 %v489, %v535
      %v556 = vpack.c.bf16 %v492, %v536
      %v557 = vld [vmem:[%s1] sm:$0xf]
      %v558 = vld [vmem:[%s1 + $0x4] sm:$0xf]
      %v559 = vld [vmem:[%s1 + $0x8] sm:$0xf]
      %v560 = vld [vmem:[%s1 + $0xc] sm:$0xf]
      %v561 = vld [vmem:[%s1 + $0x10] sm:$0xf]
      %v562 = vld [vmem:[%s1 + $0x14] sm:$0xf]
      %v563 = vld [vmem:[%s1 + $0x18] sm:$0xf]
      %v564 = vld [vmem:[%s1 + $0x1c] sm:$0xf]
      %v565 = vld [vmem:[%s1 + $0x20] sm:$0xf]
      %v566 = vld [vmem:[%s1 + $0x24] sm:$0xf]
      %v567 = vld [vmem:[%s1 + $0x28] sm:$0xf]
      %v568 = vld [vmem:[%s1 + $0x2c] sm:$0xf]
      %v569 = vld [vmem:[%s1 + $0x30] sm:$0xf]
      %v570 = vld [vmem:[%s1 + $0x34] sm:$0xf]
      %v571 = vld [vmem:[%s1 + $0x38] sm:$0xf]
      %v572 = vld [vmem:[%s1 + $0x3c] sm:$0xf]
      %v573 = vpack.c.bf16 %v495, %v537
      %s574 = scalar_lea.vmem %s1, 192
      %v575 = vld [vmem:[%s574] sm:$0xf]
      %v576 = vld [vmem:[%s574 + $0x4] sm:$0xf]
      %v577 = vld [vmem:[%s574 + $0x8] sm:$0xf]
      %v578 = vld [vmem:[%s574 + $0xc] sm:$0xf]
      %v579 = vld [vmem:[%s574 + $0x10] sm:$0xf]
      %v580 = vld [vmem:[%s574 + $0x14] sm:$0xf]
      %v581 = vld [vmem:[%s574 + $0x18] sm:$0xf]
      %v582 = vld [vmem:[%s574 + $0x1c] sm:$0xf]
      %v583 = vld [vmem:[%s574 + $0x20] sm:$0xf]
      %v584 = vld [vmem:[%s574 + $0x24] sm:$0xf]
      %v585 = vld [vmem:[%s574 + $0x28] sm:$0xf]
      %v586 = vld [vmem:[%s574 + $0x2c] sm:$0xf]
      %v587 = vld [vmem:[%s574 + $0x30] sm:$0xf]
      %v588 = vld [vmem:[%s574 + $0x34] sm:$0xf]
      %v589 = vld [vmem:[%s574 + $0x38] sm:$0xf]
      %v590 = vld [vmem:[%s574 + $0x3c] sm:$0xf]
      %v607 = vunpack.c.l.b16 %v575
      %v608 = vunpack.c.l.b16 %v576
      %v609 = vunpack.c.l.b16 %v577
      %v610 = vunpack.c.l.b16 %v578
      %v611 = vunpack.c.l.b16 %v579
      %v612 = vunpack.c.l.b16 %v580
      %v613 = vunpack.c.l.b16 %v581
      %v614 = vunpack.c.l.b16 %v582
      %v615 = vunpack.c.l.b16 %v583
      %v616 = vunpack.c.l.b16 %v584
      %v617 = vunpack.c.l.b16 %v585
      %v618 = vunpack.c.l.b16 %v586
      %v619 = vunpack.c.l.b16 %v587
      %v620 = vunpack.c.l.b16 %v588
      %v621 = vunpack.c.l.b16 %v589
      %v622 = vunpack.c.l.b16 %v590
      %v623 = vpack.c.b16 %v608, %v607
      %v624 = vpack.c.b16 %v610, %v609
      %v625 = vpack.c.b16 %v612, %v611
      %v626 = vpack.c.b16 %v614, %v613
      %v627 = vpack.c.b16 %v616, %v615
      %v628 = vpack.c.b16 %v618, %v617
      %v629 = vpack.c.b16 %v620, %v619
      %v630 = vpack.c.b16 %v622, %v621
      %639 = vmatprep.subr.bf16.mxu0 0
      %640 = vmatpush1.bf16.msra.mxu0 %v623
      %641 = vmatprep.subr.bf16.mxu0 0
      %642 = vmatpush1.bf16.msra.mxu0 %v624
      %643 = vmatprep.subr.bf16.mxu0 0
      %644 = vmatpush1.bf16.msra.mxu0 %v625
      %645 = vmatprep.subr.bf16.mxu0 0
      %646 = vmatpush1.bf16.msra.mxu0 %v626
      %647 = vmatprep.subr.bf16.mxu0 0
      %648 = vmatpush1.bf16.msra.mxu0 %v627
      %649 = vmatprep.subr.bf16.mxu0 0
      %650 = vmatpush1.bf16.msra.mxu0 %v628
      %651 = vmatprep.subr.bf16.mxu0 0
      %652 = vmatpush1.bf16.msra.mxu0 %v629
      %653 = vmatprep.subr.bf16.mxu0 0
      %654 = vmatpush1.bf16.msra.mxu0 %v630
      %655 = vmatprep.subr.bf16.mxu0 0
      %656 = vmatpush1.bf16.msra.mxu0 0
      %657 = vmatprep.subr.bf16.mxu0 0
      %658 = vmatpush1.bf16.msra.mxu0 0
      %659 = vmatprep.subr.bf16.mxu0 0
      %660 = vmatpush1.bf16.msra.mxu0 0
      %661 = vmatprep.subr.bf16.mxu0 0
      %662 = vmatpush1.bf16.msra.mxu0 0
      %663 = vmatprep.subr.bf16.mxu0 0
      %664 = vmatpush1.bf16.msra.mxu0 0
      %665 = vmatprep.subr.bf16.mxu0 0
      %666 = vmatpush1.bf16.msra.mxu0 0
      %667 = vmatprep.subr.bf16.mxu0 0
      %668 = vmatpush1.bf16.msra.mxu0 0
      %669 = vmatprep.subr.bf16.mxu0 0
      %670 = vmatpush1.bf16.msra.mxu0 0
      %671 = vmatprep.mubr.bf16.mxu0 0
      %672 = vmatmul.mubr.bf16.gmra.mrb[0].mxu0 %v550
      %v673 = vpop.f32.mrb[0].mxu0
      %v674 = vadd.f32 0.0, %v673
      %v675 = vpop.f32.mrb[0].mxu0
      %v676 = vpop.f32.mrb[0].mxu0
      %v677 = vadd.f32 0.0, %v676
      %v678 = vpop.f32.mrb[0].mxu0
      %679 = vmatprep.mubr.bf16.mxu0 0
      %680 = vmatmul.mubr.bf16.gmra.mrb[0].mxu0 %v551
      %v681 = vpop.f32.mrb[0].mxu0
      %v682 = vadd.f32 0.0, %v681
      %v683 = vpop.f32.mrb[0].mxu0
      %v684 = vpop.f32.mrb[0].mxu0
      %v685 = vadd.f32 0.0, %v684
      %v686 = vpop.f32.mrb[0].mxu0
      %687 = vmatprep.mubr.bf16.mxu0 0
      %688 = vmatmul.mubr.bf16.gmra.mrb[0].mxu0 %v552
      %v689 = vpop.f32.mrb[0].mxu0
      %v690 = vadd.f32 0.0, %v689
      %v691 = vpop.f32.mrb[0].mxu0
      %v692 = vpop.f32.mrb[0].mxu0
      %v693 = vadd.f32 0.0, %v692
      %v694 = vpop.f32.mrb[0].mxu0
      %695 = vmatprep.mubr.bf16.mxu0 0
      %696 = vmatmul.mubr.bf16.gmra.mrb[0].mxu0 %v553
      %v697 = vpop.f32.mrb[0].mxu0
      %v698 = vadd.f32 0.0, %v697
      %v699 = vpop.f32.mrb[0].mxu0
      %v700 = vpop.f32.mrb[0].mxu0
      %v701 = vadd.f32 0.0, %v700
      %v702 = vpop.f32.mrb[0].mxu0
      %703 = vmatprep.mubr.bf16.mxu0 0
      %704 = vmatmul.mubr.bf16.gmra.mrb[0].mxu0 %v554
      %v705 = vpop.f32.mrb[0].mxu0
      %v706 = vadd.f32 0.0, %v705
      %v707 = vpop.f32.mrb[0].mxu0
      %v708 = vpop.f32.mrb[0].mxu0
      %v709 = vadd.f32 0.0, %v708
      %v710 = vpop.f32.mrb[0].mxu0
      %711 = vmatprep.mubr.bf16.mxu0 0
      %712 = vmatmul.mubr.bf16.gmra.mrb[0].mxu0 %v555
      %v713 = vpop.f32.mrb[0].mxu0
      %v714 = vadd.f32 0.0, %v713
      %v715 = vpop.f32.mrb[0].mxu0
      %v716 = vpop.f32.mrb[0].mxu0
      %v717 = vadd.f32 0.0, %v716
      %v718 = vpop.f32.mrb[0].mxu0
      %719 = vmatprep.mubr.bf16.mxu0 0
      %720 = vmatmul.mubr.bf16.gmra.mrb[0].mxu0 %v556
      %v721 = vpop.f32.mrb[0].mxu0
      %v722 = vadd.f32 0.0, %v721
      %v723 = vpop.f32.mrb[0].mxu0
      %v724 = vpop.f32.mrb[0].mxu0
      %v725 = vadd.f32 0.0, %v724
      %v726 = vpop.f32.mrb[0].mxu0
      %727 = vmatprep.mubr.bf16.mxu0 0
      %728 = vmatmul.mubr.bf16.gmra.mrb[0].mxu0 %v573
      %v729 = vpop.f32.mrb[0].mxu0
      %v730 = vadd.f32 0.0, %v729
      %v731 = vpop.f32.mrb[0].mxu0
      %v732 = vpop.f32.mrb[0].mxu0
      %v733 = vadd.f32 0.0, %v732
      %v734 = vpop.f32.mrb[0].mxu0
      %735 = vdwg.mxu0
      %v752 = vunpack.c.l.b16 %v557
      %v753 = vunpack.c.l.b16 %v558
      %v754 = vunpack.c.l.b16 %v559
      %v755 = vunpack.c.l.b16 %v560
      %v756 = vunpack.c.l.b16 %v561
      %v757 = vunpack.c.l.b16 %v562
      %v758 = vunpack.c.l.b16 %v563
      %v759 = vunpack.c.l.b16 %v564
      %v760 = vunpack.c.l.b16 %v565
      %v761 = vunpack.c.l.b16 %v566
      %v762 = vunpack.c.l.b16 %v567
      %v763 = vunpack.c.l.b16 %v568
      %v764 = vunpack.c.l.b16 %v569
      %v765 = vunpack.c.l.b16 %v570
      %v766 = vunpack.c.l.b16 %v571
      %v767 = vunpack.c.l.b16 %v572
      %v768 = vpack.c.b16 %v753, %v752
      %v769 = vpack.c.b16 %v755, %v754
      %v770 = vpack.c.b16 %v757, %v756
      %v771 = vpack.c.b16 %v759, %v758
      %v772 = vpack.c.b16 %v761, %v760
      %v773 = vpack.c.b16 %v763, %v762
      %v774 = vpack.c.b16 %v765, %v764
      %v775 = vpack.c.b16 %v767, %v766
      %784 = vmatprep.subr.bf16.mxu0 0
      %785 = vmatpush1.bf16.msra.mxu0 %v768
      %786 = vmatprep.subr.bf16.mxu0 0
      %787 = vmatpush1.bf16.msra.mxu0 %v769
      %788 = vmatprep.subr.bf16.mxu0 0
      %789 = vmatpush1.bf16.msra.mxu0 %v770
      %790 = vmatprep.subr.bf16.mxu0 0
      %791 = vmatpush1.bf16.msra.mxu0 %v771
      %792 = vmatprep.subr.bf16.mxu0 0
      %793 = vmatpush1.bf16.msra.mxu0 %v772
      %794 = vmatprep.subr.bf16.mxu0 0
      %795 = vmatpush1.bf16.msra.mxu0 %v773
      %796 = vmatprep.subr.bf16.mxu0 0
      %797 = vmatpush1.bf16.msra.mxu0 %v774
      %798 = vmatprep.subr.bf16.mxu0 0
      %799 = vmatpush1.bf16.msra.mxu0 %v775
      %800 = vmatprep.subr.bf16.mxu0 0
      %801 = vmatpush1.bf16.msra.mxu0 0
      %802 = vmatprep.subr.bf16.mxu0 0
      %803 = vmatpush1.bf16.msra.mxu0 0
      %804 = vmatprep.subr.bf16.mxu0 0
      %805 = vmatpush1.bf16.msra.mxu0 0
      %806 = vmatprep.subr.bf16.mxu0 0
      %807 = vmatpush1.bf16.msra.mxu0 0
      %808 = vmatprep.subr.bf16.mxu0 0
      %809 = vmatpush1.bf16.msra.mxu0 0
      %810 = vmatprep.subr.bf16.mxu0 0
      %811 = vmatpush1.bf16.msra.mxu0 0
      %812 = vmatprep.subr.bf16.mxu0 0
      %813 = vmatpush1.bf16.msra.mxu0 0
      %814 = vmatprep.subr.bf16.mxu0 0
      %815 = vmatpush1.bf16.msra.mxu0 0
      %816 = vmatprep.mubr.bf16.mxu0 0
      %817 = vmatmul.mubr.bf16.gmra.mrb[0].mxu0 %v549
      %v818 = vpop.f32.mrb[0].mxu0
      %v819 = vadd.f32 %v674, %v818
      %v820 = vpop.f32.mrb[0].mxu0
      %v821 = vpop.f32.mrb[0].mxu0
      %v822 = vadd.f32 %v677, %v821
      %v823 = vpop.f32.mrb[0].mxu0
      %824 = vmatprep.mubr.bf16.mxu0 0
      %825 = vmatmul.mubr.bf16.gmra.mrb[0].mxu0 %v550
      %v826 = vpop.f32.mrb[0].mxu0
      %v827 = vadd.f32 %v682, %v826
      %v828 = vpop.f32.mrb[0].mxu0
      %v829 = vpop.f32.mrb[0].mxu0
      %v830 = vadd.f32 %v685, %v829
      %v831 = vpop.f32.mrb[0].mxu0
      %832 = vmatprep.mubr.bf16.mxu0 0
      %833 = vmatmul.mubr.bf16.gmra.mrb[0].mxu0 %v551
      %v834 = vpop.f32.mrb[0].mxu0
      %v835 = vadd.f32 %v690, %v834
      %v836 = vpop.f32.mrb[0].mxu0
      %v837 = vpop.f32.mrb[0].mxu0
      %v838 = vadd.f32 %v693, %v837
      %v839 = vpop.f32.mrb[0].mxu0
      %840 = vmatprep.mubr.bf16.mxu0 0
      %841 = vmatmul.mubr.bf16.gmra.mrb[0].mxu0 %v552
      %v842 = vpop.f32.mrb[0].mxu0
      %v843 = vadd.f32 %v698, %v842
      %v844 = vpop.f32.mrb[0].mxu0
      %v845 = vpop.f32.mrb[0].mxu0
      %v846 = vadd.f32 %v701, %v845
      %v847 = vpop.f32.mrb[0].mxu0
      %848 = vmatprep.mubr.bf16.mxu0 0
      %849 = vmatmul.mubr.bf16.gmra.mrb[0].mxu0 %v553
      %v850 = vpop.f32.mrb[0].mxu0
      %v851 = vadd.f32 %v706, %v850
      %v852 = vpop.f32.mrb[0].mxu0
      %v853 = vpop.f32.mrb[0].mxu0
      %v854 = vadd.f32 %v709, %v853
      %v855 = vpop.f32.mrb[0].mxu0
      %856 = vmatprep.mubr.bf16.mxu0 0
      %857 = vmatmul.mubr.bf16.gmra.mrb[0].mxu0 %v554
      %v858 = vpop.f32.mrb[0].mxu0
      %v859 = vadd.f32 %v714, %v858
      %v860 = vpop.f32.mrb[0].mxu0
      %v861 = vpop.f32.mrb[0].mxu0
      %v862 = vadd.f32 %v717, %v861
      %v863 = vpop.f32.mrb[0].mxu0
      %864 = vmatprep.mubr.bf16.mxu0 0
      %865 = vmatmul.mubr.bf16.gmra.mrb[0].mxu0 %v555
      %v866 = vpop.f32.mrb[0].mxu0
      %v867 = vadd.f32 %v722, %v866
      %v868 = vpop.f32.mrb[0].mxu0
      %v869 = vpop.f32.mrb[0].mxu0
      %v870 = vadd.f32 %v725, %v869
      %v871 = vpop.f32.mrb[0].mxu0
      %872 = vmatprep.mubr.bf16.mxu0 0
      %873 = vmatmul.mubr.bf16.gmra.mrb[0].mxu0 %v556
      %v874 = vpop.f32.mrb[0].mxu0
      %v875 = vadd.f32 %v730, %v874
      %v876 = vpop.f32.mrb[0].mxu0
      %v877 = vpop.f32.mrb[0].mxu0
      %v878 = vadd.f32 %v733, %v877
      %v879 = vpop.f32.mrb[0].mxu0
      %880 = vdwg.mxu0
      %v881 = vpack.c.bf16 %v498, %v538
      %s882 = scalar_lea.vmem %s1, 384
      %v883 = vld [vmem:[%s882] sm:$0xf]
      %v884 = vld [vmem:[%s882 + $0x4] sm:$0xf]
      %v885 = vld [vmem:[%s882 + $0x8] sm:$0xf]
      %v886 = vld [vmem:[%s882 + $0xc] sm:$0xf]
      %v887 = vld [vmem:[%s882 + $0x10] sm:$0xf]
      %v888 = vld [vmem:[%s882 + $0x14] sm:$0xf]
      %v889 = vld [vmem:[%s882 + $0x18] sm:$0xf]
      %v890 = vld [vmem:[%s882 + $0x1c] sm:$0xf]
      %v891 = vld [vmem:[%s882 + $0x20] sm:$0xf]
      %v892 = vld [vmem:[%s882 + $0x24] sm:$0xf]
      %v893 = vld [vmem:[%s882 + $0x28] sm:$0xf]
      %v894 = vld [vmem:[%s882 + $0x2c] sm:$0xf]
      %v895 = vld [vmem:[%s882 + $0x30] sm:$0xf]
      %v896 = vld [vmem:[%s882 + $0x34] sm:$0xf]
      %v897 = vld [vmem:[%s882 + $0x38] sm:$0xf]
      %v898 = vld [vmem:[%s882 + $0x3c] sm:$0xf]
      %v915 = vunpack.c.l.b16 %v883
      %v916 = vunpack.c.l.b16 %v884
      %v917 = vunpack.c.l.b16 %v885
      %v918 = vunpack.c.l.b16 %v886
      %v919 = vunpack.c.l.b16 %v887
      %v920 = vunpack.c.l.b16 %v888
      %v921 = vunpack.c.l.b16 %v889
      %v922 = vunpack.c.l.b16 %v890
      %v923 = vunpack.c.l.b16 %v891
      %v924 = vunpack.c.l.b16 %v892
      %v925 = vunpack.c.l.b16 %v893
      %v926 = vunpack.c.l.b16 %v894
      %v927 = vunpack.c.l.b16 %v895
      %v928 = vunpack.c.l.b16 %v896
      %v929 = vunpack.c.l.b16 %v897
      %v930 = vunpack.c.l.b16 %v898
      %v931 = vpack.c.b16 %v916, %v915
      %v932 = vpack.c.b16 %v918, %v917
      %v933 = vpack.c.b16 %v920, %v919
      %v934 = vpack.c.b16 %v922, %v921
      %v935 = vpack.c.b16 %v924, %v923
      %v936 = vpack.c.b16 %v926, %v925
      %v937 = vpack.c.b16 %v928, %v927
      %v938 = vpack.c.b16 %v930, %v929
      %947 = vmatprep.subr.bf16.mxu0 0
      %948 = vmatpush1.bf16.msra.mxu0 %v931
      %949 = vmatprep.subr.bf16.mxu0 0
      %950 = vmatpush1.bf16.msra.mxu0 %v932
      %951 = vmatprep.subr.bf16.mxu0 0
      %952 = vmatpush1.bf16.msra.mxu0 %v933
      %953 = vmatprep.subr.bf16.mxu0 0
      %954 = vmatpush1.bf16.msra.mxu0 %v934
      %955 = vmatprep.subr.bf16.mxu0 0
      %956 = vmatpush1.bf16.msra.mxu0 %v935
      %957 = vmatprep.subr.bf16.mxu0 0
      %958 = vmatpush1.bf16.msra.mxu0 %v936
      %959 = vmatprep.subr.bf16.mxu0 0
      %960 = vmatpush1.bf16.msra.mxu0 %v937
      %961 = vmatprep.subr.bf16.mxu0 0
      %962 = vmatpush1.bf16.msra.mxu0 %v938
      %963 = vmatprep.subr.bf16.mxu0 0
      %964 = vmatpush1.bf16.msra.mxu0 0
      %965 = vmatprep.subr.bf16.mxu0 0
      %966 = vmatpush1.bf16.msra.mxu0 0
      %967 = vmatprep.subr.bf16.mxu0 0
      %968 = vmatpush1.bf16.msra.mxu0 0
      %969 = vmatprep.subr.bf16.mxu0 0
      %970 = vmatpush1.bf16.msra.mxu0 0
      %971 = vmatprep.subr.bf16.mxu0 0
      %972 = vmatpush1.bf16.msra.mxu0 0
      %973 = vmatprep.subr.bf16.mxu0 0
      %974 = vmatpush1.bf16.msra.mxu0 0
      %975 = vmatprep.subr.bf16.mxu0 0
      %976 = vmatpush1.bf16.msra.mxu0 0
      %977 = vmatprep.subr.bf16.mxu0 0
      %978 = vmatpush1.bf16.msra.mxu0 0
      %979 = vmatprep.mubr.bf16.mxu0 0
      %980 = vmatmul.mubr.bf16.gmra.mrb[0].mxu0 %v551
      %v981 = vpop.f32.mrb[0].mxu0
      %v982 = vadd.f32 0.0, %v981
      %v983 = vpop.f32.mrb[0].mxu0
      %v984 = vpop.f32.mrb[0].mxu0
      %v985 = vadd.f32 0.0, %v984
      %v986 = vpop.f32.mrb[0].mxu0
      %987 = vmatprep.mubr.bf16.mxu0 0
      %988 = vmatmul.mubr.bf16.gmra.mrb[0].mxu0 %v552
      %v989 = vpop.f32.mrb[0].mxu0
      %v990 = vadd.f32 0.0, %v989
      %v991 = vpop.f32.mrb[0].mxu0
      %v992 = vpop.f32.mrb[0].mxu0
      %v993 = vadd.f32 0.0, %v992
      %v994 = vpop.f32.mrb[0].mxu0
      %995 = vmatprep.mubr.bf16.mxu0 0
      %996 = vmatmul.mubr.bf16.gmra.mrb[0].mxu0 %v553
      %v997 = vpop.f32.mrb[0].mxu0
      %v998 = vadd.f32 0.0, %v997
      %v999 = vpop.f32.mrb[0].mxu0
      %v1000 = vpop.f32.mrb[0].mxu0
      %v1001 = vadd.f32 0.0, %v1000
      %v1002 = vpop.f32.mrb[0].mxu0
      %1003 = vmatprep.mubr.bf16.mxu0 0
      %1004 = vmatmul.mubr.bf16.gmra.mrb[0].mxu0 %v554
      %v1005 = vpop.f32.mrb[0].mxu0
      %v1006 = vadd.f32 0.0, %v1005
      %v1007 = vpop.f32.mrb[0].mxu0
      %v1008 = vpop.f32.mrb[0].mxu0
      %v1009 = vadd.f32 0.0, %v1008
      %v1010 = vpop.f32.mrb[0].mxu0
      %1011 = vmatprep.mubr.bf16.mxu0 0
      %1012 = vmatmul.mubr.bf16.gmra.mrb[0].mxu0 %v555
      %v1013 = vpop.f32.mrb[0].mxu0
      %v1014 = vadd.f32 0.0, %v1013
      %v1015 = vpop.f32.mrb[0].mxu0
      %v1016 = vpop.f32.mrb[0].mxu0
      %v1017 = vadd.f32 0.0, %v1016
      %v1018 = vpop.f32.mrb[0].mxu0
      %1019 = vmatprep.mubr.bf16.mxu0 0
      %1020 = vmatmul.mubr.bf16.gmra.mrb[0].mxu0 %v556
      %v1021 = vpop.f32.mrb[0].mxu0
      %v1022 = vadd.f32 0.0, %v1021
      %v1023 = vpop.f32.mrb[0].mxu0
      %v1024 = vpop.f32.mrb[0].mxu0
      %v1025 = vadd.f32 0.0, %v1024
      %v1026 = vpop.f32.mrb[0].mxu0
      %1027 = vmatprep.mubr.bf16.mxu0 0
      %1028 = vmatmul.mubr.bf16.gmra.mrb[0].mxu0 %v573
      %v1029 = vpop.f32.mrb[0].mxu0
      %v1030 = vadd.f32 0.0, %v1029
      %v1031 = vpop.f32.mrb[0].mxu0
      %v1032 = vpop.f32.mrb[0].mxu0
      %v1033 = vadd.f32 0.0, %v1032
      %v1034 = vpop.f32.mrb[0].mxu0
      %1035 = vmatprep.mubr.bf16.mxu0 0
      %1036 = vmatmul.mubr.bf16.gmra.mrb[0].mxu0 %v881
      %v1037 = vpop.f32.mrb[0].mxu0
      %v1038 = vadd.f32 0.0, %v1037
      %v1039 = vpop.f32.mrb[0].mxu0
      %v1040 = vpop.f32.mrb[0].mxu0
      %v1041 = vadd.f32 0.0, %v1040
      %v1042 = vpop.f32.mrb[0].mxu0
      %1043 = vdwg.mxu0
      %v1044 = vadd.f32 %v819, %v982
      %v1045 = vadd.f32 %v822, %v985
      %v1046 = vadd.f32 %v827, %v990
      %v1047 = vadd.f32 %v830, %v993
      %v1048 = vadd.f32 %v835, %v998
      %v1049 = vadd.f32 %v838, %v1001
      %v1050 = vadd.f32 %v843, %v1006
      %v1051 = vadd.f32 %v846, %v1009
      %v1052 = vadd.f32 %v851, %v1014
      %v1053 = vadd.f32 %v854, %v1017
      %v1054 = vadd.f32 %v859, %v1022
      %v1055 = vadd.f32 %v862, %v1025
      %v1056 = vadd.f32 %v867, %v1030
      %v1057 = vadd.f32 %v870, %v1033
      %v1058 = vadd.f32 %v875, %v1038
      %v1059 = vadd.f32 %v878, %v1041
      %vm1080 = vcmask 1046528
      %v1081 = vrot.slane %v529, 1
      %v1082 = vrot.slane %v471, 1
      %v1083 = vsel %vm1080, %v1081, %v1082
      %v1084 = vrot.slane %v539, 1
      %v1085 = vsel %vm1080, %v1082, %v1084
      %v1086 = vrot.slane %v530, 1
      %v1087 = vrot.slane %v474, 1
      %v1088 = vsel %vm1080, %v1086, %v1087
      %v1089 = vrot.slane %v540, 1
      %v1090 = vsel %vm1080, %v1087, %v1089
      %v1091 = vrot.slane %v531, 1
      %v1092 = vrot.slane %v477, 1
      %v1093 = vsel %vm1080, %v1091, %v1092
      %v1094 = vrot.slane %v541, 1
      %v1095 = vsel %vm1080, %v1092, %v1094
      %v1096 = vrot.slane %v532, 1
      %v1097 = vrot.slane %v480, 1
      %v1098 = vsel %vm1080, %v1096, %v1097
      %v1099 = vrot.slane %v542, 1
      %v1100 = vsel %vm1080, %v1097, %v1099
      %v1101 = vrot.slane %v533, 1
      %v1102 = vrot.slane %v483, 1
      %v1103 = vsel %vm1080, %v1101, %v1102
      %v1104 = vrot.slane %v543, 1
      %v1105 = vsel %vm1080, %v1102, %v1104
      %v1106 = vrot.slane %v534, 1
      %v1107 = vrot.slane %v486, 1
      %v1108 = vsel %vm1080, %v1106, %v1107
      %v1109 = vrot.slane %v544, 1
      %v1110 = vsel %vm1080, %v1107, %v1109
      %v1111 = vrot.slane %v535, 1
      %v1112 = vrot.slane %v489, 1
      %v1113 = vsel %vm1080, %v1111, %v1112
      %v1114 = vrot.slane %v545, 1
      %v1115 = vsel %vm1080, %v1112, %v1114
      %v1116 = vrot.slane %v536, 1
      %v1117 = vrot.slane %v492, 1
      %v1118 = vsel %vm1080, %v1116, %v1117
      %v1119 = vrot.slane %v546, 1
      %v1120 = vsel %vm1080, %v1117, %v1119
      %v1121 = vrot.slane %v537, 1
      %v1122 = vrot.slane %v495, 1
      %v1123 = vsel %vm1080, %v1121, %v1122
      %v1124 = vrot.slane %v547, 1
      %v1125 = vsel %vm1080, %v1122, %v1124
      %v1126 = vrot.slane %v538, 1
      %v1127 = vrot.slane %v498, 1
      %v1128 = vsel %vm1080, %v1126, %v1127
      %v1129 = vrot.slane %v548, 1
      %v1130 = vsel %vm1080, %v1127, %v1129
      %v1151 = vpack.c.bf16 %v1085, %v1083
      %v1152 = vpack.c.bf16 %v1090, %v1088
      %v1153 = vpack.c.bf16 %v1095, %v1093
      %v1154 = vpack.c.bf16 %v1100, %v1098
      %v1155 = vpack.c.bf16 %v1105, %v1103
      %v1156 = vpack.c.bf16 %v1110, %v1108
      %v1157 = vpack.c.bf16 %v1115, %v1113
      %v1158 = vpack.c.bf16 %v1120, %v1118
      %s1159 = scalar_lea.vmem %s1, 64
      %v1160 = vld [vmem:[%s1159] sm:$0xf]
      %v1161 = vld [vmem:[%s1159 + $0x4] sm:$0xf]
      %v1162 = vld [vmem:[%s1159 + $0x8] sm:$0xf]
      %v1163 = vld [vmem:[%s1159 + $0xc] sm:$0xf]
      %v1164 = vld [vmem:[%s1159 + $0x10] sm:$0xf]
      %v1165 = vld [vmem:[%s1159 + $0x14] sm:$0xf]
      %v1166 = vld [vmem:[%s1159 + $0x18] sm:$0xf]
      %v1167 = vld [vmem:[%s1159 + $0x1c] sm:$0xf]
      %v1168 = vld [vmem:[%s1159 + $0x20] sm:$0xf]
      %v1169 = vld [vmem:[%s1159 + $0x24] sm:$0xf]
      %v1170 = vld [vmem:[%s1159 + $0x28] sm:$0xf]
      %v1171 = vld [vmem:[%s1159 + $0x2c] sm:$0xf]
      %v1172 = vld [vmem:[%s1159 + $0x30] sm:$0xf]
      %v1173 = vld [vmem:[%s1159 + $0x34] sm:$0xf]
      %v1174 = vld [vmem:[%s1159 + $0x38] sm:$0xf]
      %v1175 = vld [vmem:[%s1159 + $0x3c] sm:$0xf]
      %v1192 = vunpack.c.l.b16 %v1160
      %v1193 = vunpack.c.l.b16 %v1161
      %v1194 = vunpack.c.l.b16 %v1162
      %v1195 = vunpack.c.l.b16 %v1163
      %v1196 = vunpack.c.l.b16 %v1164
      %v1197 = vunpack.c.l.b16 %v1165
      %v1198 = vunpack.c.l.b16 %v1166
      %v1199 = vunpack.c.l.b16 %v1167
      %v1200 = vunpack.c.l.b16 %v1168
      %v1201 = vunpack.c.l.b16 %v1169
      %v1202 = vunpack.c.l.b16 %v1170
      %v1203 = vunpack.c.l.b16 %v1171
      %v1204 = vunpack.c.l.b16 %v1172
      %v1205 = vunpack.c.l.b16 %v1173
      %v1206 = vunpack.c.l.b16 %v1174
      %v1207 = vunpack.c.l.b16 %v1175
      %v1208 = vpack.c.b16 %v1193, %v1192
      %v1209 = vpack.c.b16 %v1195, %v1194
      %v1210 = vpack.c.b16 %v1197, %v1196
      %v1211 = vpack.c.b16 %v1199, %v1198
      %v1212 = vpack.c.b16 %v1201, %v1200
      %v1213 = vpack.c.b16 %v1203, %v1202
      %v1214 = vpack.c.b16 %v1205, %v1204
      %v1215 = vpack.c.b16 %v1207, %v1206
      %1224 = vmatprep.subr.bf16.mxu0 0
      %1225 = vmatpush1.bf16.msra.mxu0 %v1208
      %1226 = vmatprep.subr.bf16.mxu0 0
      %1227 = vmatpush1.bf16.msra.mxu0 %v1209
      %1228 = vmatprep.subr.bf16.mxu0 0
      %1229 = vmatpush1.bf16.msra.mxu0 %v1210
      %1230 = vmatprep.subr.bf16.mxu0 0
      %1231 = vmatpush1.bf16.msra.mxu0 %v1211
      %1232 = vmatprep.subr.bf16.mxu0 0
      %1233 = vmatpush1.bf16.msra.mxu0 %v1212
      %1234 = vmatprep.subr.bf16.mxu0 0
      %1235 = vmatpush1.bf16.msra.mxu0 %v1213
      %1236 = vmatprep.subr.bf16.mxu0 0
      %1237 = vmatpush1.bf16.msra.mxu0 %v1214
      %1238 = vmatprep.subr.bf16.mxu0 0
      %1239 = vmatpush1.bf16.msra.mxu0 %v1215
      %1240 = vmatprep.subr.bf16.mxu0 0
      %1241 = vmatpush1.bf16.msra.mxu0 0
      %1242 = vmatprep.subr.bf16.mxu0 0
      %1243 = vmatpush1.bf16.msra.mxu0 0
      %1244 = vmatprep.subr.bf16.mxu0 0
      %1245 = vmatpush1.bf16.msra.mxu0 0
      %1246 = vmatprep.subr.bf16.mxu0 0
      %1247 = vmatpush1.bf16.msra.mxu0 0
      %1248 = vmatprep.subr.bf16.mxu0 0
      %1249 = vmatpush1.bf16.msra.mxu0 0
      %1250 = vmatprep.subr.bf16.mxu0 0
      %1251 = vmatpush1.bf16.msra.mxu0 0
      %1252 = vmatprep.subr.bf16.mxu0 0
      %1253 = vmatpush1.bf16.msra.mxu0 0
      %1254 = vmatprep.subr.bf16.mxu0 0
      %1255 = vmatpush1.bf16.msra.mxu0 0
      %1256 = vmatprep.mubr.bf16.mxu0 0
      %1257 = vmatmul.mubr.bf16.gmra.mrb[0].mxu0 %v1151
      %v1258 = vpop.f32.mrb[0].mxu0
      %v1259 = vadd.f32 0.0, %v1258
      %v1260 = vpop.f32.mrb[0].mxu0
      %v1261 = vpop.f32.mrb[0].mxu0
      %v1262 = vadd.f32 0.0, %v1261
      %v1263 = vpop.f32.mrb[0].mxu0
      %1264 = vmatprep.mubr.bf16.mxu0 0
      %1265 = vmatmul.mubr.bf16.gmra.mrb[0].mxu0 %v1152
      %v1266 = vpop.f32.mrb[0].mxu0
      %v1267 = vadd.f32 0.0, %v1266
      %v1268 = vpop.f32.mrb[0].mxu0
      %v1269 = vpop.f32.mrb[0].mxu0
      %v1270 = vadd.f32 0.0, %v1269
      %v1271 = vpop.f32.mrb[0].mxu0
      %1272 = vmatprep.mubr.bf16.mxu0 0
      %1273 = vmatmul.mubr.bf16.gmra.mrb[0].mxu0 %v1153
      %v1274 = vpop.f32.mrb[0].mxu0
      %v1275 = vadd.f32 0.0, %v1274
      %v1276 = vpop.f32.mrb[0].mxu0
      %v1277 = vpop.f32.mrb[0].mxu0
      %v1278 = vadd.f32 0.0, %v1277
      %v1279 = vpop.f32.mrb[0].mxu0
      %1280 = vmatprep.mubr.bf16.mxu0 0
      %1281 = vmatmul.mubr.bf16.gmra.mrb[0].mxu0 %v1154
      %v1282 = vpop.f32.mrb[0].mxu0
      %v1283 = vadd.f32 0.0, %v1282
      %v1284 = vpop.f32.mrb[0].mxu0
      %v1285 = vpop.f32.mrb[0].mxu0
      %v1286 = vadd.f32 0.0, %v1285
      %v1287 = vpop.f32.mrb[0].mxu0
      %1288 = vmatprep.mubr.bf16.mxu0 0
      %1289 = vmatmul.mubr.bf16.gmra.mrb[0].mxu0 %v1155
      %v1290 = vpop.f32.mrb[0].mxu0
      %v1291 = vadd.f32 0.0, %v1290
      %v1292 = vpop.f32.mrb[0].mxu0
      %v1293 = vpop.f32.mrb[0].mxu0
      %v1294 = vadd.f32 0.0, %v1293
      %v1295 = vpop.f32.mrb[0].mxu0
      %1296 = vmatprep.mubr.bf16.mxu0 0
      %1297 = vmatmul.mubr.bf16.gmra.mrb[0].mxu0 %v1156
      %v1298 = vpop.f32.mrb[0].mxu0
      %v1299 = vadd.f32 0.0, %v1298
      %v1300 = vpop.f32.mrb[0].mxu0
      %v1301 = vpop.f32.mrb[0].mxu0
      %v1302 = vadd.f32 0.0, %v1301
      %v1303 = vpop.f32.mrb[0].mxu0
      %1304 = vmatprep.mubr.bf16.mxu0 0
      %1305 = vmatmul.mubr.bf16.gmra.mrb[0].mxu0 %v1157
      %v1306 = vpop.f32.mrb[0].mxu0
      %v1307 = vadd.f32 0.0, %v1306
      %v1308 = vpop.f32.mrb[0].mxu0
      %v1309 = vpop.f32.mrb[0].mxu0
      %v1310 = vadd.f32 0.0, %v1309
      %v1311 = vpop.f32.mrb[0].mxu0
      %1312 = vmatprep.mubr.bf16.mxu0 0
      %1313 = vmatmul.mubr.bf16.gmra.mrb[0].mxu0 %v1158
      %v1314 = vpop.f32.mrb[0].mxu0
      %v1315 = vadd.f32 0.0, %v1314
      %v1316 = vpop.f32.mrb[0].mxu0
      %v1317 = vpop.f32.mrb[0].mxu0
      %v1318 = vadd.f32 0.0, %v1317
      %v1319 = vpop.f32.mrb[0].mxu0
      %1320 = vdwg.mxu0
      %v1321 = vadd.f32 %v1044, %v1259
      %v1322 = vadd.f32 %v1045, %v1262
      %v1323 = vadd.f32 %v1046, %v1267
      %v1324 = vadd.f32 %v1047, %v1270
      %v1325 = vadd.f32 %v1048, %v1275
      %v1326 = vadd.f32 %v1049, %v1278
      %v1327 = vadd.f32 %v1050, %v1283
      %v1328 = vadd.f32 %v1051, %v1286
      %v1329 = vadd.f32 %v1052, %v1291
      %v1330 = vadd.f32 %v1053, %v1294
      %v1331 = vadd.f32 %v1054, %v1299
      %v1332 = vadd.f32 %v1055, %v1302
      %v1333 = vadd.f32 %v1056, %v1307
      %v1334 = vadd.f32 %v1057, %v1310
      %v1335 = vadd.f32 %v1058, %v1315
      %v1336 = vadd.f32 %v1059, %v1318
      %v1337 = vpack.c.bf16 %v1125, %v1123
      %s1338 = scalar_lea.vmem %s1, 256
      %v1339 = vld [vmem:[%s1338] sm:$0xf]
      %v1340 = vld [vmem:[%s1338 + $0x4] sm:$0xf]
      %v1341 = vld [vmem:[%s1338 + $0x8] sm:$0xf]
      %v1342 = vld [vmem:[%s1338 + $0xc] sm:$0xf]
      %v1343 = vld [vmem:[%s1338 + $0x10] sm:$0xf]
      %v1344 = vld [vmem:[%s1338 + $0x14] sm:$0xf]
      %v1345 = vld [vmem:[%s1338 + $0x18] sm:$0xf]
      %v1346 = vld [vmem:[%s1338 + $0x1c] sm:$0xf]
      %v1347 = vld [vmem:[%s1338 + $0x20] sm:$0xf]
      %v1348 = vld [vmem:[%s1338 + $0x24] sm:$0xf]
      %v1349 = vld [vmem:[%s1338 + $0x28] sm:$0xf]
      %v1350 = vld [vmem:[%s1338 + $0x2c] sm:$0xf]
      %v1351 = vld [vmem:[%s1338 + $0x30] sm:$0xf]
      %v1352 = vld [vmem:[%s1338 + $0x34] sm:$0xf]
      %v1353 = vld [vmem:[%s1338 + $0x38] sm:$0xf]
      %v1354 = vld [vmem:[%s1338 + $0x3c] sm:$0xf]
      %v1371 = vunpack.c.l.b16 %v1339
      %v1372 = vunpack.c.l.b16 %v1340
      %v1373 = vunpack.c.l.b16 %v1341
      %v1374 = vunpack.c.l.b16 %v1342
      %v1375 = vunpack.c.l.b16 %v1343
      %v1376 = vunpack.c.l.b16 %v1344
      %v1377 = vunpack.c.l.b16 %v1345
      %v1378 = vunpack.c.l.b16 %v1346
      %v1379 = vunpack.c.l.b16 %v1347
      %v1380 = vunpack.c.l.b16 %v1348
      %v1381 = vunpack.c.l.b16 %v1349
      %v1382 = vunpack.c.l.b16 %v1350
      %v1383 = vunpack.c.l.b16 %v1351
      %v1384 = vunpack.c.l.b16 %v1352
      %v1385 = vunpack.c.l.b16 %v1353
      %v1386 = vunpack.c.l.b16 %v1354
      %v1387 = vpack.c.b16 %v1372, %v1371
      %v1388 = vpack.c.b16 %v1374, %v1373
      %v1389 = vpack.c.b16 %v1376, %v1375
      %v1390 = vpack.c.b16 %v1378, %v1377
      %v1391 = vpack.c.b16 %v1380, %v1379
      %v1392 = vpack.c.b16 %v1382, %v1381
      %v1393 = vpack.c.b16 %v1384, %v1383
      %v1394 = vpack.c.b16 %v1386, %v1385
      %1403 = vmatprep.subr.bf16.mxu0 0
      %1404 = vmatpush1.bf16.msra.mxu0 %v1387
      %1405 = vmatprep.subr.bf16.mxu0 0
      %1406 = vmatpush1.bf16.msra.mxu0 %v1388
      %1407 = vmatprep.subr.bf16.mxu0 0
      %1408 = vmatpush1.bf16.msra.mxu0 %v1389
      %1409 = vmatprep.subr.bf16.mxu0 0
      %1410 = vmatpush1.bf16.msra.mxu0 %v1390
      %1411 = vmatprep.subr.bf16.mxu0 0
      %1412 = vmatpush1.bf16.msra.mxu0 %v1391
      %1413 = vmatprep.subr.bf16.mxu0 0
      %1414 = vmatpush1.bf16.msra.mxu0 %v1392
      %1415 = vmatprep.subr.bf16.mxu0 0
      %1416 = vmatpush1.bf16.msra.mxu0 %v1393
      %1417 = vmatprep.subr.bf16.mxu0 0
      %1418 = vmatpush1.bf16.msra.mxu0 %v1394
      %1419 = vmatprep.subr.bf16.mxu0 0
      %1420 = vmatpush1.bf16.msra.mxu0 0
      %1421 = vmatprep.subr.bf16.mxu0 0
      %1422 = vmatpush1.bf16.msra.mxu0 0
      %1423 = vmatprep.subr.bf16.mxu0 0
      %1424 = vmatpush1.bf16.msra.mxu0 0
      %1425 = vmatprep.subr.bf16.mxu0 0
      %1426 = vmatpush1.bf16.msra.mxu0 0
      %1427 = vmatprep.subr.bf16.mxu0 0
      %1428 = vmatpush1.bf16.msra.mxu0 0
      %1429 = vmatprep.subr.bf16.mxu0 0
      %1430 = vmatpush1.bf16.msra.mxu0 0
      %1431 = vmatprep.subr.bf16.mxu0 0
      %1432 = vmatpush1.bf16.msra.mxu0 0
      %1433 = vmatprep.subr.bf16.mxu0 0
      %1434 = vmatpush1.bf16.msra.mxu0 0
      %1435 = vmatprep.mubr.bf16.mxu0 0
      %1436 = vmatmul.mubr.bf16.gmra.mrb[0].mxu0 %v1152
      %v1437 = vpop.f32.mrb[0].mxu0
      %v1438 = vadd.f32 0.0, %v1437
      %v1439 = vpop.f32.mrb[0].mxu0
      %v1440 = vpop.f32.mrb[0].mxu0
      %v1441 = vadd.f32 0.0, %v1440
      %v1442 = vpop.f32.mrb[0].mxu0
      %1443 = vmatprep.mubr.bf16.mxu0 0
      %1444 = vmatmul.mubr.bf16.gmra.mrb[0].mxu0 %v1153
      %v1445 = vpop.f32.mrb[0].mxu0
      %v1446 = vadd.f32 0.0, %v1445
      %v1447 = vpop.f32.mrb[0].mxu0
      %v1448 = vpop.f32.mrb[0].mxu0
      %v1449 = vadd.f32 0.0, %v1448
      %v1450 = vpop.f32.mrb[0].mxu0
      %1451 = vmatprep.mubr.bf16.mxu0 0
      %1452 = vmatmul.mubr.bf16.gmra.mrb[0].mxu0 %v1154
      %v1453 = vpop.f32.mrb[0].mxu0
      %v1454 = vadd.f32 0.0, %v1453
      %v1455 = vpop.f32.mrb[0].mxu0
      %v1456 = vpop.f32.mrb[0].mxu0
      %v1457 = vadd.f32 0.0, %v1456
      %v1458 = vpop.f32.mrb[0].mxu0
      %1459 = vmatprep.mubr.bf16.mxu0 0
      %1460 = vmatmul.mubr.bf16.gmra.mrb[0].mxu0 %v1155
      %v1461 = vpop.f32.mrb[0].mxu0
      %v1462 = vadd.f32 0.0, %v1461
      %v1463 = vpop.f32.mrb[0].mxu0
      %v1464 = vpop.f32.mrb[0].mxu0
      %v1465 = vadd.f32 0.0, %v1464
      %v1466 = vpop.f32.mrb[0].mxu0
      %1467 = vmatprep.mubr.bf16.mxu0 0
      %1468 = vmatmul.mubr.bf16.gmra.mrb[0].mxu0 %v1156
      %v1469 = vpop.f32.mrb[0].mxu0
      %v1470 = vadd.f32 0.0, %v1469
      %v1471 = vpop.f32.mrb[0].mxu0
      %v1472 = vpop.f32.mrb[0].mxu0
      %v1473 = vadd.f32 0.0, %v1472
      %v1474 = vpop.f32.mrb[0].mxu0
      %1475 = vmatprep.mubr.bf16.mxu0 0
      %1476 = vmatmul.mubr.bf16.gmra.mrb[0].mxu0 %v1157
      %v1477 = vpop.f32.mrb[0].mxu0
      %v1478 = vadd.f32 0.0, %v1477
      %v1479 = vpop.f32.mrb[0].mxu0
      %v1480 = vpop.f32.mrb[0].mxu0
      %v1481 = vadd.f32 0.0, %v1480
      %v1482 = vpop.f32.mrb[0].mxu0
      %1483 = vmatprep.mubr.bf16.mxu0 0
      %1484 = vmatmul.mubr.bf16.gmra.mrb[0].mxu0 %v1158
      %v1485 = vpop.f32.mrb[0].mxu0
      %v1486 = vadd.f32 0.0, %v1485
      %v1487 = vpop.f32.mrb[0].mxu0
      %v1488 = vpop.f32.mrb[0].mxu0
      %v1489 = vadd.f32 0.0, %v1488
      %v1490 = vpop.f32.mrb[0].mxu0
      %1491 = vmatprep.mubr.bf16.mxu0 0
      %1492 = vmatmul.mubr.bf16.gmra.mrb[0].mxu0 %v1337
      %v1493 = vpop.f32.mrb[0].mxu0
      %v1494 = vadd.f32 0.0, %v1493
      %v1495 = vpop.f32.mrb[0].mxu0
      %v1496 = vpop.f32.mrb[0].mxu0
      %v1497 = vadd.f32 0.0, %v1496
      %v1498 = vpop.f32.mrb[0].mxu0
      %1499 = vdwg.mxu0
      %v1500 = vadd.f32 %v1321, %v1438
      %v1501 = vadd.f32 %v1322, %v1441
      %v1502 = vadd.f32 %v1323, %v1446
      %v1503 = vadd.f32 %v1324, %v1449
      %v1504 = vadd.f32 %v1325, %v1454
      %v1505 = vadd.f32 %v1326, %v1457
      %v1506 = vadd.f32 %v1327, %v1462
      %v1507 = vadd.f32 %v1328, %v1465
      %v1508 = vadd.f32 %v1329, %v1470
      %v1509 = vadd.f32 %v1330, %v1473
      %v1510 = vadd.f32 %v1331, %v1478
      %v1511 = vadd.f32 %v1332, %v1481
      %v1512 = vadd.f32 %v1333, %v1486
      %v1513 = vadd.f32 %v1334, %v1489
      %v1514 = vadd.f32 %v1335, %v1494
      %v1515 = vadd.f32 %v1336, %v1497
      %v1516 = vpack.c.bf16 %v1130, %v1128
      %s1517 = scalar_lea.vmem %s1, 448
      %v1518 = vld [vmem:[%s1517] sm:$0xf]
      %v1519 = vld [vmem:[%s1517 + $0x4] sm:$0xf]
      %v1520 = vld [vmem:[%s1517 + $0x8] sm:$0xf]
      %v1521 = vld [vmem:[%s1517 + $0xc] sm:$0xf]
      %v1522 = vld [vmem:[%s1517 + $0x10] sm:$0xf]
      %v1523 = vld [vmem:[%s1517 + $0x14] sm:$0xf]
      %v1524 = vld [vmem:[%s1517 + $0x18] sm:$0xf]
      %v1525 = vld [vmem:[%s1517 + $0x1c] sm:$0xf]
      %v1526 = vld [vmem:[%s1517 + $0x20] sm:$0xf]
      %v1527 = vld [vmem:[%s1517 + $0x24] sm:$0xf]
      %v1528 = vld [vmem:[%s1517 + $0x28] sm:$0xf]
      %v1529 = vld [vmem:[%s1517 + $0x2c] sm:$0xf]
      %v1530 = vld [vmem:[%s1517 + $0x30] sm:$0xf]
      %v1531 = vld [vmem:[%s1517 + $0x34] sm:$0xf]
      %v1532 = vld [vmem:[%s1517 + $0x38] sm:$0xf]
      %v1533 = vld [vmem:[%s1517 + $0x3c] sm:$0xf]
      %v1550 = vunpack.c.l.b16 %v1518
      %v1551 = vunpack.c.l.b16 %v1519
      %v1552 = vunpack.c.l.b16 %v1520
      %v1553 = vunpack.c.l.b16 %v1521
      %v1554 = vunpack.c.l.b16 %v1522
      %v1555 = vunpack.c.l.b16 %v1523
      %v1556 = vunpack.c.l.b16 %v1524
      %v1557 = vunpack.c.l.b16 %v1525
      %v1558 = vunpack.c.l.b16 %v1526
      %v1559 = vunpack.c.l.b16 %v1527
      %v1560 = vunpack.c.l.b16 %v1528
      %v1561 = vunpack.c.l.b16 %v1529
      %v1562 = vunpack.c.l.b16 %v1530
      %v1563 = vunpack.c.l.b16 %v1531
      %v1564 = vunpack.c.l.b16 %v1532
      %v1565 = vunpack.c.l.b16 %v1533
      %v1566 = vpack.c.b16 %v1551, %v1550
      %v1567 = vpack.c.b16 %v1553, %v1552
      %v1568 = vpack.c.b16 %v1555, %v1554
      %v1569 = vpack.c.b16 %v1557, %v1556
      %v1570 = vpack.c.b16 %v1559, %v1558
      %v1571 = vpack.c.b16 %v1561, %v1560
      %v1572 = vpack.c.b16 %v1563, %v1562
      %v1573 = vpack.c.b16 %v1565, %v1564
      %1582 = vmatprep.subr.bf16.mxu0 0
      %1583 = vmatpush1.bf16.msra.mxu0 %v1566
      %1584 = vmatprep.subr.bf16.mxu0 0
      %1585 = vmatpush1.bf16.msra.mxu0 %v1567
      %1586 = vmatprep.subr.bf16.mxu0 0
      %1587 = vmatpush1.bf16.msra.mxu0 %v1568
      %1588 = vmatprep.subr.bf16.mxu0 0
      %1589 = vmatpush1.bf16.msra.mxu0 %v1569
      %1590 = vmatprep.subr.bf16.mxu0 0
      %1591 = vmatpush1.bf16.msra.mxu0 %v1570
      %1592 = vmatprep.subr.bf16.mxu0 0
      %1593 = vmatpush1.bf16.msra.mxu0 %v1571
      %1594 = vmatprep.subr.bf16.mxu0 0
      %1595 = vmatpush1.bf16.msra.mxu0 %v1572
      %1596 = vmatprep.subr.bf16.mxu0 0
      %1597 = vmatpush1.bf16.msra.mxu0 %v1573
      %1598 = vmatprep.subr.bf16.mxu0 0
      %1599 = vmatpush1.bf16.msra.mxu0 0
      %1600 = vmatprep.subr.bf16.mxu0 0
      %1601 = vmatpush1.bf16.msra.mxu0 0
      %1602 = vmatprep.subr.bf16.mxu0 0
      %1603 = vmatpush1.bf16.msra.mxu0 0
      %1604 = vmatprep.subr.bf16.mxu0 0
      %1605 = vmatpush1.bf16.msra.mxu0 0
      %1606 = vmatprep.subr.bf16.mxu0 0
      %1607 = vmatpush1.bf16.msra.mxu0 0
      %1608 = vmatprep.subr.bf16.mxu0 0
      %1609 = vmatpush1.bf16.msra.mxu0 0
      %1610 = vmatprep.subr.bf16.mxu0 0
      %1611 = vmatpush1.bf16.msra.mxu0 0
      %1612 = vmatprep.subr.bf16.mxu0 0
      %1613 = vmatpush1.bf16.msra.mxu0 0
      %1614 = vmatprep.mubr.bf16.mxu0 0
      %1615 = vmatmul.mubr.bf16.gmra.mrb[0].mxu0 %v1153
      %v1616 = vpop.f32.mrb[0].mxu0
      %v1617 = vadd.f32 0.0, %v1616
      %v1618 = vpop.f32.mrb[0].mxu0
      %v1619 = vpop.f32.mrb[0].mxu0
      %v1620 = vadd.f32 0.0, %v1619
      %v1621 = vpop.f32.mrb[0].mxu0
      %1622 = vmatprep.mubr.bf16.mxu0 0
      %1623 = vmatmul.mubr.bf16.gmra.mrb[0].mxu0 %v1154
      %v1624 = vpop.f32.mrb[0].mxu0
      %v1625 = vadd.f32 0.0, %v1624
      %v1626 = vpop.f32.mrb[0].mxu0
      %v1627 = vpop.f32.mrb[0].mxu0
      %v1628 = vadd.f32 0.0, %v1627
      %v1629 = vpop.f32.mrb[0].mxu0
      %1630 = vmatprep.mubr.bf16.mxu0 0
      %1631 = vmatmul.mubr.bf16.gmra.mrb[0].mxu0 %v1155
      %v1632 = vpop.f32.mrb[0].mxu0
      %v1633 = vadd.f32 0.0, %v1632
      %v1634 = vpop.f32.mrb[0].mxu0
      %v1635 = vpop.f32.mrb[0].mxu0
      %v1636 = vadd.f32 0.0, %v1635
      %v1637 = vpop.f32.mrb[0].mxu0
      %1638 = vmatprep.mubr.bf16.mxu0 0
      %1639 = vmatmul.mubr.bf16.gmra.mrb[0].mxu0 %v1156
      %v1640 = vpop.f32.mrb[0].mxu0
      %v1641 = vadd.f32 0.0, %v1640
      %v1642 = vpop.f32.mrb[0].mxu0
      %v1643 = vpop.f32.mrb[0].mxu0
      %v1644 = vadd.f32 0.0, %v1643
      %v1645 = vpop.f32.mrb[0].mxu0
      %1646 = vmatprep.mubr.bf16.mxu0 0
      %1647 = vmatmul.mubr.bf16.gmra.mrb[0].mxu0 %v1157
      %v1648 = vpop.f32.mrb[0].mxu0
      %v1649 = vadd.f32 0.0, %v1648
      %v1650 = vpop.f32.mrb[0].mxu0
      %v1651 = vpop.f32.mrb[0].mxu0
      %v1652 = vadd.f32 0.0, %v1651
      %v1653 = vpop.f32.mrb[0].mxu0
      %1654 = vmatprep.mubr.bf16.mxu0 0
      %1655 = vmatmul.mubr.bf16.gmra.mrb[0].mxu0 %v1158
      %v1656 = vpop.f32.mrb[0].mxu0
      %v1657 = vadd.f32 0.0, %v1656
      %v1658 = vpop.f32.mrb[0].mxu0
      %v1659 = vpop.f32.mrb[0].mxu0
      %v1660 = vadd.f32 0.0, %v1659
      %v1661 = vpop.f32.mrb[0].mxu0
      %1662 = vmatprep.mubr.bf16.mxu0 0
      %1663 = vmatmul.mubr.bf16.gmra.mrb[0].mxu0 %v1337
      %v1664 = vpop.f32.mrb[0].mxu0
      %v1665 = vadd.f32 0.0, %v1664
      %v1666 = vpop.f32.mrb[0].mxu0
      %v1667 = vpop.f32.mrb[0].mxu0
      %v1668 = vadd.f32 0.0, %v1667
      %v1669 = vpop.f32.mrb[0].mxu0
      %1670 = vmatprep.mubr.bf16.mxu0 0
      %1671 = vmatmul.mubr.bf16.gmra.mrb[0].mxu0 %v1516
      %v1672 = vpop.f32.mrb[0].mxu0
      %v1673 = vadd.f32 0.0, %v1672
      %v1674 = vpop.f32.mrb[0].mxu0
      %v1675 = vpop.f32.mrb[0].mxu0
      %v1676 = vadd.f32 0.0, %v1675
      %v1677 = vpop.f32.mrb[0].mxu0
      %1678 = vdwg.mxu0
      %v1679 = vadd.f32 %v1500, %v1617
      %v1680 = vadd.f32 %v1501, %v1620
      %v1681 = vadd.f32 %v1502, %v1625
      %v1682 = vadd.f32 %v1503, %v1628
      %v1683 = vadd.f32 %v1504, %v1633
      %v1684 = vadd.f32 %v1505, %v1636
      %v1685 = vadd.f32 %v1506, %v1641
      %v1686 = vadd.f32 %v1507, %v1644
      %v1687 = vadd.f32 %v1508, %v1649
      %v1688 = vadd.f32 %v1509, %v1652
      %v1689 = vadd.f32 %v1510, %v1657
      %v1690 = vadd.f32 %v1511, %v1660
      %v1691 = vadd.f32 %v1512, %v1665
      %v1692 = vadd.f32 %v1513, %v1668
      %v1693 = vadd.f32 %v1514, %v1673
      %v1694 = vadd.f32 %v1515, %v1676
      %vm1695 = vcmask 1045504
      %v1696 = vrot.slane %v529, 2
      %v1697 = vrot.slane %v471, 2
      %v1698 = vsel %vm1695, %v1696, %v1697
      %v1699 = vrot.slane %v539, 2
      %v1700 = vsel %vm1695, %v1697, %v1699
      %v1701 = vrot.slane %v530, 2
      %v1702 = vrot.slane %v474, 2
      %v1703 = vsel %vm1695, %v1701, %v1702
      %v1704 = vrot.slane %v540, 2
      %v1705 = vsel %vm1695, %v1702, %v1704
      %v1706 = vrot.slane %v531, 2
      %v1707 = vrot.slane %v477, 2
      %v1708 = vsel %vm1695, %v1706, %v1707
      %v1709 = vrot.slane %v541, 2
      %v1710 = vsel %vm1695, %v1707, %v1709
      %v1711 = vrot.slane %v532, 2
      %v1712 = vrot.slane %v480, 2
      %v1713 = vsel %vm1695, %v1711, %v1712
      %v1714 = vrot.slane %v542, 2
      %v1715 = vsel %vm1695, %v1712, %v1714
      %v1716 = vrot.slane %v533, 2
      %v1717 = vrot.slane %v483, 2
      %v1718 = vsel %vm1695, %v1716, %v1717
      %v1719 = vrot.slane %v543, 2
      %v1720 = vsel %vm1695, %v1717, %v1719
      %v1721 = vrot.slane %v534, 2
      %v1722 = vrot.slane %v486, 2
      %v1723 = vsel %vm1695, %v1721, %v1722
      %v1724 = vrot.slane %v544, 2
      %v1725 = vsel %vm1695, %v1722, %v1724
      %v1726 = vrot.slane %v535, 2
      %v1727 = vrot.slane %v489, 2
      %v1728 = vsel %vm1695, %v1726, %v1727
      %v1729 = vrot.slane %v545, 2
      %v1730 = vsel %vm1695, %v1727, %v1729
      %v1731 = vrot.slane %v536, 2
      %v1732 = vrot.slane %v492, 2
      %v1733 = vsel %vm1695, %v1731, %v1732
      %v1734 = vrot.slane %v546, 2
      %v1735 = vsel %vm1695, %v1732, %v1734
      %v1736 = vrot.slane %v537, 2
      %v1737 = vrot.slane %v495, 2
      %v1738 = vsel %vm1695, %v1736, %v1737
      %v1739 = vrot.slane %v547, 2
      %v1740 = vsel %vm1695, %v1737, %v1739
      %v1741 = vrot.slane %v538, 2
      %v1742 = vrot.slane %v498, 2
      %v1743 = vsel %vm1695, %v1741, %v1742
      %v1744 = vrot.slane %v548, 2
      %v1745 = vsel %vm1695, %v1742, %v1744
      %v1766 = vpack.c.bf16 %v1700, %v1698
      %v1767 = vpack.c.bf16 %v1705, %v1703
      %v1768 = vpack.c.bf16 %v1710, %v1708
      %v1769 = vpack.c.bf16 %v1715, %v1713
      %v1770 = vpack.c.bf16 %v1720, %v1718
      %v1771 = vpack.c.bf16 %v1725, %v1723
      %v1772 = vpack.c.bf16 %v1730, %v1728
      %v1773 = vpack.c.bf16 %v1735, %v1733
      %s1774 = scalar_lea.vmem %s1, 128
      %v1775 = vld [vmem:[%s1774] sm:$0xf]
      %v1776 = vld [vmem:[%s1774 + $0x4] sm:$0xf]
      %v1777 = vld [vmem:[%s1774 + $0x8] sm:$0xf]
      %v1778 = vld [vmem:[%s1774 + $0xc] sm:$0xf]
      %v1779 = vld [vmem:[%s1774 + $0x10] sm:$0xf]
      %v1780 = vld [vmem:[%s1774 + $0x14] sm:$0xf]
      %v1781 = vld [vmem:[%s1774 + $0x18] sm:$0xf]
      %v1782 = vld [vmem:[%s1774 + $0x1c] sm:$0xf]
      %v1783 = vld [vmem:[%s1774 + $0x20] sm:$0xf]
      %v1784 = vld [vmem:[%s1774 + $0x24] sm:$0xf]
      %v1785 = vld [vmem:[%s1774 + $0x28] sm:$0xf]
      %v1786 = vld [vmem:[%s1774 + $0x2c] sm:$0xf]
      %v1787 = vld [vmem:[%s1774 + $0x30] sm:$0xf]
      %v1788 = vld [vmem:[%s1774 + $0x34] sm:$0xf]
      %v1789 = vld [vmem:[%s1774 + $0x38] sm:$0xf]
      %v1790 = vld [vmem:[%s1774 + $0x3c] sm:$0xf]
      %v1807 = vunpack.c.l.b16 %v1775
      %v1808 = vunpack.c.l.b16 %v1776
      %v1809 = vunpack.c.l.b16 %v1777
      %v1810 = vunpack.c.l.b16 %v1778
      %v1811 = vunpack.c.l.b16 %v1779
      %v1812 = vunpack.c.l.b16 %v1780
      %v1813 = vunpack.c.l.b16 %v1781
      %v1814 = vunpack.c.l.b16 %v1782
      %v1815 = vunpack.c.l.b16 %v1783
      %v1816 = vunpack.c.l.b16 %v1784
      %v1817 = vunpack.c.l.b16 %v1785
      %v1818 = vunpack.c.l.b16 %v1786
      %v1819 = vunpack.c.l.b16 %v1787
      %v1820 = vunpack.c.l.b16 %v1788
      %v1821 = vunpack.c.l.b16 %v1789
      %v1822 = vunpack.c.l.b16 %v1790
      %v1823 = vpack.c.b16 %v1808, %v1807
      %v1824 = vpack.c.b16 %v1810, %v1809
      %v1825 = vpack.c.b16 %v1812, %v1811
      %v1826 = vpack.c.b16 %v1814, %v1813
      %v1827 = vpack.c.b16 %v1816, %v1815
      %v1828 = vpack.c.b16 %v1818, %v1817
      %v1829 = vpack.c.b16 %v1820, %v1819
      %v1830 = vpack.c.b16 %v1822, %v1821
      %1839 = vmatprep.subr.bf16.mxu0 0
      %1840 = vmatpush1.bf16.msra.mxu0 %v1823
      %1841 = vmatprep.subr.bf16.mxu0 0
      %1842 = vmatpush1.bf16.msra.mxu0 %v1824
      %1843 = vmatprep.subr.bf16.mxu0 0
      %1844 = vmatpush1.bf16.msra.mxu0 %v1825
      %1845 = vmatprep.subr.bf16.mxu0 0
      %1846 = vmatpush1.bf16.msra.mxu0 %v1826
      %1847 = vmatprep.subr.bf16.mxu0 0
      %1848 = vmatpush1.bf16.msra.mxu0 %v1827
      %1849 = vmatprep.subr.bf16.mxu0 0
      %1850 = vmatpush1.bf16.msra.mxu0 %v1828
      %1851 = vmatprep.subr.bf16.mxu0 0
      %1852 = vmatpush1.bf16.msra.mxu0 %v1829
      %1853 = vmatprep.subr.bf16.mxu0 0
      %1854 = vmatpush1.bf16.msra.mxu0 %v1830
      %1855 = vmatprep.subr.bf16.mxu0 0
      %1856 = vmatpush1.bf16.msra.mxu0 0
      %1857 = vmatprep.subr.bf16.mxu0 0
      %1858 = vmatpush1.bf16.msra.mxu0 0
      %1859 = vmatprep.subr.bf16.mxu0 0
      %1860 = vmatpush1.bf16.msra.mxu0 0
      %1861 = vmatprep.subr.bf16.mxu0 0
      %1862 = vmatpush1.bf16.msra.mxu0 0
      %1863 = vmatprep.subr.bf16.mxu0 0
      %1864 = vmatpush1.bf16.msra.mxu0 0
      %1865 = vmatprep.subr.bf16.mxu0 0
      %1866 = vmatpush1.bf16.msra.mxu0 0
      %1867 = vmatprep.subr.bf16.mxu0 0
      %1868 = vmatpush1.bf16.msra.mxu0 0
      %1869 = vmatprep.subr.bf16.mxu0 0
      %1870 = vmatpush1.bf16.msra.mxu0 0
      %1871 = vmatprep.mubr.bf16.mxu0 0
      %1872 = vmatmul.mubr.bf16.gmra.mrb[0].mxu0 %v1766
      %v1873 = vpop.f32.mrb[0].mxu0
      %v1874 = vadd.f32 0.0, %v1873
      %v1875 = vpop.f32.mrb[0].mxu0
      %v1876 = vpop.f32.mrb[0].mxu0
      %v1877 = vadd.f32 0.0, %v1876
      %v1878 = vpop.f32.mrb[0].mxu0
      %1879 = vmatprep.mubr.bf16.mxu0 0
      %1880 = vmatmul.mubr.bf16.gmra.mrb[0].mxu0 %v1767
      %v1881 = vpop.f32.mrb[0].mxu0
      %v1882 = vadd.f32 0.0, %v1881
      %v1883 = vpop.f32.mrb[0].mxu0
      %v1884 = vpop.f32.mrb[0].mxu0
      %v1885 = vadd.f32 0.0, %v1884
      %v1886 = vpop.f32.mrb[0].mxu0
      %1887 = vmatprep.mubr.bf16.mxu0 0
      %1888 = vmatmul.mubr.bf16.gmra.mrb[0].mxu0 %v1768
      %v1889 = vpop.f32.mrb[0].mxu0
      %v1890 = vadd.f32 0.0, %v1889
      %v1891 = vpop.f32.mrb[0].mxu0
      %v1892 = vpop.f32.mrb[0].mxu0
      %v1893 = vadd.f32 0.0, %v1892
      %v1894 = vpop.f32.mrb[0].mxu0
      %1895 = vmatprep.mubr.bf16.mxu0 0
      %1896 = vmatmul.mubr.bf16.gmra.mrb[0].mxu0 %v1769
      %v1897 = vpop.f32.mrb[0].mxu0
      %v1898 = vadd.f32 0.0, %v1897
      %v1899 = vpop.f32.mrb[0].mxu0
      %v1900 = vpop.f32.mrb[0].mxu0
      %v1901 = vadd.f32 0.0, %v1900
      %v1902 = vpop.f32.mrb[0].mxu0
      %1903 = vmatprep.mubr.bf16.mxu0 0
      %1904 = vmatmul.mubr.bf16.gmra.mrb[0].mxu0 %v1770
      %v1905 = vpop.f32.mrb[0].mxu0
      %v1906 = vadd.f32 0.0, %v1905
      %v1907 = vpop.f32.mrb[0].mxu0
      %v1908 = vpop.f32.mrb[0].mxu0
      %v1909 = vadd.f32 0.0, %v1908
      %v1910 = vpop.f32.mrb[0].mxu0
      %1911 = vmatprep.mubr.bf16.mxu0 0
      %1912 = vmatmul.mubr.bf16.gmra.mrb[0].mxu0 %v1771
      %v1913 = vpop.f32.mrb[0].mxu0
      %v1914 = vadd.f32 0.0, %v1913
      %v1915 = vpop.f32.mrb[0].mxu0
      %v1916 = vpop.f32.mrb[0].mxu0
      %v1917 = vadd.f32 0.0, %v1916
      %v1918 = vpop.f32.mrb[0].mxu0
      %1919 = vmatprep.mubr.bf16.mxu0 0
      %1920 = vmatmul.mubr.bf16.gmra.mrb[0].mxu0 %v1772
      %v1921 = vpop.f32.mrb[0].mxu0
      %v1922 = vadd.f32 0.0, %v1921
      %v1923 = vpop.f32.mrb[0].mxu0
      %v1924 = vpop.f32.mrb[0].mxu0
      %v1925 = vadd.f32 0.0, %v1924
      %v1926 = vpop.f32.mrb[0].mxu0
      %1927 = vmatprep.mubr.bf16.mxu0 0
      %1928 = vmatmul.mubr.bf16.gmra.mrb[0].mxu0 %v1773
      %v1929 = vpop.f32.mrb[0].mxu0
      %v1930 = vadd.f32 0.0, %v1929
      %v1931 = vpop.f32.mrb[0].mxu0
      %v1932 = vpop.f32.mrb[0].mxu0
      %v1933 = vadd.f32 0.0, %v1932
      %v1934 = vpop.f32.mrb[0].mxu0
      %1935 = vdwg.mxu0
      %v1936 = vadd.f32 %v1679, %v1874
      %v1937 = vadd.f32 %v1680, %v1877
      %v1938 = vadd.f32 %v1681, %v1882
      %v1939 = vadd.f32 %v1682, %v1885
      %v1940 = vadd.f32 %v1683, %v1890
      %v1941 = vadd.f32 %v1684, %v1893
      %v1942 = vadd.f32 %v1685, %v1898
      %v1943 = vadd.f32 %v1686, %v1901
      %v1944 = vadd.f32 %v1687, %v1906
      %v1945 = vadd.f32 %v1688, %v1909
      %v1946 = vadd.f32 %v1689, %v1914
      %v1947 = vadd.f32 %v1690, %v1917
      %v1948 = vadd.f32 %v1691, %v1922
      %v1949 = vadd.f32 %v1692, %v1925
      %v1950 = vadd.f32 %v1693, %v1930
      %v1951 = vadd.f32 %v1694, %v1933
      %v1952 = vpack.c.bf16 %v1740, %v1738
      %s1953 = scalar_lea.vmem %s1, 320
      %v1954 = vld [vmem:[%s1953] sm:$0xf]
      %v1955 = vld [vmem:[%s1953 + $0x4] sm:$0xf]
      %v1956 = vld [vmem:[%s1953 + $0x8] sm:$0xf]
      %v1957 = vld [vmem:[%s1953 + $0xc] sm:$0xf]
      %v1958 = vld [vmem:[%s1953 + $0x10] sm:$0xf]
      %v1959 = vld [vmem:[%s1953 + $0x14] sm:$0xf]
      %v1960 = vld [vmem:[%s1953 + $0x18] sm:$0xf]
      %v1961 = vld [vmem:[%s1953 + $0x1c] sm:$0xf]
      %v1962 = vld [vmem:[%s1953 + $0x20] sm:$0xf]
      %v1963 = vld [vmem:[%s1953 + $0x24] sm:$0xf]
      %v1964 = vld [vmem:[%s1953 + $0x28] sm:$0xf]
      %v1965 = vld [vmem:[%s1953 + $0x2c] sm:$0xf]
      %v1966 = vld [vmem:[%s1953 + $0x30] sm:$0xf]
      %v1967 = vld [vmem:[%s1953 + $0x34] sm:$0xf]
      %v1968 = vld [vmem:[%s1953 + $0x38] sm:$0xf]
      %v1969 = vld [vmem:[%s1953 + $0x3c] sm:$0xf]
      %v1986 = vunpack.c.l.b16 %v1954
      %v1987 = vunpack.c.l.b16 %v1955
      %v1988 = vunpack.c.l.b16 %v1956
      %v1989 = vunpack.c.l.b16 %v1957
      %v1990 = vunpack.c.l.b16 %v1958
      %v1991 = vunpack.c.l.b16 %v1959
      %v1992 = vunpack.c.l.b16 %v1960
      %v1993 = vunpack.c.l.b16 %v1961
      %v1994 = vunpack.c.l.b16 %v1962
      %v1995 = vunpack.c.l.b16 %v1963
      %v1996 = vunpack.c.l.b16 %v1964
      %v1997 = vunpack.c.l.b16 %v1965
      %v1998 = vunpack.c.l.b16 %v1966
      %v1999 = vunpack.c.l.b16 %v1967
      %v2000 = vunpack.c.l.b16 %v1968
      %v2001 = vunpack.c.l.b16 %v1969
      %v2002 = vpack.c.b16 %v1987, %v1986
      %v2003 = vpack.c.b16 %v1989, %v1988
      %v2004 = vpack.c.b16 %v1991, %v1990
      %v2005 = vpack.c.b16 %v1993, %v1992
      %v2006 = vpack.c.b16 %v1995, %v1994
      %v2007 = vpack.c.b16 %v1997, %v1996
      %v2008 = vpack.c.b16 %v1999, %v1998
      %v2009 = vpack.c.b16 %v2001, %v2000
      %2018 = vmatprep.subr.bf16.mxu0 0
      %2019 = vmatpush1.bf16.msra.mxu0 %v2002
      %2020 = vmatprep.subr.bf16.mxu0 0
      %2021 = vmatpush1.bf16.msra.mxu0 %v2003
      %2022 = vmatprep.subr.bf16.mxu0 0
      %2023 = vmatpush1.bf16.msra.mxu0 %v2004
      %2024 = vmatprep.subr.bf16.mxu0 0
      %2025 = vmatpush1.bf16.msra.mxu0 %v2005
      %2026 = vmatprep.subr.bf16.mxu0 0
      %2027 = vmatpush1.bf16.msra.mxu0 %v2006
      %2028 = vmatprep.subr.bf16.mxu0 0
      %2029 = vmatpush1.bf16.msra.mxu0 %v2007
      %2030 = vmatprep.subr.bf16.mxu0 0
      %2031 = vmatpush1.bf16.msra.mxu0 %v2008
      %2032 = vmatprep.subr.bf16.mxu0 0
      %2033 = vmatpush1.bf16.msra.mxu0 %v2009
      %2034 = vmatprep.subr.bf16.mxu0 0
      %2035 = vmatpush1.bf16.msra.mxu0 0
      %2036 = vmatprep.subr.bf16.mxu0 0
      %2037 = vmatpush1.bf16.msra.mxu0 0
      %2038 = vmatprep.subr.bf16.mxu0 0
      %2039 = vmatpush1.bf16.msra.mxu0 0
      %2040 = vmatprep.subr.bf16.mxu0 0
      %2041 = vmatpush1.bf16.msra.mxu0 0
      %2042 = vmatprep.subr.bf16.mxu0 0
      %2043 = vmatpush1.bf16.msra.mxu0 0
      %2044 = vmatprep.subr.bf16.mxu0 0
      %2045 = vmatpush1.bf16.msra.mxu0 0
      %2046 = vmatprep.subr.bf16.mxu0 0
      %2047 = vmatpush1.bf16.msra.mxu0 0
      %2048 = vmatprep.subr.bf16.mxu0 0
      %2049 = vmatpush1.bf16.msra.mxu0 0
      %2050 = vmatprep.mubr.bf16.mxu0 0
      %2051 = vmatmul.mubr.bf16.gmra.mrb[0].mxu0 %v1767
      %v2052 = vpop.f32.mrb[0].mxu0
      %v2053 = vadd.f32 0.0, %v2052
      %v2054 = vpop.f32.mrb[0].mxu0
      %v2055 = vpop.f32.mrb[0].mxu0
      %v2056 = vadd.f32 0.0, %v2055
      %v2057 = vpop.f32.mrb[0].mxu0
      %2058 = vmatprep.mubr.bf16.mxu0 0
      %2059 = vmatmul.mubr.bf16.gmra.mrb[0].mxu0 %v1768
      %v2060 = vpop.f32.mrb[0].mxu0
      %v2061 = vadd.f32 0.0, %v2060
      %v2062 = vpop.f32.mrb[0].mxu0
      %v2063 = vpop.f32.mrb[0].mxu0
      %v2064 = vadd.f32 0.0, %v2063
      %v2065 = vpop.f32.mrb[0].mxu0
      %2066 = vmatprep.mubr.bf16.mxu0 0
      %2067 = vmatmul.mubr.bf16.gmra.mrb[0].mxu0 %v1769
      %v2068 = vpop.f32.mrb[0].mxu0
      %v2069 = vadd.f32 0.0, %v2068
      %v2070 = vpop.f32.mrb[0].mxu0
      %v2071 = vpop.f32.mrb[0].mxu0
      %v2072 = vadd.f32 0.0, %v2071
      %v2073 = vpop.f32.mrb[0].mxu0
      %2074 = vmatprep.mubr.bf16.mxu0 0
      %2075 = vmatmul.mubr.bf16.gmra.mrb[0].mxu0 %v1770
      %v2076 = vpop.f32.mrb[0].mxu0
      %v2077 = vadd.f32 0.0, %v2076
      %v2078 = vpop.f32.mrb[0].mxu0
      %v2079 = vpop.f32.mrb[0].mxu0
      %v2080 = vadd.f32 0.0, %v2079
      %v2081 = vpop.f32.mrb[0].mxu0
      %2082 = vmatprep.mubr.bf16.mxu0 0
      %2083 = vmatmul.mubr.bf16.gmra.mrb[0].mxu0 %v1771
      %v2084 = vpop.f32.mrb[0].mxu0
      %v2085 = vadd.f32 0.0, %v2084
      %v2086 = vpop.f32.mrb[0].mxu0
      %v2087 = vpop.f32.mrb[0].mxu0
      %v2088 = vadd.f32 0.0, %v2087
      %v2089 = vpop.f32.mrb[0].mxu0
      %2090 = vmatprep.mubr.bf16.mxu0 0
      %2091 = vmatmul.mubr.bf16.gmra.mrb[0].mxu0 %v1772
      %v2092 = vpop.f32.mrb[0].mxu0
      %v2093 = vadd.f32 0.0, %v2092
      %v2094 = vpop.f32.mrb[0].mxu0
      %v2095 = vpop.f32.mrb[0].mxu0
      %v2096 = vadd.f32 0.0, %v2095
      %v2097 = vpop.f32.mrb[0].mxu0
      %2098 = vmatprep.mubr.bf16.mxu0 0
      %2099 = vmatmul.mubr.bf16.gmra.mrb[0].mxu0 %v1773
      %v2100 = vpop.f32.mrb[0].mxu0
      %v2101 = vadd.f32 0.0, %v2100
      %v2102 = vpop.f32.mrb[0].mxu0
      %v2103 = vpop.f32.mrb[0].mxu0
      %v2104 = vadd.f32 0.0, %v2103
      %v2105 = vpop.f32.mrb[0].mxu0
      %2106 = vmatprep.mubr.bf16.mxu0 0
      %2107 = vmatmul.mubr.bf16.gmra.mrb[0].mxu0 %v1952
      %v2108 = vpop.f32.mrb[0].mxu0
      %v2109 = vadd.f32 0.0, %v2108
      %v2110 = vpop.f32.mrb[0].mxu0
      %v2111 = vpop.f32.mrb[0].mxu0
      %v2112 = vadd.f32 0.0, %v2111
      %v2113 = vpop.f32.mrb[0].mxu0
      %2114 = vdwg.mxu0
      %v2115 = vadd.f32 %v1936, %v2053
      %v2116 = vadd.f32 %v1937, %v2056
      %v2117 = vadd.f32 %v1938, %v2061
      %v2118 = vadd.f32 %v1939, %v2064
      %v2119 = vadd.f32 %v1940, %v2069
      %v2120 = vadd.f32 %v1941, %v2072
      %v2121 = vadd.f32 %v1942, %v2077
      %v2122 = vadd.f32 %v1943, %v2080
      %v2123 = vadd.f32 %v1944, %v2085
      %v2124 = vadd.f32 %v1945, %v2088
      %v2125 = vadd.f32 %v1946, %v2093
      %v2126 = vadd.f32 %v1947, %v2096
      %v2127 = vadd.f32 %v1948, %v2101
      %v2128 = vadd.f32 %v1949, %v2104
      %v2129 = vadd.f32 %v1950, %v2109
      %v2130 = vadd.f32 %v1951, %v2112
      %v2131 = vpack.c.bf16 %v1745, %v1743
      %s2132 = scalar_lea.vmem %s1, 512
      %v2133 = vld [vmem:[%s2132] sm:$0xf]
      %v2134 = vld [vmem:[%s2132 + $0x4] sm:$0xf]
      %v2135 = vld [vmem:[%s2132 + $0x8] sm:$0xf]
      %v2136 = vld [vmem:[%s2132 + $0xc] sm:$0xf]
      %v2137 = vld [vmem:[%s2132 + $0x10] sm:$0xf]
      %v2138 = vld [vmem:[%s2132 + $0x14] sm:$0xf]
      %v2139 = vld [vmem:[%s2132 + $0x18] sm:$0xf]
      %v2140 = vld [vmem:[%s2132 + $0x1c] sm:$0xf]
      %v2141 = vld [vmem:[%s2132 + $0x20] sm:$0xf]
      %v2142 = vld [vmem:[%s2132 + $0x24] sm:$0xf]
      %v2143 = vld [vmem:[%s2132 + $0x28] sm:$0xf]
      %v2144 = vld [vmem:[%s2132 + $0x2c] sm:$0xf]
      %v2145 = vld [vmem:[%s2132 + $0x30] sm:$0xf]
      %v2146 = vld [vmem:[%s2132 + $0x34] sm:$0xf]
      %v2147 = vld [vmem:[%s2132 + $0x38] sm:$0xf]
      %v2148 = vld [vmem:[%s2132 + $0x3c] sm:$0xf]
      %v2165 = vunpack.c.l.b16 %v2133
      %v2166 = vunpack.c.l.b16 %v2134
      %v2167 = vunpack.c.l.b16 %v2135
      %v2168 = vunpack.c.l.b16 %v2136
      %v2169 = vunpack.c.l.b16 %v2137
      %v2170 = vunpack.c.l.b16 %v2138
      %v2171 = vunpack.c.l.b16 %v2139
      %v2172 = vunpack.c.l.b16 %v2140
      %v2173 = vunpack.c.l.b16 %v2141
      %v2174 = vunpack.c.l.b16 %v2142
      %v2175 = vunpack.c.l.b16 %v2143
      %v2176 = vunpack.c.l.b16 %v2144
      %v2177 = vunpack.c.l.b16 %v2145
      %v2178 = vunpack.c.l.b16 %v2146
      %v2179 = vunpack.c.l.b16 %v2147
      %v2180 = vunpack.c.l.b16 %v2148
      %v2181 = vpack.c.b16 %v2166, %v2165
      %v2182 = vpack.c.b16 %v2168, %v2167
      %v2183 = vpack.c.b16 %v2170, %v2169
      %v2184 = vpack.c.b16 %v2172, %v2171
      %v2185 = vpack.c.b16 %v2174, %v2173
      %v2186 = vpack.c.b16 %v2176, %v2175
      %v2187 = vpack.c.b16 %v2178, %v2177
      %v2188 = vpack.c.b16 %v2180, %v2179
      %2197 = vmatprep.subr.bf16.mxu0 0
      %2198 = vmatpush1.bf16.msra.mxu0 %v2181
      %2199 = vmatprep.subr.bf16.mxu0 0
      %2200 = vmatpush1.bf16.msra.mxu0 %v2182
      %2201 = vmatprep.subr.bf16.mxu0 0
      %2202 = vmatpush1.bf16.msra.mxu0 %v2183
      %2203 = vmatprep.subr.bf16.mxu0 0
      %2204 = vmatpush1.bf16.msra.mxu0 %v2184
      %2205 = vmatprep.subr.bf16.mxu0 0
      %2206 = vmatpush1.bf16.msra.mxu0 %v2185
      %2207 = vmatprep.subr.bf16.mxu0 0
      %2208 = vmatpush1.bf16.msra.mxu0 %v2186
      %2209 = vmatprep.subr.bf16.mxu0 0
      %2210 = vmatpush1.bf16.msra.mxu0 %v2187
      %2211 = vmatprep.subr.bf16.mxu0 0
      %2212 = vmatpush1.bf16.msra.mxu0 %v2188
      %2213 = vmatprep.subr.bf16.mxu0 0
      %2214 = vmatpush1.bf16.msra.mxu0 0
      %2215 = vmatprep.subr.bf16.mxu0 0
      %2216 = vmatpush1.bf16.msra.mxu0 0
      %2217 = vmatprep.subr.bf16.mxu0 0
      %2218 = vmatpush1.bf16.msra.mxu0 0
      %2219 = vmatprep.subr.bf16.mxu0 0
      %2220 = vmatpush1.bf16.msra.mxu0 0
      %2221 = vmatprep.subr.bf16.mxu0 0
      %2222 = vmatpush1.bf16.msra.mxu0 0
      %2223 = vmatprep.subr.bf16.mxu0 0
      %2224 = vmatpush1.bf16.msra.mxu0 0
      %2225 = vmatprep.subr.bf16.mxu0 0
      %2226 = vmatpush1.bf16.msra.mxu0 0
      %2227 = vmatprep.subr.bf16.mxu0 0
      %2228 = vmatpush1.bf16.msra.mxu0 0
      %2229 = vmatprep.mubr.bf16.mxu0 0
      %2230 = vmatmul.mubr.bf16.gmra.mrb[0].mxu0 %v1768
      %v2231 = vpop.f32.mrb[0].mxu0
      %v2232 = vadd.f32 0.0, %v2231
      %v2233 = vpop.f32.mrb[0].mxu0
      %v2234 = vpop.f32.mrb[0].mxu0
      %v2235 = vadd.f32 0.0, %v2234
      %v2236 = vpop.f32.mrb[0].mxu0
      %2237 = vmatprep.mubr.bf16.mxu0 0
      %2238 = vmatmul.mubr.bf16.gmra.mrb[0].mxu0 %v1769
      %v2239 = vpop.f32.mrb[0].mxu0
      %v2240 = vadd.f32 0.0, %v2239
      %v2241 = vpop.f32.mrb[0].mxu0
      %v2242 = vpop.f32.mrb[0].mxu0
      %v2243 = vadd.f32 0.0, %v2242
      %v2244 = vpop.f32.mrb[0].mxu0
      %2245 = vmatprep.mubr.bf16.mxu0 0
      %2246 = vmatmul.mubr.bf16.gmra.mrb[0].mxu0 %v1770
      %v2247 = vpop.f32.mrb[0].mxu0
      %v2248 = vadd.f32 0.0, %v2247
      %v2249 = vpop.f32.mrb[0].mxu0
      %v2250 = vpop.f32.mrb[0].mxu0
      %v2251 = vadd.f32 0.0, %v2250
      %v2252 = vpop.f32.mrb[0].mxu0
      %2253 = vmatprep.mubr.bf16.mxu0 0
      %2254 = vmatmul.mubr.bf16.gmra.mrb[0].mxu0 %v1771
      %v2255 = vpop.f32.mrb[0].mxu0
      %v2256 = vadd.f32 0.0, %v2255
      %v2257 = vpop.f32.mrb[0].mxu0
      %v2258 = vpop.f32.mrb[0].mxu0
      %v2259 = vadd.f32 0.0, %v2258
      %v2260 = vpop.f32.mrb[0].mxu0
      %2261 = vmatprep.mubr.bf16.mxu0 0
      %2262 = vmatmul.mubr.bf16.gmra.mrb[0].mxu0 %v1772
      %v2263 = vpop.f32.mrb[0].mxu0
      %v2264 = vadd.f32 0.0, %v2263
      %v2265 = vpop.f32.mrb[0].mxu0
      %v2266 = vpop.f32.mrb[0].mxu0
      %v2267 = vadd.f32 0.0, %v2266
      %v2268 = vpop.f32.mrb[0].mxu0
      %2269 = vmatprep.mubr.bf16.mxu0 0
      %2270 = vmatmul.mubr.bf16.gmra.mrb[0].mxu0 %v1773
      %v2271 = vpop.f32.mrb[0].mxu0
      %v2272 = vadd.f32 0.0, %v2271
      %v2273 = vpop.f32.mrb[0].mxu0
      %v2274 = vpop.f32.mrb[0].mxu0
      %v2275 = vadd.f32 0.0, %v2274
      %v2276 = vpop.f32.mrb[0].mxu0
      %2277 = vmatprep.mubr.bf16.mxu0 0
      %2278 = vmatmul.mubr.bf16.gmra.mrb[0].mxu0 %v1952
      %v2279 = vpop.f32.mrb[0].mxu0
      %v2280 = vadd.f32 0.0, %v2279
      %v2281 = vpop.f32.mrb[0].mxu0
      %v2282 = vpop.f32.mrb[0].mxu0
      %v2283 = vadd.f32 0.0, %v2282
      %v2284 = vpop.f32.mrb[0].mxu0
      %2285 = vmatprep.mubr.bf16.mxu0 0
      %2286 = vmatmul.mubr.bf16.gmra.mrb[0].mxu0 %v2131
      %v2287 = vpop.f32.mrb[0].mxu0
      %v2288 = vadd.f32 0.0, %v2287
      %v2289 = vpop.f32.mrb[0].mxu0
      %v2290 = vpop.f32.mrb[0].mxu0
      %v2291 = vadd.f32 0.0, %v2290
      %v2292 = vpop.f32.mrb[0].mxu0
      %2293 = vdwg.mxu0
      %v2294 = vadd.f32 %v2115, %v2232
      %v2295 = vadd.f32 %v2116, %v2235
      %v2296 = vadd.f32 %v2117, %v2240
      %v2297 = vadd.f32 %v2118, %v2243
      %v2298 = vadd.f32 %v2119, %v2248
      %v2299 = vadd.f32 %v2120, %v2251
      %v2300 = vadd.f32 %v2121, %v2256
      %v2301 = vadd.f32 %v2122, %v2259
      %v2302 = vadd.f32 %v2123, %v2264
      %v2303 = vadd.f32 %v2124, %v2267
      %v2304 = vadd.f32 %v2125, %v2272
      %v2305 = vadd.f32 %v2126, %v2275
      %v2306 = vadd.f32 %v2127, %v2280
      %v2307 = vadd.f32 %v2128, %v2283
      %v2308 = vadd.f32 %v2129, %v2288
      %v2309 = vadd.f32 %v2130, %v2291
      %v2310 = vpack.c.bf16 %v2295, %v2294
      %v2311 = vpack.c.bf16 %v2297, %v2296
      %v2312 = vpack.c.bf16 %v2299, %v2298
      %v2313 = vpack.c.bf16 %v2301, %v2300
      %v2314 = vpack.c.bf16 %v2303, %v2302
      %v2315 = vpack.c.bf16 %v2305, %v2304
      %v2316 = vpack.c.bf16 %v2307, %v2306
      %v2317 = vpack.c.bf16 %v2309, %v2308
      %v2326 = vunpack.c.l.b16 %v2310
      %v2327 = vunpack.c.h.b16 %v2310
      %v2328 = vunpack.c.l.b16 %v2311
      %v2329 = vunpack.c.h.b16 %v2311
      %v2330 = vunpack.c.l.b16 %v2312
      %v2331 = vunpack.c.h.b16 %v2312
      %v2332 = vunpack.c.l.b16 %v2313
      %v2333 = vunpack.c.h.b16 %v2313
      %v2334 = vunpack.c.l.b16 %v2314
      %v2335 = vunpack.c.h.b16 %v2314
      %v2336 = vunpack.c.l.b16 %v2315
      %v2337 = vunpack.c.h.b16 %v2315
      %v2338 = vunpack.c.l.b16 %v2316
      %v2339 = vunpack.c.h.b16 %v2316
      %v2340 = vunpack.c.l.b16 %v2317
      %v2341 = vunpack.c.h.b16 %v2317
      %v2342 = vpack.c.b16 %v2326, %v2326
      %v2343 = vpack.c.b16 %v2327, %v2327
      %v2344 = vpack.c.b16 %v2328, %v2328
      %v2345 = vpack.c.b16 %v2329, %v2329
      %v2346 = vpack.c.b16 %v2330, %v2330
      %v2347 = vpack.c.b16 %v2331, %v2331
      %v2348 = vpack.c.b16 %v2332, %v2332
      %v2349 = vpack.c.b16 %v2333, %v2333
      %v2350 = vpack.c.b16 %v2334, %v2334
      %v2351 = vpack.c.b16 %v2335, %v2335
      %v2352 = vpack.c.b16 %v2336, %v2336
      %v2353 = vpack.c.b16 %v2337, %v2337
      %v2354 = vpack.c.b16 %v2338, %v2338
      %v2355 = vpack.c.b16 %v2339, %v2339
      %v2356 = vpack.c.b16 %v2340, %v2340
      %v2357 = vpack.c.b16 %v2341, %v2341
      %2374 = vst [vmem:[%s288] sm:$0xf] %v2342
      %2375 = vst [vmem:[%s288 + $0x4] sm:$0xf] %v2343
      %2376 = vst [vmem:[%s288 + $0x8] sm:$0xf] %v2344
      %2377 = vst [vmem:[%s288 + $0xc] sm:$0xf] %v2345
      %2378 = vst [vmem:[%s288 + $0x10] sm:$0xf] %v2346
      %2379 = vst [vmem:[%s288 + $0x14] sm:$0xf] %v2347
      %2380 = vst [vmem:[%s288 + $0x18] sm:$0xf] %v2348
      %2381 = vst [vmem:[%s288 + $0x1c] sm:$0xf] %v2349
      %2382 = vst [vmem:[%s288 + $0x20] sm:$0xf] %v2350
      %2383 = vst [vmem:[%s288 + $0x24] sm:$0xf] %v2351
      %2384 = vst [vmem:[%s288 + $0x28] sm:$0xf] %v2352
      %2385 = vst [vmem:[%s288 + $0x2c] sm:$0xf] %v2353
      %2386 = vst [vmem:[%s288 + $0x30] sm:$0xf] %v2354
      %2387 = vst [vmem:[%s288 + $0x34] sm:$0xf] %v2355
      %2388 = vst [vmem:[%s288 + $0x38] sm:$0xf] %v2356
      %2389 = vst [vmem:[%s288 + $0x3c] sm:$0xf] %v2357
      %v2390 = vadd.f32 %v2294, %v2295
      %v2391 = vadd.f32 %v2390, %v2296
      %v2392 = vadd.f32 %v2391, %v2297
      %v2393 = vadd.f32 %v2392, %v2298
      %v2394 = vadd.f32 %v2393, %v2299
      %v2395 = vadd.f32 %v2394, %v2300
      %v2396 = vadd.f32 %v2395, %v2301
      %v2397 = vadd.f32 %v2396, %v2302
      %v2398 = vadd.f32 %v2397, %v2303
      %v2399 = vadd.f32 %v2398, %v2304
      %v2400 = vadd.f32 %v2399, %v2305
      %v2401 = vadd.f32 %v2400, %v2306
      %v2402 = vadd.f32 %v2401, %v2307
      %v2403 = vadd.f32 %v2402, %v2308
      %v2404 = vadd.f32 %v2403, %v2309
      %v2405 = vrot.slane %v2404, 4
      %v2406 = vadd.f32 %v2404, %v2405
      %v2407 = vrot.slane %v2406, 2
      %v2408 = vadd.f32 %v2406, %v2407
      %v2409 = vrot.slane %v2408, 1
      %v2410 = vadd.f32 %v2408, %v2409
      %v2411 = vmul.f32 %v2294, %v2294
      %v2412 = vmul.f32 %v2295, %v2295
      %v2413 = vmul.f32 %v2296, %v2296
      %v2414 = vmul.f32 %v2297, %v2297
      %v2415 = vmul.f32 %v2298, %v2298
      %v2416 = vmul.f32 %v2299, %v2299
      %v2417 = vmul.f32 %v2300, %v2300
      %v2418 = vmul.f32 %v2301, %v2301
      %v2419 = vmul.f32 %v2302, %v2302
      %v2420 = vmul.f32 %v2303, %v2303
      %v2421 = vmul.f32 %v2304, %v2304
      %v2422 = vmul.f32 %v2305, %v2305
      %v2423 = vmul.f32 %v2306, %v2306
      %v2424 = vmul.f32 %v2307, %v2307
      %v2425 = vmul.f32 %v2308, %v2308
      %v2426 = vmul.f32 %v2309, %v2309
      %v2427 = vadd.f32 %v2411, %v2412
      %v2428 = vadd.f32 %v2427, %v2413
      %v2429 = vadd.f32 %v2428, %v2414
      %v2430 = vadd.f32 %v2429, %v2415
      %v2431 = vadd.f32 %v2430, %v2416
      %v2432 = vadd.f32 %v2431, %v2417
      %v2433 = vadd.f32 %v2432, %v2418
      %v2434 = vadd.f32 %v2433, %v2419
      %v2435 = vadd.f32 %v2434, %v2420
      %v2436 = vadd.f32 %v2435, %v2421
      %v2437 = vadd.f32 %v2436, %v2422
      %v2438 = vadd.f32 %v2437, %v2423
      %v2439 = vadd.f32 %v2438, %v2424
      %v2440 = vadd.f32 %v2439, %v2425
      %v2441 = vadd.f32 %v2440, %v2426
      %v2442 = vrot.slane %v2441, 4
      %v2443 = vadd.f32 %v2441, %v2442
      %v2444 = vrot.slane %v2443, 2
      %v2445 = vadd.f32 %v2443, %v2444
      %v2446 = vrot.slane %v2445, 1
      %v2447 = vadd.f32 %v2445, %v2446
      %v2448 = vsel %vm468, %v2410, %v2447
      %2449 = vst [vmem:[%s297] sm:$0x3] %v2448
      %s2450 = smul.u32 8, %s23
      %p2451 = scmp.lt.s32.totalorder %s22, 1
      %s2452 = scalar_select %p2451, %s22, 1
      %p2453 = scmp.lt.s32.totalorder %s2450, 15
      %s2454 = scalar_select %p2453, %s2450, 15
      %s2455 = smul.addr %s2454, 2
      %s2456 = smul.addr %s2452, 32
      %s2457 = sadd.s32 %s2455, %s2456
      %s2458 = smul.addr %s2457, 4
      %s2459 = scalar_lea.vmem %s5, %s2458
      %p2460 = scmp.lt.s32.totalorder %s22, 1
      %s2461 = scalar_select %p2460, %s22, 1
      %p2462 = scmp.lt.s32.totalorder %s23, 1
      %s2463 = scalar_select %p2462, %s23, 1
      %s2464 = smul.addr %s2461, 2
      %s2465 = sadd.s32 %s2463, %s2464
      %s2466 = smul.addr %s2465, 2
      %s2467 = scalar_lea.vmem %s6, %s2466
      // Predicated region
      $region41: #{deeplab_decoder_forward.6} parent=39 // pred_check
        %p2468 = pneg %p160
      $region42: #{deeplab_decoder_forward.6} parent=39 // pred_check_branch
        %2470 = sbr.rel (%p2468) target = $region44
      $region43: #{deeplab_decoder_forward.6} parent=39 // pred_region
        %s2471 = smul.u32 8, %s23
      $region44: #{deeplab_decoder_forward.6} parent=39 // pred_fallthru
        _
      // Predicated region
      $region45: #{deeplab_decoder_forward.6} parent=39 // pred_check
        %p2472 = pneg %p188
      $region46: #{deeplab_decoder_forward.6} parent=39 // pred_check_branch
        %2474 = sbr.rel (%p2472) target = $region48
      $region47: #{deeplab_decoder_forward.6} parent=39 // pred_region
        _
      $region48: #{deeplab_decoder_forward.6} parent=39 // pred_fallthru
        _
    $region40: #{deeplab_decoder_forward.6} parent=5 // pred_fallthru
      _
    %p2475 = scmp.le.s32.totalorder 2, %s13
    // Predicated region
    $region49: #{deeplab_decoder_forward.6} parent=5 // pred_check
      %p2476 = pneg %p2475
    $region50: #{deeplab_decoder_forward.6} parent=5 // pred_check_branch
      %2478 = sbr.rel (%p2476) target = $region52
    $region51: #{deeplab_decoder_forward.6} parent=5 // pred_region
      %s2479 = ssub.s32 %s13, 2
      // Predicated region
      $region53: #{deeplab_decoder_forward.6} parent=51 // pred_check
        %p2480 = pneg %p166
      $region54: #{deeplab_decoder_forward.6} parent=51 // pred_check_branch
        %2482 = sbr.rel (%p2480) target = $region56
      $region55: #{deeplab_decoder_forward.6} parent=51 // pred_region
        %s2483 = smul.u32 8, %s25
        %p2484 = scmp.lt.s32.totalorder %s24, 1
        %s2485 = scalar_select %p2484, %s24, 1
        %p2486 = scmp.lt.s32.totalorder %s2483, 15
        %s2487 = scalar_select %p2486, %s2483, 15
        %s2488 = smul.addr %s2487, 2
        %s2489 = smul.addr %s2485, 32
        %s2490 = sadd.s32 %s2488, %s2489
        %s2491 = smul.addr %s2490, 4
        %s2492 = scalar_lea.vmem %s5, %s2491
      $region56: #{deeplab_decoder_forward.6} parent=51 // pred_fallthru
        _
      // Predicated region
      $region57: #{deeplab_decoder_forward.6} parent=51 // pred_check
        %p2493 = pneg %p194
      $region58: #{deeplab_decoder_forward.6} parent=51 // pred_check_branch
        %2495 = sbr.rel (%p2493) target = $region60
      $region59: #{deeplab_decoder_forward.6} parent=51 // pred_region
        %p2496 = scmp.lt.s32.totalorder %s24, 1
        %s2497 = scalar_select %p2496, %s24, 1
        %p2498 = scmp.lt.s32.totalorder %s25, 1
        %s2499 = scalar_select %p2498, %s25, 1
        %s2500 = smul.addr %s2497, 2
        %s2501 = sadd.s32 %s2499, %s2500
        %s2502 = smul.addr %s2501, 2
        %s2503 = scalar_lea.vmem %s6, %s2502
      $region60: #{deeplab_decoder_forward.6} parent=51 // pred_fallthru
        _
    $region52: #{deeplab_decoder_forward.6} parent=5 // pred_fallthru
      _
  $region6: #{deeplab_decoder_forward.6} parent=0 // loop_footer
    %s17 = sadd.s32 1, %s13
  $region7: #{deeplab_decoder_forward.6} parent=0 // loop_footer_branch
    %12 = sbr.rel target = $region3
  $region8: #{deeplab_decoder_forward.6} parent=0 // loop_exit
    _

</llo_original>
